<compile_context>
chip_gen: v7x
topology: tpu7x:2x2x1
jax: 0.10.0
libtpu: 0.0.40
codegen_flags: <defaults>
</compile_context>

<pallas_src>
import numpy as np
import jax
import jax.numpy as jnp
from jax import lax
from jax.experimental import pallas as pl
from jax.experimental.pallas import tpu as pltpu

# ----------------------------- configuration --------------------------------
HEIGHT = 16
WIDTH = 16
SEQUENCE_LEN = 8
LABEL_LEN = 6
BATCH = 2

C_IN = 1
C_OUT = 32
K = 3
OH = HEIGHT - (K - 1)
OW = WIDTH - (K - 1)
OWC = OW * C_OUT               # lane-dense conv-feature row width (ow*C_OUT + c)
HID = 32                       # lstm_hidden_size
FEAT = C_OUT * OH * OW         # LSTM input size (32*23*23 in the full model)
FC_IN = HID * SEQUENCE_LEN
FC_OUT = LABEL_LEN * HEIGHT * WIDTH

N_FRAMES = BATCH * SEQUENCE_LEN
# 2 grid steps (one per v7x TC); at full scale N_FRAMES=144 -> FB=72 (big MXU M dim).
FB = N_FRAMES // 2
assert N_FRAMES % FB == 0

FC_TILE = 1024                 # output-lane tile (multiple of 128); see header for full scale
FC_NT = -(-FC_OUT // FC_TILE)  # cdiv
FC_OUT_PAD = FC_NT * FC_TILE


# ------------------ kernel A: conv3x3 + ReLU + input projection --------------
def conv_proj_kernel(x_ref, wband_ref, wih_ref, bconv_ref, blstm_ref, o_ref):
    """Fused conv + ReLU + LSTM input projection for a block of FB frames.

    x_ref:     (FB, H, W)             f32   input frames
    wband_ref: (K, W, OW*C_OUT)       bf16  banded conv weights (one band per ki)
    wih_ref:   (OH, OW*C_OUT, 4*HID)  bf16  row-sliced LSTM input-projection weights
    bconv_ref: (1, OW*C_OUT)          f32   conv bias tiled over ow
    blstm_ref: (1, 4*HID)             f32   combined LSTM bias (b_ih + b_hh)
    o_ref:     (FB, 4*HID)            f32   gate pre-activations (w/o recurrent term)
    """
    fb = x_ref.shape[0]
    xb = x_ref[...].astype(jnp.bfloat16)                       # cast once per grid step
    bconv = jnp.broadcast_to(bconv_ref[...], (fb, OWC))        # hoisted out of oh loop
    blstm = blstm_ref[...]                                     # hoisted
    g_acc = jnp.zeros((fb, 4 * HID), jnp.float32)
    for oh in range(OH):
        # conv output row `oh` for all FB frames, lane layout [ow*C_OUT + c]
        acc = jnp.zeros((fb, OWC), jnp.float32)
        for ki in range(K):                                    # 3-term banded matmul
            acc = acc + jnp.dot(xb[:, oh + ki, :], wband_ref[ki],
                                preferred_element_type=jnp.float32)
        feat = jnp.maximum(acc + bconv, 0.0)                   # ReLU, (fb, OWC)
        # project this conv row into the gates (contracts the OW*C_OUT lane axis)
        g_acc = g_acc + jnp.dot(feat.astype(jnp.bfloat16), wih_ref[oh],
                                preferred_element_type=jnp.float32)
    o_ref[...] = g_acc + blstm


def conv_proj(frames, w_band, wih_r, b_conv_t, b_lstm):
    n = frames.shape[0]
    return pl.pallas_call(
        conv_proj_kernel,
        out_shape=jax.ShapeDtypeStruct((n, 4 * HID), jnp.float32),
        grid=(n // FB,),
        in_specs=[
            pl.BlockSpec((FB, HEIGHT, WIDTH), lambda i: (i, 0, 0)),
            pl.BlockSpec((K, WIDTH, OWC), lambda i: (0, 0, 0)),
            pl.BlockSpec((OH, OWC, 4 * HID), lambda i: (0, 0, 0)),
            pl.BlockSpec((1, OWC), lambda i: (0, 0)),
            pl.BlockSpec((1, 4 * HID), lambda i: (0, 0)),
        ],
        out_specs=pl.BlockSpec((FB, 4 * HID), lambda i: (i, 0)),
        compiler_params=pltpu.CompilerParams(dimension_semantics=("parallel",)),
    )(frames, w_band, wih_r, b_conv_t, b_lstm)


# --------------------- kernel B: LSTM recurrence (per batch row) --------------
def lstm_recurrence_kernel(gp_ref, whh_ref, o_ref):
    """Whole LSTM recurrence for one batch row (batch dim squeezed by BlockSpec).

    gp_ref:  (S, 4*HID)   f32   precomputed x_t @ Wih^T + (b_ih + b_hh)
    whh_ref: (HID, 4*HID) bf16
    o_ref:   (S, HID)     f32   hidden states
    """
    seq = gp_ref.shape[0]
    whh = whh_ref[...]                                   # hoisted (tiny, bf16)
    h = jnp.zeros((1, HID), jnp.float32)
    c = jnp.zeros((1, HID), jnp.float32)
    for t in range(seq):                                 # fully unrolled, static indices
        g = gp_ref[t:t + 1, :] + jnp.dot(h.astype(jnp.bfloat16), whh,
                                         preferred_element_type=jnp.float32)  # (1, 4H)
        sg = 0.5 * (jnp.tanh(0.5 * g) + 1.0)   # sigmoid over the full 128-lane vreg (EUP)
        i_g = sg[:, 0 * HID:1 * HID]
        f_g = sg[:, 1 * HID:2 * HID]
        o_g = sg[:, 3 * HID:4 * HID]
        g_g = jnp.tanh(g[:, 2 * HID:3 * HID])
        c = f_g * c + i_g * g_g
        h = o_g * jnp.tanh(c)
        o_ref[t:t + 1, :] = h


def lstm_recurrence(gp, whh_t):
    bsz, s, _ = gp.shape
    return pl.pallas_call(
        lstm_recurrence_kernel,
        out_shape=jax.ShapeDtypeStruct((bsz, s, HID), jnp.float32),
        grid=(bsz,),
        in_specs=[
            pl.BlockSpec((None, s, 4 * HID), lambda b: (b, 0, 0)),
            pl.BlockSpec((HID, 4 * HID), lambda b: (0, 0)),
        ],
        out_specs=pl.BlockSpec((None, s, HID), lambda b: (b, 0, 0)),
        compiler_params=pltpu.CompilerParams(dimension_semantics=("parallel",)),
    )(gp, whh_t)


# --------------------------- kernel C: fc layer --------------------------------
def fc_kernel(x_ref, w_ref, b_ref, o_ref):
    # w_ref: (1, FC_IN, FC_TILE) bf16 — tile-contiguous in HBM => one big contiguous DMA
    o_ref[...] = (jnp.dot(x_ref[...].astype(jnp.bfloat16), w_ref[0],
                          preferred_element_type=jnp.float32) + b_ref[...])


def fc_layer(x, w_tiles, b_pad):
    bsz = x.shape[0]
    nt = w_tiles.shape[0]
    return pl.pallas_call(
        fc_kernel,
        out_shape=jax.ShapeDtypeStruct((bsz, nt * FC_TILE), jnp.float32),
        grid=(nt,),
        in_specs=[
            pl.BlockSpec((bsz, FC_IN), lambda j: (0, 0)),
            pl.BlockSpec((1, FC_IN, FC_TILE), lambda j: (j, 0, 0)),
            pl.BlockSpec((1, FC_TILE), lambda j: (0, j)),
        ],
        out_specs=pl.BlockSpec((bsz, FC_TILE), lambda j: (0, j)),
        compiler_params=pltpu.CompilerParams(dimension_semantics=("parallel",)),
    )(x, w_tiles, b_pad)


# ------------------------------ full forward ---------------------------------
@jax.jit
def cnn_lstm_forward(x, params):
    bsz, seq, _, hh, ww = x.shape
    frames = x.reshape(bsz * seq, hh, ww)                                   # C_IN == 1
    gates_pre = conv_proj(frames, params["w_band"], params["wih_r"],
                          params["b_conv_t"], params["b_lstm"])             # (B*S, 4H)
    gp = gates_pre.reshape(bsz, seq, 4 * HID)                # free reshape (batch-major)
    h_bs = lstm_recurrence(gp, params["whh_t"])                             # (B, S, HID)
    h_flat = h_bs.reshape(bsz, FC_IN)                                       # free reshape
    out = fc_layer(h_flat, params["w_fc_tiles"], params["b_fc_pad"])  # (B, FC_OUT_PAD)
    return out[:, :FC_OUT].reshape(bsz, LABEL_LEN, HEIGHT, WIDTH)


# -------------------------- pure-JAX reference -------------------------------
def reference_forward(x, p):
    bsz, seq, c, hh, ww = x.shape
    frames = x.reshape(bsz * seq, c, hh, ww)
    conv = lax.conv_general_dilated(frames, p["w_conv"], (1, 1), "VALID",
                                    dimension_numbers=("NCHW", "OIHW", "NCHW"))
    conv = jnp.maximum(conv + p["b_conv"][None, :, None, None], 0.0)
    feats = conv.reshape(bsz, seq, -1)
    wih, whh = p["w_ih"], p["w_hh"]
    bias = p["b_ih"] + p["b_hh"]

    def step(carry, x_t):
        h, cst = carry
        gates = x_t @ wih.T + h @ whh.T + bias
        i, f, g, o = jnp.split(gates, 4, axis=-1)
        i = jax.nn.sigmoid(i)
        f = jax.nn.sigmoid(f)
        g = jnp.tanh(g)
        o = jax.nn.sigmoid(o)
        cst = f * cst + i * g
        h = o * jnp.tanh(cst)
        return (h, cst), h

    h0 = jnp.zeros((bsz, HID), jnp.float32)
    c0 = jnp.zeros((bsz, HID), jnp.float32)
    _, hs = lax.scan(step, (h0, c0), jnp.transpose(feats, (1, 0, 2)))
    hs = jnp.transpose(hs, (1, 0, 2)).reshape(bsz, -1)
    out = hs @ p["w_fc"].T + p["b_fc"]
    return out.reshape(bsz, LABEL_LEN, HEIGHT, WIDTH)


# ------------------------------- parameters ----------------------------------
def init_params(key):
    ks = jax.random.split(key, 8)
    w_conv = jax.random.normal(ks[0], (C_OUT, C_IN, K, K), jnp.float32) * 0.3
    b_conv = jax.random.normal(ks[1], (C_OUT,), jnp.float32) * 0.1
    w_ih = jax.random.normal(ks[2], (4 * HID, FEAT), jnp.float32) / np.sqrt(FEAT)
    w_hh = jax.random.normal(ks[3], (4 * HID, HID), jnp.float32) / np.sqrt(HID)
    b_ih = jax.random.normal(ks[4], (4 * HID,), jnp.float32) * 0.05
    b_hh = jax.random.normal(ks[5], (4 * HID,), jnp.float32) * 0.05
    w_fc = jax.random.normal(ks[6], (FC_OUT, FC_IN), jnp.float32) / np.sqrt(FC_IN)
    b_fc = jax.random.normal(ks[7], (FC_OUT,), jnp.float32) * 0.05

    torch_params = dict(w_conv=w_conv, b_conv=b_conv, w_ih=w_ih, w_hh=w_hh,
                        b_ih=b_ih, b_hh=b_hh, w_fc=w_fc, b_fc=b_fc)

    # ---- kernel-layout parameters (all layout permutations folded in here) ----
    # Banded conv weights: w_band[ki, w, ow*C_OUT + c] = w_conv[c, 0, ki, w - ow]
    wc = np.asarray(w_conv)
    w_band = np.zeros((K, WIDTH, OWC), np.float32)
    for ki in range(K):
        for ow in range(OW):
            for kj in range(K):
                w_band[ki, ow + kj, ow * C_OUT:(ow + 1) * C_OUT] = wc[:, 0, ki, kj]
    b_conv_t = np.tile(np.asarray(b_conv), OW).reshape(1, OWC)

    # Row-sliced input projection:
    #   wih_r[oh, ow*C_OUT + c, g] = w_ih[g, c*OH*OW + oh*OW + ow]
    # (folds PyTorch's channel-first flatten order into the weight, so no activation
    #  transpose is needed anywhere).
    wih4 = np.asarray(w_ih).reshape(4 * HID, C_OUT, OH, OW)
    wih_r = np.transpose(wih4, (2, 3, 1, 0)).reshape(OH, OWC, 4 * HID)

    # FC weight: pad FC_OUT to a multiple of FC_TILE, then re-order to a
    # tile-contiguous (NT, FC_IN, FC_TILE) bf16 layout so each grid step streams one
    # contiguous slab from HBM (the FC is bandwidth-bound at full scale).
    w_fc_pad = np.zeros((FC_IN, FC_OUT_PAD), np.float32)
    w_fc_pad[:, :FC_OUT] = np.asarray(w_fc).T
    w_fc_tiles = w_fc_pad.reshape(FC_IN, FC_NT, FC_TILE).transpose(1, 0, 2)
    b_fc_pad = np.zeros((1, FC_OUT_PAD), np.float32)
    b_fc_pad[0, :FC_OUT] = np.asarray(b_fc)

    kernel_params = dict(
        w_band=jnp.asarray(w_band).astype(jnp.bfloat16),          # (K, W, OWC)        bf16
        b_conv_t=jnp.asarray(b_conv_t),                           # (1, OWC)           f32
        wih_r=jnp.asarray(wih_r).astype(jnp.bfloat16),            # (OH, OWC, 4H)      bf16
        b_lstm=(b_ih + b_hh).reshape(1, 4 * HID),                 # (1, 4H)            f32
        whh_t=jnp.transpose(w_hh, (1, 0)).astype(jnp.bfloat16),   # (HID, 4H)          bf16
        w_fc_tiles=jnp.asarray(w_fc_tiles).astype(jnp.bfloat16),  # (NT, FC_IN, TILE)  bf16
        b_fc_pad=jnp.asarray(b_fc_pad),                           # (1, FC_OUT_PAD)    f32
    )
    return torch_params, kernel_params


if __name__ == "__main__":
    key = jax.random.PRNGKey(0)
    k_in, k_par = jax.random.split(key)
    x = jax.random.normal(k_in, (BATCH, SEQUENCE_LEN, C_IN, HEIGHT, WIDTH), jnp.float32)
    torch_params, kernel_params = init_params(k_par)

    out = jax.block_until_ready(cnn_lstm_forward(x, kernel_params))
    assert out.shape == (BATCH, LABEL_LEN, HEIGHT, WIDTH), out.shape

    ref = jax.block_until_ready(reference_forward(x, torch_params))
    np.testing.assert_allclose(np.asarray(out), np.asarray(ref), rtol=2e-2, atol=2e-2)

    print("KERNEL_OK")
</pallas_src>

<mosaic_0001>
module attributes {stable_mosaic.version = 11 : i64} {
  func.func @fc_kernel(%arg0: i32, %arg1: memref<2x256xf32, #tpu.memory_space<vmem>>, %arg2: memref<1x256x1024xbf16, #tpu.memory_space<vmem>>, %arg3: memref<1x1024xf32, #tpu.memory_space<vmem>>, %arg4: memref<2x1024xf32, #tpu.memory_space<vmem>>) attributes {dimension_semantics = [#tpu.dimension_semantics<parallel>], iteration_bounds = array<i64: 2>, scalar_prefetch = 0 : i64, scratch_operands = 0 : i64, tpu.core_type = #tpu.core_type<tc>, window_params = [{pipeline_mode = #tpu.pipeline_mode<synchronous>, transform_indices = @transform_0, window_bounds = array<i64: 2, 256>}, {transform_indices = @transform_1, window_bounds = array<i64: 1, 256, 1024>}, {transform_indices = @transform_2, window_bounds = array<i64: 1, 1024>}, {transform_indices = @transform_3, window_bounds = array<i64: 2, 1024>}]} {
    %c0 = arith.constant 0 : index
    %c0_0 = arith.constant 0 : index
    %0 = vector.load %arg1[%c0, %c0_0] : memref<2x256xf32, #tpu.memory_space<vmem>>, vector<2x256xf32>
    %1 = arith.truncf %0 : vector<2x256xf32> to vector<2x256xbf16>
    %c0_1 = arith.constant 0 : index
    %c0_2 = arith.constant 0 : index
    %c0_3 = arith.constant 0 : index
    %2 = vector.load %arg2[%c0_1, %c0_2, %c0_3] : memref<1x256x1024xbf16, #tpu.memory_space<vmem>>, vector<1x256x1024xbf16>
    %3 = vector.shape_cast %2 : vector<1x256x1024xbf16> to vector<256x1024xbf16>
    %cst = arith.constant dense<0.000000e+00> : vector<2x1024xf32>
    %4 = tpu.matmul %1, %3, %cst {dimension_numbers = #tpu.dot_dimension_numbers<[1], [0], [0], [1], [0, 0, 1, 1], [], []>} : vector<2x256xbf16>, vector<256x1024xbf16>, vector<2x1024xf32> -> vector<2x1024xf32>
    %c0_4 = arith.constant 0 : index
    %c0_5 = arith.constant 0 : index
    %5 = vector.load %arg3[%c0_4, %c0_5] : memref<1x1024xf32, #tpu.memory_space<vmem>>, vector<1x1024xf32>
    %6 = vector.broadcast %5 : vector<1x1024xf32> to vector<2x1024xf32>
    %7 = arith.addf %4, %6 : vector<2x1024xf32>
    %c0_6 = arith.constant 0 : index
    %c0_7 = arith.constant 0 : index
    %8 = vector.load %arg4[%c0_6, %c0_7] : memref<2x1024xf32, #tpu.memory_space<vmem>>, vector<2x1024xf32>
    tpu.vector_store %arg4[%c0_6, %c0_7], %7 {strides = array<i32>} : memref<2x1024xf32, #tpu.memory_space<vmem>>, vector<2x1024xf32>,
    return
  }
  func.func @transform_0(%arg0: i32) -> (i32, i32) {
    %c0_i32 = arith.constant 0 : i32
    %c0_i32_0 = arith.constant 0 : i32
    %c0_i32_1 = arith.constant 0 : i32
    return %c0_i32, %c0_i32_0 : i32, i32
  }
  func.func @transform_1(%arg0: i32) -> (i32, i32, i32) {
    %c0_i32 = arith.constant 0 : i32
    %c0_i32_0 = arith.constant 0 : i32
    %c0_i32_1 = arith.constant 0 : i32
    return %arg0, %c0_i32, %c0_i32_0 : i32, i32, i32
  }
  func.func @transform_2(%arg0: i32) -> (i32, i32) {
    %c0_i32 = arith.constant 0 : i32
    %c0_i32_0 = arith.constant 0 : i32
    return %c0_i32, %arg0 : i32, i32
  }
  func.func @transform_3(%arg0: i32) -> (i32, i32) {
    %c0_i32 = arith.constant 0 : i32
    %c0_i32_0 = arith.constant 0 : i32
    return %c0_i32, %arg0 : i32, i32
  }
}

module attributes {stable_mosaic.version = 11 : i64} {
  func.func @conv_proj_kernel(%arg0: i32, %arg1: memref<8x16x16xf32, #tpu.memory_space<vmem>>, %arg2: memref<3x16x448xbf16, #tpu.memory_space<vmem>>, %arg3: memref<14x448x128xbf16, #tpu.memory_space<vmem>>, %arg4: memref<1x448xf32, #tpu.memory_space<vmem>>, %arg5: memref<1x128xf32, #tpu.memory_space<vmem>>, %arg6: memref<8x128xf32, #tpu.memory_space<vmem>>) attributes {dimension_semantics = [#tpu.dimension_semantics<parallel>], iteration_bounds = array<i64: 2>, scalar_prefetch = 0 : i64, scratch_operands = 0 : i64, tpu.core_type = #tpu.core_type<tc>, window_params = [{transform_indices = @transform_0, window_bounds = array<i64: 8, 16, 16>}, {pipeline_mode = #tpu.pipeline_mode<synchronous>, transform_indices = @transform_1, window_bounds = array<i64: 3, 16, 448>}, {pipeline_mode = #tpu.pipeline_mode<synchronous>, transform_indices = @transform_2, window_bounds = array<i64: 14, 448, 128>}, {pipeline_mode = #tpu.pipeline_mode<synchronous>, transform_indices = @transform_3, window_bounds = array<i64: 1, 448>}, {pipeline_mode = #tpu.pipeline_mode<synchronous>, transform_indices = @transform_4, window_bounds = array<i64: 1, 128>}, {transform_indices = @transform_5, window_bounds = array<i64: 8, 128>}]} {
    %c0 = arith.constant 0 : index
    %c0_0 = arith.constant 0 : index
    %c0_1 = arith.constant 0 : index
    %0 = vector.load %arg1[%c0, %c0_0, %c0_1] : memref<8x16x16xf32, #tpu.memory_space<vmem>>, vector<8x16x16xf32>
    %1 = arith.truncf %0 : vector<8x16x16xf32> to vector<8x16x16xbf16>
    %c0_2 = arith.constant 0 : index
    %c0_3 = arith.constant 0 : index
    %2 = vector.load %arg4[%c0_2, %c0_3] : memref<1x448xf32, #tpu.memory_space<vmem>>, vector<1x448xf32>
    %3 = vector.shape_cast %2 : vector<1x448xf32> to vector<1x448xf32>
    %4 = vector.broadcast %3 : vector<1x448xf32> to vector<8x448xf32>
    %c0_4 = arith.constant 0 : index
    %c0_5 = arith.constant 0 : index
    %5 = vector.load %arg5[%c0_4, %c0_5] : memref<1x128xf32, #tpu.memory_space<vmem>>, vector<1x128xf32>
    %cst = arith.constant 0.000000e+00 : f32
    %6 = vector.broadcast %cst : f32 to vector<8x128xf32>
    %cst_6 = arith.constant 0.000000e+00 : f32
    %7 = vector.broadcast %cst_6 : f32 to vector<8x448xf32>
    %8 = vector.extract_strided_slice %1 {offsets = [0, 0, 0], sizes = [8, 1, 16], strides = [1, 1, 1]} : vector<8x16x16xbf16> to vector<8x1x16xbf16>
    %9 = vector.shape_cast %8 : vector<8x1x16xbf16> to vector<8x16xbf16>
    %c0_7 = arith.constant 0 : index
    %c0_8 = arith.constant 0 : index
    %c0_9 = arith.constant 0 : index
    %10 = vector.load %arg2[%c0_7, %c0_8, %c0_9] : memref<3x16x448xbf16, #tpu.memory_space<vmem>>, vector<1x16x448xbf16>
    %11 = vector.shape_cast %10 : vector<1x16x448xbf16> to vector<16x448xbf16>
    %cst_10 = arith.constant dense<0.000000e+00> : vector<8x448xf32>
    %12 = tpu.matmul %9, %11, %cst_10 {dimension_numbers = #tpu.dot_dimension_numbers<[1], [0], [0], [1], [0, 0, 1, 1], [], []>} : vector<8x16xbf16>, vector<16x448xbf16>, vector<8x448xf32> -> vector<8x448xf32>
    %13 = arith.addf %7, %12 : vector<8x448xf32>
    %14 = vector.extract_strided_slice %1 {offsets = [0, 1, 0], sizes = [8, 1, 16], strides = [1, 1, 1]} : vector<8x16x16xbf16> to vector<8x1x16xbf16>
    %15 = vector.shape_cast %14 : vector<8x1x16xbf16> to vector<8x16xbf16>
    %c1 = arith.constant 1 : index
    %c0_11 = arith.constant 0 : index
    %c0_12 = arith.constant 0 : index
    %16 = vector.load %arg2[%c1, %c0_11, %c0_12] : memref<3x16x448xbf16, #tpu.memory_space<vmem>>, vector<1x16x448xbf16>
    %17 = vector.shape_cast %16 : vector<1x16x448xbf16> to vector<16x448xbf16>
    %cst_13 = arith.constant dense<0.000000e+00> : vector<8x448xf32>
    %18 = tpu.matmul %15, %17, %cst_13 {dimension_numbers = #tpu.dot_dimension_numbers<[1], [0], [0], [1], [0, 0, 1, 1], [], []>} : vector<8x16xbf16>, vector<16x448xbf16>, vector<8x448xf32> -> vector<8x448xf32>
    %19 = arith.addf %13, %18 : vector<8x448xf32>
    %20 = vector.extract_strided_slice %1 {offsets = [0, 2, 0], sizes = [8, 1, 16], strides = [1, 1, 1]} : vector<8x16x16xbf16> to vector<8x1x16xbf16>
    %21 = vector.shape_cast %20 : vector<8x1x16xbf16> to vector<8x16xbf16>
    %c2 = arith.constant 2 : index
    %c0_14 = arith.constant 0 : index
    %c0_15 = arith.constant 0 : index
    %22 = vector.load %arg2[%c2, %c0_14, %c0_15] : memref<3x16x448xbf16, #tpu.memory_space<vmem>>, vector<1x16x448xbf16>
    %23 = vector.shape_cast %22 : vector<1x16x448xbf16> to vector<16x448xbf16>
    %cst_16 = arith.constant dense<0.000000e+00> : vector<8x448xf32>
    %24 = tpu.matmul %21, %23, %cst_16 {dimension_numbers = #tpu.dot_dimension_numbers<[1], [0], [0], [1], [0, 0, 1, 1], [], []>} : vector<8x16xbf16>, vector<16x448xbf16>, vector<8x448xf32> -> vector<8x448xf32>
    %25 = arith.addf %19, %24 : vector<8x448xf32>
    %26 = arith.addf %25, %4 : vector<8x448xf32>
    %cst_17 = arith.constant 0.000000e+00 : f32
    %27 = vector.broadcast %cst_17 : f32 to vector<8x448xf32>
    %28 = arith.maximumf %26, %27 : vector<8x448xf32>
    %29 = arith.truncf %28 : vector<8x448xf32> to vector<8x448xbf16>
    %c0_18 = arith.constant 0 : index
    %c0_19 = arith.constant 0 : index
    %c0_20 = arith.constant 0 : index
    %30 = vector.load %arg3[%c0_18, %c0_19, %c0_20] : memref<14x448x128xbf16, #tpu.memory_space<vmem>>, vector<1x448x128xbf16>
    %31 = vector.shape_cast %30 : vector<1x448x128xbf16> to vector<448x128xbf16>
    %cst_21 = arith.constant dense<0.000000e+00> : vector<8x128xf32>
    %32 = tpu.matmul %29, %31, %cst_21 {dimension_numbers = #tpu.dot_dimension_numbers<[1], [0], [0], [1], [0, 0, 1, 1], [], []>} : vector<8x448xbf16>, vector<448x128xbf16>, vector<8x128xf32> -> vector<8x128xf32>
    %33 = arith.addf %6, %32 : vector<8x128xf32>
    %cst_22 = arith.constant 0.000000e+00 : f32
    %34 = vector.broadcast %cst_22 : f32 to vector<8x448xf32>
    %35 = vector.extract_strided_slice %1 {offsets = [0, 1, 0], sizes = [8, 1, 16], strides = [1, 1, 1]} : vector<8x16x16xbf16> to vector<8x1x16xbf16>
    %36 = vector.shape_cast %35 : vector<8x1x16xbf16> to vector<8x16xbf16>
    %c0_23 = arith.constant 0 : index
    %c0_24 = arith.constant 0 : index
    %c0_25 = arith.constant 0 : index
    %37 = vector.load %arg2[%c0_23, %c0_24, %c0_25] : memref<3x16x448xbf16, #tpu.memory_space<vmem>>, vector<1x16x448xbf16>
    %38 = vector.shape_cast %37 : vector<1x16x448xbf16> to vector<16x448xbf16>
    %cst_26 = arith.constant dense<0.000000e+00> : vector<8x448xf32>
    %39 = tpu.matmul %36, %38, %cst_26 {dimension_numbers = #tpu.dot_dimension_numbers<[1], [0], [0], [1], [0, 0, 1, 1], [], []>} : vector<8x16xbf16>, vector<16x448xbf16>, vector<8x448xf32> -> vector<8x448xf32>
    %40 = arith.addf %34, %39 : vector<8x448xf32>
    %41 = vector.extract_strided_slice %1 {offsets = [0, 2, 0], sizes = [8, 1, 16], strides = [1, 1, 1]} : vector<8x16x16xbf16> to vector<8x1x16xbf16>
    %42 = vector.shape_cast %41 : vector<8x1x16xbf16> to vector<8x16xbf16>
    %c1_27 = arith.constant 1 : index
    %c0_28 = arith.constant 0 : index
    %c0_29 = arith.constant 0 : index
    %43 = vector.load %arg2[%c1_27, %c0_28, %c0_29] : memref<3x16x448xbf16, #tpu.memory_space<vmem>>, vector<1x16x448xbf16>
    %44 = vector.shape_cast %43 : vector<1x16x448xbf16> to vector<16x448xbf16>
    %cst_30 = arith.constant dense<0.000000e+00> : vector<8x448xf32>
    %45 = tpu.matmul %42, %44, %cst_30 {dimension_numbers = #tpu.dot_dimension_numbers<[1], [0], [0], [1], [0, 0, 1, 1], [], []>} : vector<8x16xbf16>, vector<16x448xbf16>, vector<8x448xf32> -> vector<8x448xf32>
    %46 = arith.addf %40, %45 : vector<8x448xf32>
    %47 = vector.extract_strided_slice %1 {offsets = [0, 3, 0], sizes = [8, 1, 16], strides = [1, 1, 1]} : vector<8x16x16xbf16> to vector<8x1x16xbf16>
    %48 = vector.shape_cast %47 : vector<8x1x16xbf16> to vector<8x16xbf16>
    %c2_31 = arith.constant 2 : index
    %c0_32 = arith.constant 0 : index
    %c0_33 = arith.constant 0 : index
    %49 = vector.load %arg2[%c2_31, %c0_32, %c0_33] : memref<3x16x448xbf16, #tpu.memory_space<vmem>>, vector<1x16x448xbf16>
    %50 = vector.shape_cast %49 : vector<1x16x448xbf16> to vector<16x448xbf16>
    %cst_34 = arith.constant dense<0.000000e+00> : vector<8x448xf32>
    %51 = tpu.matmul %48, %50, %cst_34 {dimension_numbers = #tpu.dot_dimension_numbers<[1], [0], [0], [1], [0, 0, 1, 1], [], []>} : vector<8x16xbf16>, vector<16x448xbf16>, vector<8x448xf32> -> vector<8x448xf32>
    %52 = arith.addf %46, %51 : vector<8x448xf32>
    %53 = arith.addf %52, %4 : vector<8x448xf32>
    %cst_35 = arith.constant 0.000000e+00 : f32
    %54 = vector.broadcast %cst_35 : f32 to vector<8x448xf32>
    %55 = arith.maximumf %53, %54 : vector<8x448xf32>
    %56 = arith.truncf %55 : vector<8x448xf32> to vector<8x448xbf16>
    %c1_36 = arith.constant 1 : index
    %c0_37 = arith.constant 0 : index
    %c0_38 = arith.constant 0 : index
    %57 = vector.load %arg3[%c1_36, %c0_37, %c0_38] : memref<14x448x128xbf16, #tpu.memory_space<vmem>>, vector<1x448x128xbf16>
    %58 = vector.shape_cast %57 : vector<1x448x128xbf16> to vector<448x128xbf16>
    %cst_39 = arith.constant dense<0.000000e+00> : vector<8x128xf32>
    %59 = tpu.matmul %56, %58, %cst_39 {dimension_numbers = #tpu.dot_dimension_numbers<[1], [0], [0], [1], [0, 0, 1, 1], [], []>} : vector<8x448xbf16>, vector<448x128xbf16>, vector<8x128xf32> -> vector<8x128xf32>
    %60 = arith.addf %33, %59 : vector<8x128xf32>
    %cst_40 = arith.constant 0.000000e+00 : f32
    %61 = vector.broadcast %cst_40 : f32 to vector<8x448xf32>
    %62 = vector.extract_strided_slice %1 {offsets = [0, 2, 0], sizes = [8, 1, 16], strides = [1, 1, 1]} : vector<8x16x16xbf16> to vector<8x1x16xbf16>
    %63 = vector.shape_cast %62 : vector<8x1x16xbf16> to vector<8x16xbf16>
    %c0_41 = arith.constant 0 : index
    %c0_42 = arith.constant 0 : index
    %c0_43 = arith.constant 0 : index
    %64 = vector.load %arg2[%c0_41, %c0_42, %c0_43] : memref<3x16x448xbf16, #tpu.memory_space<vmem>>, vector<1x16x448xbf16>
    %65 = vector.shape_cast %64 : vector<1x16x448xbf16> to vector<16x448xbf16>
    %cst_44 = arith.constant dense<0.000000e+00> : vector<8x448xf32>
    %66 = tpu.matmul %63, %65, %cst_44 {dimension_numbers = #tpu.dot_dimension_numbers<[1], [0], [0], [1], [0, 0, 1, 1], [], []>} : vector<8x16xbf16>, vector<16x448xbf16>, vector<8x448xf32> -> vector<8x448xf32>
    %67 = arith.addf %61, %66 : vector<8x448xf32>
    %68 = vector.extract_strided_slice %1 {offsets = [0, 3, 0], sizes = [8, 1, 16], strides = [1, 1, 1]} : vector<8x16x16xbf16> to vector<8x1x16xbf16>
    %69 = vector.shape_cast %68 : vector<8x1x16xbf16> to vector<8x16xbf16>
    %c1_45 = arith.constant 1 : index
    %c0_46 = arith.constant 0 : index
    %c0_47 = arith.constant 0 : index
    %70 = vector.load %arg2[%c1_45, %c0_46, %c0_47] : memref<3x16x448xbf16, #tpu.memory_space<vmem>>, vector<1x16x448xbf16>
    %71 = vector.shape_cast %70 : vector<1x16x448xbf16> to vector<16x448xbf16>
    %cst_48 = arith.constant dense<0.000000e+00> : vector<8x448xf32>
    %72 = tpu.matmul %69, %71, %cst_48 {dimension_numbers = #tpu.dot_dimension_numbers<[1], [0], [0], [1], [0, 0, 1, 1], [], []>} : vector<8x16xbf16>, vector<16x448xbf16>, vector<8x448xf32> -> vector<8x448xf32>
    %73 = arith.addf %67, %72 : vector<8x448xf32>
    %74 = vector.extract_strided_slice %1 {offsets = [0, 4, 0], sizes = [8, 1, 16], strides = [1, 1, 1]} : vector<8x16x16xbf16> to vector<8x1x16xbf16>
    %75 = vector.shape_cast %74 : vector<8x1x16xbf16> to vector<8x16xbf16>
    %c2_49 = arith.constant 2 : index
    %c0_50 = arith.constant 0 : index
    %c0_51 = arith.constant 0 : index
    %76 = vector.load %arg2[%c2_49, %c0_50, %c0_51] : memref<3x16x448xbf16, #tpu.memory_space<vmem>>, vector<1x16x448xbf16>
    %77 = vector.shape_cast %76 : vector<1x16x448xbf16> to vector<16x448xbf16>
    %cst_52 = arith.constant dense<0.000000e+00> : vector<8x448xf32>
    %78 = tpu.matmul %75, %77, %cst_52 {dimension_numbers = #tpu.dot_dimension_numbers<[1], [0], [0], [1], [0, 0, 1, 1], [], []>} : vector<8x16xbf16>, vector<16x448xbf16>, vector<8x448xf32> -> vector<8x448xf32>
    %79 = arith.addf %73, %78 : vector<8x448xf32>
    %80 = arith.addf %79, %4 : vector<8x448xf32>
    %cst_53 = arith.constant 0.000000e+00 : f32
    %81 = vector.broadcast %cst_53 : f32 to vector<8x448xf32>
    %82 = arith.maximumf %80, %81 : vector<8x448xf32>
    %83 = arith.truncf %82 : vector<8x448xf32> to vector<8x448xbf16>
    %c2_54 = arith.constant 2 : index
    %c0_55 = arith.constant 0 : index
    %c0_56 = arith.constant 0 : index
    %84 = vector.load %arg3[%c2_54, %c0_55, %c0_56] : memref<14x448x128xbf16, #tpu.memory_space<vmem>>, vector<1x448x128xbf16>
    %85 = vector.shape_cast %84 : vector<1x448x128xbf16> to vector<448x128xbf16>
    %cst_57 = arith.constant dense<0.000000e+00> : vector<8x128xf32>
    %86 = tpu.matmul %83, %85, %cst_57 {dimension_numbers = #tpu.dot_dimension_numbers<[1], [0], [0], [1], [0, 0, 1, 1], [], []>} : vector<8x448xbf16>, vector<448x128xbf16>, vector<8x128xf32> -> vector<8x128xf32>
    %87 = arith.addf %60, %86 : vector<8x128xf32>
    %cst_58 = arith.constant 0.000000e+00 : f32
    %88 = vector.broadcast %cst_58 : f32 to vector<8x448xf32>
    %89 = vector.extract_strided_slice %1 {offsets = [0, 3, 0], sizes = [8, 1, 16], strides = [1, 1, 1]} : vector<8x16x16xbf16> to vector<8x1x16xbf16>
    %90 = vector.shape_cast %89 : vector<8x1x16xbf16> to vector<8x16xbf16>
    %c0_59 = arith.constant 0 : index
    %c0_60 = arith.constant 0 : index
    %c0_61 = arith.constant 0 : index
    %91 = vector.load %arg2[%c0_59, %c0_60, %c0_61] : memref<3x16x448xbf16, #tpu.memory_space<vmem>>, vector<1x16x448xbf16>
    %92 = vector.shape_cast %91 : vector<1x16x448xbf16> to vector<16x448xbf16>
    %cst_62 = arith.constant dense<0.000000e+00> : vector<8x448xf32>
    %93 = tpu.matmul %90, %92, %cst_62 {dimension_numbers = #tpu.dot_dimension_numbers<[1], [0], [0], [1], [0, 0, 1, 1], [], []>} : vector<8x16xbf16>, vector<16x448xbf16>, vector<8x448xf32> -> vector<8x448xf32>
    %94 = arith.addf %88, %93 : vector<8x448xf32>
    %95 = vector.extract_strided_slice %1 {offsets = [0, 4, 0], sizes = [8, 1, 16], strides = [1, 1, 1]} : vector<8x16x16xbf16> to vector<8x1x16xbf16>
    %96 = vector.shape_cast %95 : vector<8x1x16xbf16> to vector<8x16xbf16>
    %c1_63 = arith.constant 1 : index
    %c0_64 = arith.constant 0 : index
    %c0_65 = arith.constant 0 : index
    %97 = vector.load %arg2[%c1_63, %c0_64, %c0_65] : memref<3x16x448xbf16, #tpu.memory_space<vmem>>, vector<1x16x448xbf16>
    %98 = vector.shape_cast %97 : vector<1x16x448xbf16> to vector<16x448xbf16>
    %cst_66 = arith.constant dense<0.000000e+00> : vector<8x448xf32>
    %99 = tpu.matmul %96, %98, %cst_66 {dimension_numbers = #tpu.dot_dimension_numbers<[1], [0], [0], [1], [0, 0, 1, 1], [], []>} : vector<8x16xbf16>, vector<16x448xbf16>, vector<8x448xf32> -> vector<8x448xf32>
    %100 = arith.addf %94, %99 : vector<8x448xf32>
    %101 = vector.extract_strided_slice %1 {offsets = [0, 5, 0], sizes = [8, 1, 16], strides = [1, 1, 1]} : vector<8x16x16xbf16> to vector<8x1x16xbf16>
    %102 = vector.shape_cast %101 : vector<8x1x16xbf16> to vector<8x16xbf16>
    %c2_67 = arith.constant 2 : index
    %c0_68 = arith.constant 0 : index
    %c0_69 = arith.constant 0 : index
    %103 = vector.load %arg2[%c2_67, %c0_68, %c0_69] : memref<3x16x448xbf16, #tpu.memory_space<vmem>>, vector<1x16x448xbf16>
    %104 = vector.shape_cast %103 : vector<1x16x448xbf16> to vector<16x448xbf16>
    %cst_70 = arith.constant dense<0.000000e+00> : vector<8x448xf32>
    %105 = tpu.matmul %102, %104, %cst_70 {dimension_numbers = #tpu.dot_dimension_numbers<[1], [0], [0], [1], [0, 0, 1, 1], [], []>} : vector<8x16xbf16>, vector<16x448xbf16>, vector<8x448xf32> -> vector<8x448xf32>
    %106 = arith.addf %100, %105 : vector<8x448xf32>
    %107 = arith.addf %106, %4 : vector<8x448xf32>
    %cst_71 = arith.constant 0.000000e+00 : f32
    %108 = vector.broadcast %cst_71 : f32 to vector<8x448xf32>
    %109 = arith.maximumf %107, %108 : vector<8x448xf32>
    %110 = arith.truncf %109 : vector<8x448xf32> to vector<8x448xbf16>
    %c3 = arith.constant 3 : index
    %c0_72 = arith.constant 0 : index
    %c0_73 = arith.constant 0 : index
    %111 = vector.load %arg3[%c3, %c0_72, %c0_73] : memref<14x448x128xbf16, #tpu.memory_space<vmem>>, vector<1x448x128xbf16>
    %112 = vector.shape_cast %111 : vector<1x448x128xbf16> to vector<448x128xbf16>
    %cst_74 = arith.constant dense<0.000000e+00> : vector<8x128xf32>
    %113 = tpu.matmul %110, %112, %cst_74 {dimension_numbers = #tpu.dot_dimension_numbers<[1], [0], [0], [1], [0, 0, 1, 1], [], []>} : vector<8x448xbf16>, vector<448x128xbf16>, vector<8x128xf32> -> vector<8x128xf32>
    %114 = arith.addf %87, %113 : vector<8x128xf32>
    %cst_75 = arith.constant 0.000000e+00 : f32
    %115 = vector.broadcast %cst_75 : f32 to vector<8x448xf32>
    %116 = vector.extract_strided_slice %1 {offsets = [0, 4, 0], sizes = [8, 1, 16], strides = [1, 1, 1]} : vector<8x16x16xbf16> to vector<8x1x16xbf16>
    %117 = vector.shape_cast %116 : vector<8x1x16xbf16> to vector<8x16xbf16>
    %c0_76 = arith.constant 0 : index
    %c0_77 = arith.constant 0 : index
    %c0_78 = arith.constant 0 : index
    %118 = vector.load %arg2[%c0_76, %c0_77, %c0_78] : memref<3x16x448xbf16, #tpu.memory_space<vmem>>, vector<1x16x448xbf16>
    %119 = vector.shape_cast %118 : vector<1x16x448xbf16> to vector<16x448xbf16>
    %cst_79 = arith.constant dense<0.000000e+00> : vector<8x448xf32>
    %120 = tpu.matmul %117, %119, %cst_79 {dimension_numbers = #tpu.dot_dimension_numbers<[1], [0], [0], [1], [0, 0, 1, 1], [], []>} : vector<8x16xbf16>, vector<16x448xbf16>, vector<8x448xf32> -> vector<8x448xf32>
    %121 = arith.addf %115, %120 : vector<8x448xf32>
    %122 = vector.extract_strided_slice %1 {offsets = [0, 5, 0], sizes = [8, 1, 16], strides = [1, 1, 1]} : vector<8x16x16xbf16> to vector<8x1x16xbf16>
    %123 = vector.shape_cast %122 : vector<8x1x16xbf16> to vector<8x16xbf16>
    %c1_80 = arith.constant 1 : index
    %c0_81 = arith.constant 0 : index
    %c0_82 = arith.constant 0 : index
    %124 = vector.load %arg2[%c1_80, %c0_81, %c0_82] : memref<3x16x448xbf16, #tpu.memory_space<vmem>>, vector<1x16x448xbf16>
    %125 = vector.shape_cast %124 : vector<1x16x448xbf16> to vector<16x448xbf16>
    %cst_83 = arith.constant dense<0.000000e+00> : vector<8x448xf32>
    %126 = tpu.matmul %123, %125, %cst_83 {dimension_numbers = #tpu.dot_dimension_numbers<[1], [0], [0], [1], [0, 0, 1, 1], [], []>} : vector<8x16xbf16>, vector<16x448xbf16>, vector<8x448xf32> -> vector<8x448xf32>
    %127 = arith.addf %121, %126 : vector<8x448xf32>
    %128 = vector.extract_strided_slice %1 {offsets = [0, 6, 0], sizes = [8, 1, 16], strides = [1, 1, 1]} : vector<8x16x16xbf16> to vector<8x1x16xbf16>
    %129 = vector.shape_cast %128 : vector<8x1x16xbf16> to vector<8x16xbf16>
    %c2_84 = arith.constant 2 : index
    %c0_85 = arith.constant 0 : index
    %c0_86 = arith.constant 0 : index
    %130 = vector.load %arg2[%c2_84, %c0_85, %c0_86] : memref<3x16x448xbf16, #tpu.memory_space<vmem>>, vector<1x16x448xbf16>
    %131 = vector.shape_cast %130 : vector<1x16x448xbf16> to vector<16x448xbf16>
    %cst_87 = arith.constant dense<0.000000e+00> : vector<8x448xf32>
    %132 = tpu.matmul %129, %131, %cst_87 {dimension_numbers = #tpu.dot_dimension_numbers<[1], [0], [0], [1], [0, 0, 1, 1], [], []>} : vector<8x16xbf16>, vector<16x448xbf16>, vector<8x448xf32> -> vector<8x448xf32>
    %133 = arith.addf %127, %132 : vector<8x448xf32>
    %134 = arith.addf %133, %4 : vector<8x448xf32>
    %cst_88 = arith.constant 0.000000e+00 : f32
    %135 = vector.broadcast %cst_88 : f32 to vector<8x448xf32>
    %136 = arith.maximumf %134, %135 : vector<8x448xf32>
    %137 = arith.truncf %136 : vector<8x448xf32> to vector<8x448xbf16>
    %c4 = arith.constant 4 : index
    %c0_89 = arith.constant 0 : index
    %c0_90 = arith.constant 0 : index
    %138 = vector.load %arg3[%c4, %c0_89, %c0_90] : memref<14x448x128xbf16, #tpu.memory_space<vmem>>, vector<1x448x128xbf16>
    %139 = vector.shape_cast %138 : vector<1x448x128xbf16> to vector<448x128xbf16>
    %cst_91 = arith.constant dense<0.000000e+00> : vector<8x128xf32>
    %140 = tpu.matmul %137, %139, %cst_91 {dimension_numbers = #tpu.dot_dimension_numbers<[1], [0], [0], [1], [0, 0, 1, 1], [], []>} : vector<8x448xbf16>, vector<448x128xbf16>, vector<8x128xf32> -> vector<8x128xf32>
    %141 = arith.addf %114, %140 : vector<8x128xf32>
    %cst_92 = arith.constant 0.000000e+00 : f32
    %142 = vector.broadcast %cst_92 : f32 to vector<8x448xf32>
    %143 = vector.extract_strided_slice %1 {offsets = [0, 5, 0], sizes = [8, 1, 16], strides = [1, 1, 1]} : vector<8x16x16xbf16> to vector<8x1x16xbf16>
    %144 = vector.shape_cast %143 : vector<8x1x16xbf16> to vector<8x16xbf16>
    %c0_93 = arith.constant 0 : index
    %c0_94 = arith.constant 0 : index
    %c0_95 = arith.constant 0 : index
    %145 = vector.load %arg2[%c0_93, %c0_94, %c0_95] : memref<3x16x448xbf16, #tpu.memory_space<vmem>>, vector<1x16x448xbf16>
    %146 = vector.shape_cast %145 : vector<1x16x448xbf16> to vector<16x448xbf16>
    %cst_96 = arith.constant dense<0.000000e+00> : vector<8x448xf32>
    %147 = tpu.matmul %144, %146, %cst_96 {dimension_numbers = #tpu.dot_dimension_numbers<[1], [0], [0], [1], [0, 0, 1, 1], [], []>} : vector<8x16xbf16>, vector<16x448xbf16>, vector<8x448xf32> -> vector<8x448xf32>
    %148 = arith.addf %142, %147 : vector<8x448xf32>
    %149 = vector.extract_strided_slice %1 {offsets = [0, 6, 0], sizes = [8, 1, 16], strides = [1, 1, 1]} : vector<8x16x16xbf16> to vector<8x1x16xbf16>
    %150 = vector.shape_cast %149 : vector<8x1x16xbf16> to vector<8x16xbf16>
    %c1_97 = arith.constant 1 : index
    %c0_98 = arith.constant 0 : index
    %c0_99 = arith.constant 0 : index
    %151 = vector.load %arg2[%c1_97, %c0_98, %c0_99] : memref<3x16x448xbf16, #tpu.memory_space<vmem>>, vector<1x16x448xbf16>
    %152 = vector.shape_cast %151 : vector<1x16x448xbf16> to vector<16x448xbf16>
    %cst_100 = arith.constant dense<0.000000e+00> : vector<8x448xf32>
    %153 = tpu.matmul %150, %152, %cst_100 {dimension_numbers = #tpu.dot_dimension_numbers<[1], [0], [0], [1], [0, 0, 1, 1], [], []>} : vector<8x16xbf16>, vector<16x448xbf16>, vector<8x448xf32> -> vector<8x448xf32>
    %154 = arith.addf %148, %153 : vector<8x448xf32>
    %155 = vector.extract_strided_slice %1 {offsets = [0, 7, 0], sizes = [8, 1, 16], strides = [1, 1, 1]} : vector<8x16x16xbf16> to vector<8x1x16xbf16>
    %156 = vector.shape_cast %155 : vector<8x1x16xbf16> to vector<8x16xbf16>
    %c2_101 = arith.constant 2 : index
    %c0_102 = arith.constant 0 : index
    %c0_103 = arith.constant 0 : index
    %157 = vector.load %arg2[%c2_101, %c0_102, %c0_103] : memref<3x16x448xbf16, #tpu.memory_space<vmem>>, vector<1x16x448xbf16>
    %158 = vector.shape_cast %157 : vector<1x16x448xbf16> to vector<16x448xbf16>
    %cst_104 = arith.constant dense<0.000000e+00> : vector<8x448xf32>
    %159 = tpu.matmul %156, %158, %cst_104 {dimension_numbers = #tpu.dot_dimension_numbers<[1], [0], [0], [1], [0, 0, 1, 1], [], []>} : vector<8x16xbf16>, vector<16x448xbf16>, vector<8x448xf32> -> vector<8x448xf32>
    %160 = arith.addf %154, %159 : vector<8x448xf32>
    %161 = arith.addf %160, %4 : vector<8x448xf32>
    %cst_105 = arith.constant 0.000000e+00 : f32
    %162 = vector.broadcast %cst_105 : f32 to vector<8x448xf32>
    %163 = arith.maximumf %161, %162 : vector<8x448xf32>
    %164 = arith.truncf %163 : vector<8x448xf32> to vector<8x448xbf16>
    %c5 = arith.constant 5 : index
    %c0_106 = arith.constant 0 : index
    %c0_107 = arith.constant 0 : index
    %165 = vector.load %arg3[%c5, %c0_106, %c0_107] : memref<14x448x128xbf16, #tpu.memory_space<vmem>>, vector<1x448x128xbf16>
    %166 = vector.shape_cast %165 : vector<1x448x128xbf16> to vector<448x128xbf16>
    %cst_108 = arith.constant dense<0.000000e+00> : vector<8x128xf32>
    %167 = tpu.matmul %164, %166, %cst_108 {dimension_numbers = #tpu.dot_dimension_numbers<[1], [0], [0], [1], [0, 0, 1, 1], [], []>} : vector<8x448xbf16>, vector<448x128xbf16>, vector<8x128xf32> -> vector<8x128xf32>
    %168 = arith.addf %141, %167 : vector<8x128xf32>
    %cst_109 = arith.constant 0.000000e+00 : f32
    %169 = vector.broadcast %cst_109 : f32 to vector<8x448xf32>
    %170 = vector.extract_strided_slice %1 {offsets = [0, 6, 0], sizes = [8, 1, 16], strides = [1, 1, 1]} : vector<8x16x16xbf16> to vector<8x1x16xbf16>
    %171 = vector.shape_cast %170 : vector<8x1x16xbf16> to vector<8x16xbf16>
    %c0_110 = arith.constant 0 : index
    %c0_111 = arith.constant 0 : index
    %c0_112 = arith.constant 0 : index
    %172 = vector.load %arg2[%c0_110, %c0_111, %c0_112] : memref<3x16x448xbf16, #tpu.memory_space<vmem>>, vector<1x16x448xbf16>
    %173 = vector.shape_cast %172 : vector<1x16x448xbf16> to vector<16x448xbf16>
    %cst_113 = arith.constant dense<0.000000e+00> : vector<8x448xf32>
    %174 = tpu.matmul %171, %173, %cst_113 {dimension_numbers = #tpu.dot_dimension_numbers<[1], [0], [0], [1], [0, 0, 1, 1], [], []>} : vector<8x16xbf16>, vector<16x448xbf16>, vector<8x448xf32> -> vector<8x448xf32>
    %175 = arith.addf %169, %174 : vector<8x448xf32>
    %176 = vector.extract_strided_slice %1 {offsets = [0, 7, 0], sizes = [8, 1, 16], strides = [1, 1, 1]} : vector<8x16x16xbf16> to vector<8x1x16xbf16>
    %177 = vector.shape_cast %176 : vector<8x1x16xbf16> to vector<8x16xbf16>
    %c1_114 = arith.constant 1 : index
    %c0_115 = arith.constant 0 : index
    %c0_116 = arith.constant 0 : index
    %178 = vector.load %arg2[%c1_114, %c0_115, %c0_116] : memref<3x16x448xbf16, #tpu.memory_space<vmem>>, vector<1x16x448xbf16>
    %179 = vector.shape_cast %178 : vector<1x16x448xbf16> to vector<16x448xbf16>
    %cst_117 = arith.constant dense<0.000000e+00> : vector<8x448xf32>
    %180 = tpu.matmul %177, %179, %cst_117 {dimension_numbers = #tpu.dot_dimension_numbers<[1], [0], [0], [1], [0, 0, 1, 1], [], []>} : vector<8x16xbf16>, vector<16x448xbf16>, vector<8x448xf32> -> vector<8x448xf32>
    %181 = arith.addf %175, %180 : vector<8x448xf32>
    %182 = vector.extract_strided_slice %1 {offsets = [0, 8, 0], sizes = [8, 1, 16], strides = [1, 1, 1]} : vector<8x16x16xbf16> to vector<8x1x16xbf16>
    %183 = vector.shape_cast %182 : vector<8x1x16xbf16> to vector<8x16xbf16>
    %c2_118 = arith.constant 2 : index
    %c0_119 = arith.constant 0 : index
    %c0_120 = arith.constant 0 : index
    %184 = vector.load %arg2[%c2_118, %c0_119, %c0_120] : memref<3x16x448xbf16, #tpu.memory_space<vmem>>, vector<1x16x448xbf16>
    %185 = vector.shape_cast %184 : vector<1x16x448xbf16> to vector<16x448xbf16>
    %cst_121 = arith.constant dense<0.000000e+00> : vector<8x448xf32>
    %186 = tpu.matmul %183, %185, %cst_121 {dimension_numbers = #tpu.dot_dimension_numbers<[1], [0], [0], [1], [0, 0, 1, 1], [], []>} : vector<8x16xbf16>, vector<16x448xbf16>, vector<8x448xf32> -> vector<8x448xf32>
    %187 = arith.addf %181, %186 : vector<8x448xf32>
    %188 = arith.addf %187, %4 : vector<8x448xf32>
    %cst_122 = arith.constant 0.000000e+00 : f32
    %189 = vector.broadcast %cst_122 : f32 to vector<8x448xf32>
    %190 = arith.maximumf %188, %189 : vector<8x448xf32>
    %191 = arith.truncf %190 : vector<8x448xf32> to vector<8x448xbf16>
    %c6 = arith.constant 6 : index
    %c0_123 = arith.constant 0 : index
    %c0_124 = arith.constant 0 : index
    %192 = vector.load %arg3[%c6, %c0_123, %c0_124] : memref<14x448x128xbf16, #tpu.memory_space<vmem>>, vector<1x448x128xbf16>
    %193 = vector.shape_cast %192 : vector<1x448x128xbf16> to vector<448x128xbf16>
    %cst_125 = arith.constant dense<0.000000e+00> : vector<8x128xf32>
    %194 = tpu.matmul %191, %193, %cst_125 {dimension_numbers = #tpu.dot_dimension_numbers<[1], [0], [0], [1], [0, 0, 1, 1], [], []>} : vector<8x448xbf16>, vector<448x128xbf16>, vector<8x128xf32> -> vector<8x128xf32>
    %195 = arith.addf %168, %194 : vector<8x128xf32>
    %cst_126 = arith.constant 0.000000e+00 : f32
    %196 = vector.broadcast %cst_126 : f32 to vector<8x448xf32>
    %197 = vector.extract_strided_slice %1 {offsets = [0, 7, 0], sizes = [8, 1, 16], strides = [1, 1, 1]} : vector<8x16x16xbf16> to vector<8x1x16xbf16>
    %198 = vector.shape_cast %197 : vector<8x1x16xbf16> to vector<8x16xbf16>
    %c0_127 = arith.constant 0 : index
    %c0_128 = arith.constant 0 : index
    %c0_129 = arith.constant 0 : index
    %199 = vector.load %arg2[%c0_127, %c0_128, %c0_129] : memref<3x16x448xbf16, #tpu.memory_space<vmem>>, vector<1x16x448xbf16>
    %200 = vector.shape_cast %199 : vector<1x16x448xbf16> to vector<16x448xbf16>
    %cst_130 = arith.constant dense<0.000000e+00> : vector<8x448xf32>
    %201 = tpu.matmul %198, %200, %cst_130 {dimension_numbers = #tpu.dot_dimension_numbers<[1], [0], [0], [1], [0, 0, 1, 1], [], []>} : vector<8x16xbf16>, vector<16x448xbf16>, vector<8x448xf32> -> vector<8x448xf32>
    %202 = arith.addf %196, %201 : vector<8x448xf32>
    %203 = vector.extract_strided_slice %1 {offsets = [0, 8, 0], sizes = [8, 1, 16], strides = [1, 1, 1]} : vector<8x16x16xbf16> to vector<8x1x16xbf16>
    %204 = vector.shape_cast %203 : vector<8x1x16xbf16> to vector<8x16xbf16>
    %c1_131 = arith.constant 1 : index
    %c0_132 = arith.constant 0 : index
    %c0_133 = arith.constant 0 : index
    %205 = vector.load %arg2[%c1_131, %c0_132, %c0_133] : memref<3x16x448xbf16, #tpu.memory_space<vmem>>, vector<1x16x448xbf16>
    %206 = vector.shape_cast %205 : vector<1x16x448xbf16> to vector<16x448xbf16>
    %cst_134 = arith.constant dense<0.000000e+00> : vector<8x448xf32>
    %207 = tpu.matmul %204, %206, %cst_134 {dimension_numbers = #tpu.dot_dimension_numbers<[1], [0], [0], [1], [0, 0, 1, 1], [], []>} : vector<8x16xbf16>, vector<16x448xbf16>, vector<8x448xf32> -> vector<8x448xf32>
    %208 = arith.addf %202, %207 : vector<8x448xf32>
    %209 = vector.extract_strided_slice %1 {offsets = [0, 9, 0], sizes = [8, 1, 16], strides = [1, 1, 1]} : vector<8x16x16xbf16> to vector<8x1x16xbf16>
    %210 = vector.shape_cast %209 : vector<8x1x16xbf16> to vector<8x16xbf16>
    %c2_135 = arith.constant 2 : index
    %c0_136 = arith.constant 0 : index
    %c0_137 = arith.constant 0 : index
    %211 = vector.load %arg2[%c2_135, %c0_136, %c0_137] : memref<3x16x448xbf16, #tpu.memory_space<vmem>>, vector<1x16x448xbf16>
    %212 = vector.shape_cast %211 : vector<1x16x448xbf16> to vector<16x448xbf16>
    %cst_138 = arith.constant dense<0.000000e+00> : vector<8x448xf32>
    %213 = tpu.matmul %210, %212, %cst_138 {dimension_numbers = #tpu.dot_dimension_numbers<[1], [0], [0], [1], [0, 0, 1, 1], [], []>} : vector<8x16xbf16>, vector<16x448xbf16>, vector<8x448xf32> -> vector<8x448xf32>
    %214 = arith.addf %208, %213 : vector<8x448xf32>
    %215 = arith.addf %214, %4 : vector<8x448xf32>
    %cst_139 = arith.constant 0.000000e+00 : f32
    %216 = vector.broadcast %cst_139 : f32 to vector<8x448xf32>
    %217 = arith.maximumf %215, %216 : vector<8x448xf32>
    %218 = arith.truncf %217 : vector<8x448xf32> to vector<8x448xbf16>
    %c7 = arith.constant 7 : index
    %c0_140 = arith.constant 0 : index
    %c0_141 = arith.constant 0 : index
    %219 = vector.load %arg3[%c7, %c0_140, %c0_141] : memref<14x448x128xbf16, #tpu.memory_space<vmem>>, vector<1x448x128xbf16>
    %220 = vector.shape_cast %219 : vector<1x448x128xbf16> to vector<448x128xbf16>
    %cst_142 = arith.constant dense<0.000000e+00> : vector<8x128xf32>
    %221 = tpu.matmul %218, %220, %cst_142 {dimension_numbers = #tpu.dot_dimension_numbers<[1], [0], [0], [1], [0, 0, 1, 1], [], []>} : vector<8x448xbf16>, vector<448x128xbf16>, vector<8x128xf32> -> vector<8x128xf32>
    %222 = arith.addf %195, %221 : vector<8x128xf32>
    %cst_143 = arith.constant 0.000000e+00 : f32
    %223 = vector.broadcast %cst_143 : f32 to vector<8x448xf32>
    %224 = vector.extract_strided_slice %1 {offsets = [0, 8, 0], sizes = [8, 1, 16], strides = [1, 1, 1]} : vector<8x16x16xbf16> to vector<8x1x16xbf16>
    %225 = vector.shape_cast %224 : vector<8x1x16xbf16> to vector<8x16xbf16>
    %c0_144 = arith.constant 0 : index
    %c0_145 = arith.constant 0 : index
    %c0_146 = arith.constant 0 : index
    %226 = vector.load %arg2[%c0_144, %c0_145, %c0_146] : memref<3x16x448xbf16, #tpu.memory_space<vmem>>, vector<1x16x448xbf16>
    %227 = vector.shape_cast %226 : vector<1x16x448xbf16> to vector<16x448xbf16>
    %cst_147 = arith.constant dense<0.000000e+00> : vector<8x448xf32>
    %228 = tpu.matmul %225, %227, %cst_147 {dimension_numbers = #tpu.dot_dimension_numbers<[1], [0], [0], [1], [0, 0, 1, 1], [], []>} : vector<8x16xbf16>, vector<16x448xbf16>, vector<8x448xf32> -> vector<8x448xf32>
    %229 = arith.addf %223, %228 : vector<8x448xf32>
    %230 = vector.extract_strided_slice %1 {offsets = [0, 9, 0], sizes = [8, 1, 16], strides = [1, 1, 1]} : vector<8x16x16xbf16> to vector<8x1x16xbf16>
    %231 = vector.shape_cast %230 : vector<8x1x16xbf16> to vector<8x16xbf16>
    %c1_148 = arith.constant 1 : index
    %c0_149 = arith.constant 0 : index
    %c0_150 = arith.constant 0 : index
    %232 = vector.load %arg2[%c1_148, %c0_149, %c0_150] : memref<3x16x448xbf16, #tpu.memory_space<vmem>>, vector<1x16x448xbf16>
    %233 = vector.shape_cast %232 : vector<1x16x448xbf16> to vector<16x448xbf16>
    %cst_151 = arith.constant dense<0.000000e+00> : vector<8x448xf32>
    %234 = tpu.matmul %231, %233, %cst_151 {dimension_numbers = #tpu.dot_dimension_numbers<[1], [0], [0], [1], [0, 0, 1, 1], [], []>} : vector<8x16xbf16>, vector<16x448xbf16>, vector<8x448xf32> -> vector<8x448xf32>
    %235 = arith.addf %229, %234 : vector<8x448xf32>
    %236 = vector.extract_strided_slice %1 {offsets = [0, 10, 0], sizes = [8, 1, 16], strides = [1, 1, 1]} : vector<8x16x16xbf16> to vector<8x1x16xbf16>
    %237 = vector.shape_cast %236 : vector<8x1x16xbf16> to vector<8x16xbf16>
    %c2_152 = arith.constant 2 : index
    %c0_153 = arith.constant 0 : index
    %c0_154 = arith.constant 0 : index
    %238 = vector.load %arg2[%c2_152, %c0_153, %c0_154] : memref<3x16x448xbf16, #tpu.memory_space<vmem>>, vector<1x16x448xbf16>
    %239 = vector.shape_cast %238 : vector<1x16x448xbf16> to vector<16x448xbf16>
    %cst_155 = arith.constant dense<0.000000e+00> : vector<8x448xf32>
    %240 = tpu.matmul %237, %239, %cst_155 {dimension_numbers = #tpu.dot_dimension_numbers<[1], [0], [0], [1], [0, 0, 1, 1], [], []>} : vector<8x16xbf16>, vector<16x448xbf16>, vector<8x448xf32> -> vector<8x448xf32>
    %241 = arith.addf %235, %240 : vector<8x448xf32>
    %242 = arith.addf %241, %4 : vector<8x448xf32>
    %cst_156 = arith.constant 0.000000e+00 : f32
    %243 = vector.broadcast %cst_156 : f32 to vector<8x448xf32>
    %244 = arith.maximumf %242, %243 : vector<8x448xf32>
    %245 = arith.truncf %244 : vector<8x448xf32> to vector<8x448xbf16>
    %c8 = arith.constant 8 : index
    %c0_157 = arith.constant 0 : index
    %c0_158 = arith.constant 0 : index
    %246 = vector.load %arg3[%c8, %c0_157, %c0_158] : memref<14x448x128xbf16, #tpu.memory_space<vmem>>, vector<1x448x128xbf16>
    %247 = vector.shape_cast %246 : vector<1x448x128xbf16> to vector<448x128xbf16>
    %cst_159 = arith.constant dense<0.000000e+00> : vector<8x128xf32>
    %248 = tpu.matmul %245, %247, %cst_159 {dimension_numbers = #tpu.dot_dimension_numbers<[1], [0], [0], [1], [0, 0, 1, 1], [], []>} : vector<8x448xbf16>, vector<448x128xbf16>, vector<8x128xf32> -> vector<8x128xf32>
    %249 = arith.addf %222, %248 : vector<8x128xf32>
    %cst_160 = arith.constant 0.000000e+00 : f32
    %250 = vector.broadcast %cst_160 : f32 to vector<8x448xf32>
    %251 = vector.extract_strided_slice %1 {offsets = [0, 9, 0], sizes = [8, 1, 16], strides = [1, 1, 1]} : vector<8x16x16xbf16> to vector<8x1x16xbf16>
    %252 = vector.shape_cast %251 : vector<8x1x16xbf16> to vector<8x16xbf16>
    %c0_161 = arith.constant 0 : index
    %c0_162 = arith.constant 0 : index
    %c0_163 = arith.constant 0 : index
    %253 = vector.load %arg2[%c0_161, %c0_162, %c0_163] : memref<3x16x448xbf16, #tpu.memory_space<vmem>>, vector<1x16x448xbf16>
    %254 = vector.shape_cast %253 : vector<1x16x448xbf16> to vector<16x448xbf16>
    %cst_164 = arith.constant dense<0.000000e+00> : vector<8x448xf32>
    %255 = tpu.matmul %252, %254, %cst_164 {dimension_numbers = #tpu.dot_dimension_numbers<[1], [0], [0], [1], [0, 0, 1, 1], [], []>} : vector<8x16xbf16>, vector<16x448xbf16>, vector<8x448xf32> -> vector<8x448xf32>
    %256 = arith.addf %250, %255 : vector<8x448xf32>
    %257 = vector.extract_strided_slice %1 {offsets = [0, 10, 0], sizes = [8, 1, 16], strides = [1, 1, 1]} : vector<8x16x16xbf16> to vector<8x1x16xbf16>
    %258 = vector.shape_cast %257 : vector<8x1x16xbf16> to vector<8x16xbf16>
    %c1_165 = arith.constant 1 : index
    %c0_166 = arith.constant 0 : index
    %c0_167 = arith.constant 0 : index
    %259 = vector.load %arg2[%c1_165, %c0_166, %c0_167] : memref<3x16x448xbf16, #tpu.memory_space<vmem>>, vector<1x16x448xbf16>
    %260 = vector.shape_cast %259 : vector<1x16x448xbf16> to vector<16x448xbf16>
    %cst_168 = arith.constant dense<0.000000e+00> : vector<8x448xf32>
    %261 = tpu.matmul %258, %260, %cst_168 {dimension_numbers = #tpu.dot_dimension_numbers<[1], [0], [0], [1], [0, 0, 1, 1], [], []>} : vector<8x16xbf16>, vector<16x448xbf16>, vector<8x448xf32> -> vector<8x448xf32>
    %262 = arith.addf %256, %261 : vector<8x448xf32>
    %263 = vector.extract_strided_slice %1 {offsets = [0, 11, 0], sizes = [8, 1, 16], strides = [1, 1, 1]} : vector<8x16x16xbf16> to vector<8x1x16xbf16>
    %264 = vector.shape_cast %263 : vector<8x1x16xbf16> to vector<8x16xbf16>
    %c2_169 = arith.constant 2 : index
    %c0_170 = arith.constant 0 : index
    %c0_171 = arith.constant 0 : index
    %265 = vector.load %arg2[%c2_169, %c0_170, %c0_171] : memref<3x16x448xbf16, #tpu.memory_space<vmem>>, vector<1x16x448xbf16>
    %266 = vector.shape_cast %265 : vector<1x16x448xbf16> to vector<16x448xbf16>
    %cst_172 = arith.constant dense<0.000000e+00> : vector<8x448xf32>
    %267 = tpu.matmul %264, %266, %cst_172 {dimension_numbers = #tpu.dot_dimension_numbers<[1], [0], [0], [1], [0, 0, 1, 1], [], []>} : vector<8x16xbf16>, vector<16x448xbf16>, vector<8x448xf32> -> vector<8x448xf32>
    %268 = arith.addf %262, %267 : vector<8x448xf32>
    %269 = arith.addf %268, %4 : vector<8x448xf32>
    %cst_173 = arith.constant 0.000000e+00 : f32
    %270 = vector.broadcast %cst_173 : f32 to vector<8x448xf32>
    %271 = arith.maximumf %269, %270 : vector<8x448xf32>
    %272 = arith.truncf %271 : vector<8x448xf32> to vector<8x448xbf16>
    %c9 = arith.constant 9 : index
    %c0_174 = arith.constant 0 : index
    %c0_175 = arith.constant 0 : index
    %273 = vector.load %arg3[%c9, %c0_174, %c0_175] : memref<14x448x128xbf16, #tpu.memory_space<vmem>>, vector<1x448x128xbf16>
    %274 = vector.shape_cast %273 : vector<1x448x128xbf16> to vector<448x128xbf16>
    %cst_176 = arith.constant dense<0.000000e+00> : vector<8x128xf32>
    %275 = tpu.matmul %272, %274, %cst_176 {dimension_numbers = #tpu.dot_dimension_numbers<[1], [0], [0], [1], [0, 0, 1, 1], [], []>} : vector<8x448xbf16>, vector<448x128xbf16>, vector<8x128xf32> -> vector<8x128xf32>
    %276 = arith.addf %249, %275 : vector<8x128xf32>
    %cst_177 = arith.constant 0.000000e+00 : f32
    %277 = vector.broadcast %cst_177 : f32 to vector<8x448xf32>
    %278 = vector.extract_strided_slice %1 {offsets = [0, 10, 0], sizes = [8, 1, 16], strides = [1, 1, 1]} : vector<8x16x16xbf16> to vector<8x1x16xbf16>
    %279 = vector.shape_cast %278 : vector<8x1x16xbf16> to vector<8x16xbf16>
    %c0_178 = arith.constant 0 : index
    %c0_179 = arith.constant 0 : index
    %c0_180 = arith.constant 0 : index
    %280 = vector.load %arg2[%c0_178, %c0_179, %c0_180] : memref<3x16x448xbf16, #tpu.memory_space<vmem>>, vector<1x16x448xbf16>
    %281 = vector.shape_cast %280 : vector<1x16x448xbf16> to vector<16x448xbf16>
    %cst_181 = arith.constant dense<0.000000e+00> : vector<8x448xf32>
    %282 = tpu.matmul %279, %281, %cst_181 {dimension_numbers = #tpu.dot_dimension_numbers<[1], [0], [0], [1], [0, 0, 1, 1], [], []>} : vector<8x16xbf16>, vector<16x448xbf16>, vector<8x448xf32> -> vector<8x448xf32>
    %283 = arith.addf %277, %282 : vector<8x448xf32>
    %284 = vector.extract_strided_slice %1 {offsets = [0, 11, 0], sizes = [8, 1, 16], strides = [1, 1, 1]} : vector<8x16x16xbf16> to vector<8x1x16xbf16>
    %285 = vector.shape_cast %284 : vector<8x1x16xbf16> to vector<8x16xbf16>
    %c1_182 = arith.constant 1 : index
    %c0_183 = arith.constant 0 : index
    %c0_184 = arith.constant 0 : index
    %286 = vector.load %arg2[%c1_182, %c0_183, %c0_184] : memref<3x16x448xbf16, #tpu.memory_space<vmem>>, vector<1x16x448xbf16>
    %287 = vector.shape_cast %286 : vector<1x16x448xbf16> to vector<16x448xbf16>
    %cst_185 = arith.constant dense<0.000000e+00> : vector<8x448xf32>
    %288 = tpu.matmul %285, %287, %cst_185 {dimension_numbers = #tpu.dot_dimension_numbers<[1], [0], [0], [1], [0, 0, 1, 1], [], []>} : vector<8x16xbf16>, vector<16x448xbf16>, vector<8x448xf32> -> vector<8x448xf32>
    %289 = arith.addf %283, %288 : vector<8x448xf32>
    %290 = vector.extract_strided_slice %1 {offsets = [0, 12, 0], sizes = [8, 1, 16], strides = [1, 1, 1]} : vector<8x16x16xbf16> to vector<8x1x16xbf16>
    %291 = vector.shape_cast %290 : vector<8x1x16xbf16> to vector<8x16xbf16>
    %c2_186 = arith.constant 2 : index
    %c0_187 = arith.constant 0 : index
    %c0_188 = arith.constant 0 : index
    %292 = vector.load %arg2[%c2_186, %c0_187, %c0_188] : memref<3x16x448xbf16, #tpu.memory_space<vmem>>, vector<1x16x448xbf16>
    %293 = vector.shape_cast %292 : vector<1x16x448xbf16> to vector<16x448xbf16>
    %cst_189 = arith.constant dense<0.000000e+00> : vector<8x448xf32>
    %294 = tpu.matmul %291, %293, %cst_189 {dimension_numbers = #tpu.dot_dimension_numbers<[1], [0], [0], [1], [0, 0, 1, 1], [], []>} : vector<8x16xbf16>, vector<16x448xbf16>, vector<8x448xf32> -> vector<8x448xf32>
    %295 = arith.addf %289, %294 : vector<8x448xf32>
    %296 = arith.addf %295, %4 : vector<8x448xf32>
    %cst_190 = arith.constant 0.000000e+00 : f32
    %297 = vector.broadcast %cst_190 : f32 to vector<8x448xf32>
    %298 = arith.maximumf %296, %297 : vector<8x448xf32>
    %299 = arith.truncf %298 : vector<8x448xf32> to vector<8x448xbf16>
    %c10 = arith.constant 10 : index
    %c0_191 = arith.constant 0 : index
    %c0_192 = arith.constant 0 : index
    %300 = vector.load %arg3[%c10, %c0_191, %c0_192] : memref<14x448x128xbf16, #tpu.memory_space<vmem>>, vector<1x448x128xbf16>
    %301 = vector.shape_cast %300 : vector<1x448x128xbf16> to vector<448x128xbf16>
    %cst_193 = arith.constant dense<0.000000e+00> : vector<8x128xf32>
    %302 = tpu.matmul %299, %301, %cst_193 {dimension_numbers = #tpu.dot_dimension_numbers<[1], [0], [0], [1], [0, 0, 1, 1], [], []>} : vector<8x448xbf16>, vector<448x128xbf16>, vector<8x128xf32> -> vector<8x128xf32>
    %303 = arith.addf %276, %302 : vector<8x128xf32>
    %cst_194 = arith.constant 0.000000e+00 : f32
    %304 = vector.broadcast %cst_194 : f32 to vector<8x448xf32>
    %305 = vector.extract_strided_slice %1 {offsets = [0, 11, 0], sizes = [8, 1, 16], strides = [1, 1, 1]} : vector<8x16x16xbf16> to vector<8x1x16xbf16>
    %306 = vector.shape_cast %305 : vector<8x1x16xbf16> to vector<8x16xbf16>
    %c0_195 = arith.constant 0 : index
    %c0_196 = arith.constant 0 : index
    %c0_197 = arith.constant 0 : index
    %307 = vector.load %arg2[%c0_195, %c0_196, %c0_197] : memref<3x16x448xbf16, #tpu.memory_space<vmem>>, vector<1x16x448xbf16>
    %308 = vector.shape_cast %307 : vector<1x16x448xbf16> to vector<16x448xbf16>
    %cst_198 = arith.constant dense<0.000000e+00> : vector<8x448xf32>
    %309 = tpu.matmul %306, %308, %cst_198 {dimension_numbers = #tpu.dot_dimension_numbers<[1], [0], [0], [1], [0, 0, 1, 1], [], []>} : vector<8x16xbf16>, vector<16x448xbf16>, vector<8x448xf32> -> vector<8x448xf32>
    %310 = arith.addf %304, %309 : vector<8x448xf32>
    %311 = vector.extract_strided_slice %1 {offsets = [0, 12, 0], sizes = [8, 1, 16], strides = [1, 1, 1]} : vector<8x16x16xbf16> to vector<8x1x16xbf16>
    %312 = vector.shape_cast %311 : vector<8x1x16xbf16> to vector<8x16xbf16>
    %c1_199 = arith.constant 1 : index
    %c0_200 = arith.constant 0 : index
    %c0_201 = arith.constant 0 : index
    %313 = vector.load %arg2[%c1_199, %c0_200, %c0_201] : memref<3x16x448xbf16, #tpu.memory_space<vmem>>, vector<1x16x448xbf16>
    %314 = vector.shape_cast %313 : vector<1x16x448xbf16> to vector<16x448xbf16>
    %cst_202 = arith.constant dense<0.000000e+00> : vector<8x448xf32>
    %315 = tpu.matmul %312, %314, %cst_202 {dimension_numbers = #tpu.dot_dimension_numbers<[1], [0], [0], [1], [0, 0, 1, 1], [], []>} : vector<8x16xbf16>, vector<16x448xbf16>, vector<8x448xf32> -> vector<8x448xf32>
    %316 = arith.addf %310, %315 : vector<8x448xf32>
    %317 = vector.extract_strided_slice %1 {offsets = [0, 13, 0], sizes = [8, 1, 16], strides = [1, 1, 1]} : vector<8x16x16xbf16> to vector<8x1x16xbf16>
    %318 = vector.shape_cast %317 : vector<8x1x16xbf16> to vector<8x16xbf16>
    %c2_203 = arith.constant 2 : index
    %c0_204 = arith.constant 0 : index
    %c0_205 = arith.constant 0 : index
    %319 = vector.load %arg2[%c2_203, %c0_204, %c0_205] : memref<3x16x448xbf16, #tpu.memory_space<vmem>>, vector<1x16x448xbf16>
    %320 = vector.shape_cast %319 : vector<1x16x448xbf16> to vector<16x448xbf16>
    %cst_206 = arith.constant dense<0.000000e+00> : vector<8x448xf32>
    %321 = tpu.matmul %318, %320, %cst_206 {dimension_numbers = #tpu.dot_dimension_numbers<[1], [0], [0], [1], [0, 0, 1, 1], [], []>} : vector<8x16xbf16>, vector<16x448xbf16>, vector<8x448xf32> -> vector<8x448xf32>
    %322 = arith.addf %316, %321 : vector<8x448xf32>
    %323 = arith.addf %322, %4 : vector<8x448xf32>
    %cst_207 = arith.constant 0.000000e+00 : f32
    %324 = vector.broadcast %cst_207 : f32 to vector<8x448xf32>
    %325 = arith.maximumf %323, %324 : vector<8x448xf32>
    %326 = arith.truncf %325 : vector<8x448xf32> to vector<8x448xbf16>
    %c11 = arith.constant 11 : index
    %c0_208 = arith.constant 0 : index
    %c0_209 = arith.constant 0 : index
    %327 = vector.load %arg3[%c11, %c0_208, %c0_209] : memref<14x448x128xbf16, #tpu.memory_space<vmem>>, vector<1x448x128xbf16>
    %328 = vector.shape_cast %327 : vector<1x448x128xbf16> to vector<448x128xbf16>
    %cst_210 = arith.constant dense<0.000000e+00> : vector<8x128xf32>
    %329 = tpu.matmul %326, %328, %cst_210 {dimension_numbers = #tpu.dot_dimension_numbers<[1], [0], [0], [1], [0, 0, 1, 1], [], []>} : vector<8x448xbf16>, vector<448x128xbf16>, vector<8x128xf32> -> vector<8x128xf32>
    %330 = arith.addf %303, %329 : vector<8x128xf32>
    %cst_211 = arith.constant 0.000000e+00 : f32
    %331 = vector.broadcast %cst_211 : f32 to vector<8x448xf32>
    %332 = vector.extract_strided_slice %1 {offsets = [0, 12, 0], sizes = [8, 1, 16], strides = [1, 1, 1]} : vector<8x16x16xbf16> to vector<8x1x16xbf16>
    %333 = vector.shape_cast %332 : vector<8x1x16xbf16> to vector<8x16xbf16>
    %c0_212 = arith.constant 0 : index
    %c0_213 = arith.constant 0 : index
    %c0_214 = arith.constant 0 : index
    %334 = vector.load %arg2[%c0_212, %c0_213, %c0_214] : memref<3x16x448xbf16, #tpu.memory_space<vmem>>, vector<1x16x448xbf16>
    %335 = vector.shape_cast %334 : vector<1x16x448xbf16> to vector<16x448xbf16>
    %cst_215 = arith.constant dense<0.000000e+00> : vector<8x448xf32>
    %336 = tpu.matmul %333, %335, %cst_215 {dimension_numbers = #tpu.dot_dimension_numbers<[1], [0], [0], [1], [0, 0, 1, 1], [], []>} : vector<8x16xbf16>, vector<16x448xbf16>, vector<8x448xf32> -> vector<8x448xf32>
    %337 = arith.addf %331, %336 : vector<8x448xf32>
    %338 = vector.extract_strided_slice %1 {offsets = [0, 13, 0], sizes = [8, 1, 16], strides = [1, 1, 1]} : vector<8x16x16xbf16> to vector<8x1x16xbf16>
    %339 = vector.shape_cast %338 : vector<8x1x16xbf16> to vector<8x16xbf16>
    %c1_216 = arith.constant 1 : index
    %c0_217 = arith.constant 0 : index
    %c0_218 = arith.constant 0 : index
    %340 = vector.load %arg2[%c1_216, %c0_217, %c0_218] : memref<3x16x448xbf16, #tpu.memory_space<vmem>>, vector<1x16x448xbf16>
    %341 = vector.shape_cast %340 : vector<1x16x448xbf16> to vector<16x448xbf16>
    %cst_219 = arith.constant dense<0.000000e+00> : vector<8x448xf32>
    %342 = tpu.matmul %339, %341, %cst_219 {dimension_numbers = #tpu.dot_dimension_numbers<[1], [0], [0], [1], [0, 0, 1, 1], [], []>} : vector<8x16xbf16>, vector<16x448xbf16>, vector<8x448xf32> -> vector<8x448xf32>
    %343 = arith.addf %337, %342 : vector<8x448xf32>
    %344 = vector.extract_strided_slice %1 {offsets = [0, 14, 0], sizes = [8, 1, 16], strides = [1, 1, 1]} : vector<8x16x16xbf16> to vector<8x1x16xbf16>
    %345 = vector.shape_cast %344 : vector<8x1x16xbf16> to vector<8x16xbf16>
    %c2_220 = arith.constant 2 : index
    %c0_221 = arith.constant 0 : index
    %c0_222 = arith.constant 0 : index
    %346 = vector.load %arg2[%c2_220, %c0_221, %c0_222] : memref<3x16x448xbf16, #tpu.memory_space<vmem>>, vector<1x16x448xbf16>
    %347 = vector.shape_cast %346 : vector<1x16x448xbf16> to vector<16x448xbf16>
    %cst_223 = arith.constant dense<0.000000e+00> : vector<8x448xf32>
    %348 = tpu.matmul %345, %347, %cst_223 {dimension_numbers = #tpu.dot_dimension_numbers<[1], [0], [0], [1], [0, 0, 1, 1], [], []>} : vector<8x16xbf16>, vector<16x448xbf16>, vector<8x448xf32> -> vector<8x448xf32>
    %349 = arith.addf %343, %348 : vector<8x448xf32>
    %350 = arith.addf %349, %4 : vector<8x448xf32>
    %cst_224 = arith.constant 0.000000e+00 : f32
    %351 = vector.broadcast %cst_224 : f32 to vector<8x448xf32>
    %352 = arith.maximumf %350, %351 : vector<8x448xf32>
    %353 = arith.truncf %352 : vector<8x448xf32> to vector<8x448xbf16>
    %c12 = arith.constant 12 : index
    %c0_225 = arith.constant 0 : index
    %c0_226 = arith.constant 0 : index
    %354 = vector.load %arg3[%c12, %c0_225, %c0_226] : memref<14x448x128xbf16, #tpu.memory_space<vmem>>, vector<1x448x128xbf16>
    %355 = vector.shape_cast %354 : vector<1x448x128xbf16> to vector<448x128xbf16>
    %cst_227 = arith.constant dense<0.000000e+00> : vector<8x128xf32>
    %356 = tpu.matmul %353, %355, %cst_227 {dimension_numbers = #tpu.dot_dimension_numbers<[1], [0], [0], [1], [0, 0, 1, 1], [], []>} : vector<8x448xbf16>, vector<448x128xbf16>, vector<8x128xf32> -> vector<8x128xf32>
    %357 = arith.addf %330, %356 : vector<8x128xf32>
    %cst_228 = arith.constant 0.000000e+00 : f32
    %358 = vector.broadcast %cst_228 : f32 to vector<8x448xf32>
    %359 = vector.extract_strided_slice %1 {offsets = [0, 13, 0], sizes = [8, 1, 16], strides = [1, 1, 1]} : vector<8x16x16xbf16> to vector<8x1x16xbf16>
    %360 = vector.shape_cast %359 : vector<8x1x16xbf16> to vector<8x16xbf16>
    %c0_229 = arith.constant 0 : index
    %c0_230 = arith.constant 0 : index
    %c0_231 = arith.constant 0 : index
    %361 = vector.load %arg2[%c0_229, %c0_230, %c0_231] : memref<3x16x448xbf16, #tpu.memory_space<vmem>>, vector<1x16x448xbf16>
    %362 = vector.shape_cast %361 : vector<1x16x448xbf16> to vector<16x448xbf16>
    %cst_232 = arith.constant dense<0.000000e+00> : vector<8x448xf32>
    %363 = tpu.matmul %360, %362, %cst_232 {dimension_numbers = #tpu.dot_dimension_numbers<[1], [0], [0], [1], [0, 0, 1, 1], [], []>} : vector<8x16xbf16>, vector<16x448xbf16>, vector<8x448xf32> -> vector<8x448xf32>
    %364 = arith.addf %358, %363 : vector<8x448xf32>
    %365 = vector.extract_strided_slice %1 {offsets = [0, 14, 0], sizes = [8, 1, 16], strides = [1, 1, 1]} : vector<8x16x16xbf16> to vector<8x1x16xbf16>
    %366 = vector.shape_cast %365 : vector<8x1x16xbf16> to vector<8x16xbf16>
    %c1_233 = arith.constant 1 : index
    %c0_234 = arith.constant 0 : index
    %c0_235 = arith.constant 0 : index
    %367 = vector.load %arg2[%c1_233, %c0_234, %c0_235] : memref<3x16x448xbf16, #tpu.memory_space<vmem>>, vector<1x16x448xbf16>
    %368 = vector.shape_cast %367 : vector<1x16x448xbf16> to vector<16x448xbf16>
    %cst_236 = arith.constant dense<0.000000e+00> : vector<8x448xf32>
    %369 = tpu.matmul %366, %368, %cst_236 {dimension_numbers = #tpu.dot_dimension_numbers<[1], [0], [0], [1], [0, 0, 1, 1], [], []>} : vector<8x16xbf16>, vector<16x448xbf16>, vector<8x448xf32> -> vector<8x448xf32>
    %370 = arith.addf %364, %369 : vector<8x448xf32>
    %371 = vector.extract_strided_slice %1 {offsets = [0, 15, 0], sizes = [8, 1, 16], strides = [1, 1, 1]} : vector<8x16x16xbf16> to vector<8x1x16xbf16>
    %372 = vector.shape_cast %371 : vector<8x1x16xbf16> to vector<8x16xbf16>
    %c2_237 = arith.constant 2 : index
    %c0_238 = arith.constant 0 : index
    %c0_239 = arith.constant 0 : index
    %373 = vector.load %arg2[%c2_237, %c0_238, %c0_239] : memref<3x16x448xbf16, #tpu.memory_space<vmem>>, vector<1x16x448xbf16>
    %374 = vector.shape_cast %373 : vector<1x16x448xbf16> to vector<16x448xbf16>
    %cst_240 = arith.constant dense<0.000000e+00> : vector<8x448xf32>
    %375 = tpu.matmul %372, %374, %cst_240 {dimension_numbers = #tpu.dot_dimension_numbers<[1], [0], [0], [1], [0, 0, 1, 1], [], []>} : vector<8x16xbf16>, vector<16x448xbf16>, vector<8x448xf32> -> vector<8x448xf32>
    %376 = arith.addf %370, %375 : vector<8x448xf32>
    %377 = arith.addf %376, %4 : vector<8x448xf32>
    %cst_241 = arith.constant 0.000000e+00 : f32
    %378 = vector.broadcast %cst_241 : f32 to vector<8x448xf32>
    %379 = arith.maximumf %377, %378 : vector<8x448xf32>
    %380 = arith.truncf %379 : vector<8x448xf32> to vector<8x448xbf16>
    %c13 = arith.constant 13 : index
    %c0_242 = arith.constant 0 : index
    %c0_243 = arith.constant 0 : index
    %381 = vector.load %arg3[%c13, %c0_242, %c0_243] : memref<14x448x128xbf16, #tpu.memory_space<vmem>>, vector<1x448x128xbf16>
    %382 = vector.shape_cast %381 : vector<1x448x128xbf16> to vector<448x128xbf16>
    %cst_244 = arith.constant dense<0.000000e+00> : vector<8x128xf32>
    %383 = tpu.matmul %380, %382, %cst_244 {dimension_numbers = #tpu.dot_dimension_numbers<[1], [0], [0], [1], [0, 0, 1, 1], [], []>} : vector<8x448xbf16>, vector<448x128xbf16>, vector<8x128xf32> -> vector<8x128xf32>
    %384 = arith.addf %357, %383 : vector<8x128xf32>
    %385 = vector.broadcast %5 : vector<1x128xf32> to vector<8x128xf32>
    %386 = arith.addf %384, %385 : vector<8x128xf32>
    %c0_245 = arith.constant 0 : index
    %c0_246 = arith.constant 0 : index
    %387 = vector.load %arg6[%c0_245, %c0_246] : memref<8x128xf32, #tpu.memory_space<vmem>>, vector<8x128xf32>
    tpu.vector_store %arg6[%c0_245, %c0_246], %386 {strides = array<i32>} : memref<8x128xf32, #tpu.memory_space<vmem>>, vector<8x128xf32>,
    return
  }
  func.func @transform_0(%arg0: i32) -> (i32, i32, i32) {
    %c0_i32 = arith.constant 0 : i32
    %c0_i32_0 = arith.constant 0 : i32
    %c0_i32_1 = arith.constant 0 : i32
    return %arg0, %c0_i32, %c0_i32_0 : i32, i32, i32
  }
  func.func @transform_1(%arg0: i32) -> (i32, i32, i32) {
    %c0_i32 = arith.constant 0 : i32
    %c0_i32_0 = arith.constant 0 : i32
    %c0_i32_1 = arith.constant 0 : i32
    %c0_i32_2 = arith.constant 0 : i32
    return %c0_i32, %c0_i32_0, %c0_i32_1 : i32, i32, i32
  }
  func.func @transform_2(%arg0: i32) -> (i32, i32, i32) {
    %c0_i32 = arith.constant 0 : i32
    %c0_i32_0 = arith.constant 0 : i32
    %c0_i32_1 = arith.constant 0 : i32
    %c0_i32_2 = arith.constant 0 : i32
    return %c0_i32, %c0_i32_0, %c0_i32_1 : i32, i32, i32
  }
  func.func @transform_3(%arg0: i32) -> (i32, i32) {
    %c0_i32 = arith.constant 0 : i32
    %c0_i32_0 = arith.constant 0 : i32
    %c0_i32_1 = arith.constant 0 : i32
    return %c0_i32, %c0_i32_0 : i32, i32
  }
  func.func @transform_4(%arg0: i32) -> (i32, i32) {
    %c0_i32 = arith.constant 0 : i32
    %c0_i32_0 = arith.constant 0 : i32
    %c0_i32_1 = arith.constant 0 : i32
    return %c0_i32, %c0_i32_0 : i32, i32
  }
  func.func @transform_5(%arg0: i32) -> (i32, i32) {
    %c0_i32 = arith.constant 0 : i32
    %c0_i32_0 = arith.constant 0 : i32
    return %arg0, %c0_i32 : i32, i32
  }
}

module attributes {stable_mosaic.version = 11 : i64} {
  func.func @lstm_recurrence_kernel(%arg0: i32, %arg1: memref<1x8x128xf32, #tpu.memory_space<vmem>>, %arg2: memref<32x128xbf16, #tpu.memory_space<vmem>>, %arg3: memref<1x8x32xf32, #tpu.memory_space<vmem>>) attributes {dimension_semantics = [#tpu.dimension_semantics<parallel>], iteration_bounds = array<i64: 2>, scalar_prefetch = 0 : i64, scratch_operands = 0 : i64, tpu.core_type = #tpu.core_type<tc>, window_params = [{transform_indices = @transform_0, window_bounds = array<i64: 1, 8, 128>}, {pipeline_mode = #tpu.pipeline_mode<synchronous>, transform_indices = @transform_1, window_bounds = array<i64: 32, 128>}, {transform_indices = @transform_2, window_bounds = array<i64: 1, 8, 32>}]} {
    %c0 = arith.constant 0 : index
    %c0_0 = arith.constant 0 : index
    %0 = vector.load %arg2[%c0, %c0_0] : memref<32x128xbf16, #tpu.memory_space<vmem>>, vector<32x128xbf16>
    %cst = arith.constant 0.000000e+00 : f32
    %1 = vector.broadcast %cst : f32 to vector<1x32xf32>
    %cst_1 = arith.constant 0.000000e+00 : f32
    %2 = vector.broadcast %cst_1 : f32 to vector<1x32xf32>
    %c0_2 = arith.constant 0 : index
    %c0_3 = arith.constant 0 : index
    %c0_4 = arith.constant 0 : index
    %3 = vector.load %arg1[%c0_2, %c0_3, %c0_4] : memref<1x8x128xf32, #tpu.memory_space<vmem>>, vector<1x1x128xf32>
    %4 = vector.shape_cast %3 : vector<1x1x128xf32> to vector<1x128xf32>
    %5 = arith.truncf %1 : vector<1x32xf32> to vector<1x32xbf16>
    %cst_5 = arith.constant dense<0.000000e+00> : vector<1x128xf32>
    %6 = tpu.matmul %5, %0, %cst_5 {dimension_numbers = #tpu.dot_dimension_numbers<[1], [0], [0], [1], [0, 0, 1, 1], [], []>} : vector<1x32xbf16>, vector<32x128xbf16>, vector<1x128xf32> -> vector<1x128xf32>
    %7 = arith.addf %4, %6 : vector<1x128xf32>
    %cst_6 = arith.constant 5.000000e-01 : f32
    %8 = vector.broadcast %cst_6 : f32 to vector<1x128xf32>
    %9 = arith.mulf %8, %7 : vector<1x128xf32>
    %10 = math.tanh %9 : vector<1x128xf32>
    %cst_7 = arith.constant 1.000000e+00 : f32
    %11 = vector.broadcast %cst_7 : f32 to vector<1x128xf32>
    %12 = arith.addf %10, %11 : vector<1x128xf32>
    %cst_8 = arith.constant 5.000000e-01 : f32
    %13 = vector.broadcast %cst_8 : f32 to vector<1x128xf32>
    %14 = arith.mulf %13, %12 : vector<1x128xf32>
    %15 = vector.extract_strided_slice %14 {offsets = [0, 0], sizes = [1, 32], strides = [1, 1]} : vector<1x128xf32> to vector<1x32xf32>
    %16 = vector.extract_strided_slice %14 {offsets = [0, 32], sizes = [1, 32], strides = [1, 1]} : vector<1x128xf32> to vector<1x32xf32>
    %17 = vector.extract_strided_slice %14 {offsets = [0, 96], sizes = [1, 32], strides = [1, 1]} : vector<1x128xf32> to vector<1x32xf32>
    %18 = vector.extract_strided_slice %7 {offsets = [0, 64], sizes = [1, 32], strides = [1, 1]} : vector<1x128xf32> to vector<1x32xf32>
    %19 = math.tanh %18 : vector<1x32xf32>
    %20 = arith.mulf %16, %2 : vector<1x32xf32>
    %21 = arith.mulf %15, %19 : vector<1x32xf32>
    %22 = arith.addf %20, %21 : vector<1x32xf32>
    %23 = math.tanh %22 : vector<1x32xf32>
    %24 = arith.mulf %17, %23 : vector<1x32xf32>
    %c0_9 = arith.constant 0 : index
    %c0_10 = arith.constant 0 : index
    %c0_11 = arith.constant 0 : index
    %25 = vector.load %arg3[%c0_9, %c0_10, %c0_11] : memref<1x8x32xf32, #tpu.memory_space<vmem>>, vector<1x1x32xf32>
    %26 = vector.shape_cast %25 : vector<1x1x32xf32> to vector<1x32xf32>
    %27 = vector.shape_cast %24 : vector<1x32xf32> to vector<1x1x32xf32>
    tpu.vector_store %arg3[%c0_9, %c0_10, %c0_11], %27 {strides = array<i32>} : memref<1x8x32xf32, #tpu.memory_space<vmem>>, vector<1x1x32xf32>,
    %c0_12 = arith.constant 0 : index
    %c1 = arith.constant 1 : index
    %c0_13 = arith.constant 0 : index
    %28 = vector.load %arg1[%c0_12, %c1, %c0_13] : memref<1x8x128xf32, #tpu.memory_space<vmem>>, vector<1x1x128xf32>
    %29 = vector.shape_cast %28 : vector<1x1x128xf32> to vector<1x128xf32>
    %30 = arith.truncf %24 : vector<1x32xf32> to vector<1x32xbf16>
    %cst_14 = arith.constant dense<0.000000e+00> : vector<1x128xf32>
    %31 = tpu.matmul %30, %0, %cst_14 {dimension_numbers = #tpu.dot_dimension_numbers<[1], [0], [0], [1], [0, 0, 1, 1], [], []>} : vector<1x32xbf16>, vector<32x128xbf16>, vector<1x128xf32> -> vector<1x128xf32>
    %32 = arith.addf %29, %31 : vector<1x128xf32>
    %cst_15 = arith.constant 5.000000e-01 : f32
    %33 = vector.broadcast %cst_15 : f32 to vector<1x128xf32>
    %34 = arith.mulf %33, %32 : vector<1x128xf32>
    %35 = math.tanh %34 : vector<1x128xf32>
    %cst_16 = arith.constant 1.000000e+00 : f32
    %36 = vector.broadcast %cst_16 : f32 to vector<1x128xf32>
    %37 = arith.addf %35, %36 : vector<1x128xf32>
    %cst_17 = arith.constant 5.000000e-01 : f32
    %38 = vector.broadcast %cst_17 : f32 to vector<1x128xf32>
    %39 = arith.mulf %38, %37 : vector<1x128xf32>
    %40 = vector.extract_strided_slice %39 {offsets = [0, 0], sizes = [1, 32], strides = [1, 1]} : vector<1x128xf32> to vector<1x32xf32>
    %41 = vector.extract_strided_slice %39 {offsets = [0, 32], sizes = [1, 32], strides = [1, 1]} : vector<1x128xf32> to vector<1x32xf32>
    %42 = vector.extract_strided_slice %39 {offsets = [0, 96], sizes = [1, 32], strides = [1, 1]} : vector<1x128xf32> to vector<1x32xf32>
    %43 = vector.extract_strided_slice %32 {offsets = [0, 64], sizes = [1, 32], strides = [1, 1]} : vector<1x128xf32> to vector<1x32xf32>
    %44 = math.tanh %43 : vector<1x32xf32>
    %45 = arith.mulf %41, %22 : vector<1x32xf32>
    %46 = arith.mulf %40, %44 : vector<1x32xf32>
    %47 = arith.addf %45, %46 : vector<1x32xf32>
    %48 = math.tanh %47 : vector<1x32xf32>
    %49 = arith.mulf %42, %48 : vector<1x32xf32>
    %c0_18 = arith.constant 0 : index
    %c1_19 = arith.constant 1 : index
    %c0_20 = arith.constant 0 : index
    %50 = vector.load %arg3[%c0_18, %c1_19, %c0_20] : memref<1x8x32xf32, #tpu.memory_space<vmem>>, vector<1x1x32xf32>
    %51 = vector.shape_cast %50 : vector<1x1x32xf32> to vector<1x32xf32>
    %52 = vector.shape_cast %49 : vector<1x32xf32> to vector<1x1x32xf32>
    tpu.vector_store %arg3[%c0_18, %c1_19, %c0_20], %52 {strides = array<i32>} : memref<1x8x32xf32, #tpu.memory_space<vmem>>, vector<1x1x32xf32>,
    %c0_21 = arith.constant 0 : index
    %c2 = arith.constant 2 : index
    %c0_22 = arith.constant 0 : index
    %53 = vector.load %arg1[%c0_21, %c2, %c0_22] : memref<1x8x128xf32, #tpu.memory_space<vmem>>, vector<1x1x128xf32>
    %54 = vector.shape_cast %53 : vector<1x1x128xf32> to vector<1x128xf32>
    %55 = arith.truncf %49 : vector<1x32xf32> to vector<1x32xbf16>
    %cst_23 = arith.constant dense<0.000000e+00> : vector<1x128xf32>
    %56 = tpu.matmul %55, %0, %cst_23 {dimension_numbers = #tpu.dot_dimension_numbers<[1], [0], [0], [1], [0, 0, 1, 1], [], []>} : vector<1x32xbf16>, vector<32x128xbf16>, vector<1x128xf32> -> vector<1x128xf32>
    %57 = arith.addf %54, %56 : vector<1x128xf32>
    %cst_24 = arith.constant 5.000000e-01 : f32
    %58 = vector.broadcast %cst_24 : f32 to vector<1x128xf32>
    %59 = arith.mulf %58, %57 : vector<1x128xf32>
    %60 = math.tanh %59 : vector<1x128xf32>
    %cst_25 = arith.constant 1.000000e+00 : f32
    %61 = vector.broadcast %cst_25 : f32 to vector<1x128xf32>
    %62 = arith.addf %60, %61 : vector<1x128xf32>
    %cst_26 = arith.constant 5.000000e-01 : f32
    %63 = vector.broadcast %cst_26 : f32 to vector<1x128xf32>
    %64 = arith.mulf %63, %62 : vector<1x128xf32>
    %65 = vector.extract_strided_slice %64 {offsets = [0, 0], sizes = [1, 32], strides = [1, 1]} : vector<1x128xf32> to vector<1x32xf32>
    %66 = vector.extract_strided_slice %64 {offsets = [0, 32], sizes = [1, 32], strides = [1, 1]} : vector<1x128xf32> to vector<1x32xf32>
    %67 = vector.extract_strided_slice %64 {offsets = [0, 96], sizes = [1, 32], strides = [1, 1]} : vector<1x128xf32> to vector<1x32xf32>
    %68 = vector.extract_strided_slice %57 {offsets = [0, 64], sizes = [1, 32], strides = [1, 1]} : vector<1x128xf32> to vector<1x32xf32>
    %69 = math.tanh %68 : vector<1x32xf32>
    %70 = arith.mulf %66, %47 : vector<1x32xf32>
    %71 = arith.mulf %65, %69 : vector<1x32xf32>
    %72 = arith.addf %70, %71 : vector<1x32xf32>
    %73 = math.tanh %72 : vector<1x32xf32>
    %74 = arith.mulf %67, %73 : vector<1x32xf32>
    %c0_27 = arith.constant 0 : index
    %c2_28 = arith.constant 2 : index
    %c0_29 = arith.constant 0 : index
    %75 = vector.load %arg3[%c0_27, %c2_28, %c0_29] : memref<1x8x32xf32, #tpu.memory_space<vmem>>, vector<1x1x32xf32>
    %76 = vector.shape_cast %75 : vector<1x1x32xf32> to vector<1x32xf32>
    %77 = vector.shape_cast %74 : vector<1x32xf32> to vector<1x1x32xf32>
    tpu.vector_store %arg3[%c0_27, %c2_28, %c0_29], %77 {strides = array<i32>} : memref<1x8x32xf32, #tpu.memory_space<vmem>>, vector<1x1x32xf32>,
    %c0_30 = arith.constant 0 : index
    %c3 = arith.constant 3 : index
    %c0_31 = arith.constant 0 : index
    %78 = vector.load %arg1[%c0_30, %c3, %c0_31] : memref<1x8x128xf32, #tpu.memory_space<vmem>>, vector<1x1x128xf32>
    %79 = vector.shape_cast %78 : vector<1x1x128xf32> to vector<1x128xf32>
    %80 = arith.truncf %74 : vector<1x32xf32> to vector<1x32xbf16>
    %cst_32 = arith.constant dense<0.000000e+00> : vector<1x128xf32>
    %81 = tpu.matmul %80, %0, %cst_32 {dimension_numbers = #tpu.dot_dimension_numbers<[1], [0], [0], [1], [0, 0, 1, 1], [], []>} : vector<1x32xbf16>, vector<32x128xbf16>, vector<1x128xf32> -> vector<1x128xf32>
    %82 = arith.addf %79, %81 : vector<1x128xf32>
    %cst_33 = arith.constant 5.000000e-01 : f32
    %83 = vector.broadcast %cst_33 : f32 to vector<1x128xf32>
    %84 = arith.mulf %83, %82 : vector<1x128xf32>
    %85 = math.tanh %84 : vector<1x128xf32>
    %cst_34 = arith.constant 1.000000e+00 : f32
    %86 = vector.broadcast %cst_34 : f32 to vector<1x128xf32>
    %87 = arith.addf %85, %86 : vector<1x128xf32>
    %cst_35 = arith.constant 5.000000e-01 : f32
    %88 = vector.broadcast %cst_35 : f32 to vector<1x128xf32>
    %89 = arith.mulf %88, %87 : vector<1x128xf32>
    %90 = vector.extract_strided_slice %89 {offsets = [0, 0], sizes = [1, 32], strides = [1, 1]} : vector<1x128xf32> to vector<1x32xf32>
    %91 = vector.extract_strided_slice %89 {offsets = [0, 32], sizes = [1, 32], strides = [1, 1]} : vector<1x128xf32> to vector<1x32xf32>
    %92 = vector.extract_strided_slice %89 {offsets = [0, 96], sizes = [1, 32], strides = [1, 1]} : vector<1x128xf32> to vector<1x32xf32>
    %93 = vector.extract_strided_slice %82 {offsets = [0, 64], sizes = [1, 32], strides = [1, 1]} : vector<1x128xf32> to vector<1x32xf32>
    %94 = math.tanh %93 : vector<1x32xf32>
    %95 = arith.mulf %91, %72 : vector<1x32xf32>
    %96 = arith.mulf %90, %94 : vector<1x32xf32>
    %97 = arith.addf %95, %96 : vector<1x32xf32>
    %98 = math.tanh %97 : vector<1x32xf32>
    %99 = arith.mulf %92, %98 : vector<1x32xf32>
    %c0_36 = arith.constant 0 : index
    %c3_37 = arith.constant 3 : index
    %c0_38 = arith.constant 0 : index
    %100 = vector.load %arg3[%c0_36, %c3_37, %c0_38] : memref<1x8x32xf32, #tpu.memory_space<vmem>>, vector<1x1x32xf32>
    %101 = vector.shape_cast %100 : vector<1x1x32xf32> to vector<1x32xf32>
    %102 = vector.shape_cast %99 : vector<1x32xf32> to vector<1x1x32xf32>
    tpu.vector_store %arg3[%c0_36, %c3_37, %c0_38], %102 {strides = array<i32>} : memref<1x8x32xf32, #tpu.memory_space<vmem>>, vector<1x1x32xf32>,
    %c0_39 = arith.constant 0 : index
    %c4 = arith.constant 4 : index
    %c0_40 = arith.constant 0 : index
    %103 = vector.load %arg1[%c0_39, %c4, %c0_40] : memref<1x8x128xf32, #tpu.memory_space<vmem>>, vector<1x1x128xf32>
    %104 = vector.shape_cast %103 : vector<1x1x128xf32> to vector<1x128xf32>
    %105 = arith.truncf %99 : vector<1x32xf32> to vector<1x32xbf16>
    %cst_41 = arith.constant dense<0.000000e+00> : vector<1x128xf32>
    %106 = tpu.matmul %105, %0, %cst_41 {dimension_numbers = #tpu.dot_dimension_numbers<[1], [0], [0], [1], [0, 0, 1, 1], [], []>} : vector<1x32xbf16>, vector<32x128xbf16>, vector<1x128xf32> -> vector<1x128xf32>
    %107 = arith.addf %104, %106 : vector<1x128xf32>
    %cst_42 = arith.constant 5.000000e-01 : f32
    %108 = vector.broadcast %cst_42 : f32 to vector<1x128xf32>
    %109 = arith.mulf %108, %107 : vector<1x128xf32>
    %110 = math.tanh %109 : vector<1x128xf32>
    %cst_43 = arith.constant 1.000000e+00 : f32
    %111 = vector.broadcast %cst_43 : f32 to vector<1x128xf32>
    %112 = arith.addf %110, %111 : vector<1x128xf32>
    %cst_44 = arith.constant 5.000000e-01 : f32
    %113 = vector.broadcast %cst_44 : f32 to vector<1x128xf32>
    %114 = arith.mulf %113, %112 : vector<1x128xf32>
    %115 = vector.extract_strided_slice %114 {offsets = [0, 0], sizes = [1, 32], strides = [1, 1]} : vector<1x128xf32> to vector<1x32xf32>
    %116 = vector.extract_strided_slice %114 {offsets = [0, 32], sizes = [1, 32], strides = [1, 1]} : vector<1x128xf32> to vector<1x32xf32>
    %117 = vector.extract_strided_slice %114 {offsets = [0, 96], sizes = [1, 32], strides = [1, 1]} : vector<1x128xf32> to vector<1x32xf32>
    %118 = vector.extract_strided_slice %107 {offsets = [0, 64], sizes = [1, 32], strides = [1, 1]} : vector<1x128xf32> to vector<1x32xf32>
    %119 = math.tanh %118 : vector<1x32xf32>
    %120 = arith.mulf %116, %97 : vector<1x32xf32>
    %121 = arith.mulf %115, %119 : vector<1x32xf32>
    %122 = arith.addf %120, %121 : vector<1x32xf32>
    %123 = math.tanh %122 : vector<1x32xf32>
    %124 = arith.mulf %117, %123 : vector<1x32xf32>
    %c0_45 = arith.constant 0 : index
    %c4_46 = arith.constant 4 : index
    %c0_47 = arith.constant 0 : index
    %125 = vector.load %arg3[%c0_45, %c4_46, %c0_47] : memref<1x8x32xf32, #tpu.memory_space<vmem>>, vector<1x1x32xf32>
    %126 = vector.shape_cast %125 : vector<1x1x32xf32> to vector<1x32xf32>
    %127 = vector.shape_cast %124 : vector<1x32xf32> to vector<1x1x32xf32>
    tpu.vector_store %arg3[%c0_45, %c4_46, %c0_47], %127 {strides = array<i32>} : memref<1x8x32xf32, #tpu.memory_space<vmem>>, vector<1x1x32xf32>,
    %c0_48 = arith.constant 0 : index
    %c5 = arith.constant 5 : index
    %c0_49 = arith.constant 0 : index
    %128 = vector.load %arg1[%c0_48, %c5, %c0_49] : memref<1x8x128xf32, #tpu.memory_space<vmem>>, vector<1x1x128xf32>
    %129 = vector.shape_cast %128 : vector<1x1x128xf32> to vector<1x128xf32>
    %130 = arith.truncf %124 : vector<1x32xf32> to vector<1x32xbf16>
    %cst_50 = arith.constant dense<0.000000e+00> : vector<1x128xf32>
    %131 = tpu.matmul %130, %0, %cst_50 {dimension_numbers = #tpu.dot_dimension_numbers<[1], [0], [0], [1], [0, 0, 1, 1], [], []>} : vector<1x32xbf16>, vector<32x128xbf16>, vector<1x128xf32> -> vector<1x128xf32>
    %132 = arith.addf %129, %131 : vector<1x128xf32>
    %cst_51 = arith.constant 5.000000e-01 : f32
    %133 = vector.broadcast %cst_51 : f32 to vector<1x128xf32>
    %134 = arith.mulf %133, %132 : vector<1x128xf32>
    %135 = math.tanh %134 : vector<1x128xf32>
    %cst_52 = arith.constant 1.000000e+00 : f32
    %136 = vector.broadcast %cst_52 : f32 to vector<1x128xf32>
    %137 = arith.addf %135, %136 : vector<1x128xf32>
    %cst_53 = arith.constant 5.000000e-01 : f32
    %138 = vector.broadcast %cst_53 : f32 to vector<1x128xf32>
    %139 = arith.mulf %138, %137 : vector<1x128xf32>
    %140 = vector.extract_strided_slice %139 {offsets = [0, 0], sizes = [1, 32], strides = [1, 1]} : vector<1x128xf32> to vector<1x32xf32>
    %141 = vector.extract_strided_slice %139 {offsets = [0, 32], sizes = [1, 32], strides = [1, 1]} : vector<1x128xf32> to vector<1x32xf32>
    %142 = vector.extract_strided_slice %139 {offsets = [0, 96], sizes = [1, 32], strides = [1, 1]} : vector<1x128xf32> to vector<1x32xf32>
    %143 = vector.extract_strided_slice %132 {offsets = [0, 64], sizes = [1, 32], strides = [1, 1]} : vector<1x128xf32> to vector<1x32xf32>
    %144 = math.tanh %143 : vector<1x32xf32>
    %145 = arith.mulf %141, %122 : vector<1x32xf32>
    %146 = arith.mulf %140, %144 : vector<1x32xf32>
    %147 = arith.addf %145, %146 : vector<1x32xf32>
    %148 = math.tanh %147 : vector<1x32xf32>
    %149 = arith.mulf %142, %148 : vector<1x32xf32>
    %c0_54 = arith.constant 0 : index
    %c5_55 = arith.constant 5 : index
    %c0_56 = arith.constant 0 : index
    %150 = vector.load %arg3[%c0_54, %c5_55, %c0_56] : memref<1x8x32xf32, #tpu.memory_space<vmem>>, vector<1x1x32xf32>
    %151 = vector.shape_cast %150 : vector<1x1x32xf32> to vector<1x32xf32>
    %152 = vector.shape_cast %149 : vector<1x32xf32> to vector<1x1x32xf32>
    tpu.vector_store %arg3[%c0_54, %c5_55, %c0_56], %152 {strides = array<i32>} : memref<1x8x32xf32, #tpu.memory_space<vmem>>, vector<1x1x32xf32>,
    %c0_57 = arith.constant 0 : index
    %c6 = arith.constant 6 : index
    %c0_58 = arith.constant 0 : index
    %153 = vector.load %arg1[%c0_57, %c6, %c0_58] : memref<1x8x128xf32, #tpu.memory_space<vmem>>, vector<1x1x128xf32>
    %154 = vector.shape_cast %153 : vector<1x1x128xf32> to vector<1x128xf32>
    %155 = arith.truncf %149 : vector<1x32xf32> to vector<1x32xbf16>
    %cst_59 = arith.constant dense<0.000000e+00> : vector<1x128xf32>
    %156 = tpu.matmul %155, %0, %cst_59 {dimension_numbers = #tpu.dot_dimension_numbers<[1], [0], [0], [1], [0, 0, 1, 1], [], []>} : vector<1x32xbf16>, vector<32x128xbf16>, vector<1x128xf32> -> vector<1x128xf32>
    %157 = arith.addf %154, %156 : vector<1x128xf32>
    %cst_60 = arith.constant 5.000000e-01 : f32
    %158 = vector.broadcast %cst_60 : f32 to vector<1x128xf32>
    %159 = arith.mulf %158, %157 : vector<1x128xf32>
    %160 = math.tanh %159 : vector<1x128xf32>
    %cst_61 = arith.constant 1.000000e+00 : f32
    %161 = vector.broadcast %cst_61 : f32 to vector<1x128xf32>
    %162 = arith.addf %160, %161 : vector<1x128xf32>
    %cst_62 = arith.constant 5.000000e-01 : f32
    %163 = vector.broadcast %cst_62 : f32 to vector<1x128xf32>
    %164 = arith.mulf %163, %162 : vector<1x128xf32>
    %165 = vector.extract_strided_slice %164 {offsets = [0, 0], sizes = [1, 32], strides = [1, 1]} : vector<1x128xf32> to vector<1x32xf32>
    %166 = vector.extract_strided_slice %164 {offsets = [0, 32], sizes = [1, 32], strides = [1, 1]} : vector<1x128xf32> to vector<1x32xf32>
    %167 = vector.extract_strided_slice %164 {offsets = [0, 96], sizes = [1, 32], strides = [1, 1]} : vector<1x128xf32> to vector<1x32xf32>
    %168 = vector.extract_strided_slice %157 {offsets = [0, 64], sizes = [1, 32], strides = [1, 1]} : vector<1x128xf32> to vector<1x32xf32>
    %169 = math.tanh %168 : vector<1x32xf32>
    %170 = arith.mulf %166, %147 : vector<1x32xf32>
    %171 = arith.mulf %165, %169 : vector<1x32xf32>
    %172 = arith.addf %170, %171 : vector<1x32xf32>
    %173 = math.tanh %172 : vector<1x32xf32>
    %174 = arith.mulf %167, %173 : vector<1x32xf32>
    %c0_63 = arith.constant 0 : index
    %c6_64 = arith.constant 6 : index
    %c0_65 = arith.constant 0 : index
    %175 = vector.load %arg3[%c0_63, %c6_64, %c0_65] : memref<1x8x32xf32, #tpu.memory_space<vmem>>, vector<1x1x32xf32>
    %176 = vector.shape_cast %175 : vector<1x1x32xf32> to vector<1x32xf32>
    %177 = vector.shape_cast %174 : vector<1x32xf32> to vector<1x1x32xf32>
    tpu.vector_store %arg3[%c0_63, %c6_64, %c0_65], %177 {strides = array<i32>} : memref<1x8x32xf32, #tpu.memory_space<vmem>>, vector<1x1x32xf32>,
    %c0_66 = arith.constant 0 : index
    %c7 = arith.constant 7 : index
    %c0_67 = arith.constant 0 : index
    %178 = vector.load %arg1[%c0_66, %c7, %c0_67] : memref<1x8x128xf32, #tpu.memory_space<vmem>>, vector<1x1x128xf32>
    %179 = vector.shape_cast %178 : vector<1x1x128xf32> to vector<1x128xf32>
    %180 = arith.truncf %174 : vector<1x32xf32> to vector<1x32xbf16>
    %cst_68 = arith.constant dense<0.000000e+00> : vector<1x128xf32>
    %181 = tpu.matmul %180, %0, %cst_68 {dimension_numbers = #tpu.dot_dimension_numbers<[1], [0], [0], [1], [0, 0, 1, 1], [], []>} : vector<1x32xbf16>, vector<32x128xbf16>, vector<1x128xf32> -> vector<1x128xf32>
    %182 = arith.addf %179, %181 : vector<1x128xf32>
    %cst_69 = arith.constant 5.000000e-01 : f32
    %183 = vector.broadcast %cst_69 : f32 to vector<1x128xf32>
    %184 = arith.mulf %183, %182 : vector<1x128xf32>
    %185 = math.tanh %184 : vector<1x128xf32>
    %cst_70 = arith.constant 1.000000e+00 : f32
    %186 = vector.broadcast %cst_70 : f32 to vector<1x128xf32>
    %187 = arith.addf %185, %186 : vector<1x128xf32>
    %cst_71 = arith.constant 5.000000e-01 : f32
    %188 = vector.broadcast %cst_71 : f32 to vector<1x128xf32>
    %189 = arith.mulf %188, %187 : vector<1x128xf32>
    %190 = vector.extract_strided_slice %189 {offsets = [0, 0], sizes = [1, 32], strides = [1, 1]} : vector<1x128xf32> to vector<1x32xf32>
    %191 = vector.extract_strided_slice %189 {offsets = [0, 32], sizes = [1, 32], strides = [1, 1]} : vector<1x128xf32> to vector<1x32xf32>
    %192 = vector.extract_strided_slice %189 {offsets = [0, 96], sizes = [1, 32], strides = [1, 1]} : vector<1x128xf32> to vector<1x32xf32>
    %193 = vector.extract_strided_slice %182 {offsets = [0, 64], sizes = [1, 32], strides = [1, 1]} : vector<1x128xf32> to vector<1x32xf32>
    %194 = math.tanh %193 : vector<1x32xf32>
    %195 = arith.mulf %191, %172 : vector<1x32xf32>
    %196 = arith.mulf %190, %194 : vector<1x32xf32>
    %197 = arith.addf %195, %196 : vector<1x32xf32>
    %198 = math.tanh %197 : vector<1x32xf32>
    %199 = arith.mulf %192, %198 : vector<1x32xf32>
    %c0_72 = arith.constant 0 : index
    %c7_73 = arith.constant 7 : index
    %c0_74 = arith.constant 0 : index
    %200 = vector.load %arg3[%c0_72, %c7_73, %c0_74] : memref<1x8x32xf32, #tpu.memory_space<vmem>>, vector<1x1x32xf32>
    %201 = vector.shape_cast %200 : vector<1x1x32xf32> to vector<1x32xf32>
    %202 = vector.shape_cast %199 : vector<1x32xf32> to vector<1x1x32xf32>
    tpu.vector_store %arg3[%c0_72, %c7_73, %c0_74], %202 {strides = array<i32>} : memref<1x8x32xf32, #tpu.memory_space<vmem>>, vector<1x1x32xf32>,
    return
  }
  func.func @transform_0(%arg0: i32) -> (i32, i32, i32) {
    %c0_i32 = arith.constant 0 : i32
    %c0_i32_0 = arith.constant 0 : i32
    %c0_i32_1 = arith.constant 0 : i32
    return %arg0, %c0_i32, %c0_i32_0 : i32, i32, i32
  }
  func.func @transform_1(%arg0: i32) -> (i32, i32) {
    %c0_i32 = arith.constant 0 : i32
    %c0_i32_0 = arith.constant 0 : i32
    %c0_i32_1 = arith.constant 0 : i32
    return %c0_i32, %c0_i32_0 : i32, i32
  }
  func.func @transform_2(%arg0: i32) -> (i32, i32, i32) {
    %c0_i32 = arith.constant 0 : i32
    %c0_i32_0 = arith.constant 0 : i32
    %c0_i32_1 = arith.constant 0 : i32
    return %arg0, %c0_i32, %c0_i32_0 : i32, i32, i32
  }
}

</mosaic_0001>

<llo_original>
// kernel: cnn_lstm_forward.4
$region0: #{cnn_lstm_forward.4}
  #allocation0 [shape = 'u32[]', space=smem, size = 0x4, offset = 0x4, fixed_abs, tag = 'smem constant byte address 0x4 - core index']
  #allocation1 [shape = 'u32[144,128]{1,0:T(1,128)}', space=vmem, size = 0x12000, scoped, tag = 'internal scratch']
  %s0 = inlined_call_operand.vmem [shape: f32[2,8,128], index: 0, kind: input, shape index: {}]
  %s1 = inlined_call_operand.vmem [shape: bf16[32,128], index: 1, kind: input, shape index: {}]
  %s2 = inlined_call_operand.vmem [shape: f32[2,8,32], index: 2, kind: output, shape index: {}]
  %s3 = sld [smem:[#allocation0]]
  $region41: #{cnn_lstm_forward.4} parent=0
    _
  %s5 = ssub.s32 1, %s3
  %s6 = scalar_select 0, %s5, %s3
  loop: start=0, step=1, limit=4
  $region2: #{cnn_lstm_forward.4} parent=0 // loop_pre_header
    _
  $region3: #{cnn_lstm_forward.4} parent=0 // loop_header
    %s8 = sphi 0, %s12
    %p9 = scmp.ge.s32.totalorder %s8, 4
    %s18 = sphi 0, %s20
    %s21 = sphi 0, %s18
    %s22 = sphi 0, %s21
    %s38 = sphi 0, %s22
    %s42 = sphi 0, %s42
    %s44 = sphi 0, %s42
    %s45 = sphi 0, %s44
    %s59 = sphi 0, %s45
    %s65 = sphi 0, %s67
    %s68 = sphi 0, %s65
    %s69 = sphi 0, %s68
    %s85 = sphi 0, %s69
  $region4: #{cnn_lstm_forward.4} parent=0 // loop_header_branch
    %11 = sbr.rel (%p9) target = $region8
  $region5: #{cnn_lstm_forward.4} parent=0 // loop_body
    %s13 = ssub.s32 %s8, 1
    %s14 = ssub.s32 %s8, 2
    %s15 = sadd.s32 %s8, 1
    %s16 = ssub.s32 %s8, %s15
    %p17 = scmp.eq.s32.totalorder %s16, 0
    %s19 = sadd.s32 %s18, 1
    %s20 = scalar_select %p17, %s18, %s19
    %p23 = pneg %p17
    %p24 = scmp.eq.s32.totalorder %s8, 1
    %p25 = por %p23, %p24
    %p26 = scmp.ne.s32.totalorder %s18, %s21
    %p27 = scmp.eq.s32.totalorder %s8, 0
    %p28 = por %p26, %p27
    %p29 = scmp.ne.s32.totalorder %s18, %s21
    %p30 = scmp.eq.s32.totalorder %s13, 1
    %p31 = por %p29, %p30
    %p32 = scmp.ne.s32.totalorder %s21, %s22
    %p33 = scmp.eq.s32.totalorder %s13, 0
    %p34 = por %p32, %p33
    %p35 = scmp.ne.s32.totalorder %s21, %s22
    %p36 = scmp.eq.s32.totalorder %s14, 1
    %p37 = por %p35, %p36
    %p39 = scmp.ne.s32.totalorder %s22, %s38
    %p40 = scmp.eq.s32.totalorder %s14, 0
    %p41 = por %p39, %p40
    %s43 = sadd.s32 %s42, 1
    %p46 = scmp.eq.s32.totalorder %s8, 1
    %p47 = scmp.ne.s32.totalorder %s42, %s44
    %p48 = scmp.eq.s32.totalorder %s8, 0
    %p49 = por %p47, %p48
    %p50 = scmp.ne.s32.totalorder %s42, %s44
    %p51 = scmp.eq.s32.totalorder %s13, 1
    %p52 = por %p50, %p51
    %p53 = scmp.ne.s32.totalorder %s44, %s45
    %p54 = scmp.eq.s32.totalorder %s13, 0
    %p55 = por %p53, %p54
    %p56 = scmp.ne.s32.totalorder %s44, %s45
    %p57 = scmp.eq.s32.totalorder %s14, 1
    %p58 = por %p56, %p57
    %p60 = scmp.ne.s32.totalorder %s45, %s59
    %p61 = scmp.eq.s32.totalorder %s14, 0
    %p62 = por %p60, %p61
    %s63 = ssub.s32 %s8, %s15
    %p64 = scmp.eq.s32.totalorder %s63, 0
    %s66 = sadd.s32 %s65, 1
    %s67 = scalar_select %p64, %s65, %s66
    %p70 = pneg %p64
    %p71 = scmp.eq.s32.totalorder %s8, 1
    %p72 = por %p70, %p71
    %p73 = scmp.ne.s32.totalorder %s65, %s68
    %p74 = scmp.eq.s32.totalorder %s8, 0
    %p75 = por %p73, %p74
    %p76 = scmp.ne.s32.totalorder %s65, %s68
    %p77 = scmp.eq.s32.totalorder %s13, 1
    %p78 = por %p76, %p77
    %p79 = scmp.ne.s32.totalorder %s68, %s69
    %p80 = scmp.eq.s32.totalorder %s13, 0
    %p81 = por %p79, %p80
    %p82 = scmp.ne.s32.totalorder %s68, %s69
    %p83 = scmp.eq.s32.totalorder %s14, 1
    %p84 = por %p82, %p83
    %p86 = scmp.ne.s32.totalorder %s69, %s85
    %p87 = scmp.eq.s32.totalorder %s14, 0
    %p88 = por %p86, %p87
    %p89 = scmp.le.s32.totalorder 1, %s8
    %p90 = scmp.lt.s32.totalorder %s8, 3
    %p91 = pnand %p89, %p90
    %p92 = pneg %p91
    // Predicated region
    $region9: #{cnn_lstm_forward.4} parent=5 // pred_check
      _
    $region10: #{cnn_lstm_forward.4} parent=5 // pred_check_branch
      %94 = sbr.rel (%p91) target = $region12
    $region11: #{cnn_lstm_forward.4} parent=5 // pred_region
      %s95 = ssub.s32 %s8, 1
      // Predicated region
      $region13: #{cnn_lstm_forward.4} parent=11 // pred_check
        %p96 = pneg %p55
      $region14: #{cnn_lstm_forward.4} parent=11 // pred_check_branch
        %98 = sbr.rel (%p96) target = $region16
      $region15: #{cnn_lstm_forward.4} parent=11 // pred_region
        _
      $region16: #{cnn_lstm_forward.4} parent=11 // pred_fallthru
        _
    $region12: #{cnn_lstm_forward.4} parent=5 // pred_fallthru
      _
    %p99 = scmp.lt.s32.totalorder %s8, 2
    // Predicated region
    $region17: #{cnn_lstm_forward.4} parent=5 // pred_check
      %p100 = pneg %p99
    $region18: #{cnn_lstm_forward.4} parent=5 // pred_check_branch
      %102 = sbr.rel (%p100) target = $region20
    $region19: #{cnn_lstm_forward.4} parent=5 // pred_region
      // Predicated region
      $region21: #{cnn_lstm_forward.4} parent=19 // pred_check
        %p103 = pneg %p28
      $region22: #{cnn_lstm_forward.4} parent=19 // pred_check_branch
        %105 = sbr.rel (%p103) target = $region24
      $region23: #{cnn_lstm_forward.4} parent=19 // pred_region
        %p106 = scmp.lt.s32.totalorder %s8, 1
        %s107 = scalar_select %p106, %s8, 1
        %s108 = smul.addr %s107, 8
        %s109 = scalar_lea.vmem %s0, %s108
      $region24: #{cnn_lstm_forward.4} parent=19 // pred_fallthru
        _
    $region20: #{cnn_lstm_forward.4} parent=5 // pred_fallthru
      _
    %p110 = scmp.le.s32.totalorder 1, %s8
    %p111 = scmp.lt.s32.totalorder %s8, 3
    %p112 = pnand %p110, %p111
    %p113 = pneg %p112
    // Predicated region
    $region25: #{cnn_lstm_forward.4} parent=5 // pred_check
      _
    $region26: #{cnn_lstm_forward.4} parent=5 // pred_check_branch
      %115 = sbr.rel (%p112) target = $region28
    $region27: #{cnn_lstm_forward.4} parent=5 // pred_region
      %s116 = ssub.s32 %s8, 1
      %p117 = scmp.lt.s32.totalorder %s13, 1
      %s118 = scalar_select %p117, %s13, 1
      %s119 = smul.addr %s118, 8
      %s120 = scalar_lea.vmem %s0, %s119
      %p121 = pneg %p34
      %p122 = pneg %p31
      %p123 = pneg %p55
      %p124 = pneg %p52
      %p125 = pneg %p81
      %p126 = pneg %p78
      %p127 = scmp.lt.s32.totalorder %s13, 1
      %s128 = scalar_select %p127, %s13, 1
      %s129 = smul.addr %s128, 8
      %s130 = scalar_lea.vmem %s2, %s129
      %p131 = scmp.lt.s32.totalorder %s13, 1
      %s132 = scalar_select %p131, %s13, 1
      %s133 = smul.addr %s132, 8
      %s134 = scalar_lea.vmem %s0, %s133
      %p135 = scmp.lt.s32.totalorder %s13, 1
      %s136 = scalar_select %p135, %s13, 1
      %s137 = smul.addr %s136, 8
      %s138 = scalar_lea.vmem %s2, %s137
      %v140 = vld [vmem:[%s1] sm:$0xf]
      %v141 = vld [vmem:[%s1 + $0x4] sm:$0xf]
      %v142 = vld [vmem:[%s1 + $0x8] sm:$0xf]
      %v143 = vld [vmem:[%s1 + $0xc] sm:$0xf]
      %v144 = vld [vmem:[%s134] sm:$0x1]
      %v149 = vunpack.c.l.b16 %v140
      %v150 = vunpack.c.l.b16 %v141
      %v151 = vunpack.c.l.b16 %v142
      %v152 = vunpack.c.l.b16 %v143
      %v153 = vpack.c.b16 %v150, %v149
      %v154 = vpack.c.b16 %v152, %v151
      %vm157 = vcmask 261120
      %v159 = vsel %vm157, 0, 0
      %161 = vmatprep.subr.bf16.mxu0 0
      %162 = vmatpush1.bf16.msra.mxu0 %v153
      %163 = vmatprep.subr.bf16.mxu0 0
      %164 = vmatpush1.bf16.msra.mxu0 %v154
      %165 = vmatprep.subr.bf16.mxu0 0
      %166 = vmatpush1.bf16.msra.mxu0 0
      %167 = vmatprep.subr.bf16.mxu0 0
      %168 = vmatpush1.bf16.msra.mxu0 0
      %169 = vmatprep.subr.bf16.mxu0 0
      %170 = vmatpush1.bf16.msra.mxu0 0
      %171 = vmatprep.subr.bf16.mxu0 0
      %172 = vmatpush1.bf16.msra.mxu0 0
      %173 = vmatprep.subr.bf16.mxu0 0
      %174 = vmatpush1.bf16.msra.mxu0 0
      %175 = vmatprep.subr.bf16.mxu0 0
      %176 = vmatpush1.bf16.msra.mxu0 0
      %177 = vmatprep.subr.bf16.mxu0 0
      %178 = vmatpush1.bf16.msra.mxu0 0
      %179 = vmatprep.subr.bf16.mxu0 0
      %180 = vmatpush1.bf16.msra.mxu0 0
      %181 = vmatprep.subr.bf16.mxu0 0
      %182 = vmatpush1.bf16.msra.mxu0 0
      %183 = vmatprep.subr.bf16.mxu0 0
      %184 = vmatpush1.bf16.msra.mxu0 0
      %185 = vmatprep.subr.bf16.mxu0 0
      %186 = vmatpush1.bf16.msra.mxu0 0
      %187 = vmatprep.subr.bf16.mxu0 0
      %188 = vmatpush1.bf16.msra.mxu0 0
      %189 = vmatprep.subr.bf16.mxu0 0
      %190 = vmatpush1.bf16.msra.mxu0 0
      %191 = vmatprep.subr.bf16.mxu0 0
      %192 = vmatpush1.bf16.msra.mxu0 0
      %193 = vmatprep.mubr.bf16.mxu0 0
      %194 = vmatmul.mubr.bf16.gmra.mrb[0].mxu0 %v159
      %v195 = vpop.f32.mrb[0].mxu0
      %v196 = vadd.f32 0.0, %v195
      %v197 = vpop.f32.mrb[0].mxu0
      %v198 = vpop.f32.mrb[0].mxu0
      %v199 = vpop.f32.mrb[0].mxu0
      %200 = vdwg.mxu0
      %v201 = vadd.f32 %v144, %v196
      %v202 = vmul.f32 %v201, 0.5
      %v203 = vtanh.pop %v202
      %v204 = vadd.f32 %v203, 1.0
      %v205 = vmul.f32 %v204, 0.5
      %v206 = vtanh.pop %v201
      %v207 = vmul.f32 %v205, 0.0
      %209 = vrot.lane.b32.xlu0 %v206, 64
      %v210 = vpop.permute.xlu0 %209
      %v212 = vmul.f32 %v205, %v210
      %214 = vrot.lane.b32.xlu0 %v212, 32
      %v215 = vpop.permute.xlu0 %214
      %v217 = vadd.f32 %v207, %v215
      %v218 = vtanh.pop %v217
      %220 = vrot.lane.b32.xlu0 %v218, 64
      %v221 = vpop.permute.xlu0 %220
      %v223 = vmul.f32 %v205, %v221
      %225 = vrot.lane.b32.xlu0 %v223, 32
      %v226 = vpop.permute.xlu0 %225
      %vm228 = vcmask 253952
      %229 = vst.msk [vmem:[%s138] sm:$0x1] %vm228, %v226
      %v230 = vld [vmem:[%s134 + $0x1] sm:$0x1]
      %v231 = vpack.c.bf16 %v223, %v223
      %233 = vrot.lane.b32.xlu0 %v231, 32
      %v234 = vpop.permute.xlu0 %233
      %v236 = vsel %vm157, %v234, 0
      %238 = vmatprep.subr.bf16.mxu0 0
      %239 = vmatpush1.bf16.msra.mxu0 %v153
      %240 = vmatprep.subr.bf16.mxu0 0
      %241 = vmatpush1.bf16.msra.mxu0 %v154
      %242 = vmatprep.subr.bf16.mxu0 0
      %243 = vmatpush1.bf16.msra.mxu0 0
      %244 = vmatprep.subr.bf16.mxu0 0
      %245 = vmatpush1.bf16.msra.mxu0 0
      %246 = vmatprep.subr.bf16.mxu0 0
      %247 = vmatpush1.bf16.msra.mxu0 0
      %248 = vmatprep.subr.bf16.mxu0 0
      %249 = vmatpush1.bf16.msra.mxu0 0
      %250 = vmatprep.subr.bf16.mxu0 0
      %251 = vmatpush1.bf16.msra.mxu0 0
      %252 = vmatprep.subr.bf16.mxu0 0
      %253 = vmatpush1.bf16.msra.mxu0 0
      %254 = vmatprep.subr.bf16.mxu0 0
      %255 = vmatpush1.bf16.msra.mxu0 0
      %256 = vmatprep.subr.bf16.mxu0 0
      %257 = vmatpush1.bf16.msra.mxu0 0
      %258 = vmatprep.subr.bf16.mxu0 0
      %259 = vmatpush1.bf16.msra.mxu0 0
      %260 = vmatprep.subr.bf16.mxu0 0
      %261 = vmatpush1.bf16.msra.mxu0 0
      %262 = vmatprep.subr.bf16.mxu0 0
      %263 = vmatpush1.bf16.msra.mxu0 0
      %264 = vmatprep.subr.bf16.mxu0 0
      %265 = vmatpush1.bf16.msra.mxu0 0
      %266 = vmatprep.subr.bf16.mxu0 0
      %267 = vmatpush1.bf16.msra.mxu0 0
      %268 = vmatprep.subr.bf16.mxu0 0
      %269 = vmatpush1.bf16.msra.mxu0 0
      %270 = vmatprep.mubr.bf16.mxu0 0
      %271 = vmatmul.mubr.bf16.gmra.mrb[0].mxu0 %v236
      %v272 = vpop.f32.mrb[0].mxu0
      %v273 = vadd.f32 0.0, %v272
      %v274 = vpop.f32.mrb[0].mxu0
      %v275 = vpop.f32.mrb[0].mxu0
      %v276 = vpop.f32.mrb[0].mxu0
      %277 = vdwg.mxu0
      %v278 = vadd.f32 %v230, %v273
      %v279 = vmul.f32 %v278, 0.5
      %v280 = vtanh.pop %v279
      %v281 = vadd.f32 %v280, 1.0
      %v282 = vmul.f32 %v281, 0.5
      %v283 = vtanh.pop %v278
      %v284 = vmul.f32 %v282, %v217
      %286 = vrot.lane.b32.xlu0 %v283, 64
      %v287 = vpop.permute.xlu0 %286
      %v289 = vmul.f32 %v282, %v287
      %291 = vrot.lane.b32.xlu0 %v289, 32
      %v292 = vpop.permute.xlu0 %291
      %v294 = vadd.f32 %v284, %v292
      %v295 = vtanh.pop %v294
      %297 = vrot.lane.b32.xlu0 %v295, 64
      %v298 = vpop.permute.xlu0 %297
      %v300 = vmul.f32 %v282, %v298
      %302 = vrot.lane.b32.xlu0 %v300, 32
      %v303 = vpop.permute.xlu0 %302
      %305 = vst.msk [vmem:[%s138 + $0x1] sm:$0x1] %vm228, %v303
      %v306 = vld [vmem:[%s134 + $0x2] sm:$0x1]
      %v307 = vpack.c.bf16 %v300, %v300
      %309 = vrot.lane.b32.xlu0 %v307, 32
      %v310 = vpop.permute.xlu0 %309
      %v312 = vsel %vm157, %v310, 0
      %314 = vmatprep.subr.bf16.mxu0 0
      %315 = vmatpush1.bf16.msra.mxu0 %v153
      %316 = vmatprep.subr.bf16.mxu0 0
      %317 = vmatpush1.bf16.msra.mxu0 %v154
      %318 = vmatprep.subr.bf16.mxu0 0
      %319 = vmatpush1.bf16.msra.mxu0 0
      %320 = vmatprep.subr.bf16.mxu0 0
      %321 = vmatpush1.bf16.msra.mxu0 0
      %322 = vmatprep.subr.bf16.mxu0 0
      %323 = vmatpush1.bf16.msra.mxu0 0
      %324 = vmatprep.subr.bf16.mxu0 0
      %325 = vmatpush1.bf16.msra.mxu0 0
      %326 = vmatprep.subr.bf16.mxu0 0
      %327 = vmatpush1.bf16.msra.mxu0 0
      %328 = vmatprep.subr.bf16.mxu0 0
      %329 = vmatpush1.bf16.msra.mxu0 0
      %330 = vmatprep.subr.bf16.mxu0 0
      %331 = vmatpush1.bf16.msra.mxu0 0
      %332 = vmatprep.subr.bf16.mxu0 0
      %333 = vmatpush1.bf16.msra.mxu0 0
      %334 = vmatprep.subr.bf16.mxu0 0
      %335 = vmatpush1.bf16.msra.mxu0 0
      %336 = vmatprep.subr.bf16.mxu0 0
      %337 = vmatpush1.bf16.msra.mxu0 0
      %338 = vmatprep.subr.bf16.mxu0 0
      %339 = vmatpush1.bf16.msra.mxu0 0
      %340 = vmatprep.subr.bf16.mxu0 0
      %341 = vmatpush1.bf16.msra.mxu0 0
      %342 = vmatprep.subr.bf16.mxu0 0
      %343 = vmatpush1.bf16.msra.mxu0 0
      %344 = vmatprep.subr.bf16.mxu0 0
      %345 = vmatpush1.bf16.msra.mxu0 0
      %346 = vmatprep.mubr.bf16.mxu0 0
      %347 = vmatmul.mubr.bf16.gmra.mrb[0].mxu0 %v312
      %v348 = vpop.f32.mrb[0].mxu0
      %v349 = vadd.f32 0.0, %v348
      %v350 = vpop.f32.mrb[0].mxu0
      %v351 = vpop.f32.mrb[0].mxu0
      %v352 = vpop.f32.mrb[0].mxu0
      %353 = vdwg.mxu0
      %v354 = vadd.f32 %v306, %v349
      %v355 = vmul.f32 %v354, 0.5
      %v356 = vtanh.pop %v355
      %v357 = vadd.f32 %v356, 1.0
      %v358 = vmul.f32 %v357, 0.5
      %v359 = vtanh.pop %v354
      %v360 = vmul.f32 %v358, %v294
      %362 = vrot.lane.b32.xlu0 %v359, 64
      %v363 = vpop.permute.xlu0 %362
      %v365 = vmul.f32 %v358, %v363
      %367 = vrot.lane.b32.xlu0 %v365, 32
      %v368 = vpop.permute.xlu0 %367
      %v370 = vadd.f32 %v360, %v368
      %v371 = vtanh.pop %v370
      %373 = vrot.lane.b32.xlu0 %v371, 64
      %v374 = vpop.permute.xlu0 %373
      %v376 = vmul.f32 %v358, %v374
      %378 = vrot.lane.b32.xlu0 %v376, 32
      %v379 = vpop.permute.xlu0 %378
      %381 = vst.msk [vmem:[%s138 + $0x2] sm:$0x1] %vm228, %v379
      %v382 = vld [vmem:[%s134 + $0x3] sm:$0x1]
      %v383 = vpack.c.bf16 %v376, %v376
      %385 = vrot.lane.b32.xlu0 %v383, 32
      %v386 = vpop.permute.xlu0 %385
      %v388 = vsel %vm157, %v386, 0
      %390 = vmatprep.subr.bf16.mxu0 0
      %391 = vmatpush1.bf16.msra.mxu0 %v153
      %392 = vmatprep.subr.bf16.mxu0 0
      %393 = vmatpush1.bf16.msra.mxu0 %v154
      %394 = vmatprep.subr.bf16.mxu0 0
      %395 = vmatpush1.bf16.msra.mxu0 0
      %396 = vmatprep.subr.bf16.mxu0 0
      %397 = vmatpush1.bf16.msra.mxu0 0
      %398 = vmatprep.subr.bf16.mxu0 0
      %399 = vmatpush1.bf16.msra.mxu0 0
      %400 = vmatprep.subr.bf16.mxu0 0
      %401 = vmatpush1.bf16.msra.mxu0 0
      %402 = vmatprep.subr.bf16.mxu0 0
      %403 = vmatpush1.bf16.msra.mxu0 0
      %404 = vmatprep.subr.bf16.mxu0 0
      %405 = vmatpush1.bf16.msra.mxu0 0
      %406 = vmatprep.subr.bf16.mxu0 0
      %407 = vmatpush1.bf16.msra.mxu0 0
      %408 = vmatprep.subr.bf16.mxu0 0
      %409 = vmatpush1.bf16.msra.mxu0 0
      %410 = vmatprep.subr.bf16.mxu0 0
      %411 = vmatpush1.bf16.msra.mxu0 0
      %412 = vmatprep.subr.bf16.mxu0 0
      %413 = vmatpush1.bf16.msra.mxu0 0
      %414 = vmatprep.subr.bf16.mxu0 0
      %415 = vmatpush1.bf16.msra.mxu0 0
      %416 = vmatprep.subr.bf16.mxu0 0
      %417 = vmatpush1.bf16.msra.mxu0 0
      %418 = vmatprep.subr.bf16.mxu0 0
      %419 = vmatpush1.bf16.msra.mxu0 0
      %420 = vmatprep.subr.bf16.mxu0 0
      %421 = vmatpush1.bf16.msra.mxu0 0
      %422 = vmatprep.mubr.bf16.mxu0 0
      %423 = vmatmul.mubr.bf16.gmra.mrb[0].mxu0 %v388
      %v424 = vpop.f32.mrb[0].mxu0
      %v425 = vadd.f32 0.0, %v424
      %v426 = vpop.f32.mrb[0].mxu0
      %v427 = vpop.f32.mrb[0].mxu0
      %v428 = vpop.f32.mrb[0].mxu0
      %429 = vdwg.mxu0
      %v430 = vadd.f32 %v382, %v425
      %v431 = vmul.f32 %v430, 0.5
      %v432 = vtanh.pop %v431
      %v433 = vadd.f32 %v432, 1.0
      %v434 = vmul.f32 %v433, 0.5
      %v435 = vtanh.pop %v430
      %v436 = vmul.f32 %v434, %v370
      %438 = vrot.lane.b32.xlu0 %v435, 64
      %v439 = vpop.permute.xlu0 %438
      %v441 = vmul.f32 %v434, %v439
      %443 = vrot.lane.b32.xlu0 %v441, 32
      %v444 = vpop.permute.xlu0 %443
      %v446 = vadd.f32 %v436, %v444
      %v447 = vtanh.pop %v446
      %449 = vrot.lane.b32.xlu0 %v447, 64
      %v450 = vpop.permute.xlu0 %449
      %v452 = vmul.f32 %v434, %v450
      %454 = vrot.lane.b32.xlu0 %v452, 32
      %v455 = vpop.permute.xlu0 %454
      %457 = vst.msk [vmem:[%s138 + $0x3] sm:$0x1] %vm228, %v455
      %v458 = vld [vmem:[%s134 + $0x4] sm:$0x1]
      %v459 = vpack.c.bf16 %v452, %v452
      %461 = vrot.lane.b32.xlu0 %v459, 32
      %v462 = vpop.permute.xlu0 %461
      %v464 = vsel %vm157, %v462, 0
      %466 = vmatprep.subr.bf16.mxu0 0
      %467 = vmatpush1.bf16.msra.mxu0 %v153
      %468 = vmatprep.subr.bf16.mxu0 0
      %469 = vmatpush1.bf16.msra.mxu0 %v154
      %470 = vmatprep.subr.bf16.mxu0 0
      %471 = vmatpush1.bf16.msra.mxu0 0
      %472 = vmatprep.subr.bf16.mxu0 0
      %473 = vmatpush1.bf16.msra.mxu0 0
      %474 = vmatprep.subr.bf16.mxu0 0
      %475 = vmatpush1.bf16.msra.mxu0 0
      %476 = vmatprep.subr.bf16.mxu0 0
      %477 = vmatpush1.bf16.msra.mxu0 0
      %478 = vmatprep.subr.bf16.mxu0 0
      %479 = vmatpush1.bf16.msra.mxu0 0
      %480 = vmatprep.subr.bf16.mxu0 0
      %481 = vmatpush1.bf16.msra.mxu0 0
      %482 = vmatprep.subr.bf16.mxu0 0
      %483 = vmatpush1.bf16.msra.mxu0 0
      %484 = vmatprep.subr.bf16.mxu0 0
      %485 = vmatpush1.bf16.msra.mxu0 0
      %486 = vmatprep.subr.bf16.mxu0 0
      %487 = vmatpush1.bf16.msra.mxu0 0
      %488 = vmatprep.subr.bf16.mxu0 0
      %489 = vmatpush1.bf16.msra.mxu0 0
      %490 = vmatprep.subr.bf16.mxu0 0
      %491 = vmatpush1.bf16.msra.mxu0 0
      %492 = vmatprep.subr.bf16.mxu0 0
      %493 = vmatpush1.bf16.msra.mxu0 0
      %494 = vmatprep.subr.bf16.mxu0 0
      %495 = vmatpush1.bf16.msra.mxu0 0
      %496 = vmatprep.subr.bf16.mxu0 0
      %497 = vmatpush1.bf16.msra.mxu0 0
      %498 = vmatprep.mubr.bf16.mxu0 0
      %499 = vmatmul.mubr.bf16.gmra.mrb[0].mxu0 %v464
      %v500 = vpop.f32.mrb[0].mxu0
      %v501 = vadd.f32 0.0, %v500
      %v502 = vpop.f32.mrb[0].mxu0
      %v503 = vpop.f32.mrb[0].mxu0
      %v504 = vpop.f32.mrb[0].mxu0
      %505 = vdwg.mxu0
      %v506 = vadd.f32 %v458, %v501
      %v507 = vmul.f32 %v506, 0.5
      %v508 = vtanh.pop %v507
      %v509 = vadd.f32 %v508, 1.0
      %v510 = vmul.f32 %v509, 0.5
      %v511 = vtanh.pop %v506
      %v512 = vmul.f32 %v510, %v446
      %514 = vrot.lane.b32.xlu0 %v511, 64
      %v515 = vpop.permute.xlu0 %514
      %v517 = vmul.f32 %v510, %v515
      %519 = vrot.lane.b32.xlu0 %v517, 32
      %v520 = vpop.permute.xlu0 %519
      %v522 = vadd.f32 %v512, %v520
      %v523 = vtanh.pop %v522
      %525 = vrot.lane.b32.xlu0 %v523, 64
      %v526 = vpop.permute.xlu0 %525
      %v528 = vmul.f32 %v510, %v526
      %530 = vrot.lane.b32.xlu0 %v528, 32
      %v531 = vpop.permute.xlu0 %530
      %533 = vst.msk [vmem:[%s138 + $0x4] sm:$0x1] %vm228, %v531
      %v534 = vld [vmem:[%s134 + $0x5] sm:$0x1]
      %v535 = vpack.c.bf16 %v528, %v528
      %537 = vrot.lane.b32.xlu0 %v535, 32
      %v538 = vpop.permute.xlu0 %537
      %v540 = vsel %vm157, %v538, 0
      %542 = vmatprep.subr.bf16.mxu0 0
      %543 = vmatpush1.bf16.msra.mxu0 %v153
      %544 = vmatprep.subr.bf16.mxu0 0
      %545 = vmatpush1.bf16.msra.mxu0 %v154
      %546 = vmatprep.subr.bf16.mxu0 0
      %547 = vmatpush1.bf16.msra.mxu0 0
      %548 = vmatprep.subr.bf16.mxu0 0
      %549 = vmatpush1.bf16.msra.mxu0 0
      %550 = vmatprep.subr.bf16.mxu0 0
      %551 = vmatpush1.bf16.msra.mxu0 0
      %552 = vmatprep.subr.bf16.mxu0 0
      %553 = vmatpush1.bf16.msra.mxu0 0
      %554 = vmatprep.subr.bf16.mxu0 0
      %555 = vmatpush1.bf16.msra.mxu0 0
      %556 = vmatprep.subr.bf16.mxu0 0
      %557 = vmatpush1.bf16.msra.mxu0 0
      %558 = vmatprep.subr.bf16.mxu0 0
      %559 = vmatpush1.bf16.msra.mxu0 0
      %560 = vmatprep.subr.bf16.mxu0 0
      %561 = vmatpush1.bf16.msra.mxu0 0
      %562 = vmatprep.subr.bf16.mxu0 0
      %563 = vmatpush1.bf16.msra.mxu0 0
      %564 = vmatprep.subr.bf16.mxu0 0
      %565 = vmatpush1.bf16.msra.mxu0 0
      %566 = vmatprep.subr.bf16.mxu0 0
      %567 = vmatpush1.bf16.msra.mxu0 0
      %568 = vmatprep.subr.bf16.mxu0 0
      %569 = vmatpush1.bf16.msra.mxu0 0
      %570 = vmatprep.subr.bf16.mxu0 0
      %571 = vmatpush1.bf16.msra.mxu0 0
      %572 = vmatprep.subr.bf16.mxu0 0
      %573 = vmatpush1.bf16.msra.mxu0 0
      %574 = vmatprep.mubr.bf16.mxu0 0
      %575 = vmatmul.mubr.bf16.gmra.mrb[0].mxu0 %v540
      %v576 = vpop.f32.mrb[0].mxu0
      %v577 = vadd.f32 0.0, %v576
      %v578 = vpop.f32.mrb[0].mxu0
      %v579 = vpop.f32.mrb[0].mxu0
      %v580 = vpop.f32.mrb[0].mxu0
      %581 = vdwg.mxu0
      %v582 = vadd.f32 %v534, %v577
      %v583 = vmul.f32 %v582, 0.5
      %v584 = vtanh.pop %v583
      %v585 = vadd.f32 %v584, 1.0
      %v586 = vmul.f32 %v585, 0.5
      %v587 = vtanh.pop %v582
      %v588 = vmul.f32 %v586, %v522
      %590 = vrot.lane.b32.xlu0 %v587, 64
      %v591 = vpop.permute.xlu0 %590
      %v593 = vmul.f32 %v586, %v591
      %595 = vrot.lane.b32.xlu0 %v593, 32
      %v596 = vpop.permute.xlu0 %595
      %v598 = vadd.f32 %v588, %v596
      %v599 = vtanh.pop %v598
      %601 = vrot.lane.b32.xlu0 %v599, 64
      %v602 = vpop.permute.xlu0 %601
      %v604 = vmul.f32 %v586, %v602
      %606 = vrot.lane.b32.xlu0 %v604, 32
      %v607 = vpop.permute.xlu0 %606
      %609 = vst.msk [vmem:[%s138 + $0x5] sm:$0x1] %vm228, %v607
      %v610 = vld [vmem:[%s134 + $0x6] sm:$0x1]
      %v611 = vpack.c.bf16 %v604, %v604
      %613 = vrot.lane.b32.xlu0 %v611, 32
      %v614 = vpop.permute.xlu0 %613
      %v616 = vsel %vm157, %v614, 0
      %618 = vmatprep.subr.bf16.mxu0 0
      %619 = vmatpush1.bf16.msra.mxu0 %v153
      %620 = vmatprep.subr.bf16.mxu0 0
      %621 = vmatpush1.bf16.msra.mxu0 %v154
      %622 = vmatprep.subr.bf16.mxu0 0
      %623 = vmatpush1.bf16.msra.mxu0 0
      %624 = vmatprep.subr.bf16.mxu0 0
      %625 = vmatpush1.bf16.msra.mxu0 0
      %626 = vmatprep.subr.bf16.mxu0 0
      %627 = vmatpush1.bf16.msra.mxu0 0
      %628 = vmatprep.subr.bf16.mxu0 0
      %629 = vmatpush1.bf16.msra.mxu0 0
      %630 = vmatprep.subr.bf16.mxu0 0
      %631 = vmatpush1.bf16.msra.mxu0 0
      %632 = vmatprep.subr.bf16.mxu0 0
      %633 = vmatpush1.bf16.msra.mxu0 0
      %634 = vmatprep.subr.bf16.mxu0 0
      %635 = vmatpush1.bf16.msra.mxu0 0
      %636 = vmatprep.subr.bf16.mxu0 0
      %637 = vmatpush1.bf16.msra.mxu0 0
      %638 = vmatprep.subr.bf16.mxu0 0
      %639 = vmatpush1.bf16.msra.mxu0 0
      %640 = vmatprep.subr.bf16.mxu0 0
      %641 = vmatpush1.bf16.msra.mxu0 0
      %642 = vmatprep.subr.bf16.mxu0 0
      %643 = vmatpush1.bf16.msra.mxu0 0
      %644 = vmatprep.subr.bf16.mxu0 0
      %645 = vmatpush1.bf16.msra.mxu0 0
      %646 = vmatprep.subr.bf16.mxu0 0
      %647 = vmatpush1.bf16.msra.mxu0 0
      %648 = vmatprep.subr.bf16.mxu0 0
      %649 = vmatpush1.bf16.msra.mxu0 0
      %650 = vmatprep.mubr.bf16.mxu0 0
      %651 = vmatmul.mubr.bf16.gmra.mrb[0].mxu0 %v616
      %v652 = vpop.f32.mrb[0].mxu0
      %v653 = vadd.f32 0.0, %v652
      %v654 = vpop.f32.mrb[0].mxu0
      %v655 = vpop.f32.mrb[0].mxu0
      %v656 = vpop.f32.mrb[0].mxu0
      %657 = vdwg.mxu0
      %v658 = vadd.f32 %v610, %v653
      %v659 = vmul.f32 %v658, 0.5
      %v660 = vtanh.pop %v659
      %v661 = vadd.f32 %v660, 1.0
      %v662 = vmul.f32 %v661, 0.5
      %v663 = vtanh.pop %v658
      %v664 = vmul.f32 %v662, %v598
      %666 = vrot.lane.b32.xlu0 %v663, 64
      %v667 = vpop.permute.xlu0 %666
      %v669 = vmul.f32 %v662, %v667
      %671 = vrot.lane.b32.xlu0 %v669, 32
      %v672 = vpop.permute.xlu0 %671
      %v674 = vadd.f32 %v664, %v672
      %v675 = vtanh.pop %v674
      %677 = vrot.lane.b32.xlu0 %v675, 64
      %v678 = vpop.permute.xlu0 %677
      %v680 = vmul.f32 %v662, %v678
      %682 = vrot.lane.b32.xlu0 %v680, 32
      %v683 = vpop.permute.xlu0 %682
      %685 = vst.msk [vmem:[%s138 + $0x6] sm:$0x1] %vm228, %v683
      %v686 = vld [vmem:[%s134 + $0x7] sm:$0x1]
      %v687 = vpack.c.bf16 %v680, %v680
      %689 = vrot.lane.b32.xlu0 %v687, 32
      %v690 = vpop.permute.xlu0 %689
      %v692 = vsel %vm157, %v690, 0
      %694 = vmatprep.subr.bf16.mxu0 0
      %695 = vmatpush1.bf16.msra.mxu0 %v153
      %696 = vmatprep.subr.bf16.mxu0 0
      %697 = vmatpush1.bf16.msra.mxu0 %v154
      %698 = vmatprep.subr.bf16.mxu0 0
      %699 = vmatpush1.bf16.msra.mxu0 0
      %700 = vmatprep.subr.bf16.mxu0 0
      %701 = vmatpush1.bf16.msra.mxu0 0
      %702 = vmatprep.subr.bf16.mxu0 0
      %703 = vmatpush1.bf16.msra.mxu0 0
      %704 = vmatprep.subr.bf16.mxu0 0
      %705 = vmatpush1.bf16.msra.mxu0 0
      %706 = vmatprep.subr.bf16.mxu0 0
      %707 = vmatpush1.bf16.msra.mxu0 0
      %708 = vmatprep.subr.bf16.mxu0 0
      %709 = vmatpush1.bf16.msra.mxu0 0
      %710 = vmatprep.subr.bf16.mxu0 0
      %711 = vmatpush1.bf16.msra.mxu0 0
      %712 = vmatprep.subr.bf16.mxu0 0
      %713 = vmatpush1.bf16.msra.mxu0 0
      %714 = vmatprep.subr.bf16.mxu0 0
      %715 = vmatpush1.bf16.msra.mxu0 0
      %716 = vmatprep.subr.bf16.mxu0 0
      %717 = vmatpush1.bf16.msra.mxu0 0
      %718 = vmatprep.subr.bf16.mxu0 0
      %719 = vmatpush1.bf16.msra.mxu0 0
      %720 = vmatprep.subr.bf16.mxu0 0
      %721 = vmatpush1.bf16.msra.mxu0 0
      %722 = vmatprep.subr.bf16.mxu0 0
      %723 = vmatpush1.bf16.msra.mxu0 0
      %724 = vmatprep.subr.bf16.mxu0 0
      %725 = vmatpush1.bf16.msra.mxu0 0
      %726 = vmatprep.mubr.bf16.mxu0 0
      %727 = vmatmul.mubr.bf16.gmra.mrb[0].mxu0 %v692
      %v728 = vpop.f32.mrb[0].mxu0
      %v729 = vadd.f32 0.0, %v728
      %v730 = vpop.f32.mrb[0].mxu0
      %v731 = vpop.f32.mrb[0].mxu0
      %v732 = vpop.f32.mrb[0].mxu0
      %733 = vdwg.mxu0
      %v734 = vadd.f32 %v686, %v729
      %v735 = vmul.f32 %v734, 0.5
      %v736 = vtanh.pop %v735
      %v737 = vadd.f32 %v736, 1.0
      %v738 = vmul.f32 %v737, 0.5
      %v739 = vtanh.pop %v734
      %v740 = vmul.f32 %v738, %v674
      %742 = vrot.lane.b32.xlu0 %v739, 64
      %v743 = vpop.permute.xlu0 %742
      %v745 = vmul.f32 %v738, %v743
      %747 = vrot.lane.b32.xlu0 %v745, 32
      %v748 = vpop.permute.xlu0 %747
      %v750 = vadd.f32 %v740, %v748
      %v751 = vtanh.pop %v750
      %753 = vrot.lane.b32.xlu0 %v751, 64
      %v754 = vpop.permute.xlu0 %753
      %v756 = vmul.f32 %v738, %v754
      %758 = vrot.lane.b32.xlu0 %v756, 32
      %v759 = vpop.permute.xlu0 %758
      %761 = vst.msk [vmem:[%s138 + $0x7] sm:$0x1] %vm228, %v759
      %p762 = scmp.lt.s32.totalorder %s13, 1
      %s763 = scalar_select %p762, %s13, 1
      %s764 = smul.addr %s763, 8
      %s765 = scalar_lea.vmem %s2, %s764
      // Predicated region
      $region29: #{cnn_lstm_forward.4} parent=27 // pred_check
        %p766 = pneg %p78
      $region30: #{cnn_lstm_forward.4} parent=27 // pred_check_branch
        %768 = sbr.rel (%p766) target = $region32
      $region31: #{cnn_lstm_forward.4} parent=27 // pred_region
        _
      $region32: #{cnn_lstm_forward.4} parent=27 // pred_fallthru
        _
    $region28: #{cnn_lstm_forward.4} parent=5 // pred_fallthru
      _
    %p769 = scmp.le.s32.totalorder 2, %s8
    // Predicated region
    $region33: #{cnn_lstm_forward.4} parent=5 // pred_check
      %p770 = pneg %p769
    $region34: #{cnn_lstm_forward.4} parent=5 // pred_check_branch
      %772 = sbr.rel (%p770) target = $region36
    $region35: #{cnn_lstm_forward.4} parent=5 // pred_region
      %s773 = ssub.s32 %s8, 2
      // Predicated region
      $region37: #{cnn_lstm_forward.4} parent=35 // pred_check
        %p774 = pneg %p84
      $region38: #{cnn_lstm_forward.4} parent=35 // pred_check_branch
        %776 = sbr.rel (%p774) target = $region40
      $region39: #{cnn_lstm_forward.4} parent=35 // pred_region
        %p777 = scmp.lt.s32.totalorder %s14, 1
        %s778 = scalar_select %p777, %s14, 1
        %s779 = smul.addr %s778, 8
        %s780 = scalar_lea.vmem %s2, %s779
      $region40: #{cnn_lstm_forward.4} parent=35 // pred_fallthru
        _
    $region36: #{cnn_lstm_forward.4} parent=5 // pred_fallthru
      _
  $region6: #{cnn_lstm_forward.4} parent=0 // loop_footer
    %s12 = sadd.s32 1, %s8
  $region7: #{cnn_lstm_forward.4} parent=0 // loop_footer_branch
    %7 = sbr.rel target = $region3
  $region8: #{cnn_lstm_forward.4} parent=0 // loop_exit
    _

// kernel: cnn_lstm_forward.5
$region0: #{cnn_lstm_forward.5}
  #allocation0 [shape = 'u32[]', space=smem, size = 0x4, offset = 0x4, fixed_abs, tag = 'smem constant byte address 0x4 - core index']
  #allocation1 [shape = 'u32[144,128]{1,0:T(1,128)}', space=vmem, size = 0x12000, scoped, tag = 'internal scratch']
  %s0 = inlined_call_operand.vmem [shape: f32[2,256], index: 0, kind: input, shape index: {}]
  %s1 = inlined_call_operand.vmem [shape: bf16[2,256,1024], index: 1, kind: input, shape index: {}]
  %s2 = inlined_call_operand.vmem [shape: f32[1,2048], index: 2, kind: input, shape index: {}]
  %s3 = inlined_call_operand.vmem [shape: f32[2,2048], index: 3, kind: output, shape index: {}]
  %s4 = sld [smem:[#allocation0]]
  $region45: #{cnn_lstm_forward.5} parent=0
    _
  %s6 = ssub.s32 1, %s4
  %s7 = scalar_select 0, %s6, %s4
  loop: start=0, step=1, limit=4
  $region2: #{cnn_lstm_forward.5} parent=0 // loop_pre_header
    _
  $region3: #{cnn_lstm_forward.5} parent=0 // loop_header
    %s9 = sphi 0, %s13
    %p10 = scmp.ge.s32.totalorder %s9, 4
    %s17 = sphi 0, %s17
    %s19 = sphi 0, %s17
    %s20 = sphi 0, %s19
    %s34 = sphi 0, %s20
    %s40 = sphi 0, %s42
    %s43 = sphi 0, %s40
    %s44 = sphi 0, %s43
    %s60 = sphi 0, %s44
    %s66 = sphi 0, %s68
    %s69 = sphi 0, %s66
    %s70 = sphi 0, %s69
    %s86 = sphi 0, %s70
    %s92 = sphi 0, %s94
    %s95 = sphi 0, %s92
    %s96 = sphi 0, %s95
    %s112 = sphi 0, %s96
  $region4: #{cnn_lstm_forward.5} parent=0 // loop_header_branch
    %12 = sbr.rel (%p10) target = $region8
  $region5: #{cnn_lstm_forward.5} parent=0 // loop_body
    %s14 = ssub.s32 %s9, 1
    %s15 = ssub.s32 %s9, 2
    %s16 = sadd.s32 %s9, 1
    %s18 = sadd.s32 %s17, 1
    %p21 = scmp.eq.s32.totalorder %s9, 1
    %p22 = scmp.ne.s32.totalorder %s17, %s19
    %p23 = scmp.eq.s32.totalorder %s9, 0
    %p24 = por %p22, %p23
    %p25 = scmp.ne.s32.totalorder %s17, %s19
    %p26 = scmp.eq.s32.totalorder %s14, 1
    %p27 = por %p25, %p26
    %p28 = scmp.ne.s32.totalorder %s19, %s20
    %p29 = scmp.eq.s32.totalorder %s14, 0
    %p30 = por %p28, %p29
    %p31 = scmp.ne.s32.totalorder %s19, %s20
    %p32 = scmp.eq.s32.totalorder %s15, 1
    %p33 = por %p31, %p32
    %p35 = scmp.ne.s32.totalorder %s20, %s34
    %p36 = scmp.eq.s32.totalorder %s15, 0
    %p37 = por %p35, %p36
    %s38 = ssub.s32 %s9, %s16
    %p39 = scmp.eq.s32.totalorder %s38, 0
    %s41 = sadd.s32 %s40, 1
    %s42 = scalar_select %p39, %s40, %s41
    %p45 = pneg %p39
    %p46 = scmp.eq.s32.totalorder %s9, 1
    %p47 = por %p45, %p46
    %p48 = scmp.ne.s32.totalorder %s40, %s43
    %p49 = scmp.eq.s32.totalorder %s9, 0
    %p50 = por %p48, %p49
    %p51 = scmp.ne.s32.totalorder %s40, %s43
    %p52 = scmp.eq.s32.totalorder %s14, 1
    %p53 = por %p51, %p52
    %p54 = scmp.ne.s32.totalorder %s43, %s44
    %p55 = scmp.eq.s32.totalorder %s14, 0
    %p56 = por %p54, %p55
    %p57 = scmp.ne.s32.totalorder %s43, %s44
    %p58 = scmp.eq.s32.totalorder %s15, 1
    %p59 = por %p57, %p58
    %p61 = scmp.ne.s32.totalorder %s44, %s60
    %p62 = scmp.eq.s32.totalorder %s15, 0
    %p63 = por %p61, %p62
    %s64 = ssub.s32 %s9, %s16
    %p65 = scmp.eq.s32.totalorder %s64, 0
    %s67 = sadd.s32 %s66, 1
    %s68 = scalar_select %p65, %s66, %s67
    %p71 = pneg %p65
    %p72 = scmp.eq.s32.totalorder %s9, 1
    %p73 = por %p71, %p72
    %p74 = scmp.ne.s32.totalorder %s66, %s69
    %p75 = scmp.eq.s32.totalorder %s9, 0
    %p76 = por %p74, %p75
    %p77 = scmp.ne.s32.totalorder %s66, %s69
    %p78 = scmp.eq.s32.totalorder %s14, 1
    %p79 = por %p77, %p78
    %p80 = scmp.ne.s32.totalorder %s69, %s70
    %p81 = scmp.eq.s32.totalorder %s14, 0
    %p82 = por %p80, %p81
    %p83 = scmp.ne.s32.totalorder %s69, %s70
    %p84 = scmp.eq.s32.totalorder %s15, 1
    %p85 = por %p83, %p84
    %p87 = scmp.ne.s32.totalorder %s70, %s86
    %p88 = scmp.eq.s32.totalorder %s15, 0
    %p89 = por %p87, %p88
    %s90 = ssub.s32 %s9, %s16
    %p91 = scmp.eq.s32.totalorder %s90, 0
    %s93 = sadd.s32 %s92, 1
    %s94 = scalar_select %p91, %s92, %s93
    %p97 = pneg %p91
    %p98 = scmp.eq.s32.totalorder %s9, 1
    %p99 = por %p97, %p98
    %p100 = scmp.ne.s32.totalorder %s92, %s95
    %p101 = scmp.eq.s32.totalorder %s9, 0
    %p102 = por %p100, %p101
    %p103 = scmp.ne.s32.totalorder %s92, %s95
    %p104 = scmp.eq.s32.totalorder %s14, 1
    %p105 = por %p103, %p104
    %p106 = scmp.ne.s32.totalorder %s95, %s96
    %p107 = scmp.eq.s32.totalorder %s14, 0
    %p108 = por %p106, %p107
    %p109 = scmp.ne.s32.totalorder %s95, %s96
    %p110 = scmp.eq.s32.totalorder %s15, 1
    %p111 = por %p109, %p110
    %p113 = scmp.ne.s32.totalorder %s96, %s112
    %p114 = scmp.eq.s32.totalorder %s15, 0
    %p115 = por %p113, %p114
    %p116 = scmp.le.s32.totalorder 1, %s9
    %p117 = scmp.lt.s32.totalorder %s9, 3
    %p118 = pnand %p116, %p117
    %p119 = pneg %p118
    // Predicated region
    $region9: #{cnn_lstm_forward.5} parent=5 // pred_check
      _
    $region10: #{cnn_lstm_forward.5} parent=5 // pred_check_branch
      %121 = sbr.rel (%p118) target = $region12
    $region11: #{cnn_lstm_forward.5} parent=5 // pred_region
      %s122 = ssub.s32 %s9, 1
      // Predicated region
      $region13: #{cnn_lstm_forward.5} parent=11 // pred_check
        %p123 = pneg %p30
      $region14: #{cnn_lstm_forward.5} parent=11 // pred_check_branch
        %125 = sbr.rel (%p123) target = $region16
      $region15: #{cnn_lstm_forward.5} parent=11 // pred_region
        _
      $region16: #{cnn_lstm_forward.5} parent=11 // pred_fallthru
        _
    $region12: #{cnn_lstm_forward.5} parent=5 // pred_fallthru
      _
    %p126 = scmp.lt.s32.totalorder %s9, 2
    // Predicated region
    $region17: #{cnn_lstm_forward.5} parent=5 // pred_check
      %p127 = pneg %p126
    $region18: #{cnn_lstm_forward.5} parent=5 // pred_check_branch
      %129 = sbr.rel (%p127) target = $region20
    $region19: #{cnn_lstm_forward.5} parent=5 // pred_region
      // Predicated region
      $region21: #{cnn_lstm_forward.5} parent=19 // pred_check
        %p130 = pneg %p50
      $region22: #{cnn_lstm_forward.5} parent=19 // pred_check_branch
        %132 = sbr.rel (%p130) target = $region24
      $region23: #{cnn_lstm_forward.5} parent=19 // pred_region
        %p133 = scmp.lt.s32.totalorder %s9, 1
        %s134 = scalar_select %p133, %s9, 1
        %s135 = smul.addr %s134, 256
        %s136 = smul.addr %s135, 4
        %s137 = scalar_lea.vmem %s1, %s136
      $region24: #{cnn_lstm_forward.5} parent=19 // pred_fallthru
        _
      // Predicated region
      $region25: #{cnn_lstm_forward.5} parent=19 // pred_check
        %p138 = pneg %p76
      $region26: #{cnn_lstm_forward.5} parent=19 // pred_check_branch
        %140 = sbr.rel (%p138) target = $region28
      $region27: #{cnn_lstm_forward.5} parent=19 // pred_region
        %s141 = smul.u32 8, %s9
        %p142 = scmp.lt.s32.totalorder %s141, 15
        %s143 = scalar_select %p142, %s141, 15
        %s144 = scalar_lea.vmem %s2, %s143
        %s145 = smul.u32 8, %s9
      $region28: #{cnn_lstm_forward.5} parent=19 // pred_fallthru
        _
    $region20: #{cnn_lstm_forward.5} parent=5 // pred_fallthru
      _
    %p146 = scmp.le.s32.totalorder 1, %s9
    %p147 = scmp.lt.s32.totalorder %s9, 3
    %p148 = pnand %p146, %p147
    %p149 = pneg %p148
    // Predicated region
    $region29: #{cnn_lstm_forward.5} parent=5 // pred_check
      _
    $region30: #{cnn_lstm_forward.5} parent=5 // pred_check_branch
      %151 = sbr.rel (%p148) target = $region32
    $region31: #{cnn_lstm_forward.5} parent=5 // pred_region
      %s152 = ssub.s32 %s9, 1
      %p153 = pneg %p30
      %p154 = pneg %p27
      %p155 = scmp.lt.s32.totalorder %s14, 1
      %s156 = scalar_select %p155, %s14, 1
      %s157 = smul.addr %s156, 256
      %s158 = smul.addr %s157, 4
      %s159 = scalar_lea.vmem %s1, %s158
      %p160 = pneg %p56
      %p161 = pneg %p53
      %s162 = smul.u32 8, %s14
      %p163 = scmp.lt.s32.totalorder %s162, 15
      %s164 = scalar_select %p163, %s162, 15
      %s165 = scalar_lea.vmem %s2, %s164
      %p166 = pneg %p82
      %p167 = pneg %p79
      %p168 = pneg %p108
      %p169 = pneg %p105
      %s170 = smul.u32 8, %s14
      %p171 = scmp.lt.s32.totalorder %s170, 15
      %s172 = scalar_select %p171, %s170, 15
      %s173 = smul.addr %s172, 2
      %s174 = scalar_lea.vmem %s3, %s173
      %p175 = scmp.lt.s32.totalorder %s14, 1
      %s176 = scalar_select %p175, %s14, 1
      %s177 = smul.addr %s176, 256
      %s178 = smul.addr %s177, 4
      %s179 = scalar_lea.vmem %s1, %s178
      %s180 = smul.u32 8, %s14
      %p181 = scmp.lt.s32.totalorder %s180, 15
      %s182 = scalar_select %p181, %s180, 15
      %s183 = scalar_lea.vmem %s2, %s182
      %s184 = smul.u32 8, %s14
      %s185 = smul.u32 8, %s14
      %p186 = scmp.lt.s32.totalorder %s185, 15
      %s187 = scalar_select %p186, %s185, 15
      %s188 = smul.addr %s187, 2
      %s189 = scalar_lea.vmem %s3, %s188
      %s190 = smul.u32 8, %s14
      %v191 = vld [vmem:[%s0] sm:$0xf]
      %v194 = vunpack.c.l.s4 1983009808
      %v195 = vunpack.c.0.s8 %v194
      %v196 = vlaneseq
      %v197 = vshrl.u32 %v196, 7
      %v198 = vsub.s32 %v195, %v197
      %v199 = vrot.slane %v191, %v198
      %v200 = vcombine.high %v199, %v199
      %v203 = vpack.c.bf16 %v199, %v199
      %v204 = vpack.c.bf16 %v200, %v200
      %v205 = vld [vmem:[%s179] sm:$0xff]
      %v206 = vld [vmem:[%s179 + $0x8] sm:$0xff]
      %v207 = vld [vmem:[%s179 + $0x10] sm:$0xff]
      %v208 = vld [vmem:[%s179 + $0x18] sm:$0xff]
      %v209 = vld [vmem:[%s179 + $0x20] sm:$0xff]
      %v210 = vld [vmem:[%s179 + $0x28] sm:$0xff]
      %v211 = vld [vmem:[%s179 + $0x30] sm:$0xff]
      %v212 = vld [vmem:[%s179 + $0x38] sm:$0xff]
      %v213 = vld [vmem:[%s179 + $0x40] sm:$0xff]
      %v214 = vld [vmem:[%s179 + $0x48] sm:$0xff]
      %v215 = vld [vmem:[%s179 + $0x50] sm:$0xff]
      %v216 = vld [vmem:[%s179 + $0x58] sm:$0xff]
      %v217 = vld [vmem:[%s179 + $0x60] sm:$0xff]
      %v218 = vld [vmem:[%s179 + $0x68] sm:$0xff]
      %v219 = vld [vmem:[%s179 + $0x70] sm:$0xff]
      %v220 = vld [vmem:[%s179 + $0x78] sm:$0xff]
      %v221 = vld [vmem:[%s179 + $0x80] sm:$0xff]
      %v222 = vld [vmem:[%s179 + $0x88] sm:$0xff]
      %v223 = vld [vmem:[%s179 + $0x90] sm:$0xff]
      %v224 = vld [vmem:[%s179 + $0x98] sm:$0xff]
      %v225 = vld [vmem:[%s179 + $0xa0] sm:$0xff]
      %v226 = vld [vmem:[%s179 + $0xa8] sm:$0xff]
      %v227 = vld [vmem:[%s179 + $0xb0] sm:$0xff]
      %v228 = vld [vmem:[%s179 + $0xb8] sm:$0xff]
      %v229 = vld [vmem:[%s179 + $0xc0] sm:$0xff]
      %v230 = vld [vmem:[%s179 + $0xc8] sm:$0xff]
      %v231 = vld [vmem:[%s179 + $0xd0] sm:$0xff]
      %v232 = vld [vmem:[%s179 + $0xd8] sm:$0xff]
      %v233 = vld [vmem:[%s179 + $0xe0] sm:$0xff]
      %v234 = vld [vmem:[%s179 + $0xe8] sm:$0xff]
      %v235 = vld [vmem:[%s179 + $0xf0] sm:$0xff]
      %v236 = vld [vmem:[%s179 + $0xf8] sm:$0xff]
      %v237 = vld [vmem:[%s179 + $0x100] sm:$0xff]
      %v238 = vld [vmem:[%s179 + $0x108] sm:$0xff]
      %v239 = vld [vmem:[%s179 + $0x110] sm:$0xff]
      %v240 = vld [vmem:[%s179 + $0x118] sm:$0xff]
      %v241 = vld [vmem:[%s179 + $0x120] sm:$0xff]
      %v242 = vld [vmem:[%s179 + $0x128] sm:$0xff]
      %v243 = vld [vmem:[%s179 + $0x130] sm:$0xff]
      %v244 = vld [vmem:[%s179 + $0x138] sm:$0xff]
      %v245 = vld [vmem:[%s179 + $0x140] sm:$0xff]
      %v246 = vld [vmem:[%s179 + $0x148] sm:$0xff]
      %v247 = vld [vmem:[%s179 + $0x150] sm:$0xff]
      %v248 = vld [vmem:[%s179 + $0x158] sm:$0xff]
      %v249 = vld [vmem:[%s179 + $0x160] sm:$0xff]
      %v250 = vld [vmem:[%s179 + $0x168] sm:$0xff]
      %v251 = vld [vmem:[%s179 + $0x170] sm:$0xff]
      %v252 = vld [vmem:[%s179 + $0x178] sm:$0xff]
      %v253 = vld [vmem:[%s179 + $0x180] sm:$0xff]
      %v254 = vld [vmem:[%s179 + $0x188] sm:$0xff]
      %v255 = vld [vmem:[%s179 + $0x190] sm:$0xff]
      %v256 = vld [vmem:[%s179 + $0x198] sm:$0xff]
      %v257 = vld [vmem:[%s179 + $0x1a0] sm:$0xff]
      %v258 = vld [vmem:[%s179 + $0x1a8] sm:$0xff]
      %v259 = vld [vmem:[%s179 + $0x1b0] sm:$0xff]
      %v260 = vld [vmem:[%s179 + $0x1b8] sm:$0xff]
      %v261 = vld [vmem:[%s179 + $0x1c0] sm:$0xff]
      %v262 = vld [vmem:[%s179 + $0x1c8] sm:$0xff]
      %v263 = vld [vmem:[%s179 + $0x1d0] sm:$0xff]
      %v264 = vld [vmem:[%s179 + $0x1d8] sm:$0xff]
      %v265 = vld [vmem:[%s179 + $0x1e0] sm:$0xff]
      %v266 = vld [vmem:[%s179 + $0x1e8] sm:$0xff]
      %v267 = vld [vmem:[%s179 + $0x1f0] sm:$0xff]
      %v268 = vld [vmem:[%s179 + $0x1f8] sm:$0xff]
      %v269 = vld [vmem:[%s179 + $0x200] sm:$0xff]
      %v270 = vld [vmem:[%s179 + $0x208] sm:$0xff]
      %v271 = vld [vmem:[%s179 + $0x210] sm:$0xff]
      %v272 = vld [vmem:[%s179 + $0x218] sm:$0xff]
      %v273 = vld [vmem:[%s179 + $0x220] sm:$0xff]
      %v274 = vld [vmem:[%s179 + $0x228] sm:$0xff]
      %v275 = vld [vmem:[%s179 + $0x230] sm:$0xff]
      %v276 = vld [vmem:[%s179 + $0x238] sm:$0xff]
      %v277 = vld [vmem:[%s179 + $0x240] sm:$0xff]
      %v278 = vld [vmem:[%s179 + $0x248] sm:$0xff]
      %v279 = vld [vmem:[%s179 + $0x250] sm:$0xff]
      %v280 = vld [vmem:[%s179 + $0x258] sm:$0xff]
      %v281 = vld [vmem:[%s179 + $0x260] sm:$0xff]
      %v282 = vld [vmem:[%s179 + $0x268] sm:$0xff]
      %v283 = vld [vmem:[%s179 + $0x270] sm:$0xff]
      %v284 = vld [vmem:[%s179 + $0x278] sm:$0xff]
      %v285 = vld [vmem:[%s179 + $0x280] sm:$0xff]
      %v286 = vld [vmem:[%s179 + $0x288] sm:$0xff]
      %v287 = vld [vmem:[%s179 + $0x290] sm:$0xff]
      %v288 = vld [vmem:[%s179 + $0x298] sm:$0xff]
      %v289 = vld [vmem:[%s179 + $0x2a0] sm:$0xff]
      %v290 = vld [vmem:[%s179 + $0x2a8] sm:$0xff]
      %v291 = vld [vmem:[%s179 + $0x2b0] sm:$0xff]
      %v292 = vld [vmem:[%s179 + $0x2b8] sm:$0xff]
      %v293 = vld [vmem:[%s179 + $0x2c0] sm:$0xff]
      %v294 = vld [vmem:[%s179 + $0x2c8] sm:$0xff]
      %v295 = vld [vmem:[%s179 + $0x2d0] sm:$0xff]
      %v296 = vld [vmem:[%s179 + $0x2d8] sm:$0xff]
      %v297 = vld [vmem:[%s179 + $0x2e0] sm:$0xff]
      %v298 = vld [vmem:[%s179 + $0x2e8] sm:$0xff]
      %v299 = vld [vmem:[%s179 + $0x2f0] sm:$0xff]
      %v300 = vld [vmem:[%s179 + $0x2f8] sm:$0xff]
      %v301 = vld [vmem:[%s179 + $0x300] sm:$0xff]
      %v302 = vld [vmem:[%s179 + $0x308] sm:$0xff]
      %v303 = vld [vmem:[%s179 + $0x310] sm:$0xff]
      %v304 = vld [vmem:[%s179 + $0x318] sm:$0xff]
      %v305 = vld [vmem:[%s179 + $0x320] sm:$0xff]
      %v306 = vld [vmem:[%s179 + $0x328] sm:$0xff]
      %v307 = vld [vmem:[%s179 + $0x330] sm:$0xff]
      %v308 = vld [vmem:[%s179 + $0x338] sm:$0xff]
      %v309 = vld [vmem:[%s179 + $0x340] sm:$0xff]
      %v310 = vld [vmem:[%s179 + $0x348] sm:$0xff]
      %v311 = vld [vmem:[%s179 + $0x350] sm:$0xff]
      %v312 = vld [vmem:[%s179 + $0x358] sm:$0xff]
      %v313 = vld [vmem:[%s179 + $0x360] sm:$0xff]
      %v314 = vld [vmem:[%s179 + $0x368] sm:$0xff]
      %v315 = vld [vmem:[%s179 + $0x370] sm:$0xff]
      %v316 = vld [vmem:[%s179 + $0x378] sm:$0xff]
      %v317 = vld [vmem:[%s179 + $0x380] sm:$0xff]
      %v318 = vld [vmem:[%s179 + $0x388] sm:$0xff]
      %v319 = vld [vmem:[%s179 + $0x390] sm:$0xff]
      %v320 = vld [vmem:[%s179 + $0x398] sm:$0xff]
      %v321 = vld [vmem:[%s179 + $0x3a0] sm:$0xff]
      %v322 = vld [vmem:[%s179 + $0x3a8] sm:$0xff]
      %v323 = vld [vmem:[%s179 + $0x3b0] sm:$0xff]
      %v324 = vld [vmem:[%s179 + $0x3b8] sm:$0xff]
      %v325 = vld [vmem:[%s179 + $0x3c0] sm:$0xff]
      %v326 = vld [vmem:[%s179 + $0x3c8] sm:$0xff]
      %v327 = vld [vmem:[%s179 + $0x3d0] sm:$0xff]
      %v328 = vld [vmem:[%s179 + $0x3d8] sm:$0xff]
      %v329 = vld [vmem:[%s179 + $0x3e0] sm:$0xff]
      %v330 = vld [vmem:[%s179 + $0x3e8] sm:$0xff]
      %v331 = vld [vmem:[%s179 + $0x3f0] sm:$0xff]
      %v332 = vld [vmem:[%s179 + $0x3f8] sm:$0xff]
      %v333 = vld [vmem:[%s183] sm:$0xff]
      %v335 = vlaneseq
      %v336 = vshrl.u32 %v335, 7
      %v337 = vsub.s32 0, %v336
      %v338 = vrot.slane %v333, %v337
      %v339 = vlaneseq
      %v340 = vshrl.u32 %v339, 7
      %v341 = vsub.s32 1, %v340
      %v342 = vrot.slane %v333, %v341
      %v343 = vlaneseq
      %v344 = vshrl.u32 %v343, 7
      %v345 = vsub.s32 2, %v344
      %v346 = vrot.slane %v333, %v345
      %v347 = vlaneseq
      %v348 = vshrl.u32 %v347, 7
      %v349 = vsub.s32 3, %v348
      %v350 = vrot.slane %v333, %v349
      %v351 = vlaneseq
      %v352 = vshrl.u32 %v351, 7
      %v353 = vsub.s32 4, %v352
      %v354 = vrot.slane %v333, %v353
      %v355 = vlaneseq
      %v356 = vshrl.u32 %v355, 7
      %v357 = vsub.s32 5, %v356
      %v358 = vrot.slane %v333, %v357
      %v359 = vlaneseq
      %v360 = vshrl.u32 %v359, 7
      %v361 = vsub.s32 6, %v360
      %v362 = vrot.slane %v333, %v361
      %v363 = vlaneseq
      %v364 = vshrl.u32 %v363, 7
      %v365 = vsub.s32 7, %v364
      %v366 = vrot.slane %v333, %v365
      %v503 = vunpack.c.l.b16 %v205
      %v504 = vunpack.c.h.b16 %v205
      %v505 = vunpack.c.l.b16 %v206
      %v506 = vunpack.c.h.b16 %v206
      %v507 = vunpack.c.l.b16 %v207
      %v508 = vunpack.c.h.b16 %v207
      %v509 = vunpack.c.l.b16 %v208
      %v510 = vunpack.c.h.b16 %v208
      %v511 = vunpack.c.l.b16 %v209
      %v512 = vunpack.c.h.b16 %v209
      %v513 = vunpack.c.l.b16 %v210
      %v514 = vunpack.c.h.b16 %v210
      %v515 = vunpack.c.l.b16 %v211
      %v516 = vunpack.c.h.b16 %v211
      %v517 = vunpack.c.l.b16 %v212
      %v518 = vunpack.c.h.b16 %v212
      %v519 = vunpack.c.l.b16 %v213
      %v520 = vunpack.c.h.b16 %v213
      %v521 = vunpack.c.l.b16 %v214
      %v522 = vunpack.c.h.b16 %v214
      %v523 = vunpack.c.l.b16 %v215
      %v524 = vunpack.c.h.b16 %v215
      %v525 = vunpack.c.l.b16 %v216
      %v526 = vunpack.c.h.b16 %v216
      %v527 = vunpack.c.l.b16 %v217
      %v528 = vunpack.c.h.b16 %v217
      %v529 = vunpack.c.l.b16 %v218
      %v530 = vunpack.c.h.b16 %v218
      %v531 = vunpack.c.l.b16 %v219
      %v532 = vunpack.c.h.b16 %v219
      %v533 = vunpack.c.l.b16 %v220
      %v534 = vunpack.c.h.b16 %v220
      %v535 = vunpack.c.l.b16 %v221
      %v536 = vunpack.c.h.b16 %v221
      %v537 = vunpack.c.l.b16 %v222
      %v538 = vunpack.c.h.b16 %v222
      %v539 = vunpack.c.l.b16 %v223
      %v540 = vunpack.c.h.b16 %v223
      %v541 = vunpack.c.l.b16 %v224
      %v542 = vunpack.c.h.b16 %v224
      %v543 = vunpack.c.l.b16 %v225
      %v544 = vunpack.c.h.b16 %v225
      %v545 = vunpack.c.l.b16 %v226
      %v546 = vunpack.c.h.b16 %v226
      %v547 = vunpack.c.l.b16 %v227
      %v548 = vunpack.c.h.b16 %v227
      %v549 = vunpack.c.l.b16 %v228
      %v550 = vunpack.c.h.b16 %v228
      %v551 = vunpack.c.l.b16 %v229
      %v552 = vunpack.c.h.b16 %v229
      %v553 = vunpack.c.l.b16 %v230
      %v554 = vunpack.c.h.b16 %v230
      %v555 = vunpack.c.l.b16 %v231
      %v556 = vunpack.c.h.b16 %v231
      %v557 = vunpack.c.l.b16 %v232
      %v558 = vunpack.c.h.b16 %v232
      %v559 = vunpack.c.l.b16 %v233
      %v560 = vunpack.c.h.b16 %v233
      %v561 = vunpack.c.l.b16 %v234
      %v562 = vunpack.c.h.b16 %v234
      %v563 = vunpack.c.l.b16 %v235
      %v564 = vunpack.c.h.b16 %v235
      %v565 = vunpack.c.l.b16 %v236
      %v566 = vunpack.c.h.b16 %v236
      %v567 = vunpack.c.l.b16 %v237
      %v568 = vunpack.c.h.b16 %v237
      %v569 = vunpack.c.l.b16 %v238
      %v570 = vunpack.c.h.b16 %v238
      %v571 = vunpack.c.l.b16 %v239
      %v572 = vunpack.c.h.b16 %v239
      %v573 = vunpack.c.l.b16 %v240
      %v574 = vunpack.c.h.b16 %v240
      %v575 = vunpack.c.l.b16 %v241
      %v576 = vunpack.c.h.b16 %v241
      %v577 = vunpack.c.l.b16 %v242
      %v578 = vunpack.c.h.b16 %v242
      %v579 = vunpack.c.l.b16 %v243
      %v580 = vunpack.c.h.b16 %v243
      %v581 = vunpack.c.l.b16 %v244
      %v582 = vunpack.c.h.b16 %v244
      %v583 = vunpack.c.l.b16 %v245
      %v584 = vunpack.c.h.b16 %v245
      %v585 = vunpack.c.l.b16 %v246
      %v586 = vunpack.c.h.b16 %v246
      %v587 = vunpack.c.l.b16 %v247
      %v588 = vunpack.c.h.b16 %v247
      %v589 = vunpack.c.l.b16 %v248
      %v590 = vunpack.c.h.b16 %v248
      %v591 = vunpack.c.l.b16 %v249
      %v592 = vunpack.c.h.b16 %v249
      %v593 = vunpack.c.l.b16 %v250
      %v594 = vunpack.c.h.b16 %v250
      %v595 = vunpack.c.l.b16 %v251
      %v596 = vunpack.c.h.b16 %v251
      %v597 = vunpack.c.l.b16 %v252
      %v598 = vunpack.c.h.b16 %v252
      %v599 = vunpack.c.l.b16 %v253
      %v600 = vunpack.c.h.b16 %v253
      %v601 = vunpack.c.l.b16 %v254
      %v602 = vunpack.c.h.b16 %v254
      %v603 = vunpack.c.l.b16 %v255
      %v604 = vunpack.c.h.b16 %v255
      %v605 = vunpack.c.l.b16 %v256
      %v606 = vunpack.c.h.b16 %v256
      %v607 = vunpack.c.l.b16 %v257
      %v608 = vunpack.c.h.b16 %v257
      %v609 = vunpack.c.l.b16 %v258
      %v610 = vunpack.c.h.b16 %v258
      %v611 = vunpack.c.l.b16 %v259
      %v612 = vunpack.c.h.b16 %v259
      %v613 = vunpack.c.l.b16 %v260
      %v614 = vunpack.c.h.b16 %v260
      %v615 = vunpack.c.l.b16 %v261
      %v616 = vunpack.c.h.b16 %v261
      %v617 = vunpack.c.l.b16 %v262
      %v618 = vunpack.c.h.b16 %v262
      %v619 = vunpack.c.l.b16 %v263
      %v620 = vunpack.c.h.b16 %v263
      %v621 = vunpack.c.l.b16 %v264
      %v622 = vunpack.c.h.b16 %v264
      %v623 = vunpack.c.l.b16 %v265
      %v624 = vunpack.c.h.b16 %v265
      %v625 = vunpack.c.l.b16 %v266
      %v626 = vunpack.c.h.b16 %v266
      %v627 = vunpack.c.l.b16 %v267
      %v628 = vunpack.c.h.b16 %v267
      %v629 = vunpack.c.l.b16 %v268
      %v630 = vunpack.c.h.b16 %v268
      %v631 = vunpack.c.l.b16 %v269
      %v632 = vunpack.c.h.b16 %v269
      %v633 = vunpack.c.l.b16 %v270
      %v634 = vunpack.c.h.b16 %v270
      %v635 = vunpack.c.l.b16 %v271
      %v636 = vunpack.c.h.b16 %v271
      %v637 = vunpack.c.l.b16 %v272
      %v638 = vunpack.c.h.b16 %v272
      %v639 = vunpack.c.l.b16 %v273
      %v640 = vunpack.c.h.b16 %v273
      %v641 = vunpack.c.l.b16 %v274
      %v642 = vunpack.c.h.b16 %v274
      %v643 = vunpack.c.l.b16 %v275
      %v644 = vunpack.c.h.b16 %v275
      %v645 = vunpack.c.l.b16 %v276
      %v646 = vunpack.c.h.b16 %v276
      %v647 = vunpack.c.l.b16 %v277
      %v648 = vunpack.c.h.b16 %v277
      %v649 = vunpack.c.l.b16 %v278
      %v650 = vunpack.c.h.b16 %v278
      %v651 = vunpack.c.l.b16 %v279
      %v652 = vunpack.c.h.b16 %v279
      %v653 = vunpack.c.l.b16 %v280
      %v654 = vunpack.c.h.b16 %v280
      %v655 = vunpack.c.l.b16 %v281
      %v656 = vunpack.c.h.b16 %v281
      %v657 = vunpack.c.l.b16 %v282
      %v658 = vunpack.c.h.b16 %v282
      %v659 = vunpack.c.l.b16 %v283
      %v660 = vunpack.c.h.b16 %v283
      %v661 = vunpack.c.l.b16 %v284
      %v662 = vunpack.c.h.b16 %v284
      %v663 = vunpack.c.l.b16 %v285
      %v664 = vunpack.c.h.b16 %v285
      %v665 = vunpack.c.l.b16 %v286
      %v666 = vunpack.c.h.b16 %v286
      %v667 = vunpack.c.l.b16 %v287
      %v668 = vunpack.c.h.b16 %v287
      %v669 = vunpack.c.l.b16 %v288
      %v670 = vunpack.c.h.b16 %v288
      %v671 = vunpack.c.l.b16 %v289
      %v672 = vunpack.c.h.b16 %v289
      %v673 = vunpack.c.l.b16 %v290
      %v674 = vunpack.c.h.b16 %v290
      %v675 = vunpack.c.l.b16 %v291
      %v676 = vunpack.c.h.b16 %v291
      %v677 = vunpack.c.l.b16 %v292
      %v678 = vunpack.c.h.b16 %v292
      %v679 = vunpack.c.l.b16 %v293
      %v680 = vunpack.c.h.b16 %v293
      %v681 = vunpack.c.l.b16 %v294
      %v682 = vunpack.c.h.b16 %v294
      %v683 = vunpack.c.l.b16 %v295
      %v684 = vunpack.c.h.b16 %v295
      %v685 = vunpack.c.l.b16 %v296
      %v686 = vunpack.c.h.b16 %v296
      %v687 = vunpack.c.l.b16 %v297
      %v688 = vunpack.c.h.b16 %v297
      %v689 = vunpack.c.l.b16 %v298
      %v690 = vunpack.c.h.b16 %v298
      %v691 = vunpack.c.l.b16 %v299
      %v692 = vunpack.c.h.b16 %v299
      %v693 = vunpack.c.l.b16 %v300
      %v694 = vunpack.c.h.b16 %v300
      %v695 = vunpack.c.l.b16 %v301
      %v696 = vunpack.c.h.b16 %v301
      %v697 = vunpack.c.l.b16 %v302
      %v698 = vunpack.c.h.b16 %v302
      %v699 = vunpack.c.l.b16 %v303
      %v700 = vunpack.c.h.b16 %v303
      %v701 = vunpack.c.l.b16 %v304
      %v702 = vunpack.c.h.b16 %v304
      %v703 = vunpack.c.l.b16 %v305
      %v704 = vunpack.c.h.b16 %v305
      %v705 = vunpack.c.l.b16 %v306
      %v706 = vunpack.c.h.b16 %v306
      %v707 = vunpack.c.l.b16 %v307
      %v708 = vunpack.c.h.b16 %v307
      %v709 = vunpack.c.l.b16 %v308
      %v710 = vunpack.c.h.b16 %v308
      %v711 = vunpack.c.l.b16 %v309
      %v712 = vunpack.c.h.b16 %v309
      %v713 = vunpack.c.l.b16 %v310
      %v714 = vunpack.c.h.b16 %v310
      %v715 = vunpack.c.l.b16 %v311
      %v716 = vunpack.c.h.b16 %v311
      %v717 = vunpack.c.l.b16 %v312
      %v718 = vunpack.c.h.b16 %v312
      %v719 = vunpack.c.l.b16 %v313
      %v720 = vunpack.c.h.b16 %v313
      %v721 = vunpack.c.l.b16 %v314
      %v722 = vunpack.c.h.b16 %v314
      %v723 = vunpack.c.l.b16 %v315
      %v724 = vunpack.c.h.b16 %v315
      %v725 = vunpack.c.l.b16 %v316
      %v726 = vunpack.c.h.b16 %v316
      %v727 = vunpack.c.l.b16 %v317
      %v728 = vunpack.c.h.b16 %v317
      %v729 = vunpack.c.l.b16 %v318
      %v730 = vunpack.c.h.b16 %v318
      %v731 = vunpack.c.l.b16 %v319
      %v732 = vunpack.c.h.b16 %v319
      %v733 = vunpack.c.l.b16 %v320
      %v734 = vunpack.c.h.b16 %v320
      %v735 = vunpack.c.l.b16 %v321
      %v736 = vunpack.c.h.b16 %v321
      %v737 = vunpack.c.l.b16 %v322
      %v738 = vunpack.c.h.b16 %v322
      %v739 = vunpack.c.l.b16 %v323
      %v740 = vunpack.c.h.b16 %v323
      %v741 = vunpack.c.l.b16 %v324
      %v742 = vunpack.c.h.b16 %v324
      %v743 = vunpack.c.l.b16 %v325
      %v744 = vunpack.c.h.b16 %v325
      %v745 = vunpack.c.l.b16 %v326
      %v746 = vunpack.c.h.b16 %v326
      %v747 = vunpack.c.l.b16 %v327
      %v748 = vunpack.c.h.b16 %v327
      %v749 = vunpack.c.l.b16 %v328
      %v750 = vunpack.c.h.b16 %v328
      %v751 = vunpack.c.l.b16 %v329
      %v752 = vunpack.c.h.b16 %v329
      %v753 = vunpack.c.l.b16 %v330
      %v754 = vunpack.c.h.b16 %v330
      %v755 = vunpack.c.l.b16 %v331
      %v756 = vunpack.c.h.b16 %v331
      %v757 = vunpack.c.l.b16 %v332
      %v758 = vunpack.c.h.b16 %v332
      %v759 = vpack.c.b16 %v511, %v503
      %v760 = vpack.c.b16 %v512, %v504
      %v761 = vpack.c.b16 %v513, %v505
      %v762 = vpack.c.b16 %v514, %v506
      %v763 = vpack.c.b16 %v515, %v507
      %v764 = vpack.c.b16 %v516, %v508
      %v765 = vpack.c.b16 %v517, %v509
      %v766 = vpack.c.b16 %v518, %v510
      %v767 = vpack.c.b16 %v527, %v519
      %v768 = vpack.c.b16 %v528, %v520
      %v769 = vpack.c.b16 %v529, %v521
      %v770 = vpack.c.b16 %v530, %v522
      %v771 = vpack.c.b16 %v531, %v523
      %v772 = vpack.c.b16 %v532, %v524
      %v773 = vpack.c.b16 %v533, %v525
      %v774 = vpack.c.b16 %v534, %v526
      %v775 = vpack.c.b16 %v543, %v535
      %v776 = vpack.c.b16 %v544, %v536
      %v777 = vpack.c.b16 %v545, %v537
      %v778 = vpack.c.b16 %v546, %v538
      %v779 = vpack.c.b16 %v547, %v539
      %v780 = vpack.c.b16 %v548, %v540
      %v781 = vpack.c.b16 %v549, %v541
      %v782 = vpack.c.b16 %v550, %v542
      %v783 = vpack.c.b16 %v559, %v551
      %v784 = vpack.c.b16 %v560, %v552
      %v785 = vpack.c.b16 %v561, %v553
      %v786 = vpack.c.b16 %v562, %v554
      %v787 = vpack.c.b16 %v563, %v555
      %v788 = vpack.c.b16 %v564, %v556
      %v789 = vpack.c.b16 %v565, %v557
      %v790 = vpack.c.b16 %v566, %v558
      %v791 = vpack.c.b16 %v575, %v567
      %v792 = vpack.c.b16 %v576, %v568
      %v793 = vpack.c.b16 %v577, %v569
      %v794 = vpack.c.b16 %v578, %v570
      %v795 = vpack.c.b16 %v579, %v571
      %v796 = vpack.c.b16 %v580, %v572
      %v797 = vpack.c.b16 %v581, %v573
      %v798 = vpack.c.b16 %v582, %v574
      %v799 = vpack.c.b16 %v591, %v583
      %v800 = vpack.c.b16 %v592, %v584
      %v801 = vpack.c.b16 %v593, %v585
      %v802 = vpack.c.b16 %v594, %v586
      %v803 = vpack.c.b16 %v595, %v587
      %v804 = vpack.c.b16 %v596, %v588
      %v805 = vpack.c.b16 %v597, %v589
      %v806 = vpack.c.b16 %v598, %v590
      %v807 = vpack.c.b16 %v607, %v599
      %v808 = vpack.c.b16 %v608, %v600
      %v809 = vpack.c.b16 %v609, %v601
      %v810 = vpack.c.b16 %v610, %v602
      %v811 = vpack.c.b16 %v611, %v603
      %v812 = vpack.c.b16 %v612, %v604
      %v813 = vpack.c.b16 %v613, %v605
      %v814 = vpack.c.b16 %v614, %v606
      %v815 = vpack.c.b16 %v623, %v615
      %v816 = vpack.c.b16 %v624, %v616
      %v817 = vpack.c.b16 %v625, %v617
      %v818 = vpack.c.b16 %v626, %v618
      %v819 = vpack.c.b16 %v627, %v619
      %v820 = vpack.c.b16 %v628, %v620
      %v821 = vpack.c.b16 %v629, %v621
      %v822 = vpack.c.b16 %v630, %v622
      %v823 = vpack.c.b16 %v639, %v631
      %v824 = vpack.c.b16 %v640, %v632
      %v825 = vpack.c.b16 %v641, %v633
      %v826 = vpack.c.b16 %v642, %v634
      %v827 = vpack.c.b16 %v643, %v635
      %v828 = vpack.c.b16 %v644, %v636
      %v829 = vpack.c.b16 %v645, %v637
      %v830 = vpack.c.b16 %v646, %v638
      %v831 = vpack.c.b16 %v655, %v647
      %v832 = vpack.c.b16 %v656, %v648
      %v833 = vpack.c.b16 %v657, %v649
      %v834 = vpack.c.b16 %v658, %v650
      %v835 = vpack.c.b16 %v659, %v651
      %v836 = vpack.c.b16 %v660, %v652
      %v837 = vpack.c.b16 %v661, %v653
      %v838 = vpack.c.b16 %v662, %v654
      %v839 = vpack.c.b16 %v671, %v663
      %v840 = vpack.c.b16 %v672, %v664
      %v841 = vpack.c.b16 %v673, %v665
      %v842 = vpack.c.b16 %v674, %v666
      %v843 = vpack.c.b16 %v675, %v667
      %v844 = vpack.c.b16 %v676, %v668
      %v845 = vpack.c.b16 %v677, %v669
      %v846 = vpack.c.b16 %v678, %v670
      %v847 = vpack.c.b16 %v687, %v679
      %v848 = vpack.c.b16 %v688, %v680
      %v849 = vpack.c.b16 %v689, %v681
      %v850 = vpack.c.b16 %v690, %v682
      %v851 = vpack.c.b16 %v691, %v683
      %v852 = vpack.c.b16 %v692, %v684
      %v853 = vpack.c.b16 %v693, %v685
      %v854 = vpack.c.b16 %v694, %v686
      %v855 = vpack.c.b16 %v703, %v695
      %v856 = vpack.c.b16 %v704, %v696
      %v857 = vpack.c.b16 %v705, %v697
      %v858 = vpack.c.b16 %v706, %v698
      %v859 = vpack.c.b16 %v707, %v699
      %v860 = vpack.c.b16 %v708, %v700
      %v861 = vpack.c.b16 %v709, %v701
      %v862 = vpack.c.b16 %v710, %v702
      %v863 = vpack.c.b16 %v719, %v711
      %v864 = vpack.c.b16 %v720, %v712
      %v865 = vpack.c.b16 %v721, %v713
      %v866 = vpack.c.b16 %v722, %v714
      %v867 = vpack.c.b16 %v723, %v715
      %v868 = vpack.c.b16 %v724, %v716
      %v869 = vpack.c.b16 %v725, %v717
      %v870 = vpack.c.b16 %v726, %v718
      %v871 = vpack.c.b16 %v735, %v727
      %v872 = vpack.c.b16 %v736, %v728
      %v873 = vpack.c.b16 %v737, %v729
      %v874 = vpack.c.b16 %v738, %v730
      %v875 = vpack.c.b16 %v739, %v731
      %v876 = vpack.c.b16 %v740, %v732
      %v877 = vpack.c.b16 %v741, %v733
      %v878 = vpack.c.b16 %v742, %v734
      %v879 = vpack.c.b16 %v751, %v743
      %v880 = vpack.c.b16 %v752, %v744
      %v881 = vpack.c.b16 %v753, %v745
      %v882 = vpack.c.b16 %v754, %v746
      %v883 = vpack.c.b16 %v755, %v747
      %v884 = vpack.c.b16 %v756, %v748
      %v885 = vpack.c.b16 %v757, %v749
      %v886 = vpack.c.b16 %v758, %v750
      %1015 = vmatprep.subr.bf16.mxu0 %v760
      %1016 = vmatpush1.bf16.msra.mxu0 %v759
      %1017 = vmatprep.subr.bf16.mxu0 %v768
      %1018 = vmatpush1.bf16.msra.mxu0 %v767
      %1019 = vmatprep.subr.bf16.mxu0 %v776
      %1020 = vmatpush1.bf16.msra.mxu0 %v775
      %1021 = vmatprep.subr.bf16.mxu0 %v784
      %1022 = vmatpush1.bf16.msra.mxu0 %v783
      %1023 = vmatprep.subr.bf16.mxu0 %v792
      %1024 = vmatpush1.bf16.msra.mxu0 %v791
      %1025 = vmatprep.subr.bf16.mxu0 %v800
      %1026 = vmatpush1.bf16.msra.mxu0 %v799
      %1027 = vmatprep.subr.bf16.mxu0 %v808
      %1028 = vmatpush1.bf16.msra.mxu0 %v807
      %1029 = vmatprep.subr.bf16.mxu0 %v816
      %1030 = vmatpush1.bf16.msra.mxu0 %v815
      %1031 = vmatprep.subr.bf16.mxu0 %v824
      %1032 = vmatpush1.bf16.msra.mxu0 %v823
      %1033 = vmatprep.subr.bf16.mxu0 %v832
      %1034 = vmatpush1.bf16.msra.mxu0 %v831
      %1035 = vmatprep.subr.bf16.mxu0 %v840
      %1036 = vmatpush1.bf16.msra.mxu0 %v839
      %1037 = vmatprep.subr.bf16.mxu0 %v848
      %1038 = vmatpush1.bf16.msra.mxu0 %v847
      %1039 = vmatprep.subr.bf16.mxu0 %v856
      %1040 = vmatpush1.bf16.msra.mxu0 %v855
      %1041 = vmatprep.subr.bf16.mxu0 %v864
      %1042 = vmatpush1.bf16.msra.mxu0 %v863
      %1043 = vmatprep.subr.bf16.mxu0 %v872
      %1044 = vmatpush1.bf16.msra.mxu0 %v871
      %1045 = vmatprep.subr.bf16.mxu0 %v880
      %1046 = vmatpush1.bf16.msra.mxu0 %v879
      %1047 = vmatprep.mubr.bf16.mxu0 %v204
      %1048 = vmatmul.mubr.bf16.gmra.mrb[0].mxu0 %v203
      %v1049 = vpop.f32.mrb[0].mxu0
      %v1050 = vadd.f32 %v338, %v1049
      %v1051 = vpop.f32.mrb[0].mxu0
      %v1052 = vadd.f32 %v342, %v1051
      %v1053 = vpop.f32.mrb[0].mxu0
      %v1054 = vpop.f32.mrb[0].mxu0
      %1055 = vdwg.mxu0
      %1056 = vmatprep.subr.bf16.mxu0 %v762
      %1057 = vmatpush1.bf16.msra.mxu0 %v761
      %1058 = vmatprep.subr.bf16.mxu0 %v770
      %1059 = vmatpush1.bf16.msra.mxu0 %v769
      %1060 = vmatprep.subr.bf16.mxu0 %v778
      %1061 = vmatpush1.bf16.msra.mxu0 %v777
      %1062 = vmatprep.subr.bf16.mxu0 %v786
      %1063 = vmatpush1.bf16.msra.mxu0 %v785
      %1064 = vmatprep.subr.bf16.mxu0 %v794
      %1065 = vmatpush1.bf16.msra.mxu0 %v793
      %1066 = vmatprep.subr.bf16.mxu0 %v802
      %1067 = vmatpush1.bf16.msra.mxu0 %v801
      %1068 = vmatprep.subr.bf16.mxu0 %v810
      %1069 = vmatpush1.bf16.msra.mxu0 %v809
      %1070 = vmatprep.subr.bf16.mxu0 %v818
      %1071 = vmatpush1.bf16.msra.mxu0 %v817
      %1072 = vmatprep.subr.bf16.mxu0 %v826
      %1073 = vmatpush1.bf16.msra.mxu0 %v825
      %1074 = vmatprep.subr.bf16.mxu0 %v834
      %1075 = vmatpush1.bf16.msra.mxu0 %v833
      %1076 = vmatprep.subr.bf16.mxu0 %v842
      %1077 = vmatpush1.bf16.msra.mxu0 %v841
      %1078 = vmatprep.subr.bf16.mxu0 %v850
      %1079 = vmatpush1.bf16.msra.mxu0 %v849
      %1080 = vmatprep.subr.bf16.mxu0 %v858
      %1081 = vmatpush1.bf16.msra.mxu0 %v857
      %1082 = vmatprep.subr.bf16.mxu0 %v866
      %1083 = vmatpush1.bf16.msra.mxu0 %v865
      %1084 = vmatprep.subr.bf16.mxu0 %v874
      %1085 = vmatpush1.bf16.msra.mxu0 %v873
      %1086 = vmatprep.subr.bf16.mxu0 %v882
      %1087 = vmatpush1.bf16.msra.mxu0 %v881
      %1088 = vmatprep.mubr.bf16.mxu0 %v204
      %1089 = vmatmul.mubr.bf16.gmra.mrb[0].mxu0 %v203
      %v1090 = vpop.f32.mrb[0].mxu0
      %v1091 = vadd.f32 %v346, %v1090
      %v1092 = vpop.f32.mrb[0].mxu0
      %v1093 = vadd.f32 %v350, %v1092
      %v1094 = vpop.f32.mrb[0].mxu0
      %v1095 = vpop.f32.mrb[0].mxu0
      %1096 = vdwg.mxu0
      %1097 = vmatprep.subr.bf16.mxu0 %v764
      %1098 = vmatpush1.bf16.msra.mxu0 %v763
      %1099 = vmatprep.subr.bf16.mxu0 %v772
      %1100 = vmatpush1.bf16.msra.mxu0 %v771
      %1101 = vmatprep.subr.bf16.mxu0 %v780
      %1102 = vmatpush1.bf16.msra.mxu0 %v779
      %1103 = vmatprep.subr.bf16.mxu0 %v788
      %1104 = vmatpush1.bf16.msra.mxu0 %v787
      %1105 = vmatprep.subr.bf16.mxu0 %v796
      %1106 = vmatpush1.bf16.msra.mxu0 %v795
      %1107 = vmatprep.subr.bf16.mxu0 %v804
      %1108 = vmatpush1.bf16.msra.mxu0 %v803
      %1109 = vmatprep.subr.bf16.mxu0 %v812
      %1110 = vmatpush1.bf16.msra.mxu0 %v811
      %1111 = vmatprep.subr.bf16.mxu0 %v820
      %1112 = vmatpush1.bf16.msra.mxu0 %v819
      %1113 = vmatprep.subr.bf16.mxu0 %v828
      %1114 = vmatpush1.bf16.msra.mxu0 %v827
      %1115 = vmatprep.subr.bf16.mxu0 %v836
      %1116 = vmatpush1.bf16.msra.mxu0 %v835
      %1117 = vmatprep.subr.bf16.mxu0 %v844
      %1118 = vmatpush1.bf16.msra.mxu0 %v843
      %1119 = vmatprep.subr.bf16.mxu0 %v852
      %1120 = vmatpush1.bf16.msra.mxu0 %v851
      %1121 = vmatprep.subr.bf16.mxu0 %v860
      %1122 = vmatpush1.bf16.msra.mxu0 %v859
      %1123 = vmatprep.subr.bf16.mxu0 %v868
      %1124 = vmatpush1.bf16.msra.mxu0 %v867
      %1125 = vmatprep.subr.bf16.mxu0 %v876
      %1126 = vmatpush1.bf16.msra.mxu0 %v875
      %1127 = vmatprep.subr.bf16.mxu0 %v884
      %1128 = vmatpush1.bf16.msra.mxu0 %v883
      %1129 = vmatprep.mubr.bf16.mxu0 %v204
      %1130 = vmatmul.mubr.bf16.gmra.mrb[0].mxu0 %v203
      %v1131 = vpop.f32.mrb[0].mxu0
      %v1132 = vadd.f32 %v354, %v1131
      %v1133 = vpop.f32.mrb[0].mxu0
      %v1134 = vadd.f32 %v358, %v1133
      %v1135 = vpop.f32.mrb[0].mxu0
      %v1136 = vpop.f32.mrb[0].mxu0
      %1137 = vdwg.mxu0
      %1138 = vmatprep.subr.bf16.mxu0 %v766
      %1139 = vmatpush1.bf16.msra.mxu0 %v765
      %1140 = vmatprep.subr.bf16.mxu0 %v774
      %1141 = vmatpush1.bf16.msra.mxu0 %v773
      %1142 = vmatprep.subr.bf16.mxu0 %v782
      %1143 = vmatpush1.bf16.msra.mxu0 %v781
      %1144 = vmatprep.subr.bf16.mxu0 %v790
      %1145 = vmatpush1.bf16.msra.mxu0 %v789
      %1146 = vmatprep.subr.bf16.mxu0 %v798
      %1147 = vmatpush1.bf16.msra.mxu0 %v797
      %1148 = vmatprep.subr.bf16.mxu0 %v806
      %1149 = vmatpush1.bf16.msra.mxu0 %v805
      %1150 = vmatprep.subr.bf16.mxu0 %v814
      %1151 = vmatpush1.bf16.msra.mxu0 %v813
      %1152 = vmatprep.subr.bf16.mxu0 %v822
      %1153 = vmatpush1.bf16.msra.mxu0 %v821
      %1154 = vmatprep.subr.bf16.mxu0 %v830
      %1155 = vmatpush1.bf16.msra.mxu0 %v829
      %1156 = vmatprep.subr.bf16.mxu0 %v838
      %1157 = vmatpush1.bf16.msra.mxu0 %v837
      %1158 = vmatprep.subr.bf16.mxu0 %v846
      %1159 = vmatpush1.bf16.msra.mxu0 %v845
      %1160 = vmatprep.subr.bf16.mxu0 %v854
      %1161 = vmatpush1.bf16.msra.mxu0 %v853
      %1162 = vmatprep.subr.bf16.mxu0 %v862
      %1163 = vmatpush1.bf16.msra.mxu0 %v861
      %1164 = vmatprep.subr.bf16.mxu0 %v870
      %1165 = vmatpush1.bf16.msra.mxu0 %v869
      %1166 = vmatprep.subr.bf16.mxu0 %v878
      %1167 = vmatpush1.bf16.msra.mxu0 %v877
      %1168 = vmatprep.subr.bf16.mxu0 %v886
      %1169 = vmatpush1.bf16.msra.mxu0 %v885
      %1170 = vmatprep.mubr.bf16.mxu0 %v204
      %1171 = vmatmul.mubr.bf16.gmra.mrb[0].mxu0 %v203
      %v1172 = vpop.f32.mrb[0].mxu0
      %v1173 = vadd.f32 %v362, %v1172
      %v1174 = vpop.f32.mrb[0].mxu0
      %v1175 = vadd.f32 %v366, %v1174
      %v1176 = vpop.f32.mrb[0].mxu0
      %v1177 = vpop.f32.mrb[0].mxu0
      %1178 = vdwg.mxu0
      %v1187 = vcombine.low %v1050, %v1052
      %v1188 = vcombine.low %v1091, %v1093
      %v1190 = vunpack.c.l.s4 1983009808
      %v1191 = vunpack.c.0.s8 %v1190
      %v1192 = vlaneseq
      %v1193 = vshrl.u32 %v1192, 7
      %v1194 = vsub.s32 %v1191, %v1193
      %v1195 = vrot.slane %v1187, %v1194
      %v1197 = vunpack.c.l.s4 1983009808
      %v1198 = vunpack.c.0.s8 %v1197
      %v1199 = vlaneseq
      %v1200 = vshrl.u32 %v1199, 7
      %v1201 = vsub.s32 %v1198, %v1200
      %v1202 = vrot.slane %v1188, %v1201
      %v1203 = vcombine.low %v1195, %v1202
      %v1204 = vcombine.low %v1132, %v1134
      %v1205 = vcombine.low %v1173, %v1175
      %v1207 = vunpack.c.l.s4 1983009808
      %v1208 = vunpack.c.0.s8 %v1207
      %v1209 = vlaneseq
      %v1210 = vshrl.u32 %v1209, 7
      %v1211 = vsub.s32 %v1208, %v1210
      %v1212 = vrot.slane %v1204, %v1211
      %v1214 = vunpack.c.l.s4 1983009808
      %v1215 = vunpack.c.0.s8 %v1214
      %v1216 = vlaneseq
      %v1217 = vshrl.u32 %v1216, 7
      %v1218 = vsub.s32 %v1215, %v1217
      %v1219 = vrot.slane %v1205, %v1218
      %v1220 = vcombine.low %v1212, %v1219
      %1223 = vst [vmem:[%s189] sm:$0xff] %v1203
      %1224 = vst [vmem:[%s189 + $0x8] sm:$0xff] %v1220
      %s1225 = smul.u32 8, %s14
      %p1226 = scmp.lt.s32.totalorder %s1225, 15
      %s1227 = scalar_select %p1226, %s1225, 15
      %s1228 = smul.addr %s1227, 2
      %s1229 = scalar_lea.vmem %s3, %s1228
      // Predicated region
      $region33: #{cnn_lstm_forward.5} parent=31 // pred_check
        %p1230 = pneg %p105
      $region34: #{cnn_lstm_forward.5} parent=31 // pred_check_branch
        %1232 = sbr.rel (%p1230) target = $region36
      $region35: #{cnn_lstm_forward.5} parent=31 // pred_region
        %s1233 = smul.u32 8, %s14
      $region36: #{cnn_lstm_forward.5} parent=31 // pred_fallthru
        _
    $region32: #{cnn_lstm_forward.5} parent=5 // pred_fallthru
      _
    %p1234 = scmp.le.s32.totalorder 2, %s9
    // Predicated region
    $region37: #{cnn_lstm_forward.5} parent=5 // pred_check
      %p1235 = pneg %p1234
    $region38: #{cnn_lstm_forward.5} parent=5 // pred_check_branch
      %1237 = sbr.rel (%p1235) target = $region40
    $region39: #{cnn_lstm_forward.5} parent=5 // pred_region
      %s1238 = ssub.s32 %s9, 2
      // Predicated region
      $region41: #{cnn_lstm_forward.5} parent=39 // pred_check
        %p1239 = pneg %p111
      $region42: #{cnn_lstm_forward.5} parent=39 // pred_check_branch
        %1241 = sbr.rel (%p1239) target = $region44
      $region43: #{cnn_lstm_forward.5} parent=39 // pred_region
        %s1242 = smul.u32 8, %s15
        %p1243 = scmp.lt.s32.totalorder %s1242, 15
        %s1244 = scalar_select %p1243, %s1242, 15
        %s1245 = smul.addr %s1244, 2
        %s1246 = scalar_lea.vmem %s3, %s1245
      $region44: #{cnn_lstm_forward.5} parent=39 // pred_fallthru
        _
    $region40: #{cnn_lstm_forward.5} parent=5 // pred_fallthru
      _
  $region6: #{cnn_lstm_forward.5} parent=0 // loop_footer
    %s13 = sadd.s32 1, %s9
  $region7: #{cnn_lstm_forward.5} parent=0 // loop_footer_branch
    %8 = sbr.rel target = $region3
  $region8: #{cnn_lstm_forward.5} parent=0 // loop_exit
    _

// kernel: cnn_lstm_forward.3
$region0: #{cnn_lstm_forward.3}
  #allocation0 [shape = 'u32[]', space=smem, size = 0x4, offset = 0x4, fixed_abs, tag = 'smem constant byte address 0x4 - core index']
  #allocation1 [shape = 'u32[144,128]{1,0:T(1,128)}', space=vmem, size = 0x12000, scoped, tag = 'internal scratch']
  %s0 = inlined_call_operand.hbm [shape: f32[16,16,16], index: 0, kind: input, shape index: {}]
  %s1 = inlined_call_operand.hbm [shape: bf16[3,16,448], index: 1, kind: input, shape index: {}]
  %s2 = inlined_call_operand.hbm [shape: bf16[14,448,128], index: 2, kind: input, shape index: {}]
  %s3 = inlined_call_operand.hbm [shape: f32[1,448], index: 3, kind: input, shape index: {}]
  %s4 = inlined_call_operand.hbm [shape: f32[1,128], index: 4, kind: input, shape index: {}]
  %s5 = inlined_call_operand.vmem [shape: f32[16,128], index: 5, kind: output, shape index: {}]
  %s6 = sld [smem:[#allocation0]]
  $region73: #{cnn_lstm_forward.3} parent=0
    _
  %s8 = ssub.s32 1, %s6
  %s9 = scalar_select 0, %s8, %s6
  $region1: #{cnn_lstm_forward.3} parent=0
    #allocation2 [shape = 'u8[131072]{0}', space=vmem, size = 0x20000, scoped, tag = 'input window, operand 0']
    #allocation3 [shape = 's32[2]{0}', space=sflag, size = 0x8, scoped, tag = 'scoped memory for cnn_lstm_forward.3']
    #allocation4 [shape = 'u8[49152]{0}', space=vmem, size = 0xc000, scoped, tag = 'input window, operand 1, single buffered']
    #allocation5 [shape = 's32[1]{0}', space=sflag, size = 0x4, scoped, tag = 'scoped memory for cnn_lstm_forward.3']
    #allocation6 [shape = 'u8[1605632]{0}', space=vmem, size = 0x188000, scoped, tag = 'input window, operand 2, single buffered']
    #allocation7 [shape = 'u8[2048]{0}', space=vmem, size = 0x800, scoped, tag = 'input window, operand 3, single buffered']
    #allocation8 [shape = 's32[1]{0}', space=sflag, size = 0x4, scoped, tag = 'scoped memory for cnn_lstm_forward.3']
    #allocation9 [shape = 'u8[512]{0}', space=vmem, size = 0x400, scoped, tag = 'input window, operand 4, single buffered']
    %10 = vsyncpa [#allocation3], 0
    %s11 = scalar_lea.sflag [#allocation3], 1
    %12 = vsyncpa %s11, 0
    %13 = vsyncpa [#allocation5], 0
    %14 = vsyncpa [#allocation8], 0
    loop: start=0, step=1, limit=4
    $region2: #{cnn_lstm_forward.3} parent=1 // loop_pre_header
      _
    $region3: #{cnn_lstm_forward.3} parent=1 // loop_header
      %s16 = sphi 0, %s20
      %p17 = scmp.ge.s32.totalorder %s16, 4
      %s26 = sphi 0, %s28
      %s29 = sphi 0, %s26
      %s30 = sphi 0, %s29
      %s46 = sphi 0, %s30
      %s50 = sphi 0, %s50
      %s52 = sphi 0, %s50
      %s53 = sphi 0, %s52
      %s67 = sphi 0, %s53
      %s71 = sphi 0, %s71
      %s73 = sphi 0, %s71
      %s74 = sphi 0, %s73
      %s88 = sphi 0, %s74
      %s92 = sphi 0, %s92
      %s94 = sphi 0, %s92
      %s95 = sphi 0, %s94
      %s109 = sphi 0, %s95
      %s113 = sphi 0, %s113
      %s115 = sphi 0, %s113
      %s116 = sphi 0, %s115
      %s130 = sphi 0, %s116
      %s136 = sphi 0, %s138
      %s139 = sphi 0, %s136
      %s140 = sphi 0, %s139
      %s156 = sphi 0, %s140
    $region4: #{cnn_lstm_forward.3} parent=1 // loop_header_branch
      %19 = sbr.rel (%p17) target = $region8
    $region5: #{cnn_lstm_forward.3} parent=1 // loop_body
      %s21 = ssub.s32 %s16, 1
      %s22 = ssub.s32 %s16, 2
      %s23 = sadd.s32 %s16, 1
      %s24 = ssub.s32 %s16, %s23
      %p25 = scmp.eq.s32.totalorder %s24, 0
      %s27 = sadd.s32 %s26, 1
      %s28 = scalar_select %p25, %s26, %s27
      %p31 = pneg %p25
      %p32 = scmp.eq.s32.totalorder %s16, 1
      %p33 = por %p31, %p32
      %p34 = scmp.ne.s32.totalorder %s26, %s29
      %p35 = scmp.eq.s32.totalorder %s16, 0
      %p36 = por %p34, %p35
      %p37 = scmp.ne.s32.totalorder %s26, %s29
      %p38 = scmp.eq.s32.totalorder %s21, 1
      %p39 = por %p37, %p38
      %p40 = scmp.ne.s32.totalorder %s29, %s30
      %p41 = scmp.eq.s32.totalorder %s21, 0
      %p42 = por %p40, %p41
      %p43 = scmp.ne.s32.totalorder %s29, %s30
      %p44 = scmp.eq.s32.totalorder %s22, 1
      %p45 = por %p43, %p44
      %p47 = scmp.ne.s32.totalorder %s30, %s46
      %p48 = scmp.eq.s32.totalorder %s22, 0
      %p49 = por %p47, %p48
      %s51 = sadd.s32 %s50, 1
      %p54 = scmp.eq.s32.totalorder %s16, 1
      %p55 = scmp.ne.s32.totalorder %s50, %s52
      %p56 = scmp.eq.s32.totalorder %s16, 0
      %p57 = por %p55, %p56
      %p58 = scmp.ne.s32.totalorder %s50, %s52
      %p59 = scmp.eq.s32.totalorder %s21, 1
      %p60 = por %p58, %p59
      %p61 = scmp.ne.s32.totalorder %s52, %s53
      %p62 = scmp.eq.s32.totalorder %s21, 0
      %p63 = por %p61, %p62
      %p64 = scmp.ne.s32.totalorder %s52, %s53
      %p65 = scmp.eq.s32.totalorder %s22, 1
      %p66 = por %p64, %p65
      %p68 = scmp.ne.s32.totalorder %s53, %s67
      %p69 = scmp.eq.s32.totalorder %s22, 0
      %p70 = por %p68, %p69
      %s72 = sadd.s32 %s71, 1
      %p75 = scmp.eq.s32.totalorder %s16, 1
      %p76 = scmp.ne.s32.totalorder %s71, %s73
      %p77 = scmp.eq.s32.totalorder %s16, 0
      %p78 = por %p76, %p77
      %p79 = scmp.ne.s32.totalorder %s71, %s73
      %p80 = scmp.eq.s32.totalorder %s21, 1
      %p81 = por %p79, %p80
      %p82 = scmp.ne.s32.totalorder %s73, %s74
      %p83 = scmp.eq.s32.totalorder %s21, 0
      %p84 = por %p82, %p83
      %p85 = scmp.ne.s32.totalorder %s73, %s74
      %p86 = scmp.eq.s32.totalorder %s22, 1
      %p87 = por %p85, %p86
      %p89 = scmp.ne.s32.totalorder %s74, %s88
      %p90 = scmp.eq.s32.totalorder %s22, 0
      %p91 = por %p89, %p90
      %s93 = sadd.s32 %s92, 1
      %p96 = scmp.eq.s32.totalorder %s16, 1
      %p97 = scmp.ne.s32.totalorder %s92, %s94
      %p98 = scmp.eq.s32.totalorder %s16, 0
      %p99 = por %p97, %p98
      %p100 = scmp.ne.s32.totalorder %s92, %s94
      %p101 = scmp.eq.s32.totalorder %s21, 1
      %p102 = por %p100, %p101
      %p103 = scmp.ne.s32.totalorder %s94, %s95
      %p104 = scmp.eq.s32.totalorder %s21, 0
      %p105 = por %p103, %p104
      %p106 = scmp.ne.s32.totalorder %s94, %s95
      %p107 = scmp.eq.s32.totalorder %s22, 1
      %p108 = por %p106, %p107
      %p110 = scmp.ne.s32.totalorder %s95, %s109
      %p111 = scmp.eq.s32.totalorder %s22, 0
      %p112 = por %p110, %p111
      %s114 = sadd.s32 %s113, 1
      %p117 = scmp.eq.s32.totalorder %s16, 1
      %p118 = scmp.ne.s32.totalorder %s113, %s115
      %p119 = scmp.eq.s32.totalorder %s16, 0
      %p120 = por %p118, %p119
      %p121 = scmp.ne.s32.totalorder %s113, %s115
      %p122 = scmp.eq.s32.totalorder %s21, 1
      %p123 = por %p121, %p122
      %p124 = scmp.ne.s32.totalorder %s115, %s116
      %p125 = scmp.eq.s32.totalorder %s21, 0
      %p126 = por %p124, %p125
      %p127 = scmp.ne.s32.totalorder %s115, %s116
      %p128 = scmp.eq.s32.totalorder %s22, 1
      %p129 = por %p127, %p128
      %p131 = scmp.ne.s32.totalorder %s116, %s130
      %p132 = scmp.eq.s32.totalorder %s22, 0
      %p133 = por %p131, %p132
      %s134 = ssub.s32 %s16, %s23
      %p135 = scmp.eq.s32.totalorder %s134, 0
      %s137 = sadd.s32 %s136, 1
      %s138 = scalar_select %p135, %s136, %s137
      %p141 = pneg %p135
      %p142 = scmp.eq.s32.totalorder %s16, 1
      %p143 = por %p141, %p142
      %p144 = scmp.ne.s32.totalorder %s136, %s139
      %p145 = scmp.eq.s32.totalorder %s16, 0
      %p146 = por %p144, %p145
      %p147 = scmp.ne.s32.totalorder %s136, %s139
      %p148 = scmp.eq.s32.totalorder %s21, 1
      %p149 = por %p147, %p148
      %p150 = scmp.ne.s32.totalorder %s139, %s140
      %p151 = scmp.eq.s32.totalorder %s21, 0
      %p152 = por %p150, %p151
      %p153 = scmp.ne.s32.totalorder %s139, %s140
      %p154 = scmp.eq.s32.totalorder %s22, 1
      %p155 = por %p153, %p154
      %p157 = scmp.ne.s32.totalorder %s140, %s156
      %p158 = scmp.eq.s32.totalorder %s22, 0
      %p159 = por %p157, %p158
      %p160 = scmp.le.s32.totalorder 1, %s16
      %p161 = scmp.lt.s32.totalorder %s16, 3
      %p162 = pnand %p160, %p161
      %p163 = pneg %p162
      // Predicated region
      $region9: #{cnn_lstm_forward.3} parent=5 // pred_check
        _
      $region10: #{cnn_lstm_forward.3} parent=5 // pred_check_branch
        %165 = sbr.rel (%p162) target = $region12
      $region11: #{cnn_lstm_forward.3} parent=5 // pred_region
        %s166 = ssub.s32 %s16, 1
        // Predicated region
        $region13: #{cnn_lstm_forward.3} parent=11 // pred_check
          %p167 = pneg %p63
        $region14: #{cnn_lstm_forward.3} parent=11 // pred_check_branch
          %169 = sbr.rel (%p167) target = $region16
        $region15: #{cnn_lstm_forward.3} parent=11 // pred_region
          %s171 = ssub.s32 1536, 1536
          %172 = vsyncadd [#allocation5], %s171
          %s173 = sshll.u32 [#allocation4], 4
          %s174 = int_to_ptr.vmem [resolvable:$true] %s173
          %179 = dma.hbm_to_vmem [thread:$0]  %s1, 1536, %s174, [#allocation5], 256, 256, 16
        $region16: #{cnn_lstm_forward.3} parent=11 // pred_fallthru
          _
        // Predicated region
        $region17: #{cnn_lstm_forward.3} parent=11 // pred_check
          %p180 = pneg %p84
        $region18: #{cnn_lstm_forward.3} parent=11 // pred_check_branch
          %182 = sbr.rel (%p180) target = $region20
        $region19: #{cnn_lstm_forward.3} parent=11 // pred_region
          %s184 = ssub.s32 50176, 50176
          %185 = vsyncadd [#allocation5], %s184
          %s186 = sshll.u32 [#allocation6], 4
          %s187 = int_to_ptr.vmem [resolvable:$true] %s186
          %192 = dma.hbm_to_vmem [thread:$0]  %s2, 50176, %s187, [#allocation5], 64, 64, 4
        $region20: #{cnn_lstm_forward.3} parent=11 // pred_fallthru
          _
        // Predicated region
        $region21: #{cnn_lstm_forward.3} parent=11 // pred_check
          %p193 = pneg %p105
        $region22: #{cnn_lstm_forward.3} parent=11 // pred_check_branch
          %195 = sbr.rel (%p193) target = $region24
        $region23: #{cnn_lstm_forward.3} parent=11 // pred_region
          %s197 = ssub.s32 64, 64
          %198 = vsyncadd [#allocation8], %s197
          %s200 = sshll.u32 [#allocation7], 4
          %s201 = int_to_ptr.vmem [resolvable:$true] %s200
          %203 = dma.hbm_to_vmem [thread:$0]  %s3, 64, %s201, [#allocation8]
        $region24: #{cnn_lstm_forward.3} parent=11 // pred_fallthru
          _
        // Predicated region
        $region25: #{cnn_lstm_forward.3} parent=11 // pred_check
          %p204 = pneg %p126
        $region26: #{cnn_lstm_forward.3} parent=11 // pred_check_branch
          %206 = sbr.rel (%p204) target = $region28
        $region27: #{cnn_lstm_forward.3} parent=11 // pred_region
          %s208 = ssub.s32 16, 16
          %209 = vsyncadd [#allocation8], %s208
          %s211 = sshll.u32 [#allocation9], 4
          %s212 = int_to_ptr.vmem [resolvable:$true] %s211
          %214 = dma.hbm_to_vmem [thread:$0]  %s4, 16, %s212, [#allocation8]
        $region28: #{cnn_lstm_forward.3} parent=11 // pred_fallthru
          _
      $region12: #{cnn_lstm_forward.3} parent=5 // pred_fallthru
        _
      %p215 = scmp.lt.s32.totalorder %s16, 2
      // Predicated region
      $region29: #{cnn_lstm_forward.3} parent=5 // pred_check
        %p216 = pneg %p215
      $region30: #{cnn_lstm_forward.3} parent=5 // pred_check_branch
        %218 = sbr.rel (%p216) target = $region32
      $region31: #{cnn_lstm_forward.3} parent=5 // pred_region
        // Predicated region
        $region33: #{cnn_lstm_forward.3} parent=31 // pred_check
          %p219 = pneg %p36
        $region34: #{cnn_lstm_forward.3} parent=31 // pred_check_branch
          %221 = sbr.rel (%p219) target = $region36
        $region35: #{cnn_lstm_forward.3} parent=31 // pred_region
          %s222 = sand.u32 %s26, 1
          %s223 = scalar_lea.sflag [#allocation3], %s222
          %s224 = sand.u32 %s26, 1
          %s225 = smul.addr %s224, 128
          %s226 = scalar_lea.vmem [#allocation2], %s225
          %s227 = smul.u32 8, %s16
          %s229 = ssub.s32 2048, 2048
          %230 = vsyncadd %s223, %s229
          %s231 = smul.addr %s227, 2
          %s232 = smul.addr %s231, 128
          %s233 = scalar_lea.hbm %s0, %s232
          %s234 = sshll.u32 %s226, 4
          %s235 = int_to_ptr.vmem [resolvable:$true] %s234
          %240 = dma.hbm_to_vmem [thread:$0]  %s233, 2048, %s235, %s223, 128, 128, 8
        $region36: #{cnn_lstm_forward.3} parent=31 // pred_fallthru
          _
      $region32: #{cnn_lstm_forward.3} parent=5 // pred_fallthru
        _
      %p241 = scmp.le.s32.totalorder 1, %s16
      %p242 = scmp.lt.s32.totalorder %s16, 3
      %p243 = pnand %p241, %p242
      %p244 = pneg %p243
      // Predicated region
      $region37: #{cnn_lstm_forward.3} parent=5 // pred_check
        _
      $region38: #{cnn_lstm_forward.3} parent=5 // pred_check_branch
        %246 = sbr.rel (%p243) target = $region40
      $region39: #{cnn_lstm_forward.3} parent=5 // pred_region
        %s247 = ssub.s32 %s16, 1
        %s248 = sand.u32 %s29, 1
        %s249 = scalar_lea.sflag [#allocation3], %s248
        %s250 = sand.u32 %s29, 1
        %s251 = smul.addr %s250, 128
        %s252 = scalar_lea.vmem [#allocation2], %s251
        // Predicated region
        $region41: #{cnn_lstm_forward.3} parent=39 // pred_check
          %p253 = pneg %p42
        $region42: #{cnn_lstm_forward.3} parent=39 // pred_check_branch
          %255 = sbr.rel (%p253) target = $region44
        $region43: #{cnn_lstm_forward.3} parent=39 // pred_region
          %256 = dma.done %s249, 2048
        $region44: #{cnn_lstm_forward.3} parent=39 // pred_fallthru
          _
        // Predicated region
        $region45: #{cnn_lstm_forward.3} parent=39 // pred_check
          %p257 = pneg %p63
        $region46: #{cnn_lstm_forward.3} parent=39 // pred_check_branch
          %259 = sbr.rel (%p257) target = $region48
        $region47: #{cnn_lstm_forward.3} parent=39 // pred_region
          %260 = dma.done [#allocation5], 1536
        $region48: #{cnn_lstm_forward.3} parent=39 // pred_fallthru
          _
        // Predicated region
        $region49: #{cnn_lstm_forward.3} parent=39 // pred_check
          %p261 = pneg %p84
        $region50: #{cnn_lstm_forward.3} parent=39 // pred_check_branch
          %263 = sbr.rel (%p261) target = $region52
        $region51: #{cnn_lstm_forward.3} parent=39 // pred_region
          %264 = dma.done [#allocation5], 50176
        $region52: #{cnn_lstm_forward.3} parent=39 // pred_fallthru
          _
        // Predicated region
        $region53: #{cnn_lstm_forward.3} parent=39 // pred_check
          %p265 = pneg %p105
        $region54: #{cnn_lstm_forward.3} parent=39 // pred_check_branch
          %267 = sbr.rel (%p265) target = $region56
        $region55: #{cnn_lstm_forward.3} parent=39 // pred_region
          %268 = dma.done [#allocation8], 64
        $region56: #{cnn_lstm_forward.3} parent=39 // pred_fallthru
          _
        // Predicated region
        $region57: #{cnn_lstm_forward.3} parent=39 // pred_check
          %p269 = pneg %p126
        $region58: #{cnn_lstm_forward.3} parent=39 // pred_check_branch
          %271 = sbr.rel (%p269) target = $region60
        $region59: #{cnn_lstm_forward.3} parent=39 // pred_region
          %272 = dma.done [#allocation8], 16
        $region60: #{cnn_lstm_forward.3} parent=39 // pred_fallthru
          _
        %s273 = sand.u32 %s29, 1
        %s274 = scalar_lea.sflag [#allocation3], %s273
        %s275 = sand.u32 %s29, 1
        %s276 = smul.addr %s275, 128
        %s277 = scalar_lea.vmem [#allocation2], %s276
        %p278 = pneg %p42
        %p279 = pneg %p39
        %p280 = pneg %p63
        %p281 = pneg %p60
        %p282 = pneg %p84
        %p283 = pneg %p81
        %p284 = pneg %p105
        %p285 = pneg %p102
        %p286 = pneg %p126
        %p287 = pneg %p123
        %p288 = pneg %p152
        %p289 = pneg %p149
        %p290 = scmp.lt.s32.totalorder %s21, 1
        %s291 = scalar_select %p290, %s21, 1
        %s292 = smul.addr %s291, 8
        %s293 = scalar_lea.vmem %s5, %s292
        %s294 = smul.u32 8, %s21
        %p295 = scmp.lt.s32.totalorder %s21, 1
        %s296 = scalar_select %p295, %s21, 1
        %s297 = smul.addr %s296, 8
        %s298 = scalar_lea.vmem %s5, %s297
        %v300 = vld [vmem:[%s252] sm:$0xff]
        %v301 = vld [vmem:[%s252 + $0x8] sm:$0xff]
        %v302 = vld [vmem:[%s252 + $0x10] sm:$0xff]
        %v303 = vld [vmem:[%s252 + $0x18] sm:$0xff]
        %v304 = vld [vmem:[%s252 + $0x20] sm:$0xff]
        %v305 = vld [vmem:[%s252 + $0x28] sm:$0xff]
        %v306 = vld [vmem:[%s252 + $0x30] sm:$0xff]
        %v307 = vld [vmem:[%s252 + $0x38] sm:$0xff]
        %v308 = vld [vmem:[%s252 + $0x40] sm:$0xff]
        %v309 = vld [vmem:[%s252 + $0x48] sm:$0xff]
        %v310 = vld [vmem:[%s252 + $0x50] sm:$0xff]
        %v311 = vld [vmem:[%s252 + $0x58] sm:$0xff]
        %v312 = vld [vmem:[%s252 + $0x60] sm:$0xff]
        %v313 = vld [vmem:[%s252 + $0x68] sm:$0xff]
        %v314 = vld [vmem:[%s252 + $0x70] sm:$0xff]
        %v315 = vld [vmem:[%s252 + $0x78] sm:$0xff]
        %v316 = vpack.c.bf16 %v301, %v300
        %v317 = vpack.c.bf16 %v303, %v302
        %v318 = vpack.c.bf16 %v305, %v304
        %v319 = vpack.c.bf16 %v307, %v306
        %v320 = vpack.c.bf16 %v309, %v308
        %v321 = vpack.c.bf16 %v311, %v310
        %v322 = vpack.c.bf16 %v313, %v312
        %v323 = vpack.c.bf16 %v315, %v314
        %v324 = vld [vmem:[#allocation7] sm:$0xf]
        %v326 = vlaneseq
        %v327 = vshrl.u32 %v326, 7
        %v328 = vsub.s32 0, %v327
        %v329 = vrot.slane %v324, %v328
        %v330 = vlaneseq
        %v331 = vshrl.u32 %v330, 7
        %v332 = vsub.s32 1, %v331
        %v333 = vrot.slane %v324, %v332
        %v334 = vlaneseq
        %v335 = vshrl.u32 %v334, 7
        %v336 = vsub.s32 2, %v335
        %v337 = vrot.slane %v324, %v336
        %v338 = vlaneseq
        %v339 = vshrl.u32 %v338, 7
        %v340 = vsub.s32 3, %v339
        %v341 = vrot.slane %v324, %v340
        %v346 = vld [vmem:[#allocation9] sm:$0x1]
        %v347 = vld [vmem:[#allocation4] sm:$0xff]
        %v348 = vld [vmem:[#allocation4 + $0x8] sm:$0xff]
        %v349 = vld [vmem:[#allocation4 + $0x10] sm:$0xff]
        %v350 = vld [vmem:[#allocation4 + $0x18] sm:$0xff]
        %s351 = scalar_lea.vmem [#allocation4], 32
        %v352 = vld [vmem:[%s351] sm:$0xff]
        %v353 = vld [vmem:[%s351 + $0x8] sm:$0xff]
        %v354 = vld [vmem:[%s351 + $0x10] sm:$0xff]
        %v355 = vld [vmem:[%s351 + $0x18] sm:$0xff]
        %v364 = vunpack.c.l.b16 %v316
        %v365 = vunpack.c.l.b16 %v317
        %v366 = vunpack.c.l.b16 %v318
        %v367 = vunpack.c.l.b16 %v319
        %v368 = vunpack.c.l.b16 %v320
        %v369 = vunpack.c.l.b16 %v321
        %v370 = vunpack.c.l.b16 %v322
        %v371 = vunpack.c.l.b16 %v323
        %v372 = vrot.slane %v364, 1
        %vm373 = vcmask 1041409
        %v374 = vsel %vm373, %v365, %v372
        %v375 = vrot.slane %v366, 7
        %vm376 = vcmask 1042434
        %v377 = vsel %vm376, %v375, %v374
        %v378 = vrot.slane %v367, 6
        %vm379 = vcmask 1043459
        %v380 = vsel %vm379, %v378, %v377
        %v381 = vrot.slane %v368, 5
        %vm382 = vcmask 1044484
        %v383 = vsel %vm382, %v381, %v380
        %v384 = vrot.slane %v369, 4
        %vm385 = vcmask 1045509
        %v386 = vsel %vm385, %v384, %v383
        %v387 = vrot.slane %v370, 3
        %vm388 = vcmask 1046534
        %v389 = vsel %vm388, %v387, %v386
        %v390 = vrot.slane %v371, 2
        %vm391 = vcmask 1047559
        %v392 = vsel %vm391, %v390, %v389
        %v393 = vpack.c.b16 %v392, %v392
        %v398 = vunpack.c.l.b16 %v352
        %v399 = vunpack.c.h.b16 %v352
        %v400 = vunpack.c.l.b16 %v353
        %v401 = vunpack.c.h.b16 %v353
        %v402 = vunpack.c.l.b16 %v354
        %v403 = vunpack.c.h.b16 %v354
        %v404 = vunpack.c.l.b16 %v355
        %v405 = vunpack.c.h.b16 %v355
        %v406 = vpack.c.b16 %v402, %v398
        %v407 = vpack.c.b16 %v403, %v399
        %v408 = vpack.c.b16 %v404, %v400
        %v409 = vpack.c.b16 %v405, %v401
        %vm414 = vcmask 130048
        %v416 = vsel %vm414, %v393, 0
        %418 = vmatprep.subr.bf16.mxu0 %v407
        %419 = vmatpush1.bf16.msra.mxu0 %v406
        %420 = vmatprep.subr.bf16.mxu0 0
        %421 = vmatpush1.bf16.msra.mxu0 0
        %422 = vmatprep.subr.bf16.mxu0 0
        %423 = vmatpush1.bf16.msra.mxu0 0
        %424 = vmatprep.subr.bf16.mxu0 0
        %425 = vmatpush1.bf16.msra.mxu0 0
        %426 = vmatprep.subr.bf16.mxu0 0
        %427 = vmatpush1.bf16.msra.mxu0 0
        %428 = vmatprep.subr.bf16.mxu0 0
        %429 = vmatpush1.bf16.msra.mxu0 0
        %430 = vmatprep.subr.bf16.mxu0 0
        %431 = vmatpush1.bf16.msra.mxu0 0
        %432 = vmatprep.subr.bf16.mxu0 0
        %433 = vmatpush1.bf16.msra.mxu0 0
        %434 = vmatprep.subr.bf16.mxu0 0
        %435 = vmatpush1.bf16.msra.mxu0 0
        %436 = vmatprep.subr.bf16.mxu0 0
        %437 = vmatpush1.bf16.msra.mxu0 0
        %438 = vmatprep.subr.bf16.mxu0 0
        %439 = vmatpush1.bf16.msra.mxu0 0
        %440 = vmatprep.subr.bf16.mxu0 0
        %441 = vmatpush1.bf16.msra.mxu0 0
        %442 = vmatprep.subr.bf16.mxu0 0
        %443 = vmatpush1.bf16.msra.mxu0 0
        %444 = vmatprep.subr.bf16.mxu0 0
        %445 = vmatpush1.bf16.msra.mxu0 0
        %446 = vmatprep.subr.bf16.mxu0 0
        %447 = vmatpush1.bf16.msra.mxu0 0
        %448 = vmatprep.subr.bf16.mxu0 0
        %449 = vmatpush1.bf16.msra.mxu0 0
        %450 = vmatprep.mubr.bf16.mxu0 0
        %451 = vmatmul.mubr.bf16.gmra.mrb[0].mxu0 %v416
        %v452 = vpop.f32.mrb[0].mxu0
        %v453 = vadd.f32 0.0, %v452
        %v454 = vpop.f32.mrb[0].mxu0
        %v455 = vadd.f32 0.0, %v454
        %v456 = vpop.f32.mrb[0].mxu0
        %v457 = vpop.f32.mrb[0].mxu0
        %458 = vdwg.mxu0
        %459 = vmatprep.subr.bf16.mxu0 %v409
        %460 = vmatpush1.bf16.msra.mxu0 %v408
        %461 = vmatprep.subr.bf16.mxu0 0
        %462 = vmatpush1.bf16.msra.mxu0 0
        %463 = vmatprep.subr.bf16.mxu0 0
        %464 = vmatpush1.bf16.msra.mxu0 0
        %465 = vmatprep.subr.bf16.mxu0 0
        %466 = vmatpush1.bf16.msra.mxu0 0
        %467 = vmatprep.subr.bf16.mxu0 0
        %468 = vmatpush1.bf16.msra.mxu0 0
        %469 = vmatprep.subr.bf16.mxu0 0
        %470 = vmatpush1.bf16.msra.mxu0 0
        %471 = vmatprep.subr.bf16.mxu0 0
        %472 = vmatpush1.bf16.msra.mxu0 0
        %473 = vmatprep.subr.bf16.mxu0 0
        %474 = vmatpush1.bf16.msra.mxu0 0
        %475 = vmatprep.subr.bf16.mxu0 0
        %476 = vmatpush1.bf16.msra.mxu0 0
        %477 = vmatprep.subr.bf16.mxu0 0
        %478 = vmatpush1.bf16.msra.mxu0 0
        %479 = vmatprep.subr.bf16.mxu0 0
        %480 = vmatpush1.bf16.msra.mxu0 0
        %481 = vmatprep.subr.bf16.mxu0 0
        %482 = vmatpush1.bf16.msra.mxu0 0
        %483 = vmatprep.subr.bf16.mxu0 0
        %484 = vmatpush1.bf16.msra.mxu0 0
        %485 = vmatprep.subr.bf16.mxu0 0
        %486 = vmatpush1.bf16.msra.mxu0 0
        %487 = vmatprep.subr.bf16.mxu0 0
        %488 = vmatpush1.bf16.msra.mxu0 0
        %489 = vmatprep.subr.bf16.mxu0 0
        %490 = vmatpush1.bf16.msra.mxu0 0
        %491 = vmatprep.mubr.bf16.mxu0 0
        %492 = vmatmul.mubr.bf16.gmra.mrb[0].mxu0 %v416
        %v493 = vpop.f32.mrb[0].mxu0
        %v494 = vadd.f32 0.0, %v493
        %v495 = vpop.f32.mrb[0].mxu0
        %v496 = vadd.f32 0.0, %v495
        %v497 = vpop.f32.mrb[0].mxu0
        %v498 = vpop.f32.mrb[0].mxu0
        %499 = vdwg.mxu0
        %v500 = vrot.slane %v365, 7
        %v501 = vsel %vm373, %v500, %v364
        %v502 = vrot.slane %v366, 6
        %v503 = vsel %vm376, %v502, %v501
        %v504 = vrot.slane %v367, 5
        %v505 = vsel %vm379, %v504, %v503
        %v506 = vrot.slane %v368, 4
        %v507 = vsel %vm382, %v506, %v505
        %v508 = vrot.slane %v369, 3
        %v509 = vsel %vm385, %v508, %v507
        %v510 = vrot.slane %v370, 2
        %v511 = vsel %vm388, %v510, %v509
        %v512 = vrot.slane %v371, 1
        %v513 = vsel %vm391, %v512, %v511
        %v514 = vpack.c.b16 %v513, %v513
        %v519 = vunpack.c.l.b16 %v347
        %v520 = vunpack.c.h.b16 %v347
        %v521 = vunpack.c.l.b16 %v348
        %v522 = vunpack.c.h.b16 %v348
        %v523 = vunpack.c.l.b16 %v349
        %v524 = vunpack.c.h.b16 %v349
        %v525 = vunpack.c.l.b16 %v350
        %v526 = vunpack.c.h.b16 %v350
        %v527 = vpack.c.b16 %v523, %v519
        %v528 = vpack.c.b16 %v524, %v520
        %v529 = vpack.c.b16 %v525, %v521
        %v530 = vpack.c.b16 %v526, %v522
        %v536 = vsel %vm414, %v514, 0
        %538 = vmatprep.subr.bf16.mxu0 %v528
        %539 = vmatpush1.bf16.msra.mxu0 %v527
        %540 = vmatprep.subr.bf16.mxu0 0
        %541 = vmatpush1.bf16.msra.mxu0 0
        %542 = vmatprep.subr.bf16.mxu0 0
        %543 = vmatpush1.bf16.msra.mxu0 0
        %544 = vmatprep.subr.bf16.mxu0 0
        %545 = vmatpush1.bf16.msra.mxu0 0
        %546 = vmatprep.subr.bf16.mxu0 0
        %547 = vmatpush1.bf16.msra.mxu0 0
        %548 = vmatprep.subr.bf16.mxu0 0
        %549 = vmatpush1.bf16.msra.mxu0 0
        %550 = vmatprep.subr.bf16.mxu0 0
        %551 = vmatpush1.bf16.msra.mxu0 0
        %552 = vmatprep.subr.bf16.mxu0 0
        %553 = vmatpush1.bf16.msra.mxu0 0
        %554 = vmatprep.subr.bf16.mxu0 0
        %555 = vmatpush1.bf16.msra.mxu0 0
        %556 = vmatprep.subr.bf16.mxu0 0
        %557 = vmatpush1.bf16.msra.mxu0 0
        %558 = vmatprep.subr.bf16.mxu0 0
        %559 = vmatpush1.bf16.msra.mxu0 0
        %560 = vmatprep.subr.bf16.mxu0 0
        %561 = vmatpush1.bf16.msra.mxu0 0
        %562 = vmatprep.subr.bf16.mxu0 0
        %563 = vmatpush1.bf16.msra.mxu0 0
        %564 = vmatprep.subr.bf16.mxu0 0
        %565 = vmatpush1.bf16.msra.mxu0 0
        %566 = vmatprep.subr.bf16.mxu0 0
        %567 = vmatpush1.bf16.msra.mxu0 0
        %568 = vmatprep.subr.bf16.mxu0 0
        %569 = vmatpush1.bf16.msra.mxu0 0
        %570 = vmatprep.mubr.bf16.mxu0 0
        %571 = vmatmul.mubr.bf16.gmra.mrb[0].mxu0 %v536
        %v572 = vpop.f32.mrb[0].mxu0
        %v573 = vadd.f32 %v453, %v572
        %v574 = vpop.f32.mrb[0].mxu0
        %v575 = vadd.f32 %v455, %v574
        %v576 = vpop.f32.mrb[0].mxu0
        %v577 = vpop.f32.mrb[0].mxu0
        %578 = vdwg.mxu0
        %579 = vmatprep.subr.bf16.mxu0 %v530
        %580 = vmatpush1.bf16.msra.mxu0 %v529
        %581 = vmatprep.subr.bf16.mxu0 0
        %582 = vmatpush1.bf16.msra.mxu0 0
        %583 = vmatprep.subr.bf16.mxu0 0
        %584 = vmatpush1.bf16.msra.mxu0 0
        %585 = vmatprep.subr.bf16.mxu0 0
        %586 = vmatpush1.bf16.msra.mxu0 0
        %587 = vmatprep.subr.bf16.mxu0 0
        %588 = vmatpush1.bf16.msra.mxu0 0
        %589 = vmatprep.subr.bf16.mxu0 0
        %590 = vmatpush1.bf16.msra.mxu0 0
        %591 = vmatprep.subr.bf16.mxu0 0
        %592 = vmatpush1.bf16.msra.mxu0 0
        %593 = vmatprep.subr.bf16.mxu0 0
        %594 = vmatpush1.bf16.msra.mxu0 0
        %595 = vmatprep.subr.bf16.mxu0 0
        %596 = vmatpush1.bf16.msra.mxu0 0
        %597 = vmatprep.subr.bf16.mxu0 0
        %598 = vmatpush1.bf16.msra.mxu0 0
        %599 = vmatprep.subr.bf16.mxu0 0
        %600 = vmatpush1.bf16.msra.mxu0 0
        %601 = vmatprep.subr.bf16.mxu0 0
        %602 = vmatpush1.bf16.msra.mxu0 0
        %603 = vmatprep.subr.bf16.mxu0 0
        %604 = vmatpush1.bf16.msra.mxu0 0
        %605 = vmatprep.subr.bf16.mxu0 0
        %606 = vmatpush1.bf16.msra.mxu0 0
        %607 = vmatprep.subr.bf16.mxu0 0
        %608 = vmatpush1.bf16.msra.mxu0 0
        %609 = vmatprep.subr.bf16.mxu0 0
        %610 = vmatpush1.bf16.msra.mxu0 0
        %611 = vmatprep.mubr.bf16.mxu0 0
        %612 = vmatmul.mubr.bf16.gmra.mrb[0].mxu0 %v536
        %v613 = vpop.f32.mrb[0].mxu0
        %v614 = vadd.f32 %v494, %v613
        %v615 = vpop.f32.mrb[0].mxu0
        %v616 = vadd.f32 %v496, %v615
        %v617 = vpop.f32.mrb[0].mxu0
        %v618 = vpop.f32.mrb[0].mxu0
        %619 = vdwg.mxu0
        %s620 = scalar_lea.vmem [#allocation4], 64
        %v621 = vld [vmem:[%s620] sm:$0xff]
        %v622 = vld [vmem:[%s620 + $0x8] sm:$0xff]
        %v623 = vld [vmem:[%s620 + $0x10] sm:$0xff]
        %v624 = vld [vmem:[%s620 + $0x18] sm:$0xff]
        %v625 = vrot.slane %v364, 2
        %v626 = vrot.slane %v365, 1
        %v627 = vsel %vm373, %v626, %v625
        %v628 = vsel %vm376, %v366, %v627
        %v629 = vrot.slane %v367, 7
        %v630 = vsel %vm379, %v629, %v628
        %v631 = vrot.slane %v368, 6
        %v632 = vsel %vm382, %v631, %v630
        %v633 = vrot.slane %v369, 5
        %v634 = vsel %vm385, %v633, %v632
        %v635 = vrot.slane %v370, 4
        %v636 = vsel %vm388, %v635, %v634
        %v637 = vrot.slane %v371, 3
        %v638 = vsel %vm391, %v637, %v636
        %v639 = vpack.c.b16 %v638, %v638
        %v644 = vunpack.c.l.b16 %v621
        %v645 = vunpack.c.h.b16 %v621
        %v646 = vunpack.c.l.b16 %v622
        %v647 = vunpack.c.h.b16 %v622
        %v648 = vunpack.c.l.b16 %v623
        %v649 = vunpack.c.h.b16 %v623
        %v650 = vunpack.c.l.b16 %v624
        %v651 = vunpack.c.h.b16 %v624
        %v652 = vpack.c.b16 %v648, %v644
        %v653 = vpack.c.b16 %v649, %v645
        %v654 = vpack.c.b16 %v650, %v646
        %v655 = vpack.c.b16 %v651, %v647
        %v661 = vsel %vm414, %v639, 0
        %663 = vmatprep.subr.bf16.mxu0 %v653
        %664 = vmatpush1.bf16.msra.mxu0 %v652
        %665 = vmatprep.subr.bf16.mxu0 0
        %666 = vmatpush1.bf16.msra.mxu0 0
        %667 = vmatprep.subr.bf16.mxu0 0
        %668 = vmatpush1.bf16.msra.mxu0 0
        %669 = vmatprep.subr.bf16.mxu0 0
        %670 = vmatpush1.bf16.msra.mxu0 0
        %671 = vmatprep.subr.bf16.mxu0 0
        %672 = vmatpush1.bf16.msra.mxu0 0
        %673 = vmatprep.subr.bf16.mxu0 0
        %674 = vmatpush1.bf16.msra.mxu0 0
        %675 = vmatprep.subr.bf16.mxu0 0
        %676 = vmatpush1.bf16.msra.mxu0 0
        %677 = vmatprep.subr.bf16.mxu0 0
        %678 = vmatpush1.bf16.msra.mxu0 0
        %679 = vmatprep.subr.bf16.mxu0 0
        %680 = vmatpush1.bf16.msra.mxu0 0
        %681 = vmatprep.subr.bf16.mxu0 0
        %682 = vmatpush1.bf16.msra.mxu0 0
        %683 = vmatprep.subr.bf16.mxu0 0
        %684 = vmatpush1.bf16.msra.mxu0 0
        %685 = vmatprep.subr.bf16.mxu0 0
        %686 = vmatpush1.bf16.msra.mxu0 0
        %687 = vmatprep.subr.bf16.mxu0 0
        %688 = vmatpush1.bf16.msra.mxu0 0
        %689 = vmatprep.subr.bf16.mxu0 0
        %690 = vmatpush1.bf16.msra.mxu0 0
        %691 = vmatprep.subr.bf16.mxu0 0
        %692 = vmatpush1.bf16.msra.mxu0 0
        %693 = vmatprep.subr.bf16.mxu0 0
        %694 = vmatpush1.bf16.msra.mxu0 0
        %695 = vmatprep.mubr.bf16.mxu0 0
        %696 = vmatmul.mubr.bf16.gmra.mrb[0].mxu0 %v661
        %v697 = vpop.f32.mrb[0].mxu0
        %v698 = vadd.f32 0.0, %v697
        %v699 = vpop.f32.mrb[0].mxu0
        %v700 = vadd.f32 0.0, %v699
        %v701 = vpop.f32.mrb[0].mxu0
        %v702 = vpop.f32.mrb[0].mxu0
        %703 = vdwg.mxu0
        %704 = vmatprep.subr.bf16.mxu0 %v655
        %705 = vmatpush1.bf16.msra.mxu0 %v654
        %706 = vmatprep.subr.bf16.mxu0 0
        %707 = vmatpush1.bf16.msra.mxu0 0
        %708 = vmatprep.subr.bf16.mxu0 0
        %709 = vmatpush1.bf16.msra.mxu0 0
        %710 = vmatprep.subr.bf16.mxu0 0
        %711 = vmatpush1.bf16.msra.mxu0 0
        %712 = vmatprep.subr.bf16.mxu0 0
        %713 = vmatpush1.bf16.msra.mxu0 0
        %714 = vmatprep.subr.bf16.mxu0 0
        %715 = vmatpush1.bf16.msra.mxu0 0
        %716 = vmatprep.subr.bf16.mxu0 0
        %717 = vmatpush1.bf16.msra.mxu0 0
        %718 = vmatprep.subr.bf16.mxu0 0
        %719 = vmatpush1.bf16.msra.mxu0 0
        %720 = vmatprep.subr.bf16.mxu0 0
        %721 = vmatpush1.bf16.msra.mxu0 0
        %722 = vmatprep.subr.bf16.mxu0 0
        %723 = vmatpush1.bf16.msra.mxu0 0
        %724 = vmatprep.subr.bf16.mxu0 0
        %725 = vmatpush1.bf16.msra.mxu0 0
        %726 = vmatprep.subr.bf16.mxu0 0
        %727 = vmatpush1.bf16.msra.mxu0 0
        %728 = vmatprep.subr.bf16.mxu0 0
        %729 = vmatpush1.bf16.msra.mxu0 0
        %730 = vmatprep.subr.bf16.mxu0 0
        %731 = vmatpush1.bf16.msra.mxu0 0
        %732 = vmatprep.subr.bf16.mxu0 0
        %733 = vmatpush1.bf16.msra.mxu0 0
        %734 = vmatprep.subr.bf16.mxu0 0
        %735 = vmatpush1.bf16.msra.mxu0 0
        %736 = vmatprep.mubr.bf16.mxu0 0
        %737 = vmatmul.mubr.bf16.gmra.mrb[0].mxu0 %v661
        %v738 = vpop.f32.mrb[0].mxu0
        %v739 = vadd.f32 0.0, %v738
        %v740 = vpop.f32.mrb[0].mxu0
        %v741 = vadd.f32 0.0, %v740
        %v742 = vpop.f32.mrb[0].mxu0
        %v743 = vpop.f32.mrb[0].mxu0
        %744 = vdwg.mxu0
        %v745 = vadd.f32 %v573, %v698
        %v746 = vadd.f32 %v575, %v700
        %v747 = vadd.f32 %v614, %v739
        %v748 = vadd.f32 %v616, %v741
        %v749 = vadd.f32 %v745, %v329
        %v750 = vadd.f32 %v746, %v333
        %v751 = vadd.f32 %v747, %v337
        %v752 = vadd.f32 %v748, %v341
        %v753 = vmax.f32 %v749, 0.0
        %v754 = vmax.f32 %v750, 0.0
        %v755 = vmax.f32 %v751, 0.0
        %v756 = vmax.f32 %v752, 0.0
        %v757 = vpack.c.bf16 %v753, %v753
        %v758 = vpack.c.bf16 %v754, %v754
        %v759 = vpack.c.bf16 %v755, %v755
        %v760 = vpack.c.bf16 %v756, %v756
        %v761 = vld [vmem:[#allocation6] sm:$0xf]
        %v762 = vld [vmem:[#allocation6 + $0x4] sm:$0xf]
        %v763 = vld [vmem:[#allocation6 + $0x8] sm:$0xf]
        %v764 = vld [vmem:[#allocation6 + $0xc] sm:$0xf]
        %v765 = vld [vmem:[#allocation6 + $0x10] sm:$0xf]
        %v766 = vld [vmem:[#allocation6 + $0x14] sm:$0xf]
        %v767 = vld [vmem:[#allocation6 + $0x18] sm:$0xf]
        %v768 = vld [vmem:[#allocation6 + $0x1c] sm:$0xf]
        %v769 = vld [vmem:[#allocation6 + $0x20] sm:$0xf]
        %v770 = vld [vmem:[#allocation6 + $0x24] sm:$0xf]
        %v771 = vld [vmem:[#allocation6 + $0x28] sm:$0xf]
        %v772 = vld [vmem:[#allocation6 + $0x2c] sm:$0xf]
        %v773 = vld [vmem:[#allocation6 + $0x30] sm:$0xf]
        %v774 = vld [vmem:[#allocation6 + $0x34] sm:$0xf]
        %v775 = vld [vmem:[#allocation6 + $0x38] sm:$0xf]
        %v776 = vld [vmem:[#allocation6 + $0x3c] sm:$0xf]
        %v777 = vld [vmem:[#allocation6 + $0x40] sm:$0xf]
        %v778 = vld [vmem:[#allocation6 + $0x44] sm:$0xf]
        %v779 = vld [vmem:[#allocation6 + $0x48] sm:$0xf]
        %v780 = vld [vmem:[#allocation6 + $0x4c] sm:$0xf]
        %v781 = vld [vmem:[#allocation6 + $0x50] sm:$0xf]
        %v782 = vld [vmem:[#allocation6 + $0x54] sm:$0xf]
        %v783 = vld [vmem:[#allocation6 + $0x58] sm:$0xf]
        %v784 = vld [vmem:[#allocation6 + $0x5c] sm:$0xf]
        %v785 = vld [vmem:[#allocation6 + $0x60] sm:$0xf]
        %v786 = vld [vmem:[#allocation6 + $0x64] sm:$0xf]
        %v787 = vld [vmem:[#allocation6 + $0x68] sm:$0xf]
        %v788 = vld [vmem:[#allocation6 + $0x6c] sm:$0xf]
        %v789 = vld [vmem:[#allocation6 + $0x70] sm:$0xf]
        %v790 = vld [vmem:[#allocation6 + $0x74] sm:$0xf]
        %v791 = vld [vmem:[#allocation6 + $0x78] sm:$0xf]
        %v792 = vld [vmem:[#allocation6 + $0x7c] sm:$0xf]
        %v793 = vld [vmem:[#allocation6 + $0x80] sm:$0xf]
        %v794 = vld [vmem:[#allocation6 + $0x84] sm:$0xf]
        %v795 = vld [vmem:[#allocation6 + $0x88] sm:$0xf]
        %v796 = vld [vmem:[#allocation6 + $0x8c] sm:$0xf]
        %v797 = vld [vmem:[#allocation6 + $0x90] sm:$0xf]
        %v798 = vld [vmem:[#allocation6 + $0x94] sm:$0xf]
        %v799 = vld [vmem:[#allocation6 + $0x98] sm:$0xf]
        %v800 = vld [vmem:[#allocation6 + $0x9c] sm:$0xf]
        %v801 = vld [vmem:[#allocation6 + $0xa0] sm:$0xf]
        %v802 = vld [vmem:[#allocation6 + $0xa4] sm:$0xf]
        %v803 = vld [vmem:[#allocation6 + $0xa8] sm:$0xf]
        %v804 = vld [vmem:[#allocation6 + $0xac] sm:$0xf]
        %v805 = vld [vmem:[#allocation6 + $0xb0] sm:$0xf]
        %v806 = vld [vmem:[#allocation6 + $0xb4] sm:$0xf]
        %v807 = vld [vmem:[#allocation6 + $0xb8] sm:$0xf]
        %v808 = vld [vmem:[#allocation6 + $0xbc] sm:$0xf]
        %v809 = vld [vmem:[#allocation6 + $0xc0] sm:$0xf]
        %v810 = vld [vmem:[#allocation6 + $0xc4] sm:$0xf]
        %v811 = vld [vmem:[#allocation6 + $0xc8] sm:$0xf]
        %v812 = vld [vmem:[#allocation6 + $0xcc] sm:$0xf]
        %v813 = vld [vmem:[#allocation6 + $0xd0] sm:$0xf]
        %v814 = vld [vmem:[#allocation6 + $0xd4] sm:$0xf]
        %v815 = vld [vmem:[#allocation6 + $0xd8] sm:$0xf]
        %v816 = vld [vmem:[#allocation6 + $0xdc] sm:$0xf]
        %817 = vmatprep.subr.bf16.mxu0 %v407
        %818 = vmatpush1.bf16.msra.mxu0 %v406
        %819 = vmatprep.subr.bf16.mxu0 0
        %820 = vmatpush1.bf16.msra.mxu0 0
        %821 = vmatprep.subr.bf16.mxu0 0
        %822 = vmatpush1.bf16.msra.mxu0 0
        %823 = vmatprep.subr.bf16.mxu0 0
        %824 = vmatpush1.bf16.msra.mxu0 0
        %825 = vmatprep.subr.bf16.mxu0 0
        %826 = vmatpush1.bf16.msra.mxu0 0
        %827 = vmatprep.subr.bf16.mxu0 0
        %828 = vmatpush1.bf16.msra.mxu0 0
        %829 = vmatprep.subr.bf16.mxu0 0
        %830 = vmatpush1.bf16.msra.mxu0 0
        %831 = vmatprep.subr.bf16.mxu0 0
        %832 = vmatpush1.bf16.msra.mxu0 0
        %833 = vmatprep.subr.bf16.mxu0 0
        %834 = vmatpush1.bf16.msra.mxu0 0
        %835 = vmatprep.subr.bf16.mxu0 0
        %836 = vmatpush1.bf16.msra.mxu0 0
        %837 = vmatprep.subr.bf16.mxu0 0
        %838 = vmatpush1.bf16.msra.mxu0 0
        %839 = vmatprep.subr.bf16.mxu0 0
        %840 = vmatpush1.bf16.msra.mxu0 0
        %841 = vmatprep.subr.bf16.mxu0 0
        %842 = vmatpush1.bf16.msra.mxu0 0
        %843 = vmatprep.subr.bf16.mxu0 0
        %844 = vmatpush1.bf16.msra.mxu0 0
        %845 = vmatprep.subr.bf16.mxu0 0
        %846 = vmatpush1.bf16.msra.mxu0 0
        %847 = vmatprep.subr.bf16.mxu0 0
        %848 = vmatpush1.bf16.msra.mxu0 0
        %849 = vmatprep.mubr.bf16.mxu0 0
        %850 = vmatmul.mubr.bf16.gmra.mrb[0].mxu0 %v661
        %v851 = vpop.f32.mrb[0].mxu0
        %v852 = vadd.f32 0.0, %v851
        %v853 = vpop.f32.mrb[0].mxu0
        %v854 = vadd.f32 0.0, %v853
        %v855 = vpop.f32.mrb[0].mxu0
        %v856 = vpop.f32.mrb[0].mxu0
        %857 = vdwg.mxu0
        %858 = vmatprep.subr.bf16.mxu0 %v409
        %859 = vmatpush1.bf16.msra.mxu0 %v408
        %860 = vmatprep.subr.bf16.mxu0 0
        %861 = vmatpush1.bf16.msra.mxu0 0
        %862 = vmatprep.subr.bf16.mxu0 0
        %863 = vmatpush1.bf16.msra.mxu0 0
        %864 = vmatprep.subr.bf16.mxu0 0
        %865 = vmatpush1.bf16.msra.mxu0 0
        %866 = vmatprep.subr.bf16.mxu0 0
        %867 = vmatpush1.bf16.msra.mxu0 0
        %868 = vmatprep.subr.bf16.mxu0 0
        %869 = vmatpush1.bf16.msra.mxu0 0
        %870 = vmatprep.subr.bf16.mxu0 0
        %871 = vmatpush1.bf16.msra.mxu0 0
        %872 = vmatprep.subr.bf16.mxu0 0
        %873 = vmatpush1.bf16.msra.mxu0 0
        %874 = vmatprep.subr.bf16.mxu0 0
        %875 = vmatpush1.bf16.msra.mxu0 0
        %876 = vmatprep.subr.bf16.mxu0 0
        %877 = vmatpush1.bf16.msra.mxu0 0
        %878 = vmatprep.subr.bf16.mxu0 0
        %879 = vmatpush1.bf16.msra.mxu0 0
        %880 = vmatprep.subr.bf16.mxu0 0
        %881 = vmatpush1.bf16.msra.mxu0 0
        %882 = vmatprep.subr.bf16.mxu0 0
        %883 = vmatpush1.bf16.msra.mxu0 0
        %884 = vmatprep.subr.bf16.mxu0 0
        %885 = vmatpush1.bf16.msra.mxu0 0
        %886 = vmatprep.subr.bf16.mxu0 0
        %887 = vmatpush1.bf16.msra.mxu0 0
        %888 = vmatprep.subr.bf16.mxu0 0
        %889 = vmatpush1.bf16.msra.mxu0 0
        %890 = vmatprep.mubr.bf16.mxu0 0
        %891 = vmatmul.mubr.bf16.gmra.mrb[0].mxu0 %v661
        %v892 = vpop.f32.mrb[0].mxu0
        %v893 = vadd.f32 0.0, %v892
        %v894 = vpop.f32.mrb[0].mxu0
        %v895 = vadd.f32 0.0, %v894
        %v896 = vpop.f32.mrb[0].mxu0
        %v897 = vpop.f32.mrb[0].mxu0
        %898 = vdwg.mxu0
        %899 = vmatprep.subr.bf16.mxu0 %v528
        %900 = vmatpush1.bf16.msra.mxu0 %v527
        %901 = vmatprep.subr.bf16.mxu0 0
        %902 = vmatpush1.bf16.msra.mxu0 0
        %903 = vmatprep.subr.bf16.mxu0 0
        %904 = vmatpush1.bf16.msra.mxu0 0
        %905 = vmatprep.subr.bf16.mxu0 0
        %906 = vmatpush1.bf16.msra.mxu0 0
        %907 = vmatprep.subr.bf16.mxu0 0
        %908 = vmatpush1.bf16.msra.mxu0 0
        %909 = vmatprep.subr.bf16.mxu0 0
        %910 = vmatpush1.bf16.msra.mxu0 0
        %911 = vmatprep.subr.bf16.mxu0 0
        %912 = vmatpush1.bf16.msra.mxu0 0
        %913 = vmatprep.subr.bf16.mxu0 0
        %914 = vmatpush1.bf16.msra.mxu0 0
        %915 = vmatprep.subr.bf16.mxu0 0
        %916 = vmatpush1.bf16.msra.mxu0 0
        %917 = vmatprep.subr.bf16.mxu0 0
        %918 = vmatpush1.bf16.msra.mxu0 0
        %919 = vmatprep.subr.bf16.mxu0 0
        %920 = vmatpush1.bf16.msra.mxu0 0
        %921 = vmatprep.subr.bf16.mxu0 0
        %922 = vmatpush1.bf16.msra.mxu0 0
        %923 = vmatprep.subr.bf16.mxu0 0
        %924 = vmatpush1.bf16.msra.mxu0 0
        %925 = vmatprep.subr.bf16.mxu0 0
        %926 = vmatpush1.bf16.msra.mxu0 0
        %927 = vmatprep.subr.bf16.mxu0 0
        %928 = vmatpush1.bf16.msra.mxu0 0
        %929 = vmatprep.subr.bf16.mxu0 0
        %930 = vmatpush1.bf16.msra.mxu0 0
        %931 = vmatprep.mubr.bf16.mxu0 0
        %932 = vmatmul.mubr.bf16.gmra.mrb[0].mxu0 %v416
        %v933 = vpop.f32.mrb[0].mxu0
        %v934 = vadd.f32 %v852, %v933
        %v935 = vpop.f32.mrb[0].mxu0
        %v936 = vadd.f32 %v854, %v935
        %v937 = vpop.f32.mrb[0].mxu0
        %v938 = vpop.f32.mrb[0].mxu0
        %939 = vdwg.mxu0
        %940 = vmatprep.subr.bf16.mxu0 %v530
        %941 = vmatpush1.bf16.msra.mxu0 %v529
        %942 = vmatprep.subr.bf16.mxu0 0
        %943 = vmatpush1.bf16.msra.mxu0 0
        %944 = vmatprep.subr.bf16.mxu0 0
        %945 = vmatpush1.bf16.msra.mxu0 0
        %946 = vmatprep.subr.bf16.mxu0 0
        %947 = vmatpush1.bf16.msra.mxu0 0
        %948 = vmatprep.subr.bf16.mxu0 0
        %949 = vmatpush1.bf16.msra.mxu0 0
        %950 = vmatprep.subr.bf16.mxu0 0
        %951 = vmatpush1.bf16.msra.mxu0 0
        %952 = vmatprep.subr.bf16.mxu0 0
        %953 = vmatpush1.bf16.msra.mxu0 0
        %954 = vmatprep.subr.bf16.mxu0 0
        %955 = vmatpush1.bf16.msra.mxu0 0
        %956 = vmatprep.subr.bf16.mxu0 0
        %957 = vmatpush1.bf16.msra.mxu0 0
        %958 = vmatprep.subr.bf16.mxu0 0
        %959 = vmatpush1.bf16.msra.mxu0 0
        %960 = vmatprep.subr.bf16.mxu0 0
        %961 = vmatpush1.bf16.msra.mxu0 0
        %962 = vmatprep.subr.bf16.mxu0 0
        %963 = vmatpush1.bf16.msra.mxu0 0
        %964 = vmatprep.subr.bf16.mxu0 0
        %965 = vmatpush1.bf16.msra.mxu0 0
        %966 = vmatprep.subr.bf16.mxu0 0
        %967 = vmatpush1.bf16.msra.mxu0 0
        %968 = vmatprep.subr.bf16.mxu0 0
        %969 = vmatpush1.bf16.msra.mxu0 0
        %970 = vmatprep.subr.bf16.mxu0 0
        %971 = vmatpush1.bf16.msra.mxu0 0
        %972 = vmatprep.mubr.bf16.mxu0 0
        %973 = vmatmul.mubr.bf16.gmra.mrb[0].mxu0 %v416
        %v974 = vpop.f32.mrb[0].mxu0
        %v975 = vadd.f32 %v893, %v974
        %v976 = vpop.f32.mrb[0].mxu0
        %v977 = vadd.f32 %v895, %v976
        %v978 = vpop.f32.mrb[0].mxu0
        %v979 = vpop.f32.mrb[0].mxu0
        %980 = vdwg.mxu0
        %v981 = vrot.slane %v364, 3
        %v982 = vrot.slane %v365, 2
        %v983 = vsel %vm373, %v982, %v981
        %v984 = vrot.slane %v366, 1
        %v985 = vsel %vm376, %v984, %v983
        %v986 = vsel %vm379, %v367, %v985
        %v987 = vrot.slane %v368, 7
        %v988 = vsel %vm382, %v987, %v986
        %v989 = vrot.slane %v369, 6
        %v990 = vsel %vm385, %v989, %v988
        %v991 = vrot.slane %v370, 5
        %v992 = vsel %vm388, %v991, %v990
        %v993 = vrot.slane %v371, 4
        %v994 = vsel %vm391, %v993, %v992
        %v995 = vpack.c.b16 %v994, %v994
        %v997 = vsel %vm414, %v995, 0
        %999 = vmatprep.subr.bf16.mxu0 %v653
        %1000 = vmatpush1.bf16.msra.mxu0 %v652
        %1001 = vmatprep.subr.bf16.mxu0 0
        %1002 = vmatpush1.bf16.msra.mxu0 0
        %1003 = vmatprep.subr.bf16.mxu0 0
        %1004 = vmatpush1.bf16.msra.mxu0 0
        %1005 = vmatprep.subr.bf16.mxu0 0
        %1006 = vmatpush1.bf16.msra.mxu0 0
        %1007 = vmatprep.subr.bf16.mxu0 0
        %1008 = vmatpush1.bf16.msra.mxu0 0
        %1009 = vmatprep.subr.bf16.mxu0 0
        %1010 = vmatpush1.bf16.msra.mxu0 0
        %1011 = vmatprep.subr.bf16.mxu0 0
        %1012 = vmatpush1.bf16.msra.mxu0 0
        %1013 = vmatprep.subr.bf16.mxu0 0
        %1014 = vmatpush1.bf16.msra.mxu0 0
        %1015 = vmatprep.subr.bf16.mxu0 0
        %1016 = vmatpush1.bf16.msra.mxu0 0
        %1017 = vmatprep.subr.bf16.mxu0 0
        %1018 = vmatpush1.bf16.msra.mxu0 0
        %1019 = vmatprep.subr.bf16.mxu0 0
        %1020 = vmatpush1.bf16.msra.mxu0 0
        %1021 = vmatprep.subr.bf16.mxu0 0
        %1022 = vmatpush1.bf16.msra.mxu0 0
        %1023 = vmatprep.subr.bf16.mxu0 0
        %1024 = vmatpush1.bf16.msra.mxu0 0
        %1025 = vmatprep.subr.bf16.mxu0 0
        %1026 = vmatpush1.bf16.msra.mxu0 0
        %1027 = vmatprep.subr.bf16.mxu0 0
        %1028 = vmatpush1.bf16.msra.mxu0 0
        %1029 = vmatprep.subr.bf16.mxu0 0
        %1030 = vmatpush1.bf16.msra.mxu0 0
        %1031 = vmatprep.mubr.bf16.mxu0 0
        %1032 = vmatmul.mubr.bf16.gmra.mrb[0].mxu0 %v997
        %v1033 = vpop.f32.mrb[0].mxu0
        %v1034 = vadd.f32 0.0, %v1033
        %v1035 = vpop.f32.mrb[0].mxu0
        %v1036 = vadd.f32 0.0, %v1035
        %v1037 = vpop.f32.mrb[0].mxu0
        %v1038 = vpop.f32.mrb[0].mxu0
        %1039 = vdwg.mxu0
        %1040 = vmatprep.subr.bf16.mxu0 %v655
        %1041 = vmatpush1.bf16.msra.mxu0 %v654
        %1042 = vmatprep.subr.bf16.mxu0 0
        %1043 = vmatpush1.bf16.msra.mxu0 0
        %1044 = vmatprep.subr.bf16.mxu0 0
        %1045 = vmatpush1.bf16.msra.mxu0 0
        %1046 = vmatprep.subr.bf16.mxu0 0
        %1047 = vmatpush1.bf16.msra.mxu0 0
        %1048 = vmatprep.subr.bf16.mxu0 0
        %1049 = vmatpush1.bf16.msra.mxu0 0
        %1050 = vmatprep.subr.bf16.mxu0 0
        %1051 = vmatpush1.bf16.msra.mxu0 0
        %1052 = vmatprep.subr.bf16.mxu0 0
        %1053 = vmatpush1.bf16.msra.mxu0 0
        %1054 = vmatprep.subr.bf16.mxu0 0
        %1055 = vmatpush1.bf16.msra.mxu0 0
        %1056 = vmatprep.subr.bf16.mxu0 0
        %1057 = vmatpush1.bf16.msra.mxu0 0
        %1058 = vmatprep.subr.bf16.mxu0 0
        %1059 = vmatpush1.bf16.msra.mxu0 0
        %1060 = vmatprep.subr.bf16.mxu0 0
        %1061 = vmatpush1.bf16.msra.mxu0 0
        %1062 = vmatprep.subr.bf16.mxu0 0
        %1063 = vmatpush1.bf16.msra.mxu0 0
        %1064 = vmatprep.subr.bf16.mxu0 0
        %1065 = vmatpush1.bf16.msra.mxu0 0
        %1066 = vmatprep.subr.bf16.mxu0 0
        %1067 = vmatpush1.bf16.msra.mxu0 0
        %1068 = vmatprep.subr.bf16.mxu0 0
        %1069 = vmatpush1.bf16.msra.mxu0 0
        %1070 = vmatprep.subr.bf16.mxu0 0
        %1071 = vmatpush1.bf16.msra.mxu0 0
        %1072 = vmatprep.mubr.bf16.mxu0 0
        %1073 = vmatmul.mubr.bf16.gmra.mrb[0].mxu0 %v997
        %v1074 = vpop.f32.mrb[0].mxu0
        %v1075 = vadd.f32 0.0, %v1074
        %v1076 = vpop.f32.mrb[0].mxu0
        %v1077 = vadd.f32 0.0, %v1076
        %v1078 = vpop.f32.mrb[0].mxu0
        %v1079 = vpop.f32.mrb[0].mxu0
        %1080 = vdwg.mxu0
        %v1081 = vadd.f32 %v934, %v1034
        %v1082 = vadd.f32 %v936, %v1036
        %v1083 = vadd.f32 %v975, %v1075
        %v1084 = vadd.f32 %v977, %v1077
        %v1085 = vadd.f32 %v1081, %v329
        %v1086 = vadd.f32 %v1082, %v333
        %v1087 = vadd.f32 %v1083, %v337
        %v1088 = vadd.f32 %v1084, %v341
        %v1089 = vmax.f32 %v1085, 0.0
        %v1090 = vmax.f32 %v1086, 0.0
        %v1091 = vmax.f32 %v1087, 0.0
        %v1092 = vmax.f32 %v1088, 0.0
        %v1093 = vpack.c.bf16 %v1089, %v1089
        %v1094 = vpack.c.bf16 %v1090, %v1090
        %v1095 = vpack.c.bf16 %v1091, %v1091
        %v1096 = vpack.c.bf16 %v1092, %v1092
        %s1097 = scalar_lea.vmem [#allocation6], 224
        %v1098 = vld [vmem:[%s1097] sm:$0xf]
        %v1099 = vld [vmem:[%s1097 + $0x4] sm:$0xf]
        %v1100 = vld [vmem:[%s1097 + $0x8] sm:$0xf]
        %v1101 = vld [vmem:[%s1097 + $0xc] sm:$0xf]
        %v1102 = vld [vmem:[%s1097 + $0x10] sm:$0xf]
        %v1103 = vld [vmem:[%s1097 + $0x14] sm:$0xf]
        %v1104 = vld [vmem:[%s1097 + $0x18] sm:$0xf]
        %v1105 = vld [vmem:[%s1097 + $0x1c] sm:$0xf]
        %v1106 = vld [vmem:[%s1097 + $0x20] sm:$0xf]
        %v1107 = vld [vmem:[%s1097 + $0x24] sm:$0xf]
        %v1108 = vld [vmem:[%s1097 + $0x28] sm:$0xf]
        %v1109 = vld [vmem:[%s1097 + $0x2c] sm:$0xf]
        %v1110 = vld [vmem:[%s1097 + $0x30] sm:$0xf]
        %v1111 = vld [vmem:[%s1097 + $0x34] sm:$0xf]
        %v1112 = vld [vmem:[%s1097 + $0x38] sm:$0xf]
        %v1113 = vld [vmem:[%s1097 + $0x3c] sm:$0xf]
        %v1114 = vld [vmem:[%s1097 + $0x40] sm:$0xf]
        %v1115 = vld [vmem:[%s1097 + $0x44] sm:$0xf]
        %v1116 = vld [vmem:[%s1097 + $0x48] sm:$0xf]
        %v1117 = vld [vmem:[%s1097 + $0x4c] sm:$0xf]
        %v1118 = vld [vmem:[%s1097 + $0x50] sm:$0xf]
        %v1119 = vld [vmem:[%s1097 + $0x54] sm:$0xf]
        %v1120 = vld [vmem:[%s1097 + $0x58] sm:$0xf]
        %v1121 = vld [vmem:[%s1097 + $0x5c] sm:$0xf]
        %v1122 = vld [vmem:[%s1097 + $0x60] sm:$0xf]
        %v1123 = vld [vmem:[%s1097 + $0x64] sm:$0xf]
        %v1124 = vld [vmem:[%s1097 + $0x68] sm:$0xf]
        %v1125 = vld [vmem:[%s1097 + $0x6c] sm:$0xf]
        %v1126 = vld [vmem:[%s1097 + $0x70] sm:$0xf]
        %v1127 = vld [vmem:[%s1097 + $0x74] sm:$0xf]
        %v1128 = vld [vmem:[%s1097 + $0x78] sm:$0xf]
        %v1129 = vld [vmem:[%s1097 + $0x7c] sm:$0xf]
        %v1130 = vld [vmem:[%s1097 + $0x80] sm:$0xf]
        %v1131 = vld [vmem:[%s1097 + $0x84] sm:$0xf]
        %v1132 = vld [vmem:[%s1097 + $0x88] sm:$0xf]
        %v1133 = vld [vmem:[%s1097 + $0x8c] sm:$0xf]
        %v1134 = vld [vmem:[%s1097 + $0x90] sm:$0xf]
        %v1135 = vld [vmem:[%s1097 + $0x94] sm:$0xf]
        %v1136 = vld [vmem:[%s1097 + $0x98] sm:$0xf]
        %v1137 = vld [vmem:[%s1097 + $0x9c] sm:$0xf]
        %v1138 = vld [vmem:[%s1097 + $0xa0] sm:$0xf]
        %v1139 = vld [vmem:[%s1097 + $0xa4] sm:$0xf]
        %v1140 = vld [vmem:[%s1097 + $0xa8] sm:$0xf]
        %v1141 = vld [vmem:[%s1097 + $0xac] sm:$0xf]
        %v1142 = vld [vmem:[%s1097 + $0xb0] sm:$0xf]
        %v1143 = vld [vmem:[%s1097 + $0xb4] sm:$0xf]
        %v1144 = vld [vmem:[%s1097 + $0xb8] sm:$0xf]
        %v1145 = vld [vmem:[%s1097 + $0xbc] sm:$0xf]
        %v1146 = vld [vmem:[%s1097 + $0xc0] sm:$0xf]
        %v1147 = vld [vmem:[%s1097 + $0xc4] sm:$0xf]
        %v1148 = vld [vmem:[%s1097 + $0xc8] sm:$0xf]
        %v1149 = vld [vmem:[%s1097 + $0xcc] sm:$0xf]
        %v1150 = vld [vmem:[%s1097 + $0xd0] sm:$0xf]
        %v1151 = vld [vmem:[%s1097 + $0xd4] sm:$0xf]
        %v1152 = vld [vmem:[%s1097 + $0xd8] sm:$0xf]
        %v1153 = vld [vmem:[%s1097 + $0xdc] sm:$0xf]
        %v1210 = vunpack.c.l.b16 %v1098
        %v1211 = vunpack.c.l.b16 %v1099
        %v1212 = vunpack.c.l.b16 %v1100
        %v1213 = vunpack.c.l.b16 %v1101
        %v1214 = vunpack.c.l.b16 %v1102
        %v1215 = vunpack.c.l.b16 %v1103
        %v1216 = vunpack.c.l.b16 %v1104
        %v1217 = vunpack.c.l.b16 %v1105
        %v1218 = vunpack.c.l.b16 %v1106
        %v1219 = vunpack.c.l.b16 %v1107
        %v1220 = vunpack.c.l.b16 %v1108
        %v1221 = vunpack.c.l.b16 %v1109
        %v1222 = vunpack.c.l.b16 %v1110
        %v1223 = vunpack.c.l.b16 %v1111
        %v1224 = vunpack.c.l.b16 %v1112
        %v1225 = vunpack.c.l.b16 %v1113
        %v1226 = vunpack.c.l.b16 %v1114
        %v1227 = vunpack.c.l.b16 %v1115
        %v1228 = vunpack.c.l.b16 %v1116
        %v1229 = vunpack.c.l.b16 %v1117
        %v1230 = vunpack.c.l.b16 %v1118
        %v1231 = vunpack.c.l.b16 %v1119
        %v1232 = vunpack.c.l.b16 %v1120
        %v1233 = vunpack.c.l.b16 %v1121
        %v1234 = vunpack.c.l.b16 %v1122
        %v1235 = vunpack.c.l.b16 %v1123
        %v1236 = vunpack.c.l.b16 %v1124
        %v1237 = vunpack.c.l.b16 %v1125
        %v1238 = vunpack.c.l.b16 %v1126
        %v1239 = vunpack.c.l.b16 %v1127
        %v1240 = vunpack.c.l.b16 %v1128
        %v1241 = vunpack.c.l.b16 %v1129
        %v1242 = vunpack.c.l.b16 %v1130
        %v1243 = vunpack.c.l.b16 %v1131
        %v1244 = vunpack.c.l.b16 %v1132
        %v1245 = vunpack.c.l.b16 %v1133
        %v1246 = vunpack.c.l.b16 %v1134
        %v1247 = vunpack.c.l.b16 %v1135
        %v1248 = vunpack.c.l.b16 %v1136
        %v1249 = vunpack.c.l.b16 %v1137
        %v1250 = vunpack.c.l.b16 %v1138
        %v1251 = vunpack.c.l.b16 %v1139
        %v1252 = vunpack.c.l.b16 %v1140
        %v1253 = vunpack.c.l.b16 %v1141
        %v1254 = vunpack.c.l.b16 %v1142
        %v1255 = vunpack.c.l.b16 %v1143
        %v1256 = vunpack.c.l.b16 %v1144
        %v1257 = vunpack.c.l.b16 %v1145
        %v1258 = vunpack.c.l.b16 %v1146
        %v1259 = vunpack.c.l.b16 %v1147
        %v1260 = vunpack.c.l.b16 %v1148
        %v1261 = vunpack.c.l.b16 %v1149
        %v1262 = vunpack.c.l.b16 %v1150
        %v1263 = vunpack.c.l.b16 %v1151
        %v1264 = vunpack.c.l.b16 %v1152
        %v1265 = vunpack.c.l.b16 %v1153
        %v1266 = vpack.c.b16 %v1211, %v1210
        %v1267 = vpack.c.b16 %v1213, %v1212
        %v1268 = vpack.c.b16 %v1215, %v1214
        %v1269 = vpack.c.b16 %v1217, %v1216
        %v1270 = vpack.c.b16 %v1219, %v1218
        %v1271 = vpack.c.b16 %v1221, %v1220
        %v1272 = vpack.c.b16 %v1223, %v1222
        %v1273 = vpack.c.b16 %v1225, %v1224
        %v1274 = vpack.c.b16 %v1227, %v1226
        %v1275 = vpack.c.b16 %v1229, %v1228
        %v1276 = vpack.c.b16 %v1231, %v1230
        %v1277 = vpack.c.b16 %v1233, %v1232
        %v1278 = vpack.c.b16 %v1235, %v1234
        %v1279 = vpack.c.b16 %v1237, %v1236
        %v1280 = vpack.c.b16 %v1239, %v1238
        %v1281 = vpack.c.b16 %v1241, %v1240
        %v1282 = vpack.c.b16 %v1243, %v1242
        %v1283 = vpack.c.b16 %v1245, %v1244
        %v1284 = vpack.c.b16 %v1247, %v1246
        %v1285 = vpack.c.b16 %v1249, %v1248
        %v1286 = vpack.c.b16 %v1251, %v1250
        %v1287 = vpack.c.b16 %v1253, %v1252
        %v1288 = vpack.c.b16 %v1255, %v1254
        %v1289 = vpack.c.b16 %v1257, %v1256
        %v1290 = vpack.c.b16 %v1259, %v1258
        %v1291 = vpack.c.b16 %v1261, %v1260
        %v1292 = vpack.c.b16 %v1263, %v1262
        %v1293 = vpack.c.b16 %v1265, %v1264
        %vm1322 = vcmask 523264
        %v1324 = vsel %vm1322, %v1096, 0
        %1326 = vmatprep.subr.bf16.mxu0 0
        %1327 = vmatpush1.bf16.msra.mxu0 %v1266
        %1328 = vmatprep.subr.bf16.mxu0 0
        %1329 = vmatpush1.bf16.msra.mxu0 %v1267
        %1330 = vmatprep.subr.bf16.mxu0 0
        %1331 = vmatpush1.bf16.msra.mxu0 %v1268
        %1332 = vmatprep.subr.bf16.mxu0 0
        %1333 = vmatpush1.bf16.msra.mxu0 %v1269
        %1334 = vmatprep.subr.bf16.mxu0 0
        %1335 = vmatpush1.bf16.msra.mxu0 %v1270
        %1336 = vmatprep.subr.bf16.mxu0 0
        %1337 = vmatpush1.bf16.msra.mxu0 %v1271
        %1338 = vmatprep.subr.bf16.mxu0 0
        %1339 = vmatpush1.bf16.msra.mxu0 %v1272
        %1340 = vmatprep.subr.bf16.mxu0 0
        %1341 = vmatpush1.bf16.msra.mxu0 %v1273
        %1342 = vmatprep.subr.bf16.mxu0 0
        %1343 = vmatpush1.bf16.msra.mxu0 %v1274
        %1344 = vmatprep.subr.bf16.mxu0 0
        %1345 = vmatpush1.bf16.msra.mxu0 %v1275
        %1346 = vmatprep.subr.bf16.mxu0 0
        %1347 = vmatpush1.bf16.msra.mxu0 %v1276
        %1348 = vmatprep.subr.bf16.mxu0 0
        %1349 = vmatpush1.bf16.msra.mxu0 %v1277
        %1350 = vmatprep.subr.bf16.mxu0 0
        %1351 = vmatpush1.bf16.msra.mxu0 %v1278
        %1352 = vmatprep.subr.bf16.mxu0 0
        %1353 = vmatpush1.bf16.msra.mxu0 %v1279
        %1354 = vmatprep.subr.bf16.mxu0 0
        %1355 = vmatpush1.bf16.msra.mxu0 %v1280
        %1356 = vmatprep.subr.bf16.mxu0 0
        %1357 = vmatpush1.bf16.msra.mxu0 %v1281
        %1358 = vmatprep.mubr.bf16.mxu0 %v1094
        %1359 = vmatmul.mubr.bf16.gmra.mrb[0].mxu0 %v1093
        %v1360 = vpop.f32.mrb[0].mxu0
        %v1361 = vadd.f32 0.0, %v1360
        %v1362 = vpop.f32.mrb[0].mxu0
        %v1363 = vpop.f32.mrb[0].mxu0
        %v1364 = vpop.f32.mrb[0].mxu0
        %1365 = vdwg.mxu0
        %1366 = vmatprep.subr.bf16.mxu0 0
        %1367 = vmatpush1.bf16.msra.mxu0 %v1282
        %1368 = vmatprep.subr.bf16.mxu0 0
        %1369 = vmatpush1.bf16.msra.mxu0 %v1283
        %1370 = vmatprep.subr.bf16.mxu0 0
        %1371 = vmatpush1.bf16.msra.mxu0 %v1284
        %1372 = vmatprep.subr.bf16.mxu0 0
        %1373 = vmatpush1.bf16.msra.mxu0 %v1285
        %1374 = vmatprep.subr.bf16.mxu0 0
        %1375 = vmatpush1.bf16.msra.mxu0 %v1286
        %1376 = vmatprep.subr.bf16.mxu0 0
        %1377 = vmatpush1.bf16.msra.mxu0 %v1287
        %1378 = vmatprep.subr.bf16.mxu0 0
        %1379 = vmatpush1.bf16.msra.mxu0 %v1288
        %1380 = vmatprep.subr.bf16.mxu0 0
        %1381 = vmatpush1.bf16.msra.mxu0 %v1289
        %1382 = vmatprep.subr.bf16.mxu0 0
        %1383 = vmatpush1.bf16.msra.mxu0 %v1290
        %1384 = vmatprep.subr.bf16.mxu0 0
        %1385 = vmatpush1.bf16.msra.mxu0 %v1291
        %1386 = vmatprep.subr.bf16.mxu0 0
        %1387 = vmatpush1.bf16.msra.mxu0 %v1292
        %1388 = vmatprep.subr.bf16.mxu0 0
        %1389 = vmatpush1.bf16.msra.mxu0 %v1293
        %1390 = vmatprep.subr.bf16.mxu0 0
        %1391 = vmatpush1.bf16.msra.mxu0 0
        %1392 = vmatprep.subr.bf16.mxu0 0
        %1393 = vmatpush1.bf16.msra.mxu0 0
        %1394 = vmatprep.subr.bf16.mxu0 0
        %1395 = vmatpush1.bf16.msra.mxu0 0
        %1396 = vmatprep.subr.bf16.mxu0 0
        %1397 = vmatpush1.bf16.msra.mxu0 0
        %1398 = vmatprep.mubr.bf16.mxu0 %v1324
        %1399 = vmatmul.mubr.bf16.gmra.mrb[0].mxu0 %v1095
        %v1400 = vpop.f32.mrb[0].mxu0
        %v1401 = vadd.f32 %v1361, %v1400
        %v1402 = vpop.f32.mrb[0].mxu0
        %v1403 = vpop.f32.mrb[0].mxu0
        %v1404 = vpop.f32.mrb[0].mxu0
        %1405 = vdwg.mxu0
        %v1462 = vunpack.c.l.b16 %v761
        %v1463 = vunpack.c.l.b16 %v762
        %v1464 = vunpack.c.l.b16 %v763
        %v1465 = vunpack.c.l.b16 %v764
        %v1466 = vunpack.c.l.b16 %v765
        %v1467 = vunpack.c.l.b16 %v766
        %v1468 = vunpack.c.l.b16 %v767
        %v1469 = vunpack.c.l.b16 %v768
        %v1470 = vunpack.c.l.b16 %v769
        %v1471 = vunpack.c.l.b16 %v770
        %v1472 = vunpack.c.l.b16 %v771
        %v1473 = vunpack.c.l.b16 %v772
        %v1474 = vunpack.c.l.b16 %v773
        %v1475 = vunpack.c.l.b16 %v774
        %v1476 = vunpack.c.l.b16 %v775
        %v1477 = vunpack.c.l.b16 %v776
        %v1478 = vunpack.c.l.b16 %v777
        %v1479 = vunpack.c.l.b16 %v778
        %v1480 = vunpack.c.l.b16 %v779
        %v1481 = vunpack.c.l.b16 %v780
        %v1482 = vunpack.c.l.b16 %v781
        %v1483 = vunpack.c.l.b16 %v782
        %v1484 = vunpack.c.l.b16 %v783
        %v1485 = vunpack.c.l.b16 %v784
        %v1486 = vunpack.c.l.b16 %v785
        %v1487 = vunpack.c.l.b16 %v786
        %v1488 = vunpack.c.l.b16 %v787
        %v1489 = vunpack.c.l.b16 %v788
        %v1490 = vunpack.c.l.b16 %v789
        %v1491 = vunpack.c.l.b16 %v790
        %v1492 = vunpack.c.l.b16 %v791
        %v1493 = vunpack.c.l.b16 %v792
        %v1494 = vunpack.c.l.b16 %v793
        %v1495 = vunpack.c.l.b16 %v794
        %v1496 = vunpack.c.l.b16 %v795
        %v1497 = vunpack.c.l.b16 %v796
        %v1498 = vunpack.c.l.b16 %v797
        %v1499 = vunpack.c.l.b16 %v798
        %v1500 = vunpack.c.l.b16 %v799
        %v1501 = vunpack.c.l.b16 %v800
        %v1502 = vunpack.c.l.b16 %v801
        %v1503 = vunpack.c.l.b16 %v802
        %v1504 = vunpack.c.l.b16 %v803
        %v1505 = vunpack.c.l.b16 %v804
        %v1506 = vunpack.c.l.b16 %v805
        %v1507 = vunpack.c.l.b16 %v806
        %v1508 = vunpack.c.l.b16 %v807
        %v1509 = vunpack.c.l.b16 %v808
        %v1510 = vunpack.c.l.b16 %v809
        %v1511 = vunpack.c.l.b16 %v810
        %v1512 = vunpack.c.l.b16 %v811
        %v1513 = vunpack.c.l.b16 %v812
        %v1514 = vunpack.c.l.b16 %v813
        %v1515 = vunpack.c.l.b16 %v814
        %v1516 = vunpack.c.l.b16 %v815
        %v1517 = vunpack.c.l.b16 %v816
        %v1518 = vpack.c.b16 %v1463, %v1462
        %v1519 = vpack.c.b16 %v1465, %v1464
        %v1520 = vpack.c.b16 %v1467, %v1466
        %v1521 = vpack.c.b16 %v1469, %v1468
        %v1522 = vpack.c.b16 %v1471, %v1470
        %v1523 = vpack.c.b16 %v1473, %v1472
        %v1524 = vpack.c.b16 %v1475, %v1474
        %v1525 = vpack.c.b16 %v1477, %v1476
        %v1526 = vpack.c.b16 %v1479, %v1478
        %v1527 = vpack.c.b16 %v1481, %v1480
        %v1528 = vpack.c.b16 %v1483, %v1482
        %v1529 = vpack.c.b16 %v1485, %v1484
        %v1530 = vpack.c.b16 %v1487, %v1486
        %v1531 = vpack.c.b16 %v1489, %v1488
        %v1532 = vpack.c.b16 %v1491, %v1490
        %v1533 = vpack.c.b16 %v1493, %v1492
        %v1534 = vpack.c.b16 %v1495, %v1494
        %v1535 = vpack.c.b16 %v1497, %v1496
        %v1536 = vpack.c.b16 %v1499, %v1498
        %v1537 = vpack.c.b16 %v1501, %v1500
        %v1538 = vpack.c.b16 %v1503, %v1502
        %v1539 = vpack.c.b16 %v1505, %v1504
        %v1540 = vpack.c.b16 %v1507, %v1506
        %v1541 = vpack.c.b16 %v1509, %v1508
        %v1542 = vpack.c.b16 %v1511, %v1510
        %v1543 = vpack.c.b16 %v1513, %v1512
        %v1544 = vpack.c.b16 %v1515, %v1514
        %v1545 = vpack.c.b16 %v1517, %v1516
        %v1575 = vsel %vm1322, %v760, 0
        %1577 = vmatprep.subr.bf16.mxu0 0
        %1578 = vmatpush1.bf16.msra.mxu0 %v1518
        %1579 = vmatprep.subr.bf16.mxu0 0
        %1580 = vmatpush1.bf16.msra.mxu0 %v1519
        %1581 = vmatprep.subr.bf16.mxu0 0
        %1582 = vmatpush1.bf16.msra.mxu0 %v1520
        %1583 = vmatprep.subr.bf16.mxu0 0
        %1584 = vmatpush1.bf16.msra.mxu0 %v1521
        %1585 = vmatprep.subr.bf16.mxu0 0
        %1586 = vmatpush1.bf16.msra.mxu0 %v1522
        %1587 = vmatprep.subr.bf16.mxu0 0
        %1588 = vmatpush1.bf16.msra.mxu0 %v1523
        %1589 = vmatprep.subr.bf16.mxu0 0
        %1590 = vmatpush1.bf16.msra.mxu0 %v1524
        %1591 = vmatprep.subr.bf16.mxu0 0
        %1592 = vmatpush1.bf16.msra.mxu0 %v1525
        %1593 = vmatprep.subr.bf16.mxu0 0
        %1594 = vmatpush1.bf16.msra.mxu0 %v1526
        %1595 = vmatprep.subr.bf16.mxu0 0
        %1596 = vmatpush1.bf16.msra.mxu0 %v1527
        %1597 = vmatprep.subr.bf16.mxu0 0
        %1598 = vmatpush1.bf16.msra.mxu0 %v1528
        %1599 = vmatprep.subr.bf16.mxu0 0
        %1600 = vmatpush1.bf16.msra.mxu0 %v1529
        %1601 = vmatprep.subr.bf16.mxu0 0
        %1602 = vmatpush1.bf16.msra.mxu0 %v1530
        %1603 = vmatprep.subr.bf16.mxu0 0
        %1604 = vmatpush1.bf16.msra.mxu0 %v1531
        %1605 = vmatprep.subr.bf16.mxu0 0
        %1606 = vmatpush1.bf16.msra.mxu0 %v1532
        %1607 = vmatprep.subr.bf16.mxu0 0
        %1608 = vmatpush1.bf16.msra.mxu0 %v1533
        %1609 = vmatprep.mubr.bf16.mxu0 %v758
        %1610 = vmatmul.mubr.bf16.gmra.mrb[0].mxu0 %v757
        %v1611 = vpop.f32.mrb[0].mxu0
        %v1612 = vadd.f32 %v1401, %v1611
        %v1613 = vpop.f32.mrb[0].mxu0
        %v1614 = vpop.f32.mrb[0].mxu0
        %v1615 = vpop.f32.mrb[0].mxu0
        %1616 = vdwg.mxu0
        %1617 = vmatprep.subr.bf16.mxu0 0
        %1618 = vmatpush1.bf16.msra.mxu0 %v1534
        %1619 = vmatprep.subr.bf16.mxu0 0
        %1620 = vmatpush1.bf16.msra.mxu0 %v1535
        %1621 = vmatprep.subr.bf16.mxu0 0
        %1622 = vmatpush1.bf16.msra.mxu0 %v1536
        %1623 = vmatprep.subr.bf16.mxu0 0
        %1624 = vmatpush1.bf16.msra.mxu0 %v1537
        %1625 = vmatprep.subr.bf16.mxu0 0
        %1626 = vmatpush1.bf16.msra.mxu0 %v1538
        %1627 = vmatprep.subr.bf16.mxu0 0
        %1628 = vmatpush1.bf16.msra.mxu0 %v1539
        %1629 = vmatprep.subr.bf16.mxu0 0
        %1630 = vmatpush1.bf16.msra.mxu0 %v1540
        %1631 = vmatprep.subr.bf16.mxu0 0
        %1632 = vmatpush1.bf16.msra.mxu0 %v1541
        %1633 = vmatprep.subr.bf16.mxu0 0
        %1634 = vmatpush1.bf16.msra.mxu0 %v1542
        %1635 = vmatprep.subr.bf16.mxu0 0
        %1636 = vmatpush1.bf16.msra.mxu0 %v1543
        %1637 = vmatprep.subr.bf16.mxu0 0
        %1638 = vmatpush1.bf16.msra.mxu0 %v1544
        %1639 = vmatprep.subr.bf16.mxu0 0
        %1640 = vmatpush1.bf16.msra.mxu0 %v1545
        %1641 = vmatprep.subr.bf16.mxu0 0
        %1642 = vmatpush1.bf16.msra.mxu0 0
        %1643 = vmatprep.subr.bf16.mxu0 0
        %1644 = vmatpush1.bf16.msra.mxu0 0
        %1645 = vmatprep.subr.bf16.mxu0 0
        %1646 = vmatpush1.bf16.msra.mxu0 0
        %1647 = vmatprep.subr.bf16.mxu0 0
        %1648 = vmatpush1.bf16.msra.mxu0 0
        %1649 = vmatprep.mubr.bf16.mxu0 %v1575
        %1650 = vmatmul.mubr.bf16.gmra.mrb[0].mxu0 %v759
        %v1651 = vpop.f32.mrb[0].mxu0
        %v1652 = vadd.f32 %v1612, %v1651
        %v1653 = vpop.f32.mrb[0].mxu0
        %v1654 = vpop.f32.mrb[0].mxu0
        %v1655 = vpop.f32.mrb[0].mxu0
        %1656 = vdwg.mxu0
        %1657 = vmatprep.subr.bf16.mxu0 %v407
        %1658 = vmatpush1.bf16.msra.mxu0 %v406
        %1659 = vmatprep.subr.bf16.mxu0 0
        %1660 = vmatpush1.bf16.msra.mxu0 0
        %1661 = vmatprep.subr.bf16.mxu0 0
        %1662 = vmatpush1.bf16.msra.mxu0 0
        %1663 = vmatprep.subr.bf16.mxu0 0
        %1664 = vmatpush1.bf16.msra.mxu0 0
        %1665 = vmatprep.subr.bf16.mxu0 0
        %1666 = vmatpush1.bf16.msra.mxu0 0
        %1667 = vmatprep.subr.bf16.mxu0 0
        %1668 = vmatpush1.bf16.msra.mxu0 0
        %1669 = vmatprep.subr.bf16.mxu0 0
        %1670 = vmatpush1.bf16.msra.mxu0 0
        %1671 = vmatprep.subr.bf16.mxu0 0
        %1672 = vmatpush1.bf16.msra.mxu0 0
        %1673 = vmatprep.subr.bf16.mxu0 0
        %1674 = vmatpush1.bf16.msra.mxu0 0
        %1675 = vmatprep.subr.bf16.mxu0 0
        %1676 = vmatpush1.bf16.msra.mxu0 0
        %1677 = vmatprep.subr.bf16.mxu0 0
        %1678 = vmatpush1.bf16.msra.mxu0 0
        %1679 = vmatprep.subr.bf16.mxu0 0
        %1680 = vmatpush1.bf16.msra.mxu0 0
        %1681 = vmatprep.subr.bf16.mxu0 0
        %1682 = vmatpush1.bf16.msra.mxu0 0
        %1683 = vmatprep.subr.bf16.mxu0 0
        %1684 = vmatpush1.bf16.msra.mxu0 0
        %1685 = vmatprep.subr.bf16.mxu0 0
        %1686 = vmatpush1.bf16.msra.mxu0 0
        %1687 = vmatprep.subr.bf16.mxu0 0
        %1688 = vmatpush1.bf16.msra.mxu0 0
        %1689 = vmatprep.mubr.bf16.mxu0 0
        %1690 = vmatmul.mubr.bf16.gmra.mrb[0].mxu0 %v997
        %v1691 = vpop.f32.mrb[0].mxu0
        %v1692 = vadd.f32 0.0, %v1691
        %v1693 = vpop.f32.mrb[0].mxu0
        %v1694 = vadd.f32 0.0, %v1693
        %v1695 = vpop.f32.mrb[0].mxu0
        %v1696 = vpop.f32.mrb[0].mxu0
        %1697 = vdwg.mxu0
        %1698 = vmatprep.subr.bf16.mxu0 %v409
        %1699 = vmatpush1.bf16.msra.mxu0 %v408
        %1700 = vmatprep.subr.bf16.mxu0 0
        %1701 = vmatpush1.bf16.msra.mxu0 0
        %1702 = vmatprep.subr.bf16.mxu0 0
        %1703 = vmatpush1.bf16.msra.mxu0 0
        %1704 = vmatprep.subr.bf16.mxu0 0
        %1705 = vmatpush1.bf16.msra.mxu0 0
        %1706 = vmatprep.subr.bf16.mxu0 0
        %1707 = vmatpush1.bf16.msra.mxu0 0
        %1708 = vmatprep.subr.bf16.mxu0 0
        %1709 = vmatpush1.bf16.msra.mxu0 0
        %1710 = vmatprep.subr.bf16.mxu0 0
        %1711 = vmatpush1.bf16.msra.mxu0 0
        %1712 = vmatprep.subr.bf16.mxu0 0
        %1713 = vmatpush1.bf16.msra.mxu0 0
        %1714 = vmatprep.subr.bf16.mxu0 0
        %1715 = vmatpush1.bf16.msra.mxu0 0
        %1716 = vmatprep.subr.bf16.mxu0 0
        %1717 = vmatpush1.bf16.msra.mxu0 0
        %1718 = vmatprep.subr.bf16.mxu0 0
        %1719 = vmatpush1.bf16.msra.mxu0 0
        %1720 = vmatprep.subr.bf16.mxu0 0
        %1721 = vmatpush1.bf16.msra.mxu0 0
        %1722 = vmatprep.subr.bf16.mxu0 0
        %1723 = vmatpush1.bf16.msra.mxu0 0
        %1724 = vmatprep.subr.bf16.mxu0 0
        %1725 = vmatpush1.bf16.msra.mxu0 0
        %1726 = vmatprep.subr.bf16.mxu0 0
        %1727 = vmatpush1.bf16.msra.mxu0 0
        %1728 = vmatprep.subr.bf16.mxu0 0
        %1729 = vmatpush1.bf16.msra.mxu0 0
        %1730 = vmatprep.mubr.bf16.mxu0 0
        %1731 = vmatmul.mubr.bf16.gmra.mrb[0].mxu0 %v997
        %v1732 = vpop.f32.mrb[0].mxu0
        %v1733 = vadd.f32 0.0, %v1732
        %v1734 = vpop.f32.mrb[0].mxu0
        %v1735 = vadd.f32 0.0, %v1734
        %v1736 = vpop.f32.mrb[0].mxu0
        %v1737 = vpop.f32.mrb[0].mxu0
        %1738 = vdwg.mxu0
        %1739 = vmatprep.subr.bf16.mxu0 %v528
        %1740 = vmatpush1.bf16.msra.mxu0 %v527
        %1741 = vmatprep.subr.bf16.mxu0 0
        %1742 = vmatpush1.bf16.msra.mxu0 0
        %1743 = vmatprep.subr.bf16.mxu0 0
        %1744 = vmatpush1.bf16.msra.mxu0 0
        %1745 = vmatprep.subr.bf16.mxu0 0
        %1746 = vmatpush1.bf16.msra.mxu0 0
        %1747 = vmatprep.subr.bf16.mxu0 0
        %1748 = vmatpush1.bf16.msra.mxu0 0
        %1749 = vmatprep.subr.bf16.mxu0 0
        %1750 = vmatpush1.bf16.msra.mxu0 0
        %1751 = vmatprep.subr.bf16.mxu0 0
        %1752 = vmatpush1.bf16.msra.mxu0 0
        %1753 = vmatprep.subr.bf16.mxu0 0
        %1754 = vmatpush1.bf16.msra.mxu0 0
        %1755 = vmatprep.subr.bf16.mxu0 0
        %1756 = vmatpush1.bf16.msra.mxu0 0
        %1757 = vmatprep.subr.bf16.mxu0 0
        %1758 = vmatpush1.bf16.msra.mxu0 0
        %1759 = vmatprep.subr.bf16.mxu0 0
        %1760 = vmatpush1.bf16.msra.mxu0 0
        %1761 = vmatprep.subr.bf16.mxu0 0
        %1762 = vmatpush1.bf16.msra.mxu0 0
        %1763 = vmatprep.subr.bf16.mxu0 0
        %1764 = vmatpush1.bf16.msra.mxu0 0
        %1765 = vmatprep.subr.bf16.mxu0 0
        %1766 = vmatpush1.bf16.msra.mxu0 0
        %1767 = vmatprep.subr.bf16.mxu0 0
        %1768 = vmatpush1.bf16.msra.mxu0 0
        %1769 = vmatprep.subr.bf16.mxu0 0
        %1770 = vmatpush1.bf16.msra.mxu0 0
        %1771 = vmatprep.mubr.bf16.mxu0 0
        %1772 = vmatmul.mubr.bf16.gmra.mrb[0].mxu0 %v661
        %v1773 = vpop.f32.mrb[0].mxu0
        %v1774 = vadd.f32 %v1692, %v1773
        %v1775 = vpop.f32.mrb[0].mxu0
        %v1776 = vadd.f32 %v1694, %v1775
        %v1777 = vpop.f32.mrb[0].mxu0
        %v1778 = vpop.f32.mrb[0].mxu0
        %1779 = vdwg.mxu0
        %1780 = vmatprep.subr.bf16.mxu0 %v530
        %1781 = vmatpush1.bf16.msra.mxu0 %v529
        %1782 = vmatprep.subr.bf16.mxu0 0
        %1783 = vmatpush1.bf16.msra.mxu0 0
        %1784 = vmatprep.subr.bf16.mxu0 0
        %1785 = vmatpush1.bf16.msra.mxu0 0
        %1786 = vmatprep.subr.bf16.mxu0 0
        %1787 = vmatpush1.bf16.msra.mxu0 0
        %1788 = vmatprep.subr.bf16.mxu0 0
        %1789 = vmatpush1.bf16.msra.mxu0 0
        %1790 = vmatprep.subr.bf16.mxu0 0
        %1791 = vmatpush1.bf16.msra.mxu0 0
        %1792 = vmatprep.subr.bf16.mxu0 0
        %1793 = vmatpush1.bf16.msra.mxu0 0
        %1794 = vmatprep.subr.bf16.mxu0 0
        %1795 = vmatpush1.bf16.msra.mxu0 0
        %1796 = vmatprep.subr.bf16.mxu0 0
        %1797 = vmatpush1.bf16.msra.mxu0 0
        %1798 = vmatprep.subr.bf16.mxu0 0
        %1799 = vmatpush1.bf16.msra.mxu0 0
        %1800 = vmatprep.subr.bf16.mxu0 0
        %1801 = vmatpush1.bf16.msra.mxu0 0
        %1802 = vmatprep.subr.bf16.mxu0 0
        %1803 = vmatpush1.bf16.msra.mxu0 0
        %1804 = vmatprep.subr.bf16.mxu0 0
        %1805 = vmatpush1.bf16.msra.mxu0 0
        %1806 = vmatprep.subr.bf16.mxu0 0
        %1807 = vmatpush1.bf16.msra.mxu0 0
        %1808 = vmatprep.subr.bf16.mxu0 0
        %1809 = vmatpush1.bf16.msra.mxu0 0
        %1810 = vmatprep.subr.bf16.mxu0 0
        %1811 = vmatpush1.bf16.msra.mxu0 0
        %1812 = vmatprep.mubr.bf16.mxu0 0
        %1813 = vmatmul.mubr.bf16.gmra.mrb[0].mxu0 %v661
        %v1814 = vpop.f32.mrb[0].mxu0
        %v1815 = vadd.f32 %v1733, %v1814
        %v1816 = vpop.f32.mrb[0].mxu0
        %v1817 = vadd.f32 %v1735, %v1816
        %v1818 = vpop.f32.mrb[0].mxu0
        %v1819 = vpop.f32.mrb[0].mxu0
        %1820 = vdwg.mxu0
        %v1821 = vrot.slane %v364, 4
        %v1822 = vrot.slane %v365, 3
        %v1823 = vsel %vm373, %v1822, %v1821
        %v1824 = vrot.slane %v366, 2
        %v1825 = vsel %vm376, %v1824, %v1823
        %v1826 = vrot.slane %v367, 1
        %v1827 = vsel %vm379, %v1826, %v1825
        %v1828 = vsel %vm382, %v368, %v1827
        %v1829 = vrot.slane %v369, 7
        %v1830 = vsel %vm385, %v1829, %v1828
        %v1831 = vrot.slane %v370, 6
        %v1832 = vsel %vm388, %v1831, %v1830
        %v1833 = vrot.slane %v371, 5
        %v1834 = vsel %vm391, %v1833, %v1832
        %v1835 = vpack.c.b16 %v1834, %v1834
        %v1837 = vsel %vm414, %v1835, 0
        %1839 = vmatprep.subr.bf16.mxu0 %v653
        %1840 = vmatpush1.bf16.msra.mxu0 %v652
        %1841 = vmatprep.subr.bf16.mxu0 0
        %1842 = vmatpush1.bf16.msra.mxu0 0
        %1843 = vmatprep.subr.bf16.mxu0 0
        %1844 = vmatpush1.bf16.msra.mxu0 0
        %1845 = vmatprep.subr.bf16.mxu0 0
        %1846 = vmatpush1.bf16.msra.mxu0 0
        %1847 = vmatprep.subr.bf16.mxu0 0
        %1848 = vmatpush1.bf16.msra.mxu0 0
        %1849 = vmatprep.subr.bf16.mxu0 0
        %1850 = vmatpush1.bf16.msra.mxu0 0
        %1851 = vmatprep.subr.bf16.mxu0 0
        %1852 = vmatpush1.bf16.msra.mxu0 0
        %1853 = vmatprep.subr.bf16.mxu0 0
        %1854 = vmatpush1.bf16.msra.mxu0 0
        %1855 = vmatprep.subr.bf16.mxu0 0
        %1856 = vmatpush1.bf16.msra.mxu0 0
        %1857 = vmatprep.subr.bf16.mxu0 0
        %1858 = vmatpush1.bf16.msra.mxu0 0
        %1859 = vmatprep.subr.bf16.mxu0 0
        %1860 = vmatpush1.bf16.msra.mxu0 0
        %1861 = vmatprep.subr.bf16.mxu0 0
        %1862 = vmatpush1.bf16.msra.mxu0 0
        %1863 = vmatprep.subr.bf16.mxu0 0
        %1864 = vmatpush1.bf16.msra.mxu0 0
        %1865 = vmatprep.subr.bf16.mxu0 0
        %1866 = vmatpush1.bf16.msra.mxu0 0
        %1867 = vmatprep.subr.bf16.mxu0 0
        %1868 = vmatpush1.bf16.msra.mxu0 0
        %1869 = vmatprep.subr.bf16.mxu0 0
        %1870 = vmatpush1.bf16.msra.mxu0 0
        %1871 = vmatprep.mubr.bf16.mxu0 0
        %1872 = vmatmul.mubr.bf16.gmra.mrb[0].mxu0 %v1837
        %v1873 = vpop.f32.mrb[0].mxu0
        %v1874 = vadd.f32 0.0, %v1873
        %v1875 = vpop.f32.mrb[0].mxu0
        %v1876 = vadd.f32 0.0, %v1875
        %v1877 = vpop.f32.mrb[0].mxu0
        %v1878 = vpop.f32.mrb[0].mxu0
        %1879 = vdwg.mxu0
        %1880 = vmatprep.subr.bf16.mxu0 %v655
        %1881 = vmatpush1.bf16.msra.mxu0 %v654
        %1882 = vmatprep.subr.bf16.mxu0 0
        %1883 = vmatpush1.bf16.msra.mxu0 0
        %1884 = vmatprep.subr.bf16.mxu0 0
        %1885 = vmatpush1.bf16.msra.mxu0 0
        %1886 = vmatprep.subr.bf16.mxu0 0
        %1887 = vmatpush1.bf16.msra.mxu0 0
        %1888 = vmatprep.subr.bf16.mxu0 0
        %1889 = vmatpush1.bf16.msra.mxu0 0
        %1890 = vmatprep.subr.bf16.mxu0 0
        %1891 = vmatpush1.bf16.msra.mxu0 0
        %1892 = vmatprep.subr.bf16.mxu0 0
        %1893 = vmatpush1.bf16.msra.mxu0 0
        %1894 = vmatprep.subr.bf16.mxu0 0
        %1895 = vmatpush1.bf16.msra.mxu0 0
        %1896 = vmatprep.subr.bf16.mxu0 0
        %1897 = vmatpush1.bf16.msra.mxu0 0
        %1898 = vmatprep.subr.bf16.mxu0 0
        %1899 = vmatpush1.bf16.msra.mxu0 0
        %1900 = vmatprep.subr.bf16.mxu0 0
        %1901 = vmatpush1.bf16.msra.mxu0 0
        %1902 = vmatprep.subr.bf16.mxu0 0
        %1903 = vmatpush1.bf16.msra.mxu0 0
        %1904 = vmatprep.subr.bf16.mxu0 0
        %1905 = vmatpush1.bf16.msra.mxu0 0
        %1906 = vmatprep.subr.bf16.mxu0 0
        %1907 = vmatpush1.bf16.msra.mxu0 0
        %1908 = vmatprep.subr.bf16.mxu0 0
        %1909 = vmatpush1.bf16.msra.mxu0 0
        %1910 = vmatprep.subr.bf16.mxu0 0
        %1911 = vmatpush1.bf16.msra.mxu0 0
        %1912 = vmatprep.mubr.bf16.mxu0 0
        %1913 = vmatmul.mubr.bf16.gmra.mrb[0].mxu0 %v1837
        %v1914 = vpop.f32.mrb[0].mxu0
        %v1915 = vadd.f32 0.0, %v1914
        %v1916 = vpop.f32.mrb[0].mxu0
        %v1917 = vadd.f32 0.0, %v1916
        %v1918 = vpop.f32.mrb[0].mxu0
        %v1919 = vpop.f32.mrb[0].mxu0
        %1920 = vdwg.mxu0
        %v1921 = vadd.f32 %v1774, %v1874
        %v1922 = vadd.f32 %v1776, %v1876
        %v1923 = vadd.f32 %v1815, %v1915
        %v1924 = vadd.f32 %v1817, %v1917
        %v1925 = vadd.f32 %v1921, %v329
        %v1926 = vadd.f32 %v1922, %v333
        %v1927 = vadd.f32 %v1923, %v337
        %v1928 = vadd.f32 %v1924, %v341
        %v1929 = vmax.f32 %v1925, 0.0
        %v1930 = vmax.f32 %v1926, 0.0
        %v1931 = vmax.f32 %v1927, 0.0
        %v1932 = vmax.f32 %v1928, 0.0
        %v1933 = vpack.c.bf16 %v1929, %v1929
        %v1934 = vpack.c.bf16 %v1930, %v1930
        %v1935 = vpack.c.bf16 %v1931, %v1931
        %v1936 = vpack.c.bf16 %v1932, %v1932
        %s1937 = scalar_lea.vmem [#allocation6], 448
        %v1938 = vld [vmem:[%s1937] sm:$0xf]
        %v1939 = vld [vmem:[%s1937 + $0x4] sm:$0xf]
        %v1940 = vld [vmem:[%s1937 + $0x8] sm:$0xf]
        %v1941 = vld [vmem:[%s1937 + $0xc] sm:$0xf]
        %v1942 = vld [vmem:[%s1937 + $0x10] sm:$0xf]
        %v1943 = vld [vmem:[%s1937 + $0x14] sm:$0xf]
        %v1944 = vld [vmem:[%s1937 + $0x18] sm:$0xf]
        %v1945 = vld [vmem:[%s1937 + $0x1c] sm:$0xf]
        %v1946 = vld [vmem:[%s1937 + $0x20] sm:$0xf]
        %v1947 = vld [vmem:[%s1937 + $0x24] sm:$0xf]
        %v1948 = vld [vmem:[%s1937 + $0x28] sm:$0xf]
        %v1949 = vld [vmem:[%s1937 + $0x2c] sm:$0xf]
        %v1950 = vld [vmem:[%s1937 + $0x30] sm:$0xf]
        %v1951 = vld [vmem:[%s1937 + $0x34] sm:$0xf]
        %v1952 = vld [vmem:[%s1937 + $0x38] sm:$0xf]
        %v1953 = vld [vmem:[%s1937 + $0x3c] sm:$0xf]
        %v1954 = vld [vmem:[%s1937 + $0x40] sm:$0xf]
        %v1955 = vld [vmem:[%s1937 + $0x44] sm:$0xf]
        %v1956 = vld [vmem:[%s1937 + $0x48] sm:$0xf]
        %v1957 = vld [vmem:[%s1937 + $0x4c] sm:$0xf]
        %v1958 = vld [vmem:[%s1937 + $0x50] sm:$0xf]
        %v1959 = vld [vmem:[%s1937 + $0x54] sm:$0xf]
        %v1960 = vld [vmem:[%s1937 + $0x58] sm:$0xf]
        %v1961 = vld [vmem:[%s1937 + $0x5c] sm:$0xf]
        %v1962 = vld [vmem:[%s1937 + $0x60] sm:$0xf]
        %v1963 = vld [vmem:[%s1937 + $0x64] sm:$0xf]
        %v1964 = vld [vmem:[%s1937 + $0x68] sm:$0xf]
        %v1965 = vld [vmem:[%s1937 + $0x6c] sm:$0xf]
        %v1966 = vld [vmem:[%s1937 + $0x70] sm:$0xf]
        %v1967 = vld [vmem:[%s1937 + $0x74] sm:$0xf]
        %v1968 = vld [vmem:[%s1937 + $0x78] sm:$0xf]
        %v1969 = vld [vmem:[%s1937 + $0x7c] sm:$0xf]
        %v1970 = vld [vmem:[%s1937 + $0x80] sm:$0xf]
        %v1971 = vld [vmem:[%s1937 + $0x84] sm:$0xf]
        %v1972 = vld [vmem:[%s1937 + $0x88] sm:$0xf]
        %v1973 = vld [vmem:[%s1937 + $0x8c] sm:$0xf]
        %v1974 = vld [vmem:[%s1937 + $0x90] sm:$0xf]
        %v1975 = vld [vmem:[%s1937 + $0x94] sm:$0xf]
        %v1976 = vld [vmem:[%s1937 + $0x98] sm:$0xf]
        %v1977 = vld [vmem:[%s1937 + $0x9c] sm:$0xf]
        %v1978 = vld [vmem:[%s1937 + $0xa0] sm:$0xf]
        %v1979 = vld [vmem:[%s1937 + $0xa4] sm:$0xf]
        %v1980 = vld [vmem:[%s1937 + $0xa8] sm:$0xf]
        %v1981 = vld [vmem:[%s1937 + $0xac] sm:$0xf]
        %v1982 = vld [vmem:[%s1937 + $0xb0] sm:$0xf]
        %v1983 = vld [vmem:[%s1937 + $0xb4] sm:$0xf]
        %v1984 = vld [vmem:[%s1937 + $0xb8] sm:$0xf]
        %v1985 = vld [vmem:[%s1937 + $0xbc] sm:$0xf]
        %v1986 = vld [vmem:[%s1937 + $0xc0] sm:$0xf]
        %v1987 = vld [vmem:[%s1937 + $0xc4] sm:$0xf]
        %v1988 = vld [vmem:[%s1937 + $0xc8] sm:$0xf]
        %v1989 = vld [vmem:[%s1937 + $0xcc] sm:$0xf]
        %v1990 = vld [vmem:[%s1937 + $0xd0] sm:$0xf]
        %v1991 = vld [vmem:[%s1937 + $0xd4] sm:$0xf]
        %v1992 = vld [vmem:[%s1937 + $0xd8] sm:$0xf]
        %v1993 = vld [vmem:[%s1937 + $0xdc] sm:$0xf]
        %v2050 = vunpack.c.l.b16 %v1938
        %v2051 = vunpack.c.l.b16 %v1939
        %v2052 = vunpack.c.l.b16 %v1940
        %v2053 = vunpack.c.l.b16 %v1941
        %v2054 = vunpack.c.l.b16 %v1942
        %v2055 = vunpack.c.l.b16 %v1943
        %v2056 = vunpack.c.l.b16 %v1944
        %v2057 = vunpack.c.l.b16 %v1945
        %v2058 = vunpack.c.l.b16 %v1946
        %v2059 = vunpack.c.l.b16 %v1947
        %v2060 = vunpack.c.l.b16 %v1948
        %v2061 = vunpack.c.l.b16 %v1949
        %v2062 = vunpack.c.l.b16 %v1950
        %v2063 = vunpack.c.l.b16 %v1951
        %v2064 = vunpack.c.l.b16 %v1952
        %v2065 = vunpack.c.l.b16 %v1953
        %v2066 = vunpack.c.l.b16 %v1954
        %v2067 = vunpack.c.l.b16 %v1955
        %v2068 = vunpack.c.l.b16 %v1956
        %v2069 = vunpack.c.l.b16 %v1957
        %v2070 = vunpack.c.l.b16 %v1958
        %v2071 = vunpack.c.l.b16 %v1959
        %v2072 = vunpack.c.l.b16 %v1960
        %v2073 = vunpack.c.l.b16 %v1961
        %v2074 = vunpack.c.l.b16 %v1962
        %v2075 = vunpack.c.l.b16 %v1963
        %v2076 = vunpack.c.l.b16 %v1964
        %v2077 = vunpack.c.l.b16 %v1965
        %v2078 = vunpack.c.l.b16 %v1966
        %v2079 = vunpack.c.l.b16 %v1967
        %v2080 = vunpack.c.l.b16 %v1968
        %v2081 = vunpack.c.l.b16 %v1969
        %v2082 = vunpack.c.l.b16 %v1970
        %v2083 = vunpack.c.l.b16 %v1971
        %v2084 = vunpack.c.l.b16 %v1972
        %v2085 = vunpack.c.l.b16 %v1973
        %v2086 = vunpack.c.l.b16 %v1974
        %v2087 = vunpack.c.l.b16 %v1975
        %v2088 = vunpack.c.l.b16 %v1976
        %v2089 = vunpack.c.l.b16 %v1977
        %v2090 = vunpack.c.l.b16 %v1978
        %v2091 = vunpack.c.l.b16 %v1979
        %v2092 = vunpack.c.l.b16 %v1980
        %v2093 = vunpack.c.l.b16 %v1981
        %v2094 = vunpack.c.l.b16 %v1982
        %v2095 = vunpack.c.l.b16 %v1983
        %v2096 = vunpack.c.l.b16 %v1984
        %v2097 = vunpack.c.l.b16 %v1985
        %v2098 = vunpack.c.l.b16 %v1986
        %v2099 = vunpack.c.l.b16 %v1987
        %v2100 = vunpack.c.l.b16 %v1988
        %v2101 = vunpack.c.l.b16 %v1989
        %v2102 = vunpack.c.l.b16 %v1990
        %v2103 = vunpack.c.l.b16 %v1991
        %v2104 = vunpack.c.l.b16 %v1992
        %v2105 = vunpack.c.l.b16 %v1993
        %v2106 = vpack.c.b16 %v2051, %v2050
        %v2107 = vpack.c.b16 %v2053, %v2052
        %v2108 = vpack.c.b16 %v2055, %v2054
        %v2109 = vpack.c.b16 %v2057, %v2056
        %v2110 = vpack.c.b16 %v2059, %v2058
        %v2111 = vpack.c.b16 %v2061, %v2060
        %v2112 = vpack.c.b16 %v2063, %v2062
        %v2113 = vpack.c.b16 %v2065, %v2064
        %v2114 = vpack.c.b16 %v2067, %v2066
        %v2115 = vpack.c.b16 %v2069, %v2068
        %v2116 = vpack.c.b16 %v2071, %v2070
        %v2117 = vpack.c.b16 %v2073, %v2072
        %v2118 = vpack.c.b16 %v2075, %v2074
        %v2119 = vpack.c.b16 %v2077, %v2076
        %v2120 = vpack.c.b16 %v2079, %v2078
        %v2121 = vpack.c.b16 %v2081, %v2080
        %v2122 = vpack.c.b16 %v2083, %v2082
        %v2123 = vpack.c.b16 %v2085, %v2084
        %v2124 = vpack.c.b16 %v2087, %v2086
        %v2125 = vpack.c.b16 %v2089, %v2088
        %v2126 = vpack.c.b16 %v2091, %v2090
        %v2127 = vpack.c.b16 %v2093, %v2092
        %v2128 = vpack.c.b16 %v2095, %v2094
        %v2129 = vpack.c.b16 %v2097, %v2096
        %v2130 = vpack.c.b16 %v2099, %v2098
        %v2131 = vpack.c.b16 %v2101, %v2100
        %v2132 = vpack.c.b16 %v2103, %v2102
        %v2133 = vpack.c.b16 %v2105, %v2104
        %v2163 = vsel %vm1322, %v1936, 0
        %2165 = vmatprep.subr.bf16.mxu0 0
        %2166 = vmatpush1.bf16.msra.mxu0 %v2106
        %2167 = vmatprep.subr.bf16.mxu0 0
        %2168 = vmatpush1.bf16.msra.mxu0 %v2107
        %2169 = vmatprep.subr.bf16.mxu0 0
        %2170 = vmatpush1.bf16.msra.mxu0 %v2108
        %2171 = vmatprep.subr.bf16.mxu0 0
        %2172 = vmatpush1.bf16.msra.mxu0 %v2109
        %2173 = vmatprep.subr.bf16.mxu0 0
        %2174 = vmatpush1.bf16.msra.mxu0 %v2110
        %2175 = vmatprep.subr.bf16.mxu0 0
        %2176 = vmatpush1.bf16.msra.mxu0 %v2111
        %2177 = vmatprep.subr.bf16.mxu0 0
        %2178 = vmatpush1.bf16.msra.mxu0 %v2112
        %2179 = vmatprep.subr.bf16.mxu0 0
        %2180 = vmatpush1.bf16.msra.mxu0 %v2113
        %2181 = vmatprep.subr.bf16.mxu0 0
        %2182 = vmatpush1.bf16.msra.mxu0 %v2114
        %2183 = vmatprep.subr.bf16.mxu0 0
        %2184 = vmatpush1.bf16.msra.mxu0 %v2115
        %2185 = vmatprep.subr.bf16.mxu0 0
        %2186 = vmatpush1.bf16.msra.mxu0 %v2116
        %2187 = vmatprep.subr.bf16.mxu0 0
        %2188 = vmatpush1.bf16.msra.mxu0 %v2117
        %2189 = vmatprep.subr.bf16.mxu0 0
        %2190 = vmatpush1.bf16.msra.mxu0 %v2118
        %2191 = vmatprep.subr.bf16.mxu0 0
        %2192 = vmatpush1.bf16.msra.mxu0 %v2119
        %2193 = vmatprep.subr.bf16.mxu0 0
        %2194 = vmatpush1.bf16.msra.mxu0 %v2120
        %2195 = vmatprep.subr.bf16.mxu0 0
        %2196 = vmatpush1.bf16.msra.mxu0 %v2121
        %2197 = vmatprep.mubr.bf16.mxu0 %v1934
        %2198 = vmatmul.mubr.bf16.gmra.mrb[0].mxu0 %v1933
        %v2199 = vpop.f32.mrb[0].mxu0
        %v2200 = vadd.f32 0.0, %v2199
        %v2201 = vpop.f32.mrb[0].mxu0
        %v2202 = vpop.f32.mrb[0].mxu0
        %v2203 = vpop.f32.mrb[0].mxu0
        %2204 = vdwg.mxu0
        %2205 = vmatprep.subr.bf16.mxu0 0
        %2206 = vmatpush1.bf16.msra.mxu0 %v2122
        %2207 = vmatprep.subr.bf16.mxu0 0
        %2208 = vmatpush1.bf16.msra.mxu0 %v2123
        %2209 = vmatprep.subr.bf16.mxu0 0
        %2210 = vmatpush1.bf16.msra.mxu0 %v2124
        %2211 = vmatprep.subr.bf16.mxu0 0
        %2212 = vmatpush1.bf16.msra.mxu0 %v2125
        %2213 = vmatprep.subr.bf16.mxu0 0
        %2214 = vmatpush1.bf16.msra.mxu0 %v2126
        %2215 = vmatprep.subr.bf16.mxu0 0
        %2216 = vmatpush1.bf16.msra.mxu0 %v2127
        %2217 = vmatprep.subr.bf16.mxu0 0
        %2218 = vmatpush1.bf16.msra.mxu0 %v2128
        %2219 = vmatprep.subr.bf16.mxu0 0
        %2220 = vmatpush1.bf16.msra.mxu0 %v2129
        %2221 = vmatprep.subr.bf16.mxu0 0
        %2222 = vmatpush1.bf16.msra.mxu0 %v2130
        %2223 = vmatprep.subr.bf16.mxu0 0
        %2224 = vmatpush1.bf16.msra.mxu0 %v2131
        %2225 = vmatprep.subr.bf16.mxu0 0
        %2226 = vmatpush1.bf16.msra.mxu0 %v2132
        %2227 = vmatprep.subr.bf16.mxu0 0
        %2228 = vmatpush1.bf16.msra.mxu0 %v2133
        %2229 = vmatprep.subr.bf16.mxu0 0
        %2230 = vmatpush1.bf16.msra.mxu0 0
        %2231 = vmatprep.subr.bf16.mxu0 0
        %2232 = vmatpush1.bf16.msra.mxu0 0
        %2233 = vmatprep.subr.bf16.mxu0 0
        %2234 = vmatpush1.bf16.msra.mxu0 0
        %2235 = vmatprep.subr.bf16.mxu0 0
        %2236 = vmatpush1.bf16.msra.mxu0 0
        %2237 = vmatprep.mubr.bf16.mxu0 %v2163
        %2238 = vmatmul.mubr.bf16.gmra.mrb[0].mxu0 %v1935
        %v2239 = vpop.f32.mrb[0].mxu0
        %v2240 = vadd.f32 %v2200, %v2239
        %v2241 = vpop.f32.mrb[0].mxu0
        %v2242 = vpop.f32.mrb[0].mxu0
        %v2243 = vpop.f32.mrb[0].mxu0
        %2244 = vdwg.mxu0
        %v2245 = vadd.f32 %v1652, %v2240
        %2246 = vmatprep.subr.bf16.mxu0 %v407
        %2247 = vmatpush1.bf16.msra.mxu0 %v406
        %2248 = vmatprep.subr.bf16.mxu0 0
        %2249 = vmatpush1.bf16.msra.mxu0 0
        %2250 = vmatprep.subr.bf16.mxu0 0
        %2251 = vmatpush1.bf16.msra.mxu0 0
        %2252 = vmatprep.subr.bf16.mxu0 0
        %2253 = vmatpush1.bf16.msra.mxu0 0
        %2254 = vmatprep.subr.bf16.mxu0 0
        %2255 = vmatpush1.bf16.msra.mxu0 0
        %2256 = vmatprep.subr.bf16.mxu0 0
        %2257 = vmatpush1.bf16.msra.mxu0 0
        %2258 = vmatprep.subr.bf16.mxu0 0
        %2259 = vmatpush1.bf16.msra.mxu0 0
        %2260 = vmatprep.subr.bf16.mxu0 0
        %2261 = vmatpush1.bf16.msra.mxu0 0
        %2262 = vmatprep.subr.bf16.mxu0 0
        %2263 = vmatpush1.bf16.msra.mxu0 0
        %2264 = vmatprep.subr.bf16.mxu0 0
        %2265 = vmatpush1.bf16.msra.mxu0 0
        %2266 = vmatprep.subr.bf16.mxu0 0
        %2267 = vmatpush1.bf16.msra.mxu0 0
        %2268 = vmatprep.subr.bf16.mxu0 0
        %2269 = vmatpush1.bf16.msra.mxu0 0
        %2270 = vmatprep.subr.bf16.mxu0 0
        %2271 = vmatpush1.bf16.msra.mxu0 0
        %2272 = vmatprep.subr.bf16.mxu0 0
        %2273 = vmatpush1.bf16.msra.mxu0 0
        %2274 = vmatprep.subr.bf16.mxu0 0
        %2275 = vmatpush1.bf16.msra.mxu0 0
        %2276 = vmatprep.subr.bf16.mxu0 0
        %2277 = vmatpush1.bf16.msra.mxu0 0
        %2278 = vmatprep.mubr.bf16.mxu0 0
        %2279 = vmatmul.mubr.bf16.gmra.mrb[0].mxu0 %v1837
        %v2280 = vpop.f32.mrb[0].mxu0
        %v2281 = vadd.f32 0.0, %v2280
        %v2282 = vpop.f32.mrb[0].mxu0
        %v2283 = vadd.f32 0.0, %v2282
        %v2284 = vpop.f32.mrb[0].mxu0
        %v2285 = vpop.f32.mrb[0].mxu0
        %2286 = vdwg.mxu0
        %2287 = vmatprep.subr.bf16.mxu0 %v409
        %2288 = vmatpush1.bf16.msra.mxu0 %v408
        %2289 = vmatprep.subr.bf16.mxu0 0
        %2290 = vmatpush1.bf16.msra.mxu0 0
        %2291 = vmatprep.subr.bf16.mxu0 0
        %2292 = vmatpush1.bf16.msra.mxu0 0
        %2293 = vmatprep.subr.bf16.mxu0 0
        %2294 = vmatpush1.bf16.msra.mxu0 0
        %2295 = vmatprep.subr.bf16.mxu0 0
        %2296 = vmatpush1.bf16.msra.mxu0 0
        %2297 = vmatprep.subr.bf16.mxu0 0
        %2298 = vmatpush1.bf16.msra.mxu0 0
        %2299 = vmatprep.subr.bf16.mxu0 0
        %2300 = vmatpush1.bf16.msra.mxu0 0
        %2301 = vmatprep.subr.bf16.mxu0 0
        %2302 = vmatpush1.bf16.msra.mxu0 0
        %2303 = vmatprep.subr.bf16.mxu0 0
        %2304 = vmatpush1.bf16.msra.mxu0 0
        %2305 = vmatprep.subr.bf16.mxu0 0
        %2306 = vmatpush1.bf16.msra.mxu0 0
        %2307 = vmatprep.subr.bf16.mxu0 0
        %2308 = vmatpush1.bf16.msra.mxu0 0
        %2309 = vmatprep.subr.bf16.mxu0 0
        %2310 = vmatpush1.bf16.msra.mxu0 0
        %2311 = vmatprep.subr.bf16.mxu0 0
        %2312 = vmatpush1.bf16.msra.mxu0 0
        %2313 = vmatprep.subr.bf16.mxu0 0
        %2314 = vmatpush1.bf16.msra.mxu0 0
        %2315 = vmatprep.subr.bf16.mxu0 0
        %2316 = vmatpush1.bf16.msra.mxu0 0
        %2317 = vmatprep.subr.bf16.mxu0 0
        %2318 = vmatpush1.bf16.msra.mxu0 0
        %2319 = vmatprep.mubr.bf16.mxu0 0
        %2320 = vmatmul.mubr.bf16.gmra.mrb[0].mxu0 %v1837
        %v2321 = vpop.f32.mrb[0].mxu0
        %v2322 = vadd.f32 0.0, %v2321
        %v2323 = vpop.f32.mrb[0].mxu0
        %v2324 = vadd.f32 0.0, %v2323
        %v2325 = vpop.f32.mrb[0].mxu0
        %v2326 = vpop.f32.mrb[0].mxu0
        %2327 = vdwg.mxu0
        %2328 = vmatprep.subr.bf16.mxu0 %v528
        %2329 = vmatpush1.bf16.msra.mxu0 %v527
        %2330 = vmatprep.subr.bf16.mxu0 0
        %2331 = vmatpush1.bf16.msra.mxu0 0
        %2332 = vmatprep.subr.bf16.mxu0 0
        %2333 = vmatpush1.bf16.msra.mxu0 0
        %2334 = vmatprep.subr.bf16.mxu0 0
        %2335 = vmatpush1.bf16.msra.mxu0 0
        %2336 = vmatprep.subr.bf16.mxu0 0
        %2337 = vmatpush1.bf16.msra.mxu0 0
        %2338 = vmatprep.subr.bf16.mxu0 0
        %2339 = vmatpush1.bf16.msra.mxu0 0
        %2340 = vmatprep.subr.bf16.mxu0 0
        %2341 = vmatpush1.bf16.msra.mxu0 0
        %2342 = vmatprep.subr.bf16.mxu0 0
        %2343 = vmatpush1.bf16.msra.mxu0 0
        %2344 = vmatprep.subr.bf16.mxu0 0
        %2345 = vmatpush1.bf16.msra.mxu0 0
        %2346 = vmatprep.subr.bf16.mxu0 0
        %2347 = vmatpush1.bf16.msra.mxu0 0
        %2348 = vmatprep.subr.bf16.mxu0 0
        %2349 = vmatpush1.bf16.msra.mxu0 0
        %2350 = vmatprep.subr.bf16.mxu0 0
        %2351 = vmatpush1.bf16.msra.mxu0 0
        %2352 = vmatprep.subr.bf16.mxu0 0
        %2353 = vmatpush1.bf16.msra.mxu0 0
        %2354 = vmatprep.subr.bf16.mxu0 0
        %2355 = vmatpush1.bf16.msra.mxu0 0
        %2356 = vmatprep.subr.bf16.mxu0 0
        %2357 = vmatpush1.bf16.msra.mxu0 0
        %2358 = vmatprep.subr.bf16.mxu0 0
        %2359 = vmatpush1.bf16.msra.mxu0 0
        %2360 = vmatprep.mubr.bf16.mxu0 0
        %2361 = vmatmul.mubr.bf16.gmra.mrb[0].mxu0 %v997
        %v2362 = vpop.f32.mrb[0].mxu0
        %v2363 = vadd.f32 %v2281, %v2362
        %v2364 = vpop.f32.mrb[0].mxu0
        %v2365 = vadd.f32 %v2283, %v2364
        %v2366 = vpop.f32.mrb[0].mxu0
        %v2367 = vpop.f32.mrb[0].mxu0
        %2368 = vdwg.mxu0
        %2369 = vmatprep.subr.bf16.mxu0 %v530
        %2370 = vmatpush1.bf16.msra.mxu0 %v529
        %2371 = vmatprep.subr.bf16.mxu0 0
        %2372 = vmatpush1.bf16.msra.mxu0 0
        %2373 = vmatprep.subr.bf16.mxu0 0
        %2374 = vmatpush1.bf16.msra.mxu0 0
        %2375 = vmatprep.subr.bf16.mxu0 0
        %2376 = vmatpush1.bf16.msra.mxu0 0
        %2377 = vmatprep.subr.bf16.mxu0 0
        %2378 = vmatpush1.bf16.msra.mxu0 0
        %2379 = vmatprep.subr.bf16.mxu0 0
        %2380 = vmatpush1.bf16.msra.mxu0 0
        %2381 = vmatprep.subr.bf16.mxu0 0
        %2382 = vmatpush1.bf16.msra.mxu0 0
        %2383 = vmatprep.subr.bf16.mxu0 0
        %2384 = vmatpush1.bf16.msra.mxu0 0
        %2385 = vmatprep.subr.bf16.mxu0 0
        %2386 = vmatpush1.bf16.msra.mxu0 0
        %2387 = vmatprep.subr.bf16.mxu0 0
        %2388 = vmatpush1.bf16.msra.mxu0 0
        %2389 = vmatprep.subr.bf16.mxu0 0
        %2390 = vmatpush1.bf16.msra.mxu0 0
        %2391 = vmatprep.subr.bf16.mxu0 0
        %2392 = vmatpush1.bf16.msra.mxu0 0
        %2393 = vmatprep.subr.bf16.mxu0 0
        %2394 = vmatpush1.bf16.msra.mxu0 0
        %2395 = vmatprep.subr.bf16.mxu0 0
        %2396 = vmatpush1.bf16.msra.mxu0 0
        %2397 = vmatprep.subr.bf16.mxu0 0
        %2398 = vmatpush1.bf16.msra.mxu0 0
        %2399 = vmatprep.subr.bf16.mxu0 0
        %2400 = vmatpush1.bf16.msra.mxu0 0
        %2401 = vmatprep.mubr.bf16.mxu0 0
        %2402 = vmatmul.mubr.bf16.gmra.mrb[0].mxu0 %v997
        %v2403 = vpop.f32.mrb[0].mxu0
        %v2404 = vadd.f32 %v2322, %v2403
        %v2405 = vpop.f32.mrb[0].mxu0
        %v2406 = vadd.f32 %v2324, %v2405
        %v2407 = vpop.f32.mrb[0].mxu0
        %v2408 = vpop.f32.mrb[0].mxu0
        %2409 = vdwg.mxu0
        %v2410 = vrot.slane %v364, 5
        %v2411 = vrot.slane %v365, 4
        %v2412 = vsel %vm373, %v2411, %v2410
        %v2413 = vrot.slane %v366, 3
        %v2414 = vsel %vm376, %v2413, %v2412
        %v2415 = vrot.slane %v367, 2
        %v2416 = vsel %vm379, %v2415, %v2414
        %v2417 = vrot.slane %v368, 1
        %v2418 = vsel %vm382, %v2417, %v2416
        %v2419 = vsel %vm385, %v369, %v2418
        %v2420 = vrot.slane %v370, 7
        %v2421 = vsel %vm388, %v2420, %v2419
        %v2422 = vrot.slane %v371, 6
        %v2423 = vsel %vm391, %v2422, %v2421
        %v2424 = vpack.c.b16 %v2423, %v2423
        %v2426 = vsel %vm414, %v2424, 0
        %2428 = vmatprep.subr.bf16.mxu0 %v653
        %2429 = vmatpush1.bf16.msra.mxu0 %v652
        %2430 = vmatprep.subr.bf16.mxu0 0
        %2431 = vmatpush1.bf16.msra.mxu0 0
        %2432 = vmatprep.subr.bf16.mxu0 0
        %2433 = vmatpush1.bf16.msra.mxu0 0
        %2434 = vmatprep.subr.bf16.mxu0 0
        %2435 = vmatpush1.bf16.msra.mxu0 0
        %2436 = vmatprep.subr.bf16.mxu0 0
        %2437 = vmatpush1.bf16.msra.mxu0 0
        %2438 = vmatprep.subr.bf16.mxu0 0
        %2439 = vmatpush1.bf16.msra.mxu0 0
        %2440 = vmatprep.subr.bf16.mxu0 0
        %2441 = vmatpush1.bf16.msra.mxu0 0
        %2442 = vmatprep.subr.bf16.mxu0 0
        %2443 = vmatpush1.bf16.msra.mxu0 0
        %2444 = vmatprep.subr.bf16.mxu0 0
        %2445 = vmatpush1.bf16.msra.mxu0 0
        %2446 = vmatprep.subr.bf16.mxu0 0
        %2447 = vmatpush1.bf16.msra.mxu0 0
        %2448 = vmatprep.subr.bf16.mxu0 0
        %2449 = vmatpush1.bf16.msra.mxu0 0
        %2450 = vmatprep.subr.bf16.mxu0 0
        %2451 = vmatpush1.bf16.msra.mxu0 0
        %2452 = vmatprep.subr.bf16.mxu0 0
        %2453 = vmatpush1.bf16.msra.mxu0 0
        %2454 = vmatprep.subr.bf16.mxu0 0
        %2455 = vmatpush1.bf16.msra.mxu0 0
        %2456 = vmatprep.subr.bf16.mxu0 0
        %2457 = vmatpush1.bf16.msra.mxu0 0
        %2458 = vmatprep.subr.bf16.mxu0 0
        %2459 = vmatpush1.bf16.msra.mxu0 0
        %2460 = vmatprep.mubr.bf16.mxu0 0
        %2461 = vmatmul.mubr.bf16.gmra.mrb[0].mxu0 %v2426
        %v2462 = vpop.f32.mrb[0].mxu0
        %v2463 = vadd.f32 0.0, %v2462
        %v2464 = vpop.f32.mrb[0].mxu0
        %v2465 = vadd.f32 0.0, %v2464
        %v2466 = vpop.f32.mrb[0].mxu0
        %v2467 = vpop.f32.mrb[0].mxu0
        %2468 = vdwg.mxu0
        %2469 = vmatprep.subr.bf16.mxu0 %v655
        %2470 = vmatpush1.bf16.msra.mxu0 %v654
        %2471 = vmatprep.subr.bf16.mxu0 0
        %2472 = vmatpush1.bf16.msra.mxu0 0
        %2473 = vmatprep.subr.bf16.mxu0 0
        %2474 = vmatpush1.bf16.msra.mxu0 0
        %2475 = vmatprep.subr.bf16.mxu0 0
        %2476 = vmatpush1.bf16.msra.mxu0 0
        %2477 = vmatprep.subr.bf16.mxu0 0
        %2478 = vmatpush1.bf16.msra.mxu0 0
        %2479 = vmatprep.subr.bf16.mxu0 0
        %2480 = vmatpush1.bf16.msra.mxu0 0
        %2481 = vmatprep.subr.bf16.mxu0 0
        %2482 = vmatpush1.bf16.msra.mxu0 0
        %2483 = vmatprep.subr.bf16.mxu0 0
        %2484 = vmatpush1.bf16.msra.mxu0 0
        %2485 = vmatprep.subr.bf16.mxu0 0
        %2486 = vmatpush1.bf16.msra.mxu0 0
        %2487 = vmatprep.subr.bf16.mxu0 0
        %2488 = vmatpush1.bf16.msra.mxu0 0
        %2489 = vmatprep.subr.bf16.mxu0 0
        %2490 = vmatpush1.bf16.msra.mxu0 0
        %2491 = vmatprep.subr.bf16.mxu0 0
        %2492 = vmatpush1.bf16.msra.mxu0 0
        %2493 = vmatprep.subr.bf16.mxu0 0
        %2494 = vmatpush1.bf16.msra.mxu0 0
        %2495 = vmatprep.subr.bf16.mxu0 0
        %2496 = vmatpush1.bf16.msra.mxu0 0
        %2497 = vmatprep.subr.bf16.mxu0 0
        %2498 = vmatpush1.bf16.msra.mxu0 0
        %2499 = vmatprep.subr.bf16.mxu0 0
        %2500 = vmatpush1.bf16.msra.mxu0 0
        %2501 = vmatprep.mubr.bf16.mxu0 0
        %2502 = vmatmul.mubr.bf16.gmra.mrb[0].mxu0 %v2426
        %v2503 = vpop.f32.mrb[0].mxu0
        %v2504 = vadd.f32 0.0, %v2503
        %v2505 = vpop.f32.mrb[0].mxu0
        %v2506 = vadd.f32 0.0, %v2505
        %v2507 = vpop.f32.mrb[0].mxu0
        %v2508 = vpop.f32.mrb[0].mxu0
        %2509 = vdwg.mxu0
        %v2510 = vadd.f32 %v2363, %v2463
        %v2511 = vadd.f32 %v2365, %v2465
        %v2512 = vadd.f32 %v2404, %v2504
        %v2513 = vadd.f32 %v2406, %v2506
        %v2514 = vadd.f32 %v2510, %v329
        %v2515 = vadd.f32 %v2511, %v333
        %v2516 = vadd.f32 %v2512, %v337
        %v2517 = vadd.f32 %v2513, %v341
        %v2518 = vmax.f32 %v2514, 0.0
        %v2519 = vmax.f32 %v2515, 0.0
        %v2520 = vmax.f32 %v2516, 0.0
        %v2521 = vmax.f32 %v2517, 0.0
        %v2522 = vpack.c.bf16 %v2518, %v2518
        %v2523 = vpack.c.bf16 %v2519, %v2519
        %v2524 = vpack.c.bf16 %v2520, %v2520
        %v2525 = vpack.c.bf16 %v2521, %v2521
        %s2526 = scalar_lea.vmem [#allocation6], 672
        %v2527 = vld [vmem:[%s2526] sm:$0xf]
        %v2528 = vld [vmem:[%s2526 + $0x4] sm:$0xf]
        %v2529 = vld [vmem:[%s2526 + $0x8] sm:$0xf]
        %v2530 = vld [vmem:[%s2526 + $0xc] sm:$0xf]
        %v2531 = vld [vmem:[%s2526 + $0x10] sm:$0xf]
        %v2532 = vld [vmem:[%s2526 + $0x14] sm:$0xf]
        %v2533 = vld [vmem:[%s2526 + $0x18] sm:$0xf]
        %v2534 = vld [vmem:[%s2526 + $0x1c] sm:$0xf]
        %v2535 = vld [vmem:[%s2526 + $0x20] sm:$0xf]
        %v2536 = vld [vmem:[%s2526 + $0x24] sm:$0xf]
        %v2537 = vld [vmem:[%s2526 + $0x28] sm:$0xf]
        %v2538 = vld [vmem:[%s2526 + $0x2c] sm:$0xf]
        %v2539 = vld [vmem:[%s2526 + $0x30] sm:$0xf]
        %v2540 = vld [vmem:[%s2526 + $0x34] sm:$0xf]
        %v2541 = vld [vmem:[%s2526 + $0x38] sm:$0xf]
        %v2542 = vld [vmem:[%s2526 + $0x3c] sm:$0xf]
        %v2543 = vld [vmem:[%s2526 + $0x40] sm:$0xf]
        %v2544 = vld [vmem:[%s2526 + $0x44] sm:$0xf]
        %v2545 = vld [vmem:[%s2526 + $0x48] sm:$0xf]
        %v2546 = vld [vmem:[%s2526 + $0x4c] sm:$0xf]
        %v2547 = vld [vmem:[%s2526 + $0x50] sm:$0xf]
        %v2548 = vld [vmem:[%s2526 + $0x54] sm:$0xf]
        %v2549 = vld [vmem:[%s2526 + $0x58] sm:$0xf]
        %v2550 = vld [vmem:[%s2526 + $0x5c] sm:$0xf]
        %v2551 = vld [vmem:[%s2526 + $0x60] sm:$0xf]
        %v2552 = vld [vmem:[%s2526 + $0x64] sm:$0xf]
        %v2553 = vld [vmem:[%s2526 + $0x68] sm:$0xf]
        %v2554 = vld [vmem:[%s2526 + $0x6c] sm:$0xf]
        %v2555 = vld [vmem:[%s2526 + $0x70] sm:$0xf]
        %v2556 = vld [vmem:[%s2526 + $0x74] sm:$0xf]
        %v2557 = vld [vmem:[%s2526 + $0x78] sm:$0xf]
        %v2558 = vld [vmem:[%s2526 + $0x7c] sm:$0xf]
        %v2559 = vld [vmem:[%s2526 + $0x80] sm:$0xf]
        %v2560 = vld [vmem:[%s2526 + $0x84] sm:$0xf]
        %v2561 = vld [vmem:[%s2526 + $0x88] sm:$0xf]
        %v2562 = vld [vmem:[%s2526 + $0x8c] sm:$0xf]
        %v2563 = vld [vmem:[%s2526 + $0x90] sm:$0xf]
        %v2564 = vld [vmem:[%s2526 + $0x94] sm:$0xf]
        %v2565 = vld [vmem:[%s2526 + $0x98] sm:$0xf]
        %v2566 = vld [vmem:[%s2526 + $0x9c] sm:$0xf]
        %v2567 = vld [vmem:[%s2526 + $0xa0] sm:$0xf]
        %v2568 = vld [vmem:[%s2526 + $0xa4] sm:$0xf]
        %v2569 = vld [vmem:[%s2526 + $0xa8] sm:$0xf]
        %v2570 = vld [vmem:[%s2526 + $0xac] sm:$0xf]
        %v2571 = vld [vmem:[%s2526 + $0xb0] sm:$0xf]
        %v2572 = vld [vmem:[%s2526 + $0xb4] sm:$0xf]
        %v2573 = vld [vmem:[%s2526 + $0xb8] sm:$0xf]
        %v2574 = vld [vmem:[%s2526 + $0xbc] sm:$0xf]
        %v2575 = vld [vmem:[%s2526 + $0xc0] sm:$0xf]
        %v2576 = vld [vmem:[%s2526 + $0xc4] sm:$0xf]
        %v2577 = vld [vmem:[%s2526 + $0xc8] sm:$0xf]
        %v2578 = vld [vmem:[%s2526 + $0xcc] sm:$0xf]
        %v2579 = vld [vmem:[%s2526 + $0xd0] sm:$0xf]
        %v2580 = vld [vmem:[%s2526 + $0xd4] sm:$0xf]
        %v2581 = vld [vmem:[%s2526 + $0xd8] sm:$0xf]
        %v2582 = vld [vmem:[%s2526 + $0xdc] sm:$0xf]
        %v2639 = vunpack.c.l.b16 %v2527
        %v2640 = vunpack.c.l.b16 %v2528
        %v2641 = vunpack.c.l.b16 %v2529
        %v2642 = vunpack.c.l.b16 %v2530
        %v2643 = vunpack.c.l.b16 %v2531
        %v2644 = vunpack.c.l.b16 %v2532
        %v2645 = vunpack.c.l.b16 %v2533
        %v2646 = vunpack.c.l.b16 %v2534
        %v2647 = vunpack.c.l.b16 %v2535
        %v2648 = vunpack.c.l.b16 %v2536
        %v2649 = vunpack.c.l.b16 %v2537
        %v2650 = vunpack.c.l.b16 %v2538
        %v2651 = vunpack.c.l.b16 %v2539
        %v2652 = vunpack.c.l.b16 %v2540
        %v2653 = vunpack.c.l.b16 %v2541
        %v2654 = vunpack.c.l.b16 %v2542
        %v2655 = vunpack.c.l.b16 %v2543
        %v2656 = vunpack.c.l.b16 %v2544
        %v2657 = vunpack.c.l.b16 %v2545
        %v2658 = vunpack.c.l.b16 %v2546
        %v2659 = vunpack.c.l.b16 %v2547
        %v2660 = vunpack.c.l.b16 %v2548
        %v2661 = vunpack.c.l.b16 %v2549
        %v2662 = vunpack.c.l.b16 %v2550
        %v2663 = vunpack.c.l.b16 %v2551
        %v2664 = vunpack.c.l.b16 %v2552
        %v2665 = vunpack.c.l.b16 %v2553
        %v2666 = vunpack.c.l.b16 %v2554
        %v2667 = vunpack.c.l.b16 %v2555
        %v2668 = vunpack.c.l.b16 %v2556
        %v2669 = vunpack.c.l.b16 %v2557
        %v2670 = vunpack.c.l.b16 %v2558
        %v2671 = vunpack.c.l.b16 %v2559
        %v2672 = vunpack.c.l.b16 %v2560
        %v2673 = vunpack.c.l.b16 %v2561
        %v2674 = vunpack.c.l.b16 %v2562
        %v2675 = vunpack.c.l.b16 %v2563
        %v2676 = vunpack.c.l.b16 %v2564
        %v2677 = vunpack.c.l.b16 %v2565
        %v2678 = vunpack.c.l.b16 %v2566
        %v2679 = vunpack.c.l.b16 %v2567
        %v2680 = vunpack.c.l.b16 %v2568
        %v2681 = vunpack.c.l.b16 %v2569
        %v2682 = vunpack.c.l.b16 %v2570
        %v2683 = vunpack.c.l.b16 %v2571
        %v2684 = vunpack.c.l.b16 %v2572
        %v2685 = vunpack.c.l.b16 %v2573
        %v2686 = vunpack.c.l.b16 %v2574
        %v2687 = vunpack.c.l.b16 %v2575
        %v2688 = vunpack.c.l.b16 %v2576
        %v2689 = vunpack.c.l.b16 %v2577
        %v2690 = vunpack.c.l.b16 %v2578
        %v2691 = vunpack.c.l.b16 %v2579
        %v2692 = vunpack.c.l.b16 %v2580
        %v2693 = vunpack.c.l.b16 %v2581
        %v2694 = vunpack.c.l.b16 %v2582
        %v2695 = vpack.c.b16 %v2640, %v2639
        %v2696 = vpack.c.b16 %v2642, %v2641
        %v2697 = vpack.c.b16 %v2644, %v2643
        %v2698 = vpack.c.b16 %v2646, %v2645
        %v2699 = vpack.c.b16 %v2648, %v2647
        %v2700 = vpack.c.b16 %v2650, %v2649
        %v2701 = vpack.c.b16 %v2652, %v2651
        %v2702 = vpack.c.b16 %v2654, %v2653
        %v2703 = vpack.c.b16 %v2656, %v2655
        %v2704 = vpack.c.b16 %v2658, %v2657
        %v2705 = vpack.c.b16 %v2660, %v2659
        %v2706 = vpack.c.b16 %v2662, %v2661
        %v2707 = vpack.c.b16 %v2664, %v2663
        %v2708 = vpack.c.b16 %v2666, %v2665
        %v2709 = vpack.c.b16 %v2668, %v2667
        %v2710 = vpack.c.b16 %v2670, %v2669
        %v2711 = vpack.c.b16 %v2672, %v2671
        %v2712 = vpack.c.b16 %v2674, %v2673
        %v2713 = vpack.c.b16 %v2676, %v2675
        %v2714 = vpack.c.b16 %v2678, %v2677
        %v2715 = vpack.c.b16 %v2680, %v2679
        %v2716 = vpack.c.b16 %v2682, %v2681
        %v2717 = vpack.c.b16 %v2684, %v2683
        %v2718 = vpack.c.b16 %v2686, %v2685
        %v2719 = vpack.c.b16 %v2688, %v2687
        %v2720 = vpack.c.b16 %v2690, %v2689
        %v2721 = vpack.c.b16 %v2692, %v2691
        %v2722 = vpack.c.b16 %v2694, %v2693
        %v2752 = vsel %vm1322, %v2525, 0
        %2754 = vmatprep.subr.bf16.mxu0 0
        %2755 = vmatpush1.bf16.msra.mxu0 %v2695
        %2756 = vmatprep.subr.bf16.mxu0 0
        %2757 = vmatpush1.bf16.msra.mxu0 %v2696
        %2758 = vmatprep.subr.bf16.mxu0 0
        %2759 = vmatpush1.bf16.msra.mxu0 %v2697
        %2760 = vmatprep.subr.bf16.mxu0 0
        %2761 = vmatpush1.bf16.msra.mxu0 %v2698
        %2762 = vmatprep.subr.bf16.mxu0 0
        %2763 = vmatpush1.bf16.msra.mxu0 %v2699
        %2764 = vmatprep.subr.bf16.mxu0 0
        %2765 = vmatpush1.bf16.msra.mxu0 %v2700
        %2766 = vmatprep.subr.bf16.mxu0 0
        %2767 = vmatpush1.bf16.msra.mxu0 %v2701
        %2768 = vmatprep.subr.bf16.mxu0 0
        %2769 = vmatpush1.bf16.msra.mxu0 %v2702
        %2770 = vmatprep.subr.bf16.mxu0 0
        %2771 = vmatpush1.bf16.msra.mxu0 %v2703
        %2772 = vmatprep.subr.bf16.mxu0 0
        %2773 = vmatpush1.bf16.msra.mxu0 %v2704
        %2774 = vmatprep.subr.bf16.mxu0 0
        %2775 = vmatpush1.bf16.msra.mxu0 %v2705
        %2776 = vmatprep.subr.bf16.mxu0 0
        %2777 = vmatpush1.bf16.msra.mxu0 %v2706
        %2778 = vmatprep.subr.bf16.mxu0 0
        %2779 = vmatpush1.bf16.msra.mxu0 %v2707
        %2780 = vmatprep.subr.bf16.mxu0 0
        %2781 = vmatpush1.bf16.msra.mxu0 %v2708
        %2782 = vmatprep.subr.bf16.mxu0 0
        %2783 = vmatpush1.bf16.msra.mxu0 %v2709
        %2784 = vmatprep.subr.bf16.mxu0 0
        %2785 = vmatpush1.bf16.msra.mxu0 %v2710
        %2786 = vmatprep.mubr.bf16.mxu0 %v2523
        %2787 = vmatmul.mubr.bf16.gmra.mrb[0].mxu0 %v2522
        %v2788 = vpop.f32.mrb[0].mxu0
        %v2789 = vadd.f32 0.0, %v2788
        %v2790 = vpop.f32.mrb[0].mxu0
        %v2791 = vpop.f32.mrb[0].mxu0
        %v2792 = vpop.f32.mrb[0].mxu0
        %2793 = vdwg.mxu0
        %2794 = vmatprep.subr.bf16.mxu0 0
        %2795 = vmatpush1.bf16.msra.mxu0 %v2711
        %2796 = vmatprep.subr.bf16.mxu0 0
        %2797 = vmatpush1.bf16.msra.mxu0 %v2712
        %2798 = vmatprep.subr.bf16.mxu0 0
        %2799 = vmatpush1.bf16.msra.mxu0 %v2713
        %2800 = vmatprep.subr.bf16.mxu0 0
        %2801 = vmatpush1.bf16.msra.mxu0 %v2714
        %2802 = vmatprep.subr.bf16.mxu0 0
        %2803 = vmatpush1.bf16.msra.mxu0 %v2715
        %2804 = vmatprep.subr.bf16.mxu0 0
        %2805 = vmatpush1.bf16.msra.mxu0 %v2716
        %2806 = vmatprep.subr.bf16.mxu0 0
        %2807 = vmatpush1.bf16.msra.mxu0 %v2717
        %2808 = vmatprep.subr.bf16.mxu0 0
        %2809 = vmatpush1.bf16.msra.mxu0 %v2718
        %2810 = vmatprep.subr.bf16.mxu0 0
        %2811 = vmatpush1.bf16.msra.mxu0 %v2719
        %2812 = vmatprep.subr.bf16.mxu0 0
        %2813 = vmatpush1.bf16.msra.mxu0 %v2720
        %2814 = vmatprep.subr.bf16.mxu0 0
        %2815 = vmatpush1.bf16.msra.mxu0 %v2721
        %2816 = vmatprep.subr.bf16.mxu0 0
        %2817 = vmatpush1.bf16.msra.mxu0 %v2722
        %2818 = vmatprep.subr.bf16.mxu0 0
        %2819 = vmatpush1.bf16.msra.mxu0 0
        %2820 = vmatprep.subr.bf16.mxu0 0
        %2821 = vmatpush1.bf16.msra.mxu0 0
        %2822 = vmatprep.subr.bf16.mxu0 0
        %2823 = vmatpush1.bf16.msra.mxu0 0
        %2824 = vmatprep.subr.bf16.mxu0 0
        %2825 = vmatpush1.bf16.msra.mxu0 0
        %2826 = vmatprep.mubr.bf16.mxu0 %v2752
        %2827 = vmatmul.mubr.bf16.gmra.mrb[0].mxu0 %v2524
        %v2828 = vpop.f32.mrb[0].mxu0
        %v2829 = vadd.f32 %v2789, %v2828
        %v2830 = vpop.f32.mrb[0].mxu0
        %v2831 = vpop.f32.mrb[0].mxu0
        %v2832 = vpop.f32.mrb[0].mxu0
        %2833 = vdwg.mxu0
        %v2834 = vadd.f32 %v2245, %v2829
        %2835 = vmatprep.subr.bf16.mxu0 %v407
        %2836 = vmatpush1.bf16.msra.mxu0 %v406
        %2837 = vmatprep.subr.bf16.mxu0 0
        %2838 = vmatpush1.bf16.msra.mxu0 0
        %2839 = vmatprep.subr.bf16.mxu0 0
        %2840 = vmatpush1.bf16.msra.mxu0 0
        %2841 = vmatprep.subr.bf16.mxu0 0
        %2842 = vmatpush1.bf16.msra.mxu0 0
        %2843 = vmatprep.subr.bf16.mxu0 0
        %2844 = vmatpush1.bf16.msra.mxu0 0
        %2845 = vmatprep.subr.bf16.mxu0 0
        %2846 = vmatpush1.bf16.msra.mxu0 0
        %2847 = vmatprep.subr.bf16.mxu0 0
        %2848 = vmatpush1.bf16.msra.mxu0 0
        %2849 = vmatprep.subr.bf16.mxu0 0
        %2850 = vmatpush1.bf16.msra.mxu0 0
        %2851 = vmatprep.subr.bf16.mxu0 0
        %2852 = vmatpush1.bf16.msra.mxu0 0
        %2853 = vmatprep.subr.bf16.mxu0 0
        %2854 = vmatpush1.bf16.msra.mxu0 0
        %2855 = vmatprep.subr.bf16.mxu0 0
        %2856 = vmatpush1.bf16.msra.mxu0 0
        %2857 = vmatprep.subr.bf16.mxu0 0
        %2858 = vmatpush1.bf16.msra.mxu0 0
        %2859 = vmatprep.subr.bf16.mxu0 0
        %2860 = vmatpush1.bf16.msra.mxu0 0
        %2861 = vmatprep.subr.bf16.mxu0 0
        %2862 = vmatpush1.bf16.msra.mxu0 0
        %2863 = vmatprep.subr.bf16.mxu0 0
        %2864 = vmatpush1.bf16.msra.mxu0 0
        %2865 = vmatprep.subr.bf16.mxu0 0
        %2866 = vmatpush1.bf16.msra.mxu0 0
        %2867 = vmatprep.mubr.bf16.mxu0 0
        %2868 = vmatmul.mubr.bf16.gmra.mrb[0].mxu0 %v2426
        %v2869 = vpop.f32.mrb[0].mxu0
        %v2870 = vadd.f32 0.0, %v2869
        %v2871 = vpop.f32.mrb[0].mxu0
        %v2872 = vadd.f32 0.0, %v2871
        %v2873 = vpop.f32.mrb[0].mxu0
        %v2874 = vpop.f32.mrb[0].mxu0
        %2875 = vdwg.mxu0
        %2876 = vmatprep.subr.bf16.mxu0 %v409
        %2877 = vmatpush1.bf16.msra.mxu0 %v408
        %2878 = vmatprep.subr.bf16.mxu0 0
        %2879 = vmatpush1.bf16.msra.mxu0 0
        %2880 = vmatprep.subr.bf16.mxu0 0
        %2881 = vmatpush1.bf16.msra.mxu0 0
        %2882 = vmatprep.subr.bf16.mxu0 0
        %2883 = vmatpush1.bf16.msra.mxu0 0
        %2884 = vmatprep.subr.bf16.mxu0 0
        %2885 = vmatpush1.bf16.msra.mxu0 0
        %2886 = vmatprep.subr.bf16.mxu0 0
        %2887 = vmatpush1.bf16.msra.mxu0 0
        %2888 = vmatprep.subr.bf16.mxu0 0
        %2889 = vmatpush1.bf16.msra.mxu0 0
        %2890 = vmatprep.subr.bf16.mxu0 0
        %2891 = vmatpush1.bf16.msra.mxu0 0
        %2892 = vmatprep.subr.bf16.mxu0 0
        %2893 = vmatpush1.bf16.msra.mxu0 0
        %2894 = vmatprep.subr.bf16.mxu0 0
        %2895 = vmatpush1.bf16.msra.mxu0 0
        %2896 = vmatprep.subr.bf16.mxu0 0
        %2897 = vmatpush1.bf16.msra.mxu0 0
        %2898 = vmatprep.subr.bf16.mxu0 0
        %2899 = vmatpush1.bf16.msra.mxu0 0
        %2900 = vmatprep.subr.bf16.mxu0 0
        %2901 = vmatpush1.bf16.msra.mxu0 0
        %2902 = vmatprep.subr.bf16.mxu0 0
        %2903 = vmatpush1.bf16.msra.mxu0 0
        %2904 = vmatprep.subr.bf16.mxu0 0
        %2905 = vmatpush1.bf16.msra.mxu0 0
        %2906 = vmatprep.subr.bf16.mxu0 0
        %2907 = vmatpush1.bf16.msra.mxu0 0
        %2908 = vmatprep.mubr.bf16.mxu0 0
        %2909 = vmatmul.mubr.bf16.gmra.mrb[0].mxu0 %v2426
        %v2910 = vpop.f32.mrb[0].mxu0
        %v2911 = vadd.f32 0.0, %v2910
        %v2912 = vpop.f32.mrb[0].mxu0
        %v2913 = vadd.f32 0.0, %v2912
        %v2914 = vpop.f32.mrb[0].mxu0
        %v2915 = vpop.f32.mrb[0].mxu0
        %2916 = vdwg.mxu0
        %2917 = vmatprep.subr.bf16.mxu0 %v528
        %2918 = vmatpush1.bf16.msra.mxu0 %v527
        %2919 = vmatprep.subr.bf16.mxu0 0
        %2920 = vmatpush1.bf16.msra.mxu0 0
        %2921 = vmatprep.subr.bf16.mxu0 0
        %2922 = vmatpush1.bf16.msra.mxu0 0
        %2923 = vmatprep.subr.bf16.mxu0 0
        %2924 = vmatpush1.bf16.msra.mxu0 0
        %2925 = vmatprep.subr.bf16.mxu0 0
        %2926 = vmatpush1.bf16.msra.mxu0 0
        %2927 = vmatprep.subr.bf16.mxu0 0
        %2928 = vmatpush1.bf16.msra.mxu0 0
        %2929 = vmatprep.subr.bf16.mxu0 0
        %2930 = vmatpush1.bf16.msra.mxu0 0
        %2931 = vmatprep.subr.bf16.mxu0 0
        %2932 = vmatpush1.bf16.msra.mxu0 0
        %2933 = vmatprep.subr.bf16.mxu0 0
        %2934 = vmatpush1.bf16.msra.mxu0 0
        %2935 = vmatprep.subr.bf16.mxu0 0
        %2936 = vmatpush1.bf16.msra.mxu0 0
        %2937 = vmatprep.subr.bf16.mxu0 0
        %2938 = vmatpush1.bf16.msra.mxu0 0
        %2939 = vmatprep.subr.bf16.mxu0 0
        %2940 = vmatpush1.bf16.msra.mxu0 0
        %2941 = vmatprep.subr.bf16.mxu0 0
        %2942 = vmatpush1.bf16.msra.mxu0 0
        %2943 = vmatprep.subr.bf16.mxu0 0
        %2944 = vmatpush1.bf16.msra.mxu0 0
        %2945 = vmatprep.subr.bf16.mxu0 0
        %2946 = vmatpush1.bf16.msra.mxu0 0
        %2947 = vmatprep.subr.bf16.mxu0 0
        %2948 = vmatpush1.bf16.msra.mxu0 0
        %2949 = vmatprep.mubr.bf16.mxu0 0
        %2950 = vmatmul.mubr.bf16.gmra.mrb[0].mxu0 %v1837
        %v2951 = vpop.f32.mrb[0].mxu0
        %v2952 = vadd.f32 %v2870, %v2951
        %v2953 = vpop.f32.mrb[0].mxu0
        %v2954 = vadd.f32 %v2872, %v2953
        %v2955 = vpop.f32.mrb[0].mxu0
        %v2956 = vpop.f32.mrb[0].mxu0
        %2957 = vdwg.mxu0
        %2958 = vmatprep.subr.bf16.mxu0 %v530
        %2959 = vmatpush1.bf16.msra.mxu0 %v529
        %2960 = vmatprep.subr.bf16.mxu0 0
        %2961 = vmatpush1.bf16.msra.mxu0 0
        %2962 = vmatprep.subr.bf16.mxu0 0
        %2963 = vmatpush1.bf16.msra.mxu0 0
        %2964 = vmatprep.subr.bf16.mxu0 0
        %2965 = vmatpush1.bf16.msra.mxu0 0
        %2966 = vmatprep.subr.bf16.mxu0 0
        %2967 = vmatpush1.bf16.msra.mxu0 0
        %2968 = vmatprep.subr.bf16.mxu0 0
        %2969 = vmatpush1.bf16.msra.mxu0 0
        %2970 = vmatprep.subr.bf16.mxu0 0
        %2971 = vmatpush1.bf16.msra.mxu0 0
        %2972 = vmatprep.subr.bf16.mxu0 0
        %2973 = vmatpush1.bf16.msra.mxu0 0
        %2974 = vmatprep.subr.bf16.mxu0 0
        %2975 = vmatpush1.bf16.msra.mxu0 0
        %2976 = vmatprep.subr.bf16.mxu0 0
        %2977 = vmatpush1.bf16.msra.mxu0 0
        %2978 = vmatprep.subr.bf16.mxu0 0
        %2979 = vmatpush1.bf16.msra.mxu0 0
        %2980 = vmatprep.subr.bf16.mxu0 0
        %2981 = vmatpush1.bf16.msra.mxu0 0
        %2982 = vmatprep.subr.bf16.mxu0 0
        %2983 = vmatpush1.bf16.msra.mxu0 0
        %2984 = vmatprep.subr.bf16.mxu0 0
        %2985 = vmatpush1.bf16.msra.mxu0 0
        %2986 = vmatprep.subr.bf16.mxu0 0
        %2987 = vmatpush1.bf16.msra.mxu0 0
        %2988 = vmatprep.subr.bf16.mxu0 0
        %2989 = vmatpush1.bf16.msra.mxu0 0
        %2990 = vmatprep.mubr.bf16.mxu0 0
        %2991 = vmatmul.mubr.bf16.gmra.mrb[0].mxu0 %v1837
        %v2992 = vpop.f32.mrb[0].mxu0
        %v2993 = vadd.f32 %v2911, %v2992
        %v2994 = vpop.f32.mrb[0].mxu0
        %v2995 = vadd.f32 %v2913, %v2994
        %v2996 = vpop.f32.mrb[0].mxu0
        %v2997 = vpop.f32.mrb[0].mxu0
        %2998 = vdwg.mxu0
        %v2999 = vrot.slane %v364, 6
        %v3000 = vrot.slane %v365, 5
        %v3001 = vsel %vm373, %v3000, %v2999
        %v3002 = vrot.slane %v366, 4
        %v3003 = vsel %vm376, %v3002, %v3001
        %v3004 = vrot.slane %v367, 3
        %v3005 = vsel %vm379, %v3004, %v3003
        %v3006 = vrot.slane %v368, 2
        %v3007 = vsel %vm382, %v3006, %v3005
        %v3008 = vrot.slane %v369, 1
        %v3009 = vsel %vm385, %v3008, %v3007
        %v3010 = vsel %vm388, %v370, %v3009
        %v3011 = vrot.slane %v371, 7
        %v3012 = vsel %vm391, %v3011, %v3010
        %v3013 = vpack.c.b16 %v3012, %v3012
        %v3015 = vsel %vm414, %v3013, 0
        %3017 = vmatprep.subr.bf16.mxu0 %v653
        %3018 = vmatpush1.bf16.msra.mxu0 %v652
        %3019 = vmatprep.subr.bf16.mxu0 0
        %3020 = vmatpush1.bf16.msra.mxu0 0
        %3021 = vmatprep.subr.bf16.mxu0 0
        %3022 = vmatpush1.bf16.msra.mxu0 0
        %3023 = vmatprep.subr.bf16.mxu0 0
        %3024 = vmatpush1.bf16.msra.mxu0 0
        %3025 = vmatprep.subr.bf16.mxu0 0
        %3026 = vmatpush1.bf16.msra.mxu0 0
        %3027 = vmatprep.subr.bf16.mxu0 0
        %3028 = vmatpush1.bf16.msra.mxu0 0
        %3029 = vmatprep.subr.bf16.mxu0 0
        %3030 = vmatpush1.bf16.msra.mxu0 0
        %3031 = vmatprep.subr.bf16.mxu0 0
        %3032 = vmatpush1.bf16.msra.mxu0 0
        %3033 = vmatprep.subr.bf16.mxu0 0
        %3034 = vmatpush1.bf16.msra.mxu0 0
        %3035 = vmatprep.subr.bf16.mxu0 0
        %3036 = vmatpush1.bf16.msra.mxu0 0
        %3037 = vmatprep.subr.bf16.mxu0 0
        %3038 = vmatpush1.bf16.msra.mxu0 0
        %3039 = vmatprep.subr.bf16.mxu0 0
        %3040 = vmatpush1.bf16.msra.mxu0 0
        %3041 = vmatprep.subr.bf16.mxu0 0
        %3042 = vmatpush1.bf16.msra.mxu0 0
        %3043 = vmatprep.subr.bf16.mxu0 0
        %3044 = vmatpush1.bf16.msra.mxu0 0
        %3045 = vmatprep.subr.bf16.mxu0 0
        %3046 = vmatpush1.bf16.msra.mxu0 0
        %3047 = vmatprep.subr.bf16.mxu0 0
        %3048 = vmatpush1.bf16.msra.mxu0 0
        %3049 = vmatprep.mubr.bf16.mxu0 0
        %3050 = vmatmul.mubr.bf16.gmra.mrb[0].mxu0 %v3015
        %v3051 = vpop.f32.mrb[0].mxu0
        %v3052 = vadd.f32 0.0, %v3051
        %v3053 = vpop.f32.mrb[0].mxu0
        %v3054 = vadd.f32 0.0, %v3053
        %v3055 = vpop.f32.mrb[0].mxu0
        %v3056 = vpop.f32.mrb[0].mxu0
        %3057 = vdwg.mxu0
        %3058 = vmatprep.subr.bf16.mxu0 %v655
        %3059 = vmatpush1.bf16.msra.mxu0 %v654
        %3060 = vmatprep.subr.bf16.mxu0 0
        %3061 = vmatpush1.bf16.msra.mxu0 0
        %3062 = vmatprep.subr.bf16.mxu0 0
        %3063 = vmatpush1.bf16.msra.mxu0 0
        %3064 = vmatprep.subr.bf16.mxu0 0
        %3065 = vmatpush1.bf16.msra.mxu0 0
        %3066 = vmatprep.subr.bf16.mxu0 0
        %3067 = vmatpush1.bf16.msra.mxu0 0
        %3068 = vmatprep.subr.bf16.mxu0 0
        %3069 = vmatpush1.bf16.msra.mxu0 0
        %3070 = vmatprep.subr.bf16.mxu0 0
        %3071 = vmatpush1.bf16.msra.mxu0 0
        %3072 = vmatprep.subr.bf16.mxu0 0
        %3073 = vmatpush1.bf16.msra.mxu0 0
        %3074 = vmatprep.subr.bf16.mxu0 0
        %3075 = vmatpush1.bf16.msra.mxu0 0
        %3076 = vmatprep.subr.bf16.mxu0 0
        %3077 = vmatpush1.bf16.msra.mxu0 0
        %3078 = vmatprep.subr.bf16.mxu0 0
        %3079 = vmatpush1.bf16.msra.mxu0 0
        %3080 = vmatprep.subr.bf16.mxu0 0
        %3081 = vmatpush1.bf16.msra.mxu0 0
        %3082 = vmatprep.subr.bf16.mxu0 0
        %3083 = vmatpush1.bf16.msra.mxu0 0
        %3084 = vmatprep.subr.bf16.mxu0 0
        %3085 = vmatpush1.bf16.msra.mxu0 0
        %3086 = vmatprep.subr.bf16.mxu0 0
        %3087 = vmatpush1.bf16.msra.mxu0 0
        %3088 = vmatprep.subr.bf16.mxu0 0
        %3089 = vmatpush1.bf16.msra.mxu0 0
        %3090 = vmatprep.mubr.bf16.mxu0 0
        %3091 = vmatmul.mubr.bf16.gmra.mrb[0].mxu0 %v3015
        %v3092 = vpop.f32.mrb[0].mxu0
        %v3093 = vadd.f32 0.0, %v3092
        %v3094 = vpop.f32.mrb[0].mxu0
        %v3095 = vadd.f32 0.0, %v3094
        %v3096 = vpop.f32.mrb[0].mxu0
        %v3097 = vpop.f32.mrb[0].mxu0
        %3098 = vdwg.mxu0
        %v3099 = vadd.f32 %v2952, %v3052
        %v3100 = vadd.f32 %v2954, %v3054
        %v3101 = vadd.f32 %v2993, %v3093
        %v3102 = vadd.f32 %v2995, %v3095
        %v3103 = vadd.f32 %v3099, %v329
        %v3104 = vadd.f32 %v3100, %v333
        %v3105 = vadd.f32 %v3101, %v337
        %v3106 = vadd.f32 %v3102, %v341
        %v3107 = vmax.f32 %v3103, 0.0
        %v3108 = vmax.f32 %v3104, 0.0
        %v3109 = vmax.f32 %v3105, 0.0
        %v3110 = vmax.f32 %v3106, 0.0
        %v3111 = vpack.c.bf16 %v3107, %v3107
        %v3112 = vpack.c.bf16 %v3108, %v3108
        %v3113 = vpack.c.bf16 %v3109, %v3109
        %v3114 = vpack.c.bf16 %v3110, %v3110
        %s3115 = scalar_lea.vmem [#allocation6], 896
        %v3116 = vld [vmem:[%s3115] sm:$0xf]
        %v3117 = vld [vmem:[%s3115 + $0x4] sm:$0xf]
        %v3118 = vld [vmem:[%s3115 + $0x8] sm:$0xf]
        %v3119 = vld [vmem:[%s3115 + $0xc] sm:$0xf]
        %v3120 = vld [vmem:[%s3115 + $0x10] sm:$0xf]
        %v3121 = vld [vmem:[%s3115 + $0x14] sm:$0xf]
        %v3122 = vld [vmem:[%s3115 + $0x18] sm:$0xf]
        %v3123 = vld [vmem:[%s3115 + $0x1c] sm:$0xf]
        %v3124 = vld [vmem:[%s3115 + $0x20] sm:$0xf]
        %v3125 = vld [vmem:[%s3115 + $0x24] sm:$0xf]
        %v3126 = vld [vmem:[%s3115 + $0x28] sm:$0xf]
        %v3127 = vld [vmem:[%s3115 + $0x2c] sm:$0xf]
        %v3128 = vld [vmem:[%s3115 + $0x30] sm:$0xf]
        %v3129 = vld [vmem:[%s3115 + $0x34] sm:$0xf]
        %v3130 = vld [vmem:[%s3115 + $0x38] sm:$0xf]
        %v3131 = vld [vmem:[%s3115 + $0x3c] sm:$0xf]
        %v3132 = vld [vmem:[%s3115 + $0x40] sm:$0xf]
        %v3133 = vld [vmem:[%s3115 + $0x44] sm:$0xf]
        %v3134 = vld [vmem:[%s3115 + $0x48] sm:$0xf]
        %v3135 = vld [vmem:[%s3115 + $0x4c] sm:$0xf]
        %v3136 = vld [vmem:[%s3115 + $0x50] sm:$0xf]
        %v3137 = vld [vmem:[%s3115 + $0x54] sm:$0xf]
        %v3138 = vld [vmem:[%s3115 + $0x58] sm:$0xf]
        %v3139 = vld [vmem:[%s3115 + $0x5c] sm:$0xf]
        %v3140 = vld [vmem:[%s3115 + $0x60] sm:$0xf]
        %v3141 = vld [vmem:[%s3115 + $0x64] sm:$0xf]
        %v3142 = vld [vmem:[%s3115 + $0x68] sm:$0xf]
        %v3143 = vld [vmem:[%s3115 + $0x6c] sm:$0xf]
        %v3144 = vld [vmem:[%s3115 + $0x70] sm:$0xf]
        %v3145 = vld [vmem:[%s3115 + $0x74] sm:$0xf]
        %v3146 = vld [vmem:[%s3115 + $0x78] sm:$0xf]
        %v3147 = vld [vmem:[%s3115 + $0x7c] sm:$0xf]
        %v3148 = vld [vmem:[%s3115 + $0x80] sm:$0xf]
        %v3149 = vld [vmem:[%s3115 + $0x84] sm:$0xf]
        %v3150 = vld [vmem:[%s3115 + $0x88] sm:$0xf]
        %v3151 = vld [vmem:[%s3115 + $0x8c] sm:$0xf]
        %v3152 = vld [vmem:[%s3115 + $0x90] sm:$0xf]
        %v3153 = vld [vmem:[%s3115 + $0x94] sm:$0xf]
        %v3154 = vld [vmem:[%s3115 + $0x98] sm:$0xf]
        %v3155 = vld [vmem:[%s3115 + $0x9c] sm:$0xf]
        %v3156 = vld [vmem:[%s3115 + $0xa0] sm:$0xf]
        %v3157 = vld [vmem:[%s3115 + $0xa4] sm:$0xf]
        %v3158 = vld [vmem:[%s3115 + $0xa8] sm:$0xf]
        %v3159 = vld [vmem:[%s3115 + $0xac] sm:$0xf]
        %v3160 = vld [vmem:[%s3115 + $0xb0] sm:$0xf]
        %v3161 = vld [vmem:[%s3115 + $0xb4] sm:$0xf]
        %v3162 = vld [vmem:[%s3115 + $0xb8] sm:$0xf]
        %v3163 = vld [vmem:[%s3115 + $0xbc] sm:$0xf]
        %v3164 = vld [vmem:[%s3115 + $0xc0] sm:$0xf]
        %v3165 = vld [vmem:[%s3115 + $0xc4] sm:$0xf]
        %v3166 = vld [vmem:[%s3115 + $0xc8] sm:$0xf]
        %v3167 = vld [vmem:[%s3115 + $0xcc] sm:$0xf]
        %v3168 = vld [vmem:[%s3115 + $0xd0] sm:$0xf]
        %v3169 = vld [vmem:[%s3115 + $0xd4] sm:$0xf]
        %v3170 = vld [vmem:[%s3115 + $0xd8] sm:$0xf]
        %v3171 = vld [vmem:[%s3115 + $0xdc] sm:$0xf]
        %v3228 = vunpack.c.l.b16 %v3116
        %v3229 = vunpack.c.l.b16 %v3117
        %v3230 = vunpack.c.l.b16 %v3118
        %v3231 = vunpack.c.l.b16 %v3119
        %v3232 = vunpack.c.l.b16 %v3120
        %v3233 = vunpack.c.l.b16 %v3121
        %v3234 = vunpack.c.l.b16 %v3122
        %v3235 = vunpack.c.l.b16 %v3123
        %v3236 = vunpack.c.l.b16 %v3124
        %v3237 = vunpack.c.l.b16 %v3125
        %v3238 = vunpack.c.l.b16 %v3126
        %v3239 = vunpack.c.l.b16 %v3127
        %v3240 = vunpack.c.l.b16 %v3128
        %v3241 = vunpack.c.l.b16 %v3129
        %v3242 = vunpack.c.l.b16 %v3130
        %v3243 = vunpack.c.l.b16 %v3131
        %v3244 = vunpack.c.l.b16 %v3132
        %v3245 = vunpack.c.l.b16 %v3133
        %v3246 = vunpack.c.l.b16 %v3134
        %v3247 = vunpack.c.l.b16 %v3135
        %v3248 = vunpack.c.l.b16 %v3136
        %v3249 = vunpack.c.l.b16 %v3137
        %v3250 = vunpack.c.l.b16 %v3138
        %v3251 = vunpack.c.l.b16 %v3139
        %v3252 = vunpack.c.l.b16 %v3140
        %v3253 = vunpack.c.l.b16 %v3141
        %v3254 = vunpack.c.l.b16 %v3142
        %v3255 = vunpack.c.l.b16 %v3143
        %v3256 = vunpack.c.l.b16 %v3144
        %v3257 = vunpack.c.l.b16 %v3145
        %v3258 = vunpack.c.l.b16 %v3146
        %v3259 = vunpack.c.l.b16 %v3147
        %v3260 = vunpack.c.l.b16 %v3148
        %v3261 = vunpack.c.l.b16 %v3149
        %v3262 = vunpack.c.l.b16 %v3150
        %v3263 = vunpack.c.l.b16 %v3151
        %v3264 = vunpack.c.l.b16 %v3152
        %v3265 = vunpack.c.l.b16 %v3153
        %v3266 = vunpack.c.l.b16 %v3154
        %v3267 = vunpack.c.l.b16 %v3155
        %v3268 = vunpack.c.l.b16 %v3156
        %v3269 = vunpack.c.l.b16 %v3157
        %v3270 = vunpack.c.l.b16 %v3158
        %v3271 = vunpack.c.l.b16 %v3159
        %v3272 = vunpack.c.l.b16 %v3160
        %v3273 = vunpack.c.l.b16 %v3161
        %v3274 = vunpack.c.l.b16 %v3162
        %v3275 = vunpack.c.l.b16 %v3163
        %v3276 = vunpack.c.l.b16 %v3164
        %v3277 = vunpack.c.l.b16 %v3165
        %v3278 = vunpack.c.l.b16 %v3166
        %v3279 = vunpack.c.l.b16 %v3167
        %v3280 = vunpack.c.l.b16 %v3168
        %v3281 = vunpack.c.l.b16 %v3169
        %v3282 = vunpack.c.l.b16 %v3170
        %v3283 = vunpack.c.l.b16 %v3171
        %v3284 = vpack.c.b16 %v3229, %v3228
        %v3285 = vpack.c.b16 %v3231, %v3230
        %v3286 = vpack.c.b16 %v3233, %v3232
        %v3287 = vpack.c.b16 %v3235, %v3234
        %v3288 = vpack.c.b16 %v3237, %v3236
        %v3289 = vpack.c.b16 %v3239, %v3238
        %v3290 = vpack.c.b16 %v3241, %v3240
        %v3291 = vpack.c.b16 %v3243, %v3242
        %v3292 = vpack.c.b16 %v3245, %v3244
        %v3293 = vpack.c.b16 %v3247, %v3246
        %v3294 = vpack.c.b16 %v3249, %v3248
        %v3295 = vpack.c.b16 %v3251, %v3250
        %v3296 = vpack.c.b16 %v3253, %v3252
        %v3297 = vpack.c.b16 %v3255, %v3254
        %v3298 = vpack.c.b16 %v3257, %v3256
        %v3299 = vpack.c.b16 %v3259, %v3258
        %v3300 = vpack.c.b16 %v3261, %v3260
        %v3301 = vpack.c.b16 %v3263, %v3262
        %v3302 = vpack.c.b16 %v3265, %v3264
        %v3303 = vpack.c.b16 %v3267, %v3266
        %v3304 = vpack.c.b16 %v3269, %v3268
        %v3305 = vpack.c.b16 %v3271, %v3270
        %v3306 = vpack.c.b16 %v3273, %v3272
        %v3307 = vpack.c.b16 %v3275, %v3274
        %v3308 = vpack.c.b16 %v3277, %v3276
        %v3309 = vpack.c.b16 %v3279, %v3278
        %v3310 = vpack.c.b16 %v3281, %v3280
        %v3311 = vpack.c.b16 %v3283, %v3282
        %v3341 = vsel %vm1322, %v3114, 0
        %3343 = vmatprep.subr.bf16.mxu0 0
        %3344 = vmatpush1.bf16.msra.mxu0 %v3284
        %3345 = vmatprep.subr.bf16.mxu0 0
        %3346 = vmatpush1.bf16.msra.mxu0 %v3285
        %3347 = vmatprep.subr.bf16.mxu0 0
        %3348 = vmatpush1.bf16.msra.mxu0 %v3286
        %3349 = vmatprep.subr.bf16.mxu0 0
        %3350 = vmatpush1.bf16.msra.mxu0 %v3287
        %3351 = vmatprep.subr.bf16.mxu0 0
        %3352 = vmatpush1.bf16.msra.mxu0 %v3288
        %3353 = vmatprep.subr.bf16.mxu0 0
        %3354 = vmatpush1.bf16.msra.mxu0 %v3289
        %3355 = vmatprep.subr.bf16.mxu0 0
        %3356 = vmatpush1.bf16.msra.mxu0 %v3290
        %3357 = vmatprep.subr.bf16.mxu0 0
        %3358 = vmatpush1.bf16.msra.mxu0 %v3291
        %3359 = vmatprep.subr.bf16.mxu0 0
        %3360 = vmatpush1.bf16.msra.mxu0 %v3292
        %3361 = vmatprep.subr.bf16.mxu0 0
        %3362 = vmatpush1.bf16.msra.mxu0 %v3293
        %3363 = vmatprep.subr.bf16.mxu0 0
        %3364 = vmatpush1.bf16.msra.mxu0 %v3294
        %3365 = vmatprep.subr.bf16.mxu0 0
        %3366 = vmatpush1.bf16.msra.mxu0 %v3295
        %3367 = vmatprep.subr.bf16.mxu0 0
        %3368 = vmatpush1.bf16.msra.mxu0 %v3296
        %3369 = vmatprep.subr.bf16.mxu0 0
        %3370 = vmatpush1.bf16.msra.mxu0 %v3297
        %3371 = vmatprep.subr.bf16.mxu0 0
        %3372 = vmatpush1.bf16.msra.mxu0 %v3298
        %3373 = vmatprep.subr.bf16.mxu0 0
        %3374 = vmatpush1.bf16.msra.mxu0 %v3299
        %3375 = vmatprep.mubr.bf16.mxu0 %v3112
        %3376 = vmatmul.mubr.bf16.gmra.mrb[0].mxu0 %v3111
        %v3377 = vpop.f32.mrb[0].mxu0
        %v3378 = vadd.f32 0.0, %v3377
        %v3379 = vpop.f32.mrb[0].mxu0
        %v3380 = vpop.f32.mrb[0].mxu0
        %v3381 = vpop.f32.mrb[0].mxu0
        %3382 = vdwg.mxu0
        %3383 = vmatprep.subr.bf16.mxu0 0
        %3384 = vmatpush1.bf16.msra.mxu0 %v3300
        %3385 = vmatprep.subr.bf16.mxu0 0
        %3386 = vmatpush1.bf16.msra.mxu0 %v3301
        %3387 = vmatprep.subr.bf16.mxu0 0
        %3388 = vmatpush1.bf16.msra.mxu0 %v3302
        %3389 = vmatprep.subr.bf16.mxu0 0
        %3390 = vmatpush1.bf16.msra.mxu0 %v3303
        %3391 = vmatprep.subr.bf16.mxu0 0
        %3392 = vmatpush1.bf16.msra.mxu0 %v3304
        %3393 = vmatprep.subr.bf16.mxu0 0
        %3394 = vmatpush1.bf16.msra.mxu0 %v3305
        %3395 = vmatprep.subr.bf16.mxu0 0
        %3396 = vmatpush1.bf16.msra.mxu0 %v3306
        %3397 = vmatprep.subr.bf16.mxu0 0
        %3398 = vmatpush1.bf16.msra.mxu0 %v3307
        %3399 = vmatprep.subr.bf16.mxu0 0
        %3400 = vmatpush1.bf16.msra.mxu0 %v3308
        %3401 = vmatprep.subr.bf16.mxu0 0
        %3402 = vmatpush1.bf16.msra.mxu0 %v3309
        %3403 = vmatprep.subr.bf16.mxu0 0
        %3404 = vmatpush1.bf16.msra.mxu0 %v3310
        %3405 = vmatprep.subr.bf16.mxu0 0
        %3406 = vmatpush1.bf16.msra.mxu0 %v3311
        %3407 = vmatprep.subr.bf16.mxu0 0
        %3408 = vmatpush1.bf16.msra.mxu0 0
        %3409 = vmatprep.subr.bf16.mxu0 0
        %3410 = vmatpush1.bf16.msra.mxu0 0
        %3411 = vmatprep.subr.bf16.mxu0 0
        %3412 = vmatpush1.bf16.msra.mxu0 0
        %3413 = vmatprep.subr.bf16.mxu0 0
        %3414 = vmatpush1.bf16.msra.mxu0 0
        %3415 = vmatprep.mubr.bf16.mxu0 %v3341
        %3416 = vmatmul.mubr.bf16.gmra.mrb[0].mxu0 %v3113
        %v3417 = vpop.f32.mrb[0].mxu0
        %v3418 = vadd.f32 %v3378, %v3417
        %v3419 = vpop.f32.mrb[0].mxu0
        %v3420 = vpop.f32.mrb[0].mxu0
        %v3421 = vpop.f32.mrb[0].mxu0
        %3422 = vdwg.mxu0
        %v3423 = vadd.f32 %v2834, %v3418
        %3424 = vmatprep.subr.bf16.mxu0 %v407
        %3425 = vmatpush1.bf16.msra.mxu0 %v406
        %3426 = vmatprep.subr.bf16.mxu0 0
        %3427 = vmatpush1.bf16.msra.mxu0 0
        %3428 = vmatprep.subr.bf16.mxu0 0
        %3429 = vmatpush1.bf16.msra.mxu0 0
        %3430 = vmatprep.subr.bf16.mxu0 0
        %3431 = vmatpush1.bf16.msra.mxu0 0
        %3432 = vmatprep.subr.bf16.mxu0 0
        %3433 = vmatpush1.bf16.msra.mxu0 0
        %3434 = vmatprep.subr.bf16.mxu0 0
        %3435 = vmatpush1.bf16.msra.mxu0 0
        %3436 = vmatprep.subr.bf16.mxu0 0
        %3437 = vmatpush1.bf16.msra.mxu0 0
        %3438 = vmatprep.subr.bf16.mxu0 0
        %3439 = vmatpush1.bf16.msra.mxu0 0
        %3440 = vmatprep.subr.bf16.mxu0 0
        %3441 = vmatpush1.bf16.msra.mxu0 0
        %3442 = vmatprep.subr.bf16.mxu0 0
        %3443 = vmatpush1.bf16.msra.mxu0 0
        %3444 = vmatprep.subr.bf16.mxu0 0
        %3445 = vmatpush1.bf16.msra.mxu0 0
        %3446 = vmatprep.subr.bf16.mxu0 0
        %3447 = vmatpush1.bf16.msra.mxu0 0
        %3448 = vmatprep.subr.bf16.mxu0 0
        %3449 = vmatpush1.bf16.msra.mxu0 0
        %3450 = vmatprep.subr.bf16.mxu0 0
        %3451 = vmatpush1.bf16.msra.mxu0 0
        %3452 = vmatprep.subr.bf16.mxu0 0
        %3453 = vmatpush1.bf16.msra.mxu0 0
        %3454 = vmatprep.subr.bf16.mxu0 0
        %3455 = vmatpush1.bf16.msra.mxu0 0
        %3456 = vmatprep.mubr.bf16.mxu0 0
        %3457 = vmatmul.mubr.bf16.gmra.mrb[0].mxu0 %v3015
        %v3458 = vpop.f32.mrb[0].mxu0
        %v3459 = vadd.f32 0.0, %v3458
        %v3460 = vpop.f32.mrb[0].mxu0
        %v3461 = vadd.f32 0.0, %v3460
        %v3462 = vpop.f32.mrb[0].mxu0
        %v3463 = vpop.f32.mrb[0].mxu0
        %3464 = vdwg.mxu0
        %3465 = vmatprep.subr.bf16.mxu0 %v409
        %3466 = vmatpush1.bf16.msra.mxu0 %v408
        %3467 = vmatprep.subr.bf16.mxu0 0
        %3468 = vmatpush1.bf16.msra.mxu0 0
        %3469 = vmatprep.subr.bf16.mxu0 0
        %3470 = vmatpush1.bf16.msra.mxu0 0
        %3471 = vmatprep.subr.bf16.mxu0 0
        %3472 = vmatpush1.bf16.msra.mxu0 0
        %3473 = vmatprep.subr.bf16.mxu0 0
        %3474 = vmatpush1.bf16.msra.mxu0 0
        %3475 = vmatprep.subr.bf16.mxu0 0
        %3476 = vmatpush1.bf16.msra.mxu0 0
        %3477 = vmatprep.subr.bf16.mxu0 0
        %3478 = vmatpush1.bf16.msra.mxu0 0
        %3479 = vmatprep.subr.bf16.mxu0 0
        %3480 = vmatpush1.bf16.msra.mxu0 0
        %3481 = vmatprep.subr.bf16.mxu0 0
        %3482 = vmatpush1.bf16.msra.mxu0 0
        %3483 = vmatprep.subr.bf16.mxu0 0
        %3484 = vmatpush1.bf16.msra.mxu0 0
        %3485 = vmatprep.subr.bf16.mxu0 0
        %3486 = vmatpush1.bf16.msra.mxu0 0
        %3487 = vmatprep.subr.bf16.mxu0 0
        %3488 = vmatpush1.bf16.msra.mxu0 0
        %3489 = vmatprep.subr.bf16.mxu0 0
        %3490 = vmatpush1.bf16.msra.mxu0 0
        %3491 = vmatprep.subr.bf16.mxu0 0
        %3492 = vmatpush1.bf16.msra.mxu0 0
        %3493 = vmatprep.subr.bf16.mxu0 0
        %3494 = vmatpush1.bf16.msra.mxu0 0
        %3495 = vmatprep.subr.bf16.mxu0 0
        %3496 = vmatpush1.bf16.msra.mxu0 0
        %3497 = vmatprep.mubr.bf16.mxu0 0
        %3498 = vmatmul.mubr.bf16.gmra.mrb[0].mxu0 %v3015
        %v3499 = vpop.f32.mrb[0].mxu0
        %v3500 = vadd.f32 0.0, %v3499
        %v3501 = vpop.f32.mrb[0].mxu0
        %v3502 = vadd.f32 0.0, %v3501
        %v3503 = vpop.f32.mrb[0].mxu0
        %v3504 = vpop.f32.mrb[0].mxu0
        %3505 = vdwg.mxu0
        %3506 = vmatprep.subr.bf16.mxu0 %v528
        %3507 = vmatpush1.bf16.msra.mxu0 %v527
        %3508 = vmatprep.subr.bf16.mxu0 0
        %3509 = vmatpush1.bf16.msra.mxu0 0
        %3510 = vmatprep.subr.bf16.mxu0 0
        %3511 = vmatpush1.bf16.msra.mxu0 0
        %3512 = vmatprep.subr.bf16.mxu0 0
        %3513 = vmatpush1.bf16.msra.mxu0 0
        %3514 = vmatprep.subr.bf16.mxu0 0
        %3515 = vmatpush1.bf16.msra.mxu0 0
        %3516 = vmatprep.subr.bf16.mxu0 0
        %3517 = vmatpush1.bf16.msra.mxu0 0
        %3518 = vmatprep.subr.bf16.mxu0 0
        %3519 = vmatpush1.bf16.msra.mxu0 0
        %3520 = vmatprep.subr.bf16.mxu0 0
        %3521 = vmatpush1.bf16.msra.mxu0 0
        %3522 = vmatprep.subr.bf16.mxu0 0
        %3523 = vmatpush1.bf16.msra.mxu0 0
        %3524 = vmatprep.subr.bf16.mxu0 0
        %3525 = vmatpush1.bf16.msra.mxu0 0
        %3526 = vmatprep.subr.bf16.mxu0 0
        %3527 = vmatpush1.bf16.msra.mxu0 0
        %3528 = vmatprep.subr.bf16.mxu0 0
        %3529 = vmatpush1.bf16.msra.mxu0 0
        %3530 = vmatprep.subr.bf16.mxu0 0
        %3531 = vmatpush1.bf16.msra.mxu0 0
        %3532 = vmatprep.subr.bf16.mxu0 0
        %3533 = vmatpush1.bf16.msra.mxu0 0
        %3534 = vmatprep.subr.bf16.mxu0 0
        %3535 = vmatpush1.bf16.msra.mxu0 0
        %3536 = vmatprep.subr.bf16.mxu0 0
        %3537 = vmatpush1.bf16.msra.mxu0 0
        %3538 = vmatprep.mubr.bf16.mxu0 0
        %3539 = vmatmul.mubr.bf16.gmra.mrb[0].mxu0 %v2426
        %v3540 = vpop.f32.mrb[0].mxu0
        %v3541 = vadd.f32 %v3459, %v3540
        %v3542 = vpop.f32.mrb[0].mxu0
        %v3543 = vadd.f32 %v3461, %v3542
        %v3544 = vpop.f32.mrb[0].mxu0
        %v3545 = vpop.f32.mrb[0].mxu0
        %3546 = vdwg.mxu0
        %3547 = vmatprep.subr.bf16.mxu0 %v530
        %3548 = vmatpush1.bf16.msra.mxu0 %v529
        %3549 = vmatprep.subr.bf16.mxu0 0
        %3550 = vmatpush1.bf16.msra.mxu0 0
        %3551 = vmatprep.subr.bf16.mxu0 0
        %3552 = vmatpush1.bf16.msra.mxu0 0
        %3553 = vmatprep.subr.bf16.mxu0 0
        %3554 = vmatpush1.bf16.msra.mxu0 0
        %3555 = vmatprep.subr.bf16.mxu0 0
        %3556 = vmatpush1.bf16.msra.mxu0 0
        %3557 = vmatprep.subr.bf16.mxu0 0
        %3558 = vmatpush1.bf16.msra.mxu0 0
        %3559 = vmatprep.subr.bf16.mxu0 0
        %3560 = vmatpush1.bf16.msra.mxu0 0
        %3561 = vmatprep.subr.bf16.mxu0 0
        %3562 = vmatpush1.bf16.msra.mxu0 0
        %3563 = vmatprep.subr.bf16.mxu0 0
        %3564 = vmatpush1.bf16.msra.mxu0 0
        %3565 = vmatprep.subr.bf16.mxu0 0
        %3566 = vmatpush1.bf16.msra.mxu0 0
        %3567 = vmatprep.subr.bf16.mxu0 0
        %3568 = vmatpush1.bf16.msra.mxu0 0
        %3569 = vmatprep.subr.bf16.mxu0 0
        %3570 = vmatpush1.bf16.msra.mxu0 0
        %3571 = vmatprep.subr.bf16.mxu0 0
        %3572 = vmatpush1.bf16.msra.mxu0 0
        %3573 = vmatprep.subr.bf16.mxu0 0
        %3574 = vmatpush1.bf16.msra.mxu0 0
        %3575 = vmatprep.subr.bf16.mxu0 0
        %3576 = vmatpush1.bf16.msra.mxu0 0
        %3577 = vmatprep.subr.bf16.mxu0 0
        %3578 = vmatpush1.bf16.msra.mxu0 0
        %3579 = vmatprep.mubr.bf16.mxu0 0
        %3580 = vmatmul.mubr.bf16.gmra.mrb[0].mxu0 %v2426
        %v3581 = vpop.f32.mrb[0].mxu0
        %v3582 = vadd.f32 %v3500, %v3581
        %v3583 = vpop.f32.mrb[0].mxu0
        %v3584 = vadd.f32 %v3502, %v3583
        %v3585 = vpop.f32.mrb[0].mxu0
        %v3586 = vpop.f32.mrb[0].mxu0
        %3587 = vdwg.mxu0
        %v3588 = vrot.slane %v364, 7
        %v3589 = vrot.slane %v365, 6
        %v3590 = vsel %vm373, %v3589, %v3588
        %v3591 = vrot.slane %v366, 5
        %v3592 = vsel %vm376, %v3591, %v3590
        %v3593 = vrot.slane %v367, 4
        %v3594 = vsel %vm379, %v3593, %v3592
        %v3595 = vrot.slane %v368, 3
        %v3596 = vsel %vm382, %v3595, %v3594
        %v3597 = vrot.slane %v369, 2
        %v3598 = vsel %vm385, %v3597, %v3596
        %v3599 = vrot.slane %v370, 1
        %v3600 = vsel %vm388, %v3599, %v3598
        %v3601 = vsel %vm391, %v371, %v3600
        %v3602 = vpack.c.b16 %v3601, %v3601
        %v3604 = vsel %vm414, %v3602, 0
        %3606 = vmatprep.subr.bf16.mxu0 %v653
        %3607 = vmatpush1.bf16.msra.mxu0 %v652
        %3608 = vmatprep.subr.bf16.mxu0 0
        %3609 = vmatpush1.bf16.msra.mxu0 0
        %3610 = vmatprep.subr.bf16.mxu0 0
        %3611 = vmatpush1.bf16.msra.mxu0 0
        %3612 = vmatprep.subr.bf16.mxu0 0
        %3613 = vmatpush1.bf16.msra.mxu0 0
        %3614 = vmatprep.subr.bf16.mxu0 0
        %3615 = vmatpush1.bf16.msra.mxu0 0
        %3616 = vmatprep.subr.bf16.mxu0 0
        %3617 = vmatpush1.bf16.msra.mxu0 0
        %3618 = vmatprep.subr.bf16.mxu0 0
        %3619 = vmatpush1.bf16.msra.mxu0 0
        %3620 = vmatprep.subr.bf16.mxu0 0
        %3621 = vmatpush1.bf16.msra.mxu0 0
        %3622 = vmatprep.subr.bf16.mxu0 0
        %3623 = vmatpush1.bf16.msra.mxu0 0
        %3624 = vmatprep.subr.bf16.mxu0 0
        %3625 = vmatpush1.bf16.msra.mxu0 0
        %3626 = vmatprep.subr.bf16.mxu0 0
        %3627 = vmatpush1.bf16.msra.mxu0 0
        %3628 = vmatprep.subr.bf16.mxu0 0
        %3629 = vmatpush1.bf16.msra.mxu0 0
        %3630 = vmatprep.subr.bf16.mxu0 0
        %3631 = vmatpush1.bf16.msra.mxu0 0
        %3632 = vmatprep.subr.bf16.mxu0 0
        %3633 = vmatpush1.bf16.msra.mxu0 0
        %3634 = vmatprep.subr.bf16.mxu0 0
        %3635 = vmatpush1.bf16.msra.mxu0 0
        %3636 = vmatprep.subr.bf16.mxu0 0
        %3637 = vmatpush1.bf16.msra.mxu0 0
        %3638 = vmatprep.mubr.bf16.mxu0 0
        %3639 = vmatmul.mubr.bf16.gmra.mrb[0].mxu0 %v3604
        %v3640 = vpop.f32.mrb[0].mxu0
        %v3641 = vadd.f32 0.0, %v3640
        %v3642 = vpop.f32.mrb[0].mxu0
        %v3643 = vadd.f32 0.0, %v3642
        %v3644 = vpop.f32.mrb[0].mxu0
        %v3645 = vpop.f32.mrb[0].mxu0
        %3646 = vdwg.mxu0
        %3647 = vmatprep.subr.bf16.mxu0 %v655
        %3648 = vmatpush1.bf16.msra.mxu0 %v654
        %3649 = vmatprep.subr.bf16.mxu0 0
        %3650 = vmatpush1.bf16.msra.mxu0 0
        %3651 = vmatprep.subr.bf16.mxu0 0
        %3652 = vmatpush1.bf16.msra.mxu0 0
        %3653 = vmatprep.subr.bf16.mxu0 0
        %3654 = vmatpush1.bf16.msra.mxu0 0
        %3655 = vmatprep.subr.bf16.mxu0 0
        %3656 = vmatpush1.bf16.msra.mxu0 0
        %3657 = vmatprep.subr.bf16.mxu0 0
        %3658 = vmatpush1.bf16.msra.mxu0 0
        %3659 = vmatprep.subr.bf16.mxu0 0
        %3660 = vmatpush1.bf16.msra.mxu0 0
        %3661 = vmatprep.subr.bf16.mxu0 0
        %3662 = vmatpush1.bf16.msra.mxu0 0
        %3663 = vmatprep.subr.bf16.mxu0 0
        %3664 = vmatpush1.bf16.msra.mxu0 0
        %3665 = vmatprep.subr.bf16.mxu0 0
        %3666 = vmatpush1.bf16.msra.mxu0 0
        %3667 = vmatprep.subr.bf16.mxu0 0
        %3668 = vmatpush1.bf16.msra.mxu0 0
        %3669 = vmatprep.subr.bf16.mxu0 0
        %3670 = vmatpush1.bf16.msra.mxu0 0
        %3671 = vmatprep.subr.bf16.mxu0 0
        %3672 = vmatpush1.bf16.msra.mxu0 0
        %3673 = vmatprep.subr.bf16.mxu0 0
        %3674 = vmatpush1.bf16.msra.mxu0 0
        %3675 = vmatprep.subr.bf16.mxu0 0
        %3676 = vmatpush1.bf16.msra.mxu0 0
        %3677 = vmatprep.subr.bf16.mxu0 0
        %3678 = vmatpush1.bf16.msra.mxu0 0
        %3679 = vmatprep.mubr.bf16.mxu0 0
        %3680 = vmatmul.mubr.bf16.gmra.mrb[0].mxu0 %v3604
        %v3681 = vpop.f32.mrb[0].mxu0
        %v3682 = vadd.f32 0.0, %v3681
        %v3683 = vpop.f32.mrb[0].mxu0
        %v3684 = vadd.f32 0.0, %v3683
        %v3685 = vpop.f32.mrb[0].mxu0
        %v3686 = vpop.f32.mrb[0].mxu0
        %3687 = vdwg.mxu0
        %v3688 = vadd.f32 %v3541, %v3641
        %v3689 = vadd.f32 %v3543, %v3643
        %v3690 = vadd.f32 %v3582, %v3682
        %v3691 = vadd.f32 %v3584, %v3684
        %v3692 = vadd.f32 %v3688, %v329
        %v3693 = vadd.f32 %v3689, %v333
        %v3694 = vadd.f32 %v3690, %v337
        %v3695 = vadd.f32 %v3691, %v341
        %v3696 = vmax.f32 %v3692, 0.0
        %v3697 = vmax.f32 %v3693, 0.0
        %v3698 = vmax.f32 %v3694, 0.0
        %v3699 = vmax.f32 %v3695, 0.0
        %v3700 = vpack.c.bf16 %v3696, %v3696
        %v3701 = vpack.c.bf16 %v3697, %v3697
        %v3702 = vpack.c.bf16 %v3698, %v3698
        %v3703 = vpack.c.bf16 %v3699, %v3699
        %s3704 = scalar_lea.vmem [#allocation6], 1120
        %v3705 = vld [vmem:[%s3704] sm:$0xf]
        %v3706 = vld [vmem:[%s3704 + $0x4] sm:$0xf]
        %v3707 = vld [vmem:[%s3704 + $0x8] sm:$0xf]
        %v3708 = vld [vmem:[%s3704 + $0xc] sm:$0xf]
        %v3709 = vld [vmem:[%s3704 + $0x10] sm:$0xf]
        %v3710 = vld [vmem:[%s3704 + $0x14] sm:$0xf]
        %v3711 = vld [vmem:[%s3704 + $0x18] sm:$0xf]
        %v3712 = vld [vmem:[%s3704 + $0x1c] sm:$0xf]
        %v3713 = vld [vmem:[%s3704 + $0x20] sm:$0xf]
        %v3714 = vld [vmem:[%s3704 + $0x24] sm:$0xf]
        %v3715 = vld [vmem:[%s3704 + $0x28] sm:$0xf]
        %v3716 = vld [vmem:[%s3704 + $0x2c] sm:$0xf]
        %v3717 = vld [vmem:[%s3704 + $0x30] sm:$0xf]
        %v3718 = vld [vmem:[%s3704 + $0x34] sm:$0xf]
        %v3719 = vld [vmem:[%s3704 + $0x38] sm:$0xf]
        %v3720 = vld [vmem:[%s3704 + $0x3c] sm:$0xf]
        %v3721 = vld [vmem:[%s3704 + $0x40] sm:$0xf]
        %v3722 = vld [vmem:[%s3704 + $0x44] sm:$0xf]
        %v3723 = vld [vmem:[%s3704 + $0x48] sm:$0xf]
        %v3724 = vld [vmem:[%s3704 + $0x4c] sm:$0xf]
        %v3725 = vld [vmem:[%s3704 + $0x50] sm:$0xf]
        %v3726 = vld [vmem:[%s3704 + $0x54] sm:$0xf]
        %v3727 = vld [vmem:[%s3704 + $0x58] sm:$0xf]
        %v3728 = vld [vmem:[%s3704 + $0x5c] sm:$0xf]
        %v3729 = vld [vmem:[%s3704 + $0x60] sm:$0xf]
        %v3730 = vld [vmem:[%s3704 + $0x64] sm:$0xf]
        %v3731 = vld [vmem:[%s3704 + $0x68] sm:$0xf]
        %v3732 = vld [vmem:[%s3704 + $0x6c] sm:$0xf]
        %v3733 = vld [vmem:[%s3704 + $0x70] sm:$0xf]
        %v3734 = vld [vmem:[%s3704 + $0x74] sm:$0xf]
        %v3735 = vld [vmem:[%s3704 + $0x78] sm:$0xf]
        %v3736 = vld [vmem:[%s3704 + $0x7c] sm:$0xf]
        %v3737 = vld [vmem:[%s3704 + $0x80] sm:$0xf]
        %v3738 = vld [vmem:[%s3704 + $0x84] sm:$0xf]
        %v3739 = vld [vmem:[%s3704 + $0x88] sm:$0xf]
        %v3740 = vld [vmem:[%s3704 + $0x8c] sm:$0xf]
        %v3741 = vld [vmem:[%s3704 + $0x90] sm:$0xf]
        %v3742 = vld [vmem:[%s3704 + $0x94] sm:$0xf]
        %v3743 = vld [vmem:[%s3704 + $0x98] sm:$0xf]
        %v3744 = vld [vmem:[%s3704 + $0x9c] sm:$0xf]
        %v3745 = vld [vmem:[%s3704 + $0xa0] sm:$0xf]
        %v3746 = vld [vmem:[%s3704 + $0xa4] sm:$0xf]
        %v3747 = vld [vmem:[%s3704 + $0xa8] sm:$0xf]
        %v3748 = vld [vmem:[%s3704 + $0xac] sm:$0xf]
        %v3749 = vld [vmem:[%s3704 + $0xb0] sm:$0xf]
        %v3750 = vld [vmem:[%s3704 + $0xb4] sm:$0xf]
        %v3751 = vld [vmem:[%s3704 + $0xb8] sm:$0xf]
        %v3752 = vld [vmem:[%s3704 + $0xbc] sm:$0xf]
        %v3753 = vld [vmem:[%s3704 + $0xc0] sm:$0xf]
        %v3754 = vld [vmem:[%s3704 + $0xc4] sm:$0xf]
        %v3755 = vld [vmem:[%s3704 + $0xc8] sm:$0xf]
        %v3756 = vld [vmem:[%s3704 + $0xcc] sm:$0xf]
        %v3757 = vld [vmem:[%s3704 + $0xd0] sm:$0xf]
        %v3758 = vld [vmem:[%s3704 + $0xd4] sm:$0xf]
        %v3759 = vld [vmem:[%s3704 + $0xd8] sm:$0xf]
        %v3760 = vld [vmem:[%s3704 + $0xdc] sm:$0xf]
        %v3817 = vunpack.c.l.b16 %v3705
        %v3818 = vunpack.c.l.b16 %v3706
        %v3819 = vunpack.c.l.b16 %v3707
        %v3820 = vunpack.c.l.b16 %v3708
        %v3821 = vunpack.c.l.b16 %v3709
        %v3822 = vunpack.c.l.b16 %v3710
        %v3823 = vunpack.c.l.b16 %v3711
        %v3824 = vunpack.c.l.b16 %v3712
        %v3825 = vunpack.c.l.b16 %v3713
        %v3826 = vunpack.c.l.b16 %v3714
        %v3827 = vunpack.c.l.b16 %v3715
        %v3828 = vunpack.c.l.b16 %v3716
        %v3829 = vunpack.c.l.b16 %v3717
        %v3830 = vunpack.c.l.b16 %v3718
        %v3831 = vunpack.c.l.b16 %v3719
        %v3832 = vunpack.c.l.b16 %v3720
        %v3833 = vunpack.c.l.b16 %v3721
        %v3834 = vunpack.c.l.b16 %v3722
        %v3835 = vunpack.c.l.b16 %v3723
        %v3836 = vunpack.c.l.b16 %v3724
        %v3837 = vunpack.c.l.b16 %v3725
        %v3838 = vunpack.c.l.b16 %v3726
        %v3839 = vunpack.c.l.b16 %v3727
        %v3840 = vunpack.c.l.b16 %v3728
        %v3841 = vunpack.c.l.b16 %v3729
        %v3842 = vunpack.c.l.b16 %v3730
        %v3843 = vunpack.c.l.b16 %v3731
        %v3844 = vunpack.c.l.b16 %v3732
        %v3845 = vunpack.c.l.b16 %v3733
        %v3846 = vunpack.c.l.b16 %v3734
        %v3847 = vunpack.c.l.b16 %v3735
        %v3848 = vunpack.c.l.b16 %v3736
        %v3849 = vunpack.c.l.b16 %v3737
        %v3850 = vunpack.c.l.b16 %v3738
        %v3851 = vunpack.c.l.b16 %v3739
        %v3852 = vunpack.c.l.b16 %v3740
        %v3853 = vunpack.c.l.b16 %v3741
        %v3854 = vunpack.c.l.b16 %v3742
        %v3855 = vunpack.c.l.b16 %v3743
        %v3856 = vunpack.c.l.b16 %v3744
        %v3857 = vunpack.c.l.b16 %v3745
        %v3858 = vunpack.c.l.b16 %v3746
        %v3859 = vunpack.c.l.b16 %v3747
        %v3860 = vunpack.c.l.b16 %v3748
        %v3861 = vunpack.c.l.b16 %v3749
        %v3862 = vunpack.c.l.b16 %v3750
        %v3863 = vunpack.c.l.b16 %v3751
        %v3864 = vunpack.c.l.b16 %v3752
        %v3865 = vunpack.c.l.b16 %v3753
        %v3866 = vunpack.c.l.b16 %v3754
        %v3867 = vunpack.c.l.b16 %v3755
        %v3868 = vunpack.c.l.b16 %v3756
        %v3869 = vunpack.c.l.b16 %v3757
        %v3870 = vunpack.c.l.b16 %v3758
        %v3871 = vunpack.c.l.b16 %v3759
        %v3872 = vunpack.c.l.b16 %v3760
        %v3873 = vpack.c.b16 %v3818, %v3817
        %v3874 = vpack.c.b16 %v3820, %v3819
        %v3875 = vpack.c.b16 %v3822, %v3821
        %v3876 = vpack.c.b16 %v3824, %v3823
        %v3877 = vpack.c.b16 %v3826, %v3825
        %v3878 = vpack.c.b16 %v3828, %v3827
        %v3879 = vpack.c.b16 %v3830, %v3829
        %v3880 = vpack.c.b16 %v3832, %v3831
        %v3881 = vpack.c.b16 %v3834, %v3833
        %v3882 = vpack.c.b16 %v3836, %v3835
        %v3883 = vpack.c.b16 %v3838, %v3837
        %v3884 = vpack.c.b16 %v3840, %v3839
        %v3885 = vpack.c.b16 %v3842, %v3841
        %v3886 = vpack.c.b16 %v3844, %v3843
        %v3887 = vpack.c.b16 %v3846, %v3845
        %v3888 = vpack.c.b16 %v3848, %v3847
        %v3889 = vpack.c.b16 %v3850, %v3849
        %v3890 = vpack.c.b16 %v3852, %v3851
        %v3891 = vpack.c.b16 %v3854, %v3853
        %v3892 = vpack.c.b16 %v3856, %v3855
        %v3893 = vpack.c.b16 %v3858, %v3857
        %v3894 = vpack.c.b16 %v3860, %v3859
        %v3895 = vpack.c.b16 %v3862, %v3861
        %v3896 = vpack.c.b16 %v3864, %v3863
        %v3897 = vpack.c.b16 %v3866, %v3865
        %v3898 = vpack.c.b16 %v3868, %v3867
        %v3899 = vpack.c.b16 %v3870, %v3869
        %v3900 = vpack.c.b16 %v3872, %v3871
        %v3930 = vsel %vm1322, %v3703, 0
        %3932 = vmatprep.subr.bf16.mxu0 0
        %3933 = vmatpush1.bf16.msra.mxu0 %v3873
        %3934 = vmatprep.subr.bf16.mxu0 0
        %3935 = vmatpush1.bf16.msra.mxu0 %v3874
        %3936 = vmatprep.subr.bf16.mxu0 0
        %3937 = vmatpush1.bf16.msra.mxu0 %v3875
        %3938 = vmatprep.subr.bf16.mxu0 0
        %3939 = vmatpush1.bf16.msra.mxu0 %v3876
        %3940 = vmatprep.subr.bf16.mxu0 0
        %3941 = vmatpush1.bf16.msra.mxu0 %v3877
        %3942 = vmatprep.subr.bf16.mxu0 0
        %3943 = vmatpush1.bf16.msra.mxu0 %v3878
        %3944 = vmatprep.subr.bf16.mxu0 0
        %3945 = vmatpush1.bf16.msra.mxu0 %v3879
        %3946 = vmatprep.subr.bf16.mxu0 0
        %3947 = vmatpush1.bf16.msra.mxu0 %v3880
        %3948 = vmatprep.subr.bf16.mxu0 0
        %3949 = vmatpush1.bf16.msra.mxu0 %v3881
        %3950 = vmatprep.subr.bf16.mxu0 0
        %3951 = vmatpush1.bf16.msra.mxu0 %v3882
        %3952 = vmatprep.subr.bf16.mxu0 0
        %3953 = vmatpush1.bf16.msra.mxu0 %v3883
        %3954 = vmatprep.subr.bf16.mxu0 0
        %3955 = vmatpush1.bf16.msra.mxu0 %v3884
        %3956 = vmatprep.subr.bf16.mxu0 0
        %3957 = vmatpush1.bf16.msra.mxu0 %v3885
        %3958 = vmatprep.subr.bf16.mxu0 0
        %3959 = vmatpush1.bf16.msra.mxu0 %v3886
        %3960 = vmatprep.subr.bf16.mxu0 0
        %3961 = vmatpush1.bf16.msra.mxu0 %v3887
        %3962 = vmatprep.subr.bf16.mxu0 0
        %3963 = vmatpush1.bf16.msra.mxu0 %v3888
        %3964 = vmatprep.mubr.bf16.mxu0 %v3701
        %3965 = vmatmul.mubr.bf16.gmra.mrb[0].mxu0 %v3700
        %v3966 = vpop.f32.mrb[0].mxu0
        %v3967 = vadd.f32 0.0, %v3966
        %v3968 = vpop.f32.mrb[0].mxu0
        %v3969 = vpop.f32.mrb[0].mxu0
        %v3970 = vpop.f32.mrb[0].mxu0
        %3971 = vdwg.mxu0
        %3972 = vmatprep.subr.bf16.mxu0 0
        %3973 = vmatpush1.bf16.msra.mxu0 %v3889
        %3974 = vmatprep.subr.bf16.mxu0 0
        %3975 = vmatpush1.bf16.msra.mxu0 %v3890
        %3976 = vmatprep.subr.bf16.mxu0 0
        %3977 = vmatpush1.bf16.msra.mxu0 %v3891
        %3978 = vmatprep.subr.bf16.mxu0 0
        %3979 = vmatpush1.bf16.msra.mxu0 %v3892
        %3980 = vmatprep.subr.bf16.mxu0 0
        %3981 = vmatpush1.bf16.msra.mxu0 %v3893
        %3982 = vmatprep.subr.bf16.mxu0 0
        %3983 = vmatpush1.bf16.msra.mxu0 %v3894
        %3984 = vmatprep.subr.bf16.mxu0 0
        %3985 = vmatpush1.bf16.msra.mxu0 %v3895
        %3986 = vmatprep.subr.bf16.mxu0 0
        %3987 = vmatpush1.bf16.msra.mxu0 %v3896
        %3988 = vmatprep.subr.bf16.mxu0 0
        %3989 = vmatpush1.bf16.msra.mxu0 %v3897
        %3990 = vmatprep.subr.bf16.mxu0 0
        %3991 = vmatpush1.bf16.msra.mxu0 %v3898
        %3992 = vmatprep.subr.bf16.mxu0 0
        %3993 = vmatpush1.bf16.msra.mxu0 %v3899
        %3994 = vmatprep.subr.bf16.mxu0 0
        %3995 = vmatpush1.bf16.msra.mxu0 %v3900
        %3996 = vmatprep.subr.bf16.mxu0 0
        %3997 = vmatpush1.bf16.msra.mxu0 0
        %3998 = vmatprep.subr.bf16.mxu0 0
        %3999 = vmatpush1.bf16.msra.mxu0 0
        %4000 = vmatprep.subr.bf16.mxu0 0
        %4001 = vmatpush1.bf16.msra.mxu0 0
        %4002 = vmatprep.subr.bf16.mxu0 0
        %4003 = vmatpush1.bf16.msra.mxu0 0
        %4004 = vmatprep.mubr.bf16.mxu0 %v3930
        %4005 = vmatmul.mubr.bf16.gmra.mrb[0].mxu0 %v3702
        %v4006 = vpop.f32.mrb[0].mxu0
        %v4007 = vadd.f32 %v3967, %v4006
        %v4008 = vpop.f32.mrb[0].mxu0
        %v4009 = vpop.f32.mrb[0].mxu0
        %v4010 = vpop.f32.mrb[0].mxu0
        %4011 = vdwg.mxu0
        %v4012 = vadd.f32 %v3423, %v4007
        %4013 = vmatprep.subr.bf16.mxu0 %v407
        %4014 = vmatpush1.bf16.msra.mxu0 %v406
        %4015 = vmatprep.subr.bf16.mxu0 0
        %4016 = vmatpush1.bf16.msra.mxu0 0
        %4017 = vmatprep.subr.bf16.mxu0 0
        %4018 = vmatpush1.bf16.msra.mxu0 0
        %4019 = vmatprep.subr.bf16.mxu0 0
        %4020 = vmatpush1.bf16.msra.mxu0 0
        %4021 = vmatprep.subr.bf16.mxu0 0
        %4022 = vmatpush1.bf16.msra.mxu0 0
        %4023 = vmatprep.subr.bf16.mxu0 0
        %4024 = vmatpush1.bf16.msra.mxu0 0
        %4025 = vmatprep.subr.bf16.mxu0 0
        %4026 = vmatpush1.bf16.msra.mxu0 0
        %4027 = vmatprep.subr.bf16.mxu0 0
        %4028 = vmatpush1.bf16.msra.mxu0 0
        %4029 = vmatprep.subr.bf16.mxu0 0
        %4030 = vmatpush1.bf16.msra.mxu0 0
        %4031 = vmatprep.subr.bf16.mxu0 0
        %4032 = vmatpush1.bf16.msra.mxu0 0
        %4033 = vmatprep.subr.bf16.mxu0 0
        %4034 = vmatpush1.bf16.msra.mxu0 0
        %4035 = vmatprep.subr.bf16.mxu0 0
        %4036 = vmatpush1.bf16.msra.mxu0 0
        %4037 = vmatprep.subr.bf16.mxu0 0
        %4038 = vmatpush1.bf16.msra.mxu0 0
        %4039 = vmatprep.subr.bf16.mxu0 0
        %4040 = vmatpush1.bf16.msra.mxu0 0
        %4041 = vmatprep.subr.bf16.mxu0 0
        %4042 = vmatpush1.bf16.msra.mxu0 0
        %4043 = vmatprep.subr.bf16.mxu0 0
        %4044 = vmatpush1.bf16.msra.mxu0 0
        %4045 = vmatprep.mubr.bf16.mxu0 0
        %4046 = vmatmul.mubr.bf16.gmra.mrb[0].mxu0 %v3604
        %v4047 = vpop.f32.mrb[0].mxu0
        %v4048 = vadd.f32 0.0, %v4047
        %v4049 = vpop.f32.mrb[0].mxu0
        %v4050 = vadd.f32 0.0, %v4049
        %v4051 = vpop.f32.mrb[0].mxu0
        %v4052 = vpop.f32.mrb[0].mxu0
        %4053 = vdwg.mxu0
        %4054 = vmatprep.subr.bf16.mxu0 %v409
        %4055 = vmatpush1.bf16.msra.mxu0 %v408
        %4056 = vmatprep.subr.bf16.mxu0 0
        %4057 = vmatpush1.bf16.msra.mxu0 0
        %4058 = vmatprep.subr.bf16.mxu0 0
        %4059 = vmatpush1.bf16.msra.mxu0 0
        %4060 = vmatprep.subr.bf16.mxu0 0
        %4061 = vmatpush1.bf16.msra.mxu0 0
        %4062 = vmatprep.subr.bf16.mxu0 0
        %4063 = vmatpush1.bf16.msra.mxu0 0
        %4064 = vmatprep.subr.bf16.mxu0 0
        %4065 = vmatpush1.bf16.msra.mxu0 0
        %4066 = vmatprep.subr.bf16.mxu0 0
        %4067 = vmatpush1.bf16.msra.mxu0 0
        %4068 = vmatprep.subr.bf16.mxu0 0
        %4069 = vmatpush1.bf16.msra.mxu0 0
        %4070 = vmatprep.subr.bf16.mxu0 0
        %4071 = vmatpush1.bf16.msra.mxu0 0
        %4072 = vmatprep.subr.bf16.mxu0 0
        %4073 = vmatpush1.bf16.msra.mxu0 0
        %4074 = vmatprep.subr.bf16.mxu0 0
        %4075 = vmatpush1.bf16.msra.mxu0 0
        %4076 = vmatprep.subr.bf16.mxu0 0
        %4077 = vmatpush1.bf16.msra.mxu0 0
        %4078 = vmatprep.subr.bf16.mxu0 0
        %4079 = vmatpush1.bf16.msra.mxu0 0
        %4080 = vmatprep.subr.bf16.mxu0 0
        %4081 = vmatpush1.bf16.msra.mxu0 0
        %4082 = vmatprep.subr.bf16.mxu0 0
        %4083 = vmatpush1.bf16.msra.mxu0 0
        %4084 = vmatprep.subr.bf16.mxu0 0
        %4085 = vmatpush1.bf16.msra.mxu0 0
        %4086 = vmatprep.mubr.bf16.mxu0 0
        %4087 = vmatmul.mubr.bf16.gmra.mrb[0].mxu0 %v3604
        %v4088 = vpop.f32.mrb[0].mxu0
        %v4089 = vadd.f32 0.0, %v4088
        %v4090 = vpop.f32.mrb[0].mxu0
        %v4091 = vadd.f32 0.0, %v4090
        %v4092 = vpop.f32.mrb[0].mxu0
        %v4093 = vpop.f32.mrb[0].mxu0
        %4094 = vdwg.mxu0
        %4095 = vmatprep.subr.bf16.mxu0 %v528
        %4096 = vmatpush1.bf16.msra.mxu0 %v527
        %4097 = vmatprep.subr.bf16.mxu0 0
        %4098 = vmatpush1.bf16.msra.mxu0 0
        %4099 = vmatprep.subr.bf16.mxu0 0
        %4100 = vmatpush1.bf16.msra.mxu0 0
        %4101 = vmatprep.subr.bf16.mxu0 0
        %4102 = vmatpush1.bf16.msra.mxu0 0
        %4103 = vmatprep.subr.bf16.mxu0 0
        %4104 = vmatpush1.bf16.msra.mxu0 0
        %4105 = vmatprep.subr.bf16.mxu0 0
        %4106 = vmatpush1.bf16.msra.mxu0 0
        %4107 = vmatprep.subr.bf16.mxu0 0
        %4108 = vmatpush1.bf16.msra.mxu0 0
        %4109 = vmatprep.subr.bf16.mxu0 0
        %4110 = vmatpush1.bf16.msra.mxu0 0
        %4111 = vmatprep.subr.bf16.mxu0 0
        %4112 = vmatpush1.bf16.msra.mxu0 0
        %4113 = vmatprep.subr.bf16.mxu0 0
        %4114 = vmatpush1.bf16.msra.mxu0 0
        %4115 = vmatprep.subr.bf16.mxu0 0
        %4116 = vmatpush1.bf16.msra.mxu0 0
        %4117 = vmatprep.subr.bf16.mxu0 0
        %4118 = vmatpush1.bf16.msra.mxu0 0
        %4119 = vmatprep.subr.bf16.mxu0 0
        %4120 = vmatpush1.bf16.msra.mxu0 0
        %4121 = vmatprep.subr.bf16.mxu0 0
        %4122 = vmatpush1.bf16.msra.mxu0 0
        %4123 = vmatprep.subr.bf16.mxu0 0
        %4124 = vmatpush1.bf16.msra.mxu0 0
        %4125 = vmatprep.subr.bf16.mxu0 0
        %4126 = vmatpush1.bf16.msra.mxu0 0
        %4127 = vmatprep.mubr.bf16.mxu0 0
        %4128 = vmatmul.mubr.bf16.gmra.mrb[0].mxu0 %v3015
        %v4129 = vpop.f32.mrb[0].mxu0
        %v4130 = vadd.f32 %v4048, %v4129
        %v4131 = vpop.f32.mrb[0].mxu0
        %v4132 = vadd.f32 %v4050, %v4131
        %v4133 = vpop.f32.mrb[0].mxu0
        %v4134 = vpop.f32.mrb[0].mxu0
        %4135 = vdwg.mxu0
        %4136 = vmatprep.subr.bf16.mxu0 %v530
        %4137 = vmatpush1.bf16.msra.mxu0 %v529
        %4138 = vmatprep.subr.bf16.mxu0 0
        %4139 = vmatpush1.bf16.msra.mxu0 0
        %4140 = vmatprep.subr.bf16.mxu0 0
        %4141 = vmatpush1.bf16.msra.mxu0 0
        %4142 = vmatprep.subr.bf16.mxu0 0
        %4143 = vmatpush1.bf16.msra.mxu0 0
        %4144 = vmatprep.subr.bf16.mxu0 0
        %4145 = vmatpush1.bf16.msra.mxu0 0
        %4146 = vmatprep.subr.bf16.mxu0 0
        %4147 = vmatpush1.bf16.msra.mxu0 0
        %4148 = vmatprep.subr.bf16.mxu0 0
        %4149 = vmatpush1.bf16.msra.mxu0 0
        %4150 = vmatprep.subr.bf16.mxu0 0
        %4151 = vmatpush1.bf16.msra.mxu0 0
        %4152 = vmatprep.subr.bf16.mxu0 0
        %4153 = vmatpush1.bf16.msra.mxu0 0
        %4154 = vmatprep.subr.bf16.mxu0 0
        %4155 = vmatpush1.bf16.msra.mxu0 0
        %4156 = vmatprep.subr.bf16.mxu0 0
        %4157 = vmatpush1.bf16.msra.mxu0 0
        %4158 = vmatprep.subr.bf16.mxu0 0
        %4159 = vmatpush1.bf16.msra.mxu0 0
        %4160 = vmatprep.subr.bf16.mxu0 0
        %4161 = vmatpush1.bf16.msra.mxu0 0
        %4162 = vmatprep.subr.bf16.mxu0 0
        %4163 = vmatpush1.bf16.msra.mxu0 0
        %4164 = vmatprep.subr.bf16.mxu0 0
        %4165 = vmatpush1.bf16.msra.mxu0 0
        %4166 = vmatprep.subr.bf16.mxu0 0
        %4167 = vmatpush1.bf16.msra.mxu0 0
        %4168 = vmatprep.mubr.bf16.mxu0 0
        %4169 = vmatmul.mubr.bf16.gmra.mrb[0].mxu0 %v3015
        %v4170 = vpop.f32.mrb[0].mxu0
        %v4171 = vadd.f32 %v4089, %v4170
        %v4172 = vpop.f32.mrb[0].mxu0
        %v4173 = vadd.f32 %v4091, %v4172
        %v4174 = vpop.f32.mrb[0].mxu0
        %v4175 = vpop.f32.mrb[0].mxu0
        %4176 = vdwg.mxu0
        %v4177 = vunpack.c.h.b16 %v316
        %v4178 = vunpack.c.h.b16 %v317
        %v4179 = vunpack.c.h.b16 %v318
        %v4180 = vunpack.c.h.b16 %v319
        %v4181 = vunpack.c.h.b16 %v320
        %v4182 = vunpack.c.h.b16 %v321
        %v4183 = vunpack.c.h.b16 %v322
        %v4184 = vunpack.c.h.b16 %v323
        %v4185 = vrot.slane %v4178, 7
        %v4186 = vsel %vm373, %v4185, %v4177
        %v4187 = vrot.slane %v4179, 6
        %v4188 = vsel %vm376, %v4187, %v4186
        %v4189 = vrot.slane %v4180, 5
        %v4190 = vsel %vm379, %v4189, %v4188
        %v4191 = vrot.slane %v4181, 4
        %v4192 = vsel %vm382, %v4191, %v4190
        %v4193 = vrot.slane %v4182, 3
        %v4194 = vsel %vm385, %v4193, %v4192
        %v4195 = vrot.slane %v4183, 2
        %v4196 = vsel %vm388, %v4195, %v4194
        %v4197 = vrot.slane %v4184, 1
        %v4198 = vsel %vm391, %v4197, %v4196
        %v4199 = vpack.c.b16 %v4198, %v4198
        %v4201 = vsel %vm414, %v4199, 0
        %4203 = vmatprep.subr.bf16.mxu0 %v653
        %4204 = vmatpush1.bf16.msra.mxu0 %v652
        %4205 = vmatprep.subr.bf16.mxu0 0
        %4206 = vmatpush1.bf16.msra.mxu0 0
        %4207 = vmatprep.subr.bf16.mxu0 0
        %4208 = vmatpush1.bf16.msra.mxu0 0
        %4209 = vmatprep.subr.bf16.mxu0 0
        %4210 = vmatpush1.bf16.msra.mxu0 0
        %4211 = vmatprep.subr.bf16.mxu0 0
        %4212 = vmatpush1.bf16.msra.mxu0 0
        %4213 = vmatprep.subr.bf16.mxu0 0
        %4214 = vmatpush1.bf16.msra.mxu0 0
        %4215 = vmatprep.subr.bf16.mxu0 0
        %4216 = vmatpush1.bf16.msra.mxu0 0
        %4217 = vmatprep.subr.bf16.mxu0 0
        %4218 = vmatpush1.bf16.msra.mxu0 0
        %4219 = vmatprep.subr.bf16.mxu0 0
        %4220 = vmatpush1.bf16.msra.mxu0 0
        %4221 = vmatprep.subr.bf16.mxu0 0
        %4222 = vmatpush1.bf16.msra.mxu0 0
        %4223 = vmatprep.subr.bf16.mxu0 0
        %4224 = vmatpush1.bf16.msra.mxu0 0
        %4225 = vmatprep.subr.bf16.mxu0 0
        %4226 = vmatpush1.bf16.msra.mxu0 0
        %4227 = vmatprep.subr.bf16.mxu0 0
        %4228 = vmatpush1.bf16.msra.mxu0 0
        %4229 = vmatprep.subr.bf16.mxu0 0
        %4230 = vmatpush1.bf16.msra.mxu0 0
        %4231 = vmatprep.subr.bf16.mxu0 0
        %4232 = vmatpush1.bf16.msra.mxu0 0
        %4233 = vmatprep.subr.bf16.mxu0 0
        %4234 = vmatpush1.bf16.msra.mxu0 0
        %4235 = vmatprep.mubr.bf16.mxu0 0
        %4236 = vmatmul.mubr.bf16.gmra.mrb[0].mxu0 %v4201
        %v4237 = vpop.f32.mrb[0].mxu0
        %v4238 = vadd.f32 0.0, %v4237
        %v4239 = vpop.f32.mrb[0].mxu0
        %v4240 = vadd.f32 0.0, %v4239
        %v4241 = vpop.f32.mrb[0].mxu0
        %v4242 = vpop.f32.mrb[0].mxu0
        %4243 = vdwg.mxu0
        %4244 = vmatprep.subr.bf16.mxu0 %v655
        %4245 = vmatpush1.bf16.msra.mxu0 %v654
        %4246 = vmatprep.subr.bf16.mxu0 0
        %4247 = vmatpush1.bf16.msra.mxu0 0
        %4248 = vmatprep.subr.bf16.mxu0 0
        %4249 = vmatpush1.bf16.msra.mxu0 0
        %4250 = vmatprep.subr.bf16.mxu0 0
        %4251 = vmatpush1.bf16.msra.mxu0 0
        %4252 = vmatprep.subr.bf16.mxu0 0
        %4253 = vmatpush1.bf16.msra.mxu0 0
        %4254 = vmatprep.subr.bf16.mxu0 0
        %4255 = vmatpush1.bf16.msra.mxu0 0
        %4256 = vmatprep.subr.bf16.mxu0 0
        %4257 = vmatpush1.bf16.msra.mxu0 0
        %4258 = vmatprep.subr.bf16.mxu0 0
        %4259 = vmatpush1.bf16.msra.mxu0 0
        %4260 = vmatprep.subr.bf16.mxu0 0
        %4261 = vmatpush1.bf16.msra.mxu0 0
        %4262 = vmatprep.subr.bf16.mxu0 0
        %4263 = vmatpush1.bf16.msra.mxu0 0
        %4264 = vmatprep.subr.bf16.mxu0 0
        %4265 = vmatpush1.bf16.msra.mxu0 0
        %4266 = vmatprep.subr.bf16.mxu0 0
        %4267 = vmatpush1.bf16.msra.mxu0 0
        %4268 = vmatprep.subr.bf16.mxu0 0
        %4269 = vmatpush1.bf16.msra.mxu0 0
        %4270 = vmatprep.subr.bf16.mxu0 0
        %4271 = vmatpush1.bf16.msra.mxu0 0
        %4272 = vmatprep.subr.bf16.mxu0 0
        %4273 = vmatpush1.bf16.msra.mxu0 0
        %4274 = vmatprep.subr.bf16.mxu0 0
        %4275 = vmatpush1.bf16.msra.mxu0 0
        %4276 = vmatprep.mubr.bf16.mxu0 0
        %4277 = vmatmul.mubr.bf16.gmra.mrb[0].mxu0 %v4201
        %v4278 = vpop.f32.mrb[0].mxu0
        %v4279 = vadd.f32 0.0, %v4278
        %v4280 = vpop.f32.mrb[0].mxu0
        %v4281 = vadd.f32 0.0, %v4280
        %v4282 = vpop.f32.mrb[0].mxu0
        %v4283 = vpop.f32.mrb[0].mxu0
        %4284 = vdwg.mxu0
        %v4285 = vadd.f32 %v4130, %v4238
        %v4286 = vadd.f32 %v4132, %v4240
        %v4287 = vadd.f32 %v4171, %v4279
        %v4288 = vadd.f32 %v4173, %v4281
        %v4289 = vadd.f32 %v4285, %v329
        %v4290 = vadd.f32 %v4286, %v333
        %v4291 = vadd.f32 %v4287, %v337
        %v4292 = vadd.f32 %v4288, %v341
        %v4293 = vmax.f32 %v4289, 0.0
        %v4294 = vmax.f32 %v4290, 0.0
        %v4295 = vmax.f32 %v4291, 0.0
        %v4296 = vmax.f32 %v4292, 0.0
        %v4297 = vpack.c.bf16 %v4293, %v4293
        %v4298 = vpack.c.bf16 %v4294, %v4294
        %v4299 = vpack.c.bf16 %v4295, %v4295
        %v4300 = vpack.c.bf16 %v4296, %v4296
        %s4301 = scalar_lea.vmem [#allocation6], 1344
        %v4302 = vld [vmem:[%s4301] sm:$0xf]
        %v4303 = vld [vmem:[%s4301 + $0x4] sm:$0xf]
        %v4304 = vld [vmem:[%s4301 + $0x8] sm:$0xf]
        %v4305 = vld [vmem:[%s4301 + $0xc] sm:$0xf]
        %v4306 = vld [vmem:[%s4301 + $0x10] sm:$0xf]
        %v4307 = vld [vmem:[%s4301 + $0x14] sm:$0xf]
        %v4308 = vld [vmem:[%s4301 + $0x18] sm:$0xf]
        %v4309 = vld [vmem:[%s4301 + $0x1c] sm:$0xf]
        %v4310 = vld [vmem:[%s4301 + $0x20] sm:$0xf]
        %v4311 = vld [vmem:[%s4301 + $0x24] sm:$0xf]
        %v4312 = vld [vmem:[%s4301 + $0x28] sm:$0xf]
        %v4313 = vld [vmem:[%s4301 + $0x2c] sm:$0xf]
        %v4314 = vld [vmem:[%s4301 + $0x30] sm:$0xf]
        %v4315 = vld [vmem:[%s4301 + $0x34] sm:$0xf]
        %v4316 = vld [vmem:[%s4301 + $0x38] sm:$0xf]
        %v4317 = vld [vmem:[%s4301 + $0x3c] sm:$0xf]
        %v4318 = vld [vmem:[%s4301 + $0x40] sm:$0xf]
        %v4319 = vld [vmem:[%s4301 + $0x44] sm:$0xf]
        %v4320 = vld [vmem:[%s4301 + $0x48] sm:$0xf]
        %v4321 = vld [vmem:[%s4301 + $0x4c] sm:$0xf]
        %v4322 = vld [vmem:[%s4301 + $0x50] sm:$0xf]
        %v4323 = vld [vmem:[%s4301 + $0x54] sm:$0xf]
        %v4324 = vld [vmem:[%s4301 + $0x58] sm:$0xf]
        %v4325 = vld [vmem:[%s4301 + $0x5c] sm:$0xf]
        %v4326 = vld [vmem:[%s4301 + $0x60] sm:$0xf]
        %v4327 = vld [vmem:[%s4301 + $0x64] sm:$0xf]
        %v4328 = vld [vmem:[%s4301 + $0x68] sm:$0xf]
        %v4329 = vld [vmem:[%s4301 + $0x6c] sm:$0xf]
        %v4330 = vld [vmem:[%s4301 + $0x70] sm:$0xf]
        %v4331 = vld [vmem:[%s4301 + $0x74] sm:$0xf]
        %v4332 = vld [vmem:[%s4301 + $0x78] sm:$0xf]
        %v4333 = vld [vmem:[%s4301 + $0x7c] sm:$0xf]
        %v4334 = vld [vmem:[%s4301 + $0x80] sm:$0xf]
        %v4335 = vld [vmem:[%s4301 + $0x84] sm:$0xf]
        %v4336 = vld [vmem:[%s4301 + $0x88] sm:$0xf]
        %v4337 = vld [vmem:[%s4301 + $0x8c] sm:$0xf]
        %v4338 = vld [vmem:[%s4301 + $0x90] sm:$0xf]
        %v4339 = vld [vmem:[%s4301 + $0x94] sm:$0xf]
        %v4340 = vld [vmem:[%s4301 + $0x98] sm:$0xf]
        %v4341 = vld [vmem:[%s4301 + $0x9c] sm:$0xf]
        %v4342 = vld [vmem:[%s4301 + $0xa0] sm:$0xf]
        %v4343 = vld [vmem:[%s4301 + $0xa4] sm:$0xf]
        %v4344 = vld [vmem:[%s4301 + $0xa8] sm:$0xf]
        %v4345 = vld [vmem:[%s4301 + $0xac] sm:$0xf]
        %v4346 = vld [vmem:[%s4301 + $0xb0] sm:$0xf]
        %v4347 = vld [vmem:[%s4301 + $0xb4] sm:$0xf]
        %v4348 = vld [vmem:[%s4301 + $0xb8] sm:$0xf]
        %v4349 = vld [vmem:[%s4301 + $0xbc] sm:$0xf]
        %v4350 = vld [vmem:[%s4301 + $0xc0] sm:$0xf]
        %v4351 = vld [vmem:[%s4301 + $0xc4] sm:$0xf]
        %v4352 = vld [vmem:[%s4301 + $0xc8] sm:$0xf]
        %v4353 = vld [vmem:[%s4301 + $0xcc] sm:$0xf]
        %v4354 = vld [vmem:[%s4301 + $0xd0] sm:$0xf]
        %v4355 = vld [vmem:[%s4301 + $0xd4] sm:$0xf]
        %v4356 = vld [vmem:[%s4301 + $0xd8] sm:$0xf]
        %v4357 = vld [vmem:[%s4301 + $0xdc] sm:$0xf]
        %v4414 = vunpack.c.l.b16 %v4302
        %v4415 = vunpack.c.l.b16 %v4303
        %v4416 = vunpack.c.l.b16 %v4304
        %v4417 = vunpack.c.l.b16 %v4305
        %v4418 = vunpack.c.l.b16 %v4306
        %v4419 = vunpack.c.l.b16 %v4307
        %v4420 = vunpack.c.l.b16 %v4308
        %v4421 = vunpack.c.l.b16 %v4309
        %v4422 = vunpack.c.l.b16 %v4310
        %v4423 = vunpack.c.l.b16 %v4311
        %v4424 = vunpack.c.l.b16 %v4312
        %v4425 = vunpack.c.l.b16 %v4313
        %v4426 = vunpack.c.l.b16 %v4314
        %v4427 = vunpack.c.l.b16 %v4315
        %v4428 = vunpack.c.l.b16 %v4316
        %v4429 = vunpack.c.l.b16 %v4317
        %v4430 = vunpack.c.l.b16 %v4318
        %v4431 = vunpack.c.l.b16 %v4319
        %v4432 = vunpack.c.l.b16 %v4320
        %v4433 = vunpack.c.l.b16 %v4321
        %v4434 = vunpack.c.l.b16 %v4322
        %v4435 = vunpack.c.l.b16 %v4323
        %v4436 = vunpack.c.l.b16 %v4324
        %v4437 = vunpack.c.l.b16 %v4325
        %v4438 = vunpack.c.l.b16 %v4326
        %v4439 = vunpack.c.l.b16 %v4327
        %v4440 = vunpack.c.l.b16 %v4328
        %v4441 = vunpack.c.l.b16 %v4329
        %v4442 = vunpack.c.l.b16 %v4330
        %v4443 = vunpack.c.l.b16 %v4331
        %v4444 = vunpack.c.l.b16 %v4332
        %v4445 = vunpack.c.l.b16 %v4333
        %v4446 = vunpack.c.l.b16 %v4334
        %v4447 = vunpack.c.l.b16 %v4335
        %v4448 = vunpack.c.l.b16 %v4336
        %v4449 = vunpack.c.l.b16 %v4337
        %v4450 = vunpack.c.l.b16 %v4338
        %v4451 = vunpack.c.l.b16 %v4339
        %v4452 = vunpack.c.l.b16 %v4340
        %v4453 = vunpack.c.l.b16 %v4341
        %v4454 = vunpack.c.l.b16 %v4342
        %v4455 = vunpack.c.l.b16 %v4343
        %v4456 = vunpack.c.l.b16 %v4344
        %v4457 = vunpack.c.l.b16 %v4345
        %v4458 = vunpack.c.l.b16 %v4346
        %v4459 = vunpack.c.l.b16 %v4347
        %v4460 = vunpack.c.l.b16 %v4348
        %v4461 = vunpack.c.l.b16 %v4349
        %v4462 = vunpack.c.l.b16 %v4350
        %v4463 = vunpack.c.l.b16 %v4351
        %v4464 = vunpack.c.l.b16 %v4352
        %v4465 = vunpack.c.l.b16 %v4353
        %v4466 = vunpack.c.l.b16 %v4354
        %v4467 = vunpack.c.l.b16 %v4355
        %v4468 = vunpack.c.l.b16 %v4356
        %v4469 = vunpack.c.l.b16 %v4357
        %v4470 = vpack.c.b16 %v4415, %v4414
        %v4471 = vpack.c.b16 %v4417, %v4416
        %v4472 = vpack.c.b16 %v4419, %v4418
        %v4473 = vpack.c.b16 %v4421, %v4420
        %v4474 = vpack.c.b16 %v4423, %v4422
        %v4475 = vpack.c.b16 %v4425, %v4424
        %v4476 = vpack.c.b16 %v4427, %v4426
        %v4477 = vpack.c.b16 %v4429, %v4428
        %v4478 = vpack.c.b16 %v4431, %v4430
        %v4479 = vpack.c.b16 %v4433, %v4432
        %v4480 = vpack.c.b16 %v4435, %v4434
        %v4481 = vpack.c.b16 %v4437, %v4436
        %v4482 = vpack.c.b16 %v4439, %v4438
        %v4483 = vpack.c.b16 %v4441, %v4440
        %v4484 = vpack.c.b16 %v4443, %v4442
        %v4485 = vpack.c.b16 %v4445, %v4444
        %v4486 = vpack.c.b16 %v4447, %v4446
        %v4487 = vpack.c.b16 %v4449, %v4448
        %v4488 = vpack.c.b16 %v4451, %v4450
        %v4489 = vpack.c.b16 %v4453, %v4452
        %v4490 = vpack.c.b16 %v4455, %v4454
        %v4491 = vpack.c.b16 %v4457, %v4456
        %v4492 = vpack.c.b16 %v4459, %v4458
        %v4493 = vpack.c.b16 %v4461, %v4460
        %v4494 = vpack.c.b16 %v4463, %v4462
        %v4495 = vpack.c.b16 %v4465, %v4464
        %v4496 = vpack.c.b16 %v4467, %v4466
        %v4497 = vpack.c.b16 %v4469, %v4468
        %v4527 = vsel %vm1322, %v4300, 0
        %4529 = vmatprep.subr.bf16.mxu0 0
        %4530 = vmatpush1.bf16.msra.mxu0 %v4470
        %4531 = vmatprep.subr.bf16.mxu0 0
        %4532 = vmatpush1.bf16.msra.mxu0 %v4471
        %4533 = vmatprep.subr.bf16.mxu0 0
        %4534 = vmatpush1.bf16.msra.mxu0 %v4472
        %4535 = vmatprep.subr.bf16.mxu0 0
        %4536 = vmatpush1.bf16.msra.mxu0 %v4473
        %4537 = vmatprep.subr.bf16.mxu0 0
        %4538 = vmatpush1.bf16.msra.mxu0 %v4474
        %4539 = vmatprep.subr.bf16.mxu0 0
        %4540 = vmatpush1.bf16.msra.mxu0 %v4475
        %4541 = vmatprep.subr.bf16.mxu0 0
        %4542 = vmatpush1.bf16.msra.mxu0 %v4476
        %4543 = vmatprep.subr.bf16.mxu0 0
        %4544 = vmatpush1.bf16.msra.mxu0 %v4477
        %4545 = vmatprep.subr.bf16.mxu0 0
        %4546 = vmatpush1.bf16.msra.mxu0 %v4478
        %4547 = vmatprep.subr.bf16.mxu0 0
        %4548 = vmatpush1.bf16.msra.mxu0 %v4479
        %4549 = vmatprep.subr.bf16.mxu0 0
        %4550 = vmatpush1.bf16.msra.mxu0 %v4480
        %4551 = vmatprep.subr.bf16.mxu0 0
        %4552 = vmatpush1.bf16.msra.mxu0 %v4481
        %4553 = vmatprep.subr.bf16.mxu0 0
        %4554 = vmatpush1.bf16.msra.mxu0 %v4482
        %4555 = vmatprep.subr.bf16.mxu0 0
        %4556 = vmatpush1.bf16.msra.mxu0 %v4483
        %4557 = vmatprep.subr.bf16.mxu0 0
        %4558 = vmatpush1.bf16.msra.mxu0 %v4484
        %4559 = vmatprep.subr.bf16.mxu0 0
        %4560 = vmatpush1.bf16.msra.mxu0 %v4485
        %4561 = vmatprep.mubr.bf16.mxu0 %v4298
        %4562 = vmatmul.mubr.bf16.gmra.mrb[0].mxu0 %v4297
        %v4563 = vpop.f32.mrb[0].mxu0
        %v4564 = vadd.f32 0.0, %v4563
        %v4565 = vpop.f32.mrb[0].mxu0
        %v4566 = vpop.f32.mrb[0].mxu0
        %v4567 = vpop.f32.mrb[0].mxu0
        %4568 = vdwg.mxu0
        %4569 = vmatprep.subr.bf16.mxu0 0
        %4570 = vmatpush1.bf16.msra.mxu0 %v4486
        %4571 = vmatprep.subr.bf16.mxu0 0
        %4572 = vmatpush1.bf16.msra.mxu0 %v4487
        %4573 = vmatprep.subr.bf16.mxu0 0
        %4574 = vmatpush1.bf16.msra.mxu0 %v4488
        %4575 = vmatprep.subr.bf16.mxu0 0
        %4576 = vmatpush1.bf16.msra.mxu0 %v4489
        %4577 = vmatprep.subr.bf16.mxu0 0
        %4578 = vmatpush1.bf16.msra.mxu0 %v4490
        %4579 = vmatprep.subr.bf16.mxu0 0
        %4580 = vmatpush1.bf16.msra.mxu0 %v4491
        %4581 = vmatprep.subr.bf16.mxu0 0
        %4582 = vmatpush1.bf16.msra.mxu0 %v4492
        %4583 = vmatprep.subr.bf16.mxu0 0
        %4584 = vmatpush1.bf16.msra.mxu0 %v4493
        %4585 = vmatprep.subr.bf16.mxu0 0
        %4586 = vmatpush1.bf16.msra.mxu0 %v4494
        %4587 = vmatprep.subr.bf16.mxu0 0
        %4588 = vmatpush1.bf16.msra.mxu0 %v4495
        %4589 = vmatprep.subr.bf16.mxu0 0
        %4590 = vmatpush1.bf16.msra.mxu0 %v4496
        %4591 = vmatprep.subr.bf16.mxu0 0
        %4592 = vmatpush1.bf16.msra.mxu0 %v4497
        %4593 = vmatprep.subr.bf16.mxu0 0
        %4594 = vmatpush1.bf16.msra.mxu0 0
        %4595 = vmatprep.subr.bf16.mxu0 0
        %4596 = vmatpush1.bf16.msra.mxu0 0
        %4597 = vmatprep.subr.bf16.mxu0 0
        %4598 = vmatpush1.bf16.msra.mxu0 0
        %4599 = vmatprep.subr.bf16.mxu0 0
        %4600 = vmatpush1.bf16.msra.mxu0 0
        %4601 = vmatprep.mubr.bf16.mxu0 %v4527
        %4602 = vmatmul.mubr.bf16.gmra.mrb[0].mxu0 %v4299
        %v4603 = vpop.f32.mrb[0].mxu0
        %v4604 = vadd.f32 %v4564, %v4603
        %v4605 = vpop.f32.mrb[0].mxu0
        %v4606 = vpop.f32.mrb[0].mxu0
        %v4607 = vpop.f32.mrb[0].mxu0
        %4608 = vdwg.mxu0
        %v4609 = vadd.f32 %v4012, %v4604
        %4610 = vmatprep.subr.bf16.mxu0 %v407
        %4611 = vmatpush1.bf16.msra.mxu0 %v406
        %4612 = vmatprep.subr.bf16.mxu0 0
        %4613 = vmatpush1.bf16.msra.mxu0 0
        %4614 = vmatprep.subr.bf16.mxu0 0
        %4615 = vmatpush1.bf16.msra.mxu0 0
        %4616 = vmatprep.subr.bf16.mxu0 0
        %4617 = vmatpush1.bf16.msra.mxu0 0
        %4618 = vmatprep.subr.bf16.mxu0 0
        %4619 = vmatpush1.bf16.msra.mxu0 0
        %4620 = vmatprep.subr.bf16.mxu0 0
        %4621 = vmatpush1.bf16.msra.mxu0 0
        %4622 = vmatprep.subr.bf16.mxu0 0
        %4623 = vmatpush1.bf16.msra.mxu0 0
        %4624 = vmatprep.subr.bf16.mxu0 0
        %4625 = vmatpush1.bf16.msra.mxu0 0
        %4626 = vmatprep.subr.bf16.mxu0 0
        %4627 = vmatpush1.bf16.msra.mxu0 0
        %4628 = vmatprep.subr.bf16.mxu0 0
        %4629 = vmatpush1.bf16.msra.mxu0 0
        %4630 = vmatprep.subr.bf16.mxu0 0
        %4631 = vmatpush1.bf16.msra.mxu0 0
        %4632 = vmatprep.subr.bf16.mxu0 0
        %4633 = vmatpush1.bf16.msra.mxu0 0
        %4634 = vmatprep.subr.bf16.mxu0 0
        %4635 = vmatpush1.bf16.msra.mxu0 0
        %4636 = vmatprep.subr.bf16.mxu0 0
        %4637 = vmatpush1.bf16.msra.mxu0 0
        %4638 = vmatprep.subr.bf16.mxu0 0
        %4639 = vmatpush1.bf16.msra.mxu0 0
        %4640 = vmatprep.subr.bf16.mxu0 0
        %4641 = vmatpush1.bf16.msra.mxu0 0
        %4642 = vmatprep.mubr.bf16.mxu0 0
        %4643 = vmatmul.mubr.bf16.gmra.mrb[0].mxu0 %v4201
        %v4644 = vpop.f32.mrb[0].mxu0
        %v4645 = vadd.f32 0.0, %v4644
        %v4646 = vpop.f32.mrb[0].mxu0
        %v4647 = vadd.f32 0.0, %v4646
        %v4648 = vpop.f32.mrb[0].mxu0
        %v4649 = vpop.f32.mrb[0].mxu0
        %4650 = vdwg.mxu0
        %4651 = vmatprep.subr.bf16.mxu0 %v409
        %4652 = vmatpush1.bf16.msra.mxu0 %v408
        %4653 = vmatprep.subr.bf16.mxu0 0
        %4654 = vmatpush1.bf16.msra.mxu0 0
        %4655 = vmatprep.subr.bf16.mxu0 0
        %4656 = vmatpush1.bf16.msra.mxu0 0
        %4657 = vmatprep.subr.bf16.mxu0 0
        %4658 = vmatpush1.bf16.msra.mxu0 0
        %4659 = vmatprep.subr.bf16.mxu0 0
        %4660 = vmatpush1.bf16.msra.mxu0 0
        %4661 = vmatprep.subr.bf16.mxu0 0
        %4662 = vmatpush1.bf16.msra.mxu0 0
        %4663 = vmatprep.subr.bf16.mxu0 0
        %4664 = vmatpush1.bf16.msra.mxu0 0
        %4665 = vmatprep.subr.bf16.mxu0 0
        %4666 = vmatpush1.bf16.msra.mxu0 0
        %4667 = vmatprep.subr.bf16.mxu0 0
        %4668 = vmatpush1.bf16.msra.mxu0 0
        %4669 = vmatprep.subr.bf16.mxu0 0
        %4670 = vmatpush1.bf16.msra.mxu0 0
        %4671 = vmatprep.subr.bf16.mxu0 0
        %4672 = vmatpush1.bf16.msra.mxu0 0
        %4673 = vmatprep.subr.bf16.mxu0 0
        %4674 = vmatpush1.bf16.msra.mxu0 0
        %4675 = vmatprep.subr.bf16.mxu0 0
        %4676 = vmatpush1.bf16.msra.mxu0 0
        %4677 = vmatprep.subr.bf16.mxu0 0
        %4678 = vmatpush1.bf16.msra.mxu0 0
        %4679 = vmatprep.subr.bf16.mxu0 0
        %4680 = vmatpush1.bf16.msra.mxu0 0
        %4681 = vmatprep.subr.bf16.mxu0 0
        %4682 = vmatpush1.bf16.msra.mxu0 0
        %4683 = vmatprep.mubr.bf16.mxu0 0
        %4684 = vmatmul.mubr.bf16.gmra.mrb[0].mxu0 %v4201
        %v4685 = vpop.f32.mrb[0].mxu0
        %v4686 = vadd.f32 0.0, %v4685
        %v4687 = vpop.f32.mrb[0].mxu0
        %v4688 = vadd.f32 0.0, %v4687
        %v4689 = vpop.f32.mrb[0].mxu0
        %v4690 = vpop.f32.mrb[0].mxu0
        %4691 = vdwg.mxu0
        %4692 = vmatprep.subr.bf16.mxu0 %v528
        %4693 = vmatpush1.bf16.msra.mxu0 %v527
        %4694 = vmatprep.subr.bf16.mxu0 0
        %4695 = vmatpush1.bf16.msra.mxu0 0
        %4696 = vmatprep.subr.bf16.mxu0 0
        %4697 = vmatpush1.bf16.msra.mxu0 0
        %4698 = vmatprep.subr.bf16.mxu0 0
        %4699 = vmatpush1.bf16.msra.mxu0 0
        %4700 = vmatprep.subr.bf16.mxu0 0
        %4701 = vmatpush1.bf16.msra.mxu0 0
        %4702 = vmatprep.subr.bf16.mxu0 0
        %4703 = vmatpush1.bf16.msra.mxu0 0
        %4704 = vmatprep.subr.bf16.mxu0 0
        %4705 = vmatpush1.bf16.msra.mxu0 0
        %4706 = vmatprep.subr.bf16.mxu0 0
        %4707 = vmatpush1.bf16.msra.mxu0 0
        %4708 = vmatprep.subr.bf16.mxu0 0
        %4709 = vmatpush1.bf16.msra.mxu0 0
        %4710 = vmatprep.subr.bf16.mxu0 0
        %4711 = vmatpush1.bf16.msra.mxu0 0
        %4712 = vmatprep.subr.bf16.mxu0 0
        %4713 = vmatpush1.bf16.msra.mxu0 0
        %4714 = vmatprep.subr.bf16.mxu0 0
        %4715 = vmatpush1.bf16.msra.mxu0 0
        %4716 = vmatprep.subr.bf16.mxu0 0
        %4717 = vmatpush1.bf16.msra.mxu0 0
        %4718 = vmatprep.subr.bf16.mxu0 0
        %4719 = vmatpush1.bf16.msra.mxu0 0
        %4720 = vmatprep.subr.bf16.mxu0 0
        %4721 = vmatpush1.bf16.msra.mxu0 0
        %4722 = vmatprep.subr.bf16.mxu0 0
        %4723 = vmatpush1.bf16.msra.mxu0 0
        %4724 = vmatprep.mubr.bf16.mxu0 0
        %4725 = vmatmul.mubr.bf16.gmra.mrb[0].mxu0 %v3604
        %v4726 = vpop.f32.mrb[0].mxu0
        %v4727 = vadd.f32 %v4645, %v4726
        %v4728 = vpop.f32.mrb[0].mxu0
        %v4729 = vadd.f32 %v4647, %v4728
        %v4730 = vpop.f32.mrb[0].mxu0
        %v4731 = vpop.f32.mrb[0].mxu0
        %4732 = vdwg.mxu0
        %4733 = vmatprep.subr.bf16.mxu0 %v530
        %4734 = vmatpush1.bf16.msra.mxu0 %v529
        %4735 = vmatprep.subr.bf16.mxu0 0
        %4736 = vmatpush1.bf16.msra.mxu0 0
        %4737 = vmatprep.subr.bf16.mxu0 0
        %4738 = vmatpush1.bf16.msra.mxu0 0
        %4739 = vmatprep.subr.bf16.mxu0 0
        %4740 = vmatpush1.bf16.msra.mxu0 0
        %4741 = vmatprep.subr.bf16.mxu0 0
        %4742 = vmatpush1.bf16.msra.mxu0 0
        %4743 = vmatprep.subr.bf16.mxu0 0
        %4744 = vmatpush1.bf16.msra.mxu0 0
        %4745 = vmatprep.subr.bf16.mxu0 0
        %4746 = vmatpush1.bf16.msra.mxu0 0
        %4747 = vmatprep.subr.bf16.mxu0 0
        %4748 = vmatpush1.bf16.msra.mxu0 0
        %4749 = vmatprep.subr.bf16.mxu0 0
        %4750 = vmatpush1.bf16.msra.mxu0 0
        %4751 = vmatprep.subr.bf16.mxu0 0
        %4752 = vmatpush1.bf16.msra.mxu0 0
        %4753 = vmatprep.subr.bf16.mxu0 0
        %4754 = vmatpush1.bf16.msra.mxu0 0
        %4755 = vmatprep.subr.bf16.mxu0 0
        %4756 = vmatpush1.bf16.msra.mxu0 0
        %4757 = vmatprep.subr.bf16.mxu0 0
        %4758 = vmatpush1.bf16.msra.mxu0 0
        %4759 = vmatprep.subr.bf16.mxu0 0
        %4760 = vmatpush1.bf16.msra.mxu0 0
        %4761 = vmatprep.subr.bf16.mxu0 0
        %4762 = vmatpush1.bf16.msra.mxu0 0
        %4763 = vmatprep.subr.bf16.mxu0 0
        %4764 = vmatpush1.bf16.msra.mxu0 0
        %4765 = vmatprep.mubr.bf16.mxu0 0
        %4766 = vmatmul.mubr.bf16.gmra.mrb[0].mxu0 %v3604
        %v4767 = vpop.f32.mrb[0].mxu0
        %v4768 = vadd.f32 %v4686, %v4767
        %v4769 = vpop.f32.mrb[0].mxu0
        %v4770 = vadd.f32 %v4688, %v4769
        %v4771 = vpop.f32.mrb[0].mxu0
        %v4772 = vpop.f32.mrb[0].mxu0
        %4773 = vdwg.mxu0
        %v4774 = vrot.slane %v4177, 1
        %v4775 = vsel %vm373, %v4178, %v4774
        %v4776 = vrot.slane %v4179, 7
        %v4777 = vsel %vm376, %v4776, %v4775
        %v4778 = vrot.slane %v4180, 6
        %v4779 = vsel %vm379, %v4778, %v4777
        %v4780 = vrot.slane %v4181, 5
        %v4781 = vsel %vm382, %v4780, %v4779
        %v4782 = vrot.slane %v4182, 4
        %v4783 = vsel %vm385, %v4782, %v4781
        %v4784 = vrot.slane %v4183, 3
        %v4785 = vsel %vm388, %v4784, %v4783
        %v4786 = vrot.slane %v4184, 2
        %v4787 = vsel %vm391, %v4786, %v4785
        %v4788 = vpack.c.b16 %v4787, %v4787
        %v4790 = vsel %vm414, %v4788, 0
        %4792 = vmatprep.subr.bf16.mxu0 %v653
        %4793 = vmatpush1.bf16.msra.mxu0 %v652
        %4794 = vmatprep.subr.bf16.mxu0 0
        %4795 = vmatpush1.bf16.msra.mxu0 0
        %4796 = vmatprep.subr.bf16.mxu0 0
        %4797 = vmatpush1.bf16.msra.mxu0 0
        %4798 = vmatprep.subr.bf16.mxu0 0
        %4799 = vmatpush1.bf16.msra.mxu0 0
        %4800 = vmatprep.subr.bf16.mxu0 0
        %4801 = vmatpush1.bf16.msra.mxu0 0
        %4802 = vmatprep.subr.bf16.mxu0 0
        %4803 = vmatpush1.bf16.msra.mxu0 0
        %4804 = vmatprep.subr.bf16.mxu0 0
        %4805 = vmatpush1.bf16.msra.mxu0 0
        %4806 = vmatprep.subr.bf16.mxu0 0
        %4807 = vmatpush1.bf16.msra.mxu0 0
        %4808 = vmatprep.subr.bf16.mxu0 0
        %4809 = vmatpush1.bf16.msra.mxu0 0
        %4810 = vmatprep.subr.bf16.mxu0 0
        %4811 = vmatpush1.bf16.msra.mxu0 0
        %4812 = vmatprep.subr.bf16.mxu0 0
        %4813 = vmatpush1.bf16.msra.mxu0 0
        %4814 = vmatprep.subr.bf16.mxu0 0
        %4815 = vmatpush1.bf16.msra.mxu0 0
        %4816 = vmatprep.subr.bf16.mxu0 0
        %4817 = vmatpush1.bf16.msra.mxu0 0
        %4818 = vmatprep.subr.bf16.mxu0 0
        %4819 = vmatpush1.bf16.msra.mxu0 0
        %4820 = vmatprep.subr.bf16.mxu0 0
        %4821 = vmatpush1.bf16.msra.mxu0 0
        %4822 = vmatprep.subr.bf16.mxu0 0
        %4823 = vmatpush1.bf16.msra.mxu0 0
        %4824 = vmatprep.mubr.bf16.mxu0 0
        %4825 = vmatmul.mubr.bf16.gmra.mrb[0].mxu0 %v4790
        %v4826 = vpop.f32.mrb[0].mxu0
        %v4827 = vadd.f32 0.0, %v4826
        %v4828 = vpop.f32.mrb[0].mxu0
        %v4829 = vadd.f32 0.0, %v4828
        %v4830 = vpop.f32.mrb[0].mxu0
        %v4831 = vpop.f32.mrb[0].mxu0
        %4832 = vdwg.mxu0
        %4833 = vmatprep.subr.bf16.mxu0 %v655
        %4834 = vmatpush1.bf16.msra.mxu0 %v654
        %4835 = vmatprep.subr.bf16.mxu0 0
        %4836 = vmatpush1.bf16.msra.mxu0 0
        %4837 = vmatprep.subr.bf16.mxu0 0
        %4838 = vmatpush1.bf16.msra.mxu0 0
        %4839 = vmatprep.subr.bf16.mxu0 0
        %4840 = vmatpush1.bf16.msra.mxu0 0
        %4841 = vmatprep.subr.bf16.mxu0 0
        %4842 = vmatpush1.bf16.msra.mxu0 0
        %4843 = vmatprep.subr.bf16.mxu0 0
        %4844 = vmatpush1.bf16.msra.mxu0 0
        %4845 = vmatprep.subr.bf16.mxu0 0
        %4846 = vmatpush1.bf16.msra.mxu0 0
        %4847 = vmatprep.subr.bf16.mxu0 0
        %4848 = vmatpush1.bf16.msra.mxu0 0
        %4849 = vmatprep.subr.bf16.mxu0 0
        %4850 = vmatpush1.bf16.msra.mxu0 0
        %4851 = vmatprep.subr.bf16.mxu0 0
        %4852 = vmatpush1.bf16.msra.mxu0 0
        %4853 = vmatprep.subr.bf16.mxu0 0
        %4854 = vmatpush1.bf16.msra.mxu0 0
        %4855 = vmatprep.subr.bf16.mxu0 0
        %4856 = vmatpush1.bf16.msra.mxu0 0
        %4857 = vmatprep.subr.bf16.mxu0 0
        %4858 = vmatpush1.bf16.msra.mxu0 0
        %4859 = vmatprep.subr.bf16.mxu0 0
        %4860 = vmatpush1.bf16.msra.mxu0 0
        %4861 = vmatprep.subr.bf16.mxu0 0
        %4862 = vmatpush1.bf16.msra.mxu0 0
        %4863 = vmatprep.subr.bf16.mxu0 0
        %4864 = vmatpush1.bf16.msra.mxu0 0
        %4865 = vmatprep.mubr.bf16.mxu0 0
        %4866 = vmatmul.mubr.bf16.gmra.mrb[0].mxu0 %v4790
        %v4867 = vpop.f32.mrb[0].mxu0
        %v4868 = vadd.f32 0.0, %v4867
        %v4869 = vpop.f32.mrb[0].mxu0
        %v4870 = vadd.f32 0.0, %v4869
        %v4871 = vpop.f32.mrb[0].mxu0
        %v4872 = vpop.f32.mrb[0].mxu0
        %4873 = vdwg.mxu0
        %v4874 = vadd.f32 %v4727, %v4827
        %v4875 = vadd.f32 %v4729, %v4829
        %v4876 = vadd.f32 %v4768, %v4868
        %v4877 = vadd.f32 %v4770, %v4870
        %v4878 = vadd.f32 %v4874, %v329
        %v4879 = vadd.f32 %v4875, %v333
        %v4880 = vadd.f32 %v4876, %v337
        %v4881 = vadd.f32 %v4877, %v341
        %v4882 = vmax.f32 %v4878, 0.0
        %v4883 = vmax.f32 %v4879, 0.0
        %v4884 = vmax.f32 %v4880, 0.0
        %v4885 = vmax.f32 %v4881, 0.0
        %v4886 = vpack.c.bf16 %v4882, %v4882
        %v4887 = vpack.c.bf16 %v4883, %v4883
        %v4888 = vpack.c.bf16 %v4884, %v4884
        %v4889 = vpack.c.bf16 %v4885, %v4885
        %s4890 = scalar_lea.vmem [#allocation6], 1568
        %v4891 = vld [vmem:[%s4890] sm:$0xf]
        %v4892 = vld [vmem:[%s4890 + $0x4] sm:$0xf]
        %v4893 = vld [vmem:[%s4890 + $0x8] sm:$0xf]
        %v4894 = vld [vmem:[%s4890 + $0xc] sm:$0xf]
        %v4895 = vld [vmem:[%s4890 + $0x10] sm:$0xf]
        %v4896 = vld [vmem:[%s4890 + $0x14] sm:$0xf]
        %v4897 = vld [vmem:[%s4890 + $0x18] sm:$0xf]
        %v4898 = vld [vmem:[%s4890 + $0x1c] sm:$0xf]
        %v4899 = vld [vmem:[%s4890 + $0x20] sm:$0xf]
        %v4900 = vld [vmem:[%s4890 + $0x24] sm:$0xf]
        %v4901 = vld [vmem:[%s4890 + $0x28] sm:$0xf]
        %v4902 = vld [vmem:[%s4890 + $0x2c] sm:$0xf]
        %v4903 = vld [vmem:[%s4890 + $0x30] sm:$0xf]
        %v4904 = vld [vmem:[%s4890 + $0x34] sm:$0xf]
        %v4905 = vld [vmem:[%s4890 + $0x38] sm:$0xf]
        %v4906 = vld [vmem:[%s4890 + $0x3c] sm:$0xf]
        %v4907 = vld [vmem:[%s4890 + $0x40] sm:$0xf]
        %v4908 = vld [vmem:[%s4890 + $0x44] sm:$0xf]
        %v4909 = vld [vmem:[%s4890 + $0x48] sm:$0xf]
        %v4910 = vld [vmem:[%s4890 + $0x4c] sm:$0xf]
        %v4911 = vld [vmem:[%s4890 + $0x50] sm:$0xf]
        %v4912 = vld [vmem:[%s4890 + $0x54] sm:$0xf]
        %v4913 = vld [vmem:[%s4890 + $0x58] sm:$0xf]
        %v4914 = vld [vmem:[%s4890 + $0x5c] sm:$0xf]
        %v4915 = vld [vmem:[%s4890 + $0x60] sm:$0xf]
        %v4916 = vld [vmem:[%s4890 + $0x64] sm:$0xf]
        %v4917 = vld [vmem:[%s4890 + $0x68] sm:$0xf]
        %v4918 = vld [vmem:[%s4890 + $0x6c] sm:$0xf]
        %v4919 = vld [vmem:[%s4890 + $0x70] sm:$0xf]
        %v4920 = vld [vmem:[%s4890 + $0x74] sm:$0xf]
        %v4921 = vld [vmem:[%s4890 + $0x78] sm:$0xf]
        %v4922 = vld [vmem:[%s4890 + $0x7c] sm:$0xf]
        %v4923 = vld [vmem:[%s4890 + $0x80] sm:$0xf]
        %v4924 = vld [vmem:[%s4890 + $0x84] sm:$0xf]
        %v4925 = vld [vmem:[%s4890 + $0x88] sm:$0xf]
        %v4926 = vld [vmem:[%s4890 + $0x8c] sm:$0xf]
        %v4927 = vld [vmem:[%s4890 + $0x90] sm:$0xf]
        %v4928 = vld [vmem:[%s4890 + $0x94] sm:$0xf]
        %v4929 = vld [vmem:[%s4890 + $0x98] sm:$0xf]
        %v4930 = vld [vmem:[%s4890 + $0x9c] sm:$0xf]
        %v4931 = vld [vmem:[%s4890 + $0xa0] sm:$0xf]
        %v4932 = vld [vmem:[%s4890 + $0xa4] sm:$0xf]
        %v4933 = vld [vmem:[%s4890 + $0xa8] sm:$0xf]
        %v4934 = vld [vmem:[%s4890 + $0xac] sm:$0xf]
        %v4935 = vld [vmem:[%s4890 + $0xb0] sm:$0xf]
        %v4936 = vld [vmem:[%s4890 + $0xb4] sm:$0xf]
        %v4937 = vld [vmem:[%s4890 + $0xb8] sm:$0xf]
        %v4938 = vld [vmem:[%s4890 + $0xbc] sm:$0xf]
        %v4939 = vld [vmem:[%s4890 + $0xc0] sm:$0xf]
        %v4940 = vld [vmem:[%s4890 + $0xc4] sm:$0xf]
        %v4941 = vld [vmem:[%s4890 + $0xc8] sm:$0xf]
        %v4942 = vld [vmem:[%s4890 + $0xcc] sm:$0xf]
        %v4943 = vld [vmem:[%s4890 + $0xd0] sm:$0xf]
        %v4944 = vld [vmem:[%s4890 + $0xd4] sm:$0xf]
        %v4945 = vld [vmem:[%s4890 + $0xd8] sm:$0xf]
        %v4946 = vld [vmem:[%s4890 + $0xdc] sm:$0xf]
        %v5003 = vunpack.c.l.b16 %v4891
        %v5004 = vunpack.c.l.b16 %v4892
        %v5005 = vunpack.c.l.b16 %v4893
        %v5006 = vunpack.c.l.b16 %v4894
        %v5007 = vunpack.c.l.b16 %v4895
        %v5008 = vunpack.c.l.b16 %v4896
        %v5009 = vunpack.c.l.b16 %v4897
        %v5010 = vunpack.c.l.b16 %v4898
        %v5011 = vunpack.c.l.b16 %v4899
        %v5012 = vunpack.c.l.b16 %v4900
        %v5013 = vunpack.c.l.b16 %v4901
        %v5014 = vunpack.c.l.b16 %v4902
        %v5015 = vunpack.c.l.b16 %v4903
        %v5016 = vunpack.c.l.b16 %v4904
        %v5017 = vunpack.c.l.b16 %v4905
        %v5018 = vunpack.c.l.b16 %v4906
        %v5019 = vunpack.c.l.b16 %v4907
        %v5020 = vunpack.c.l.b16 %v4908
        %v5021 = vunpack.c.l.b16 %v4909
        %v5022 = vunpack.c.l.b16 %v4910
        %v5023 = vunpack.c.l.b16 %v4911
        %v5024 = vunpack.c.l.b16 %v4912
        %v5025 = vunpack.c.l.b16 %v4913
        %v5026 = vunpack.c.l.b16 %v4914
        %v5027 = vunpack.c.l.b16 %v4915
        %v5028 = vunpack.c.l.b16 %v4916
        %v5029 = vunpack.c.l.b16 %v4917
        %v5030 = vunpack.c.l.b16 %v4918
        %v5031 = vunpack.c.l.b16 %v4919
        %v5032 = vunpack.c.l.b16 %v4920
        %v5033 = vunpack.c.l.b16 %v4921
        %v5034 = vunpack.c.l.b16 %v4922
        %v5035 = vunpack.c.l.b16 %v4923
        %v5036 = vunpack.c.l.b16 %v4924
        %v5037 = vunpack.c.l.b16 %v4925
        %v5038 = vunpack.c.l.b16 %v4926
        %v5039 = vunpack.c.l.b16 %v4927
        %v5040 = vunpack.c.l.b16 %v4928
        %v5041 = vunpack.c.l.b16 %v4929
        %v5042 = vunpack.c.l.b16 %v4930
        %v5043 = vunpack.c.l.b16 %v4931
        %v5044 = vunpack.c.l.b16 %v4932
        %v5045 = vunpack.c.l.b16 %v4933
        %v5046 = vunpack.c.l.b16 %v4934
        %v5047 = vunpack.c.l.b16 %v4935
        %v5048 = vunpack.c.l.b16 %v4936
        %v5049 = vunpack.c.l.b16 %v4937
        %v5050 = vunpack.c.l.b16 %v4938
        %v5051 = vunpack.c.l.b16 %v4939
        %v5052 = vunpack.c.l.b16 %v4940
        %v5053 = vunpack.c.l.b16 %v4941
        %v5054 = vunpack.c.l.b16 %v4942
        %v5055 = vunpack.c.l.b16 %v4943
        %v5056 = vunpack.c.l.b16 %v4944
        %v5057 = vunpack.c.l.b16 %v4945
        %v5058 = vunpack.c.l.b16 %v4946
        %v5059 = vpack.c.b16 %v5004, %v5003
        %v5060 = vpack.c.b16 %v5006, %v5005
        %v5061 = vpack.c.b16 %v5008, %v5007
        %v5062 = vpack.c.b16 %v5010, %v5009
        %v5063 = vpack.c.b16 %v5012, %v5011
        %v5064 = vpack.c.b16 %v5014, %v5013
        %v5065 = vpack.c.b16 %v5016, %v5015
        %v5066 = vpack.c.b16 %v5018, %v5017
        %v5067 = vpack.c.b16 %v5020, %v5019
        %v5068 = vpack.c.b16 %v5022, %v5021
        %v5069 = vpack.c.b16 %v5024, %v5023
        %v5070 = vpack.c.b16 %v5026, %v5025
        %v5071 = vpack.c.b16 %v5028, %v5027
        %v5072 = vpack.c.b16 %v5030, %v5029
        %v5073 = vpack.c.b16 %v5032, %v5031
        %v5074 = vpack.c.b16 %v5034, %v5033
        %v5075 = vpack.c.b16 %v5036, %v5035
        %v5076 = vpack.c.b16 %v5038, %v5037
        %v5077 = vpack.c.b16 %v5040, %v5039
        %v5078 = vpack.c.b16 %v5042, %v5041
        %v5079 = vpack.c.b16 %v5044, %v5043
        %v5080 = vpack.c.b16 %v5046, %v5045
        %v5081 = vpack.c.b16 %v5048, %v5047
        %v5082 = vpack.c.b16 %v5050, %v5049
        %v5083 = vpack.c.b16 %v5052, %v5051
        %v5084 = vpack.c.b16 %v5054, %v5053
        %v5085 = vpack.c.b16 %v5056, %v5055
        %v5086 = vpack.c.b16 %v5058, %v5057
        %v5116 = vsel %vm1322, %v4889, 0
        %5118 = vmatprep.subr.bf16.mxu0 0
        %5119 = vmatpush1.bf16.msra.mxu0 %v5059
        %5120 = vmatprep.subr.bf16.mxu0 0
        %5121 = vmatpush1.bf16.msra.mxu0 %v5060
        %5122 = vmatprep.subr.bf16.mxu0 0
        %5123 = vmatpush1.bf16.msra.mxu0 %v5061
        %5124 = vmatprep.subr.bf16.mxu0 0
        %5125 = vmatpush1.bf16.msra.mxu0 %v5062
        %5126 = vmatprep.subr.bf16.mxu0 0
        %5127 = vmatpush1.bf16.msra.mxu0 %v5063
        %5128 = vmatprep.subr.bf16.mxu0 0
        %5129 = vmatpush1.bf16.msra.mxu0 %v5064
        %5130 = vmatprep.subr.bf16.mxu0 0
        %5131 = vmatpush1.bf16.msra.mxu0 %v5065
        %5132 = vmatprep.subr.bf16.mxu0 0
        %5133 = vmatpush1.bf16.msra.mxu0 %v5066
        %5134 = vmatprep.subr.bf16.mxu0 0
        %5135 = vmatpush1.bf16.msra.mxu0 %v5067
        %5136 = vmatprep.subr.bf16.mxu0 0
        %5137 = vmatpush1.bf16.msra.mxu0 %v5068
        %5138 = vmatprep.subr.bf16.mxu0 0
        %5139 = vmatpush1.bf16.msra.mxu0 %v5069
        %5140 = vmatprep.subr.bf16.mxu0 0
        %5141 = vmatpush1.bf16.msra.mxu0 %v5070
        %5142 = vmatprep.subr.bf16.mxu0 0
        %5143 = vmatpush1.bf16.msra.mxu0 %v5071
        %5144 = vmatprep.subr.bf16.mxu0 0
        %5145 = vmatpush1.bf16.msra.mxu0 %v5072
        %5146 = vmatprep.subr.bf16.mxu0 0
        %5147 = vmatpush1.bf16.msra.mxu0 %v5073
        %5148 = vmatprep.subr.bf16.mxu0 0
        %5149 = vmatpush1.bf16.msra.mxu0 %v5074
        %5150 = vmatprep.mubr.bf16.mxu0 %v4887
        %5151 = vmatmul.mubr.bf16.gmra.mrb[0].mxu0 %v4886
        %v5152 = vpop.f32.mrb[0].mxu0
        %v5153 = vadd.f32 0.0, %v5152
        %v5154 = vpop.f32.mrb[0].mxu0
        %v5155 = vpop.f32.mrb[0].mxu0
        %v5156 = vpop.f32.mrb[0].mxu0
        %5157 = vdwg.mxu0
        %5158 = vmatprep.subr.bf16.mxu0 0
        %5159 = vmatpush1.bf16.msra.mxu0 %v5075
        %5160 = vmatprep.subr.bf16.mxu0 0
        %5161 = vmatpush1.bf16.msra.mxu0 %v5076
        %5162 = vmatprep.subr.bf16.mxu0 0
        %5163 = vmatpush1.bf16.msra.mxu0 %v5077
        %5164 = vmatprep.subr.bf16.mxu0 0
        %5165 = vmatpush1.bf16.msra.mxu0 %v5078
        %5166 = vmatprep.subr.bf16.mxu0 0
        %5167 = vmatpush1.bf16.msra.mxu0 %v5079
        %5168 = vmatprep.subr.bf16.mxu0 0
        %5169 = vmatpush1.bf16.msra.mxu0 %v5080
        %5170 = vmatprep.subr.bf16.mxu0 0
        %5171 = vmatpush1.bf16.msra.mxu0 %v5081
        %5172 = vmatprep.subr.bf16.mxu0 0
        %5173 = vmatpush1.bf16.msra.mxu0 %v5082
        %5174 = vmatprep.subr.bf16.mxu0 0
        %5175 = vmatpush1.bf16.msra.mxu0 %v5083
        %5176 = vmatprep.subr.bf16.mxu0 0
        %5177 = vmatpush1.bf16.msra.mxu0 %v5084
        %5178 = vmatprep.subr.bf16.mxu0 0
        %5179 = vmatpush1.bf16.msra.mxu0 %v5085
        %5180 = vmatprep.subr.bf16.mxu0 0
        %5181 = vmatpush1.bf16.msra.mxu0 %v5086
        %5182 = vmatprep.subr.bf16.mxu0 0
        %5183 = vmatpush1.bf16.msra.mxu0 0
        %5184 = vmatprep.subr.bf16.mxu0 0
        %5185 = vmatpush1.bf16.msra.mxu0 0
        %5186 = vmatprep.subr.bf16.mxu0 0
        %5187 = vmatpush1.bf16.msra.mxu0 0
        %5188 = vmatprep.subr.bf16.mxu0 0
        %5189 = vmatpush1.bf16.msra.mxu0 0
        %5190 = vmatprep.mubr.bf16.mxu0 %v5116
        %5191 = vmatmul.mubr.bf16.gmra.mrb[0].mxu0 %v4888
        %v5192 = vpop.f32.mrb[0].mxu0
        %v5193 = vadd.f32 %v5153, %v5192
        %v5194 = vpop.f32.mrb[0].mxu0
        %v5195 = vpop.f32.mrb[0].mxu0
        %v5196 = vpop.f32.mrb[0].mxu0
        %5197 = vdwg.mxu0
        %v5198 = vadd.f32 %v4609, %v5193
        %5199 = vmatprep.subr.bf16.mxu0 %v407
        %5200 = vmatpush1.bf16.msra.mxu0 %v406
        %5201 = vmatprep.subr.bf16.mxu0 0
        %5202 = vmatpush1.bf16.msra.mxu0 0
        %5203 = vmatprep.subr.bf16.mxu0 0
        %5204 = vmatpush1.bf16.msra.mxu0 0
        %5205 = vmatprep.subr.bf16.mxu0 0
        %5206 = vmatpush1.bf16.msra.mxu0 0
        %5207 = vmatprep.subr.bf16.mxu0 0
        %5208 = vmatpush1.bf16.msra.mxu0 0
        %5209 = vmatprep.subr.bf16.mxu0 0
        %5210 = vmatpush1.bf16.msra.mxu0 0
        %5211 = vmatprep.subr.bf16.mxu0 0
        %5212 = vmatpush1.bf16.msra.mxu0 0
        %5213 = vmatprep.subr.bf16.mxu0 0
        %5214 = vmatpush1.bf16.msra.mxu0 0
        %5215 = vmatprep.subr.bf16.mxu0 0
        %5216 = vmatpush1.bf16.msra.mxu0 0
        %5217 = vmatprep.subr.bf16.mxu0 0
        %5218 = vmatpush1.bf16.msra.mxu0 0
        %5219 = vmatprep.subr.bf16.mxu0 0
        %5220 = vmatpush1.bf16.msra.mxu0 0
        %5221 = vmatprep.subr.bf16.mxu0 0
        %5222 = vmatpush1.bf16.msra.mxu0 0
        %5223 = vmatprep.subr.bf16.mxu0 0
        %5224 = vmatpush1.bf16.msra.mxu0 0
        %5225 = vmatprep.subr.bf16.mxu0 0
        %5226 = vmatpush1.bf16.msra.mxu0 0
        %5227 = vmatprep.subr.bf16.mxu0 0
        %5228 = vmatpush1.bf16.msra.mxu0 0
        %5229 = vmatprep.subr.bf16.mxu0 0
        %5230 = vmatpush1.bf16.msra.mxu0 0
        %5231 = vmatprep.mubr.bf16.mxu0 0
        %5232 = vmatmul.mubr.bf16.gmra.mrb[0].mxu0 %v4790
        %v5233 = vpop.f32.mrb[0].mxu0
        %v5234 = vadd.f32 0.0, %v5233
        %v5235 = vpop.f32.mrb[0].mxu0
        %v5236 = vadd.f32 0.0, %v5235
        %v5237 = vpop.f32.mrb[0].mxu0
        %v5238 = vpop.f32.mrb[0].mxu0
        %5239 = vdwg.mxu0
        %5240 = vmatprep.subr.bf16.mxu0 %v409
        %5241 = vmatpush1.bf16.msra.mxu0 %v408
        %5242 = vmatprep.subr.bf16.mxu0 0
        %5243 = vmatpush1.bf16.msra.mxu0 0
        %5244 = vmatprep.subr.bf16.mxu0 0
        %5245 = vmatpush1.bf16.msra.mxu0 0
        %5246 = vmatprep.subr.bf16.mxu0 0
        %5247 = vmatpush1.bf16.msra.mxu0 0
        %5248 = vmatprep.subr.bf16.mxu0 0
        %5249 = vmatpush1.bf16.msra.mxu0 0
        %5250 = vmatprep.subr.bf16.mxu0 0
        %5251 = vmatpush1.bf16.msra.mxu0 0
        %5252 = vmatprep.subr.bf16.mxu0 0
        %5253 = vmatpush1.bf16.msra.mxu0 0
        %5254 = vmatprep.subr.bf16.mxu0 0
        %5255 = vmatpush1.bf16.msra.mxu0 0
        %5256 = vmatprep.subr.bf16.mxu0 0
        %5257 = vmatpush1.bf16.msra.mxu0 0
        %5258 = vmatprep.subr.bf16.mxu0 0
        %5259 = vmatpush1.bf16.msra.mxu0 0
        %5260 = vmatprep.subr.bf16.mxu0 0
        %5261 = vmatpush1.bf16.msra.mxu0 0
        %5262 = vmatprep.subr.bf16.mxu0 0
        %5263 = vmatpush1.bf16.msra.mxu0 0
        %5264 = vmatprep.subr.bf16.mxu0 0
        %5265 = vmatpush1.bf16.msra.mxu0 0
        %5266 = vmatprep.subr.bf16.mxu0 0
        %5267 = vmatpush1.bf16.msra.mxu0 0
        %5268 = vmatprep.subr.bf16.mxu0 0
        %5269 = vmatpush1.bf16.msra.mxu0 0
        %5270 = vmatprep.subr.bf16.mxu0 0
        %5271 = vmatpush1.bf16.msra.mxu0 0
        %5272 = vmatprep.mubr.bf16.mxu0 0
        %5273 = vmatmul.mubr.bf16.gmra.mrb[0].mxu0 %v4790
        %v5274 = vpop.f32.mrb[0].mxu0
        %v5275 = vadd.f32 0.0, %v5274
        %v5276 = vpop.f32.mrb[0].mxu0
        %v5277 = vadd.f32 0.0, %v5276
        %v5278 = vpop.f32.mrb[0].mxu0
        %v5279 = vpop.f32.mrb[0].mxu0
        %5280 = vdwg.mxu0
        %5281 = vmatprep.subr.bf16.mxu0 %v528
        %5282 = vmatpush1.bf16.msra.mxu0 %v527
        %5283 = vmatprep.subr.bf16.mxu0 0
        %5284 = vmatpush1.bf16.msra.mxu0 0
        %5285 = vmatprep.subr.bf16.mxu0 0
        %5286 = vmatpush1.bf16.msra.mxu0 0
        %5287 = vmatprep.subr.bf16.mxu0 0
        %5288 = vmatpush1.bf16.msra.mxu0 0
        %5289 = vmatprep.subr.bf16.mxu0 0
        %5290 = vmatpush1.bf16.msra.mxu0 0
        %5291 = vmatprep.subr.bf16.mxu0 0
        %5292 = vmatpush1.bf16.msra.mxu0 0
        %5293 = vmatprep.subr.bf16.mxu0 0
        %5294 = vmatpush1.bf16.msra.mxu0 0
        %5295 = vmatprep.subr.bf16.mxu0 0
        %5296 = vmatpush1.bf16.msra.mxu0 0
        %5297 = vmatprep.subr.bf16.mxu0 0
        %5298 = vmatpush1.bf16.msra.mxu0 0
        %5299 = vmatprep.subr.bf16.mxu0 0
        %5300 = vmatpush1.bf16.msra.mxu0 0
        %5301 = vmatprep.subr.bf16.mxu0 0
        %5302 = vmatpush1.bf16.msra.mxu0 0
        %5303 = vmatprep.subr.bf16.mxu0 0
        %5304 = vmatpush1.bf16.msra.mxu0 0
        %5305 = vmatprep.subr.bf16.mxu0 0
        %5306 = vmatpush1.bf16.msra.mxu0 0
        %5307 = vmatprep.subr.bf16.mxu0 0
        %5308 = vmatpush1.bf16.msra.mxu0 0
        %5309 = vmatprep.subr.bf16.mxu0 0
        %5310 = vmatpush1.bf16.msra.mxu0 0
        %5311 = vmatprep.subr.bf16.mxu0 0
        %5312 = vmatpush1.bf16.msra.mxu0 0
        %5313 = vmatprep.mubr.bf16.mxu0 0
        %5314 = vmatmul.mubr.bf16.gmra.mrb[0].mxu0 %v4201
        %v5315 = vpop.f32.mrb[0].mxu0
        %v5316 = vadd.f32 %v5234, %v5315
        %v5317 = vpop.f32.mrb[0].mxu0
        %v5318 = vadd.f32 %v5236, %v5317
        %v5319 = vpop.f32.mrb[0].mxu0
        %v5320 = vpop.f32.mrb[0].mxu0
        %5321 = vdwg.mxu0
        %5322 = vmatprep.subr.bf16.mxu0 %v530
        %5323 = vmatpush1.bf16.msra.mxu0 %v529
        %5324 = vmatprep.subr.bf16.mxu0 0
        %5325 = vmatpush1.bf16.msra.mxu0 0
        %5326 = vmatprep.subr.bf16.mxu0 0
        %5327 = vmatpush1.bf16.msra.mxu0 0
        %5328 = vmatprep.subr.bf16.mxu0 0
        %5329 = vmatpush1.bf16.msra.mxu0 0
        %5330 = vmatprep.subr.bf16.mxu0 0
        %5331 = vmatpush1.bf16.msra.mxu0 0
        %5332 = vmatprep.subr.bf16.mxu0 0
        %5333 = vmatpush1.bf16.msra.mxu0 0
        %5334 = vmatprep.subr.bf16.mxu0 0
        %5335 = vmatpush1.bf16.msra.mxu0 0
        %5336 = vmatprep.subr.bf16.mxu0 0
        %5337 = vmatpush1.bf16.msra.mxu0 0
        %5338 = vmatprep.subr.bf16.mxu0 0
        %5339 = vmatpush1.bf16.msra.mxu0 0
        %5340 = vmatprep.subr.bf16.mxu0 0
        %5341 = vmatpush1.bf16.msra.mxu0 0
        %5342 = vmatprep.subr.bf16.mxu0 0
        %5343 = vmatpush1.bf16.msra.mxu0 0
        %5344 = vmatprep.subr.bf16.mxu0 0
        %5345 = vmatpush1.bf16.msra.mxu0 0
        %5346 = vmatprep.subr.bf16.mxu0 0
        %5347 = vmatpush1.bf16.msra.mxu0 0
        %5348 = vmatprep.subr.bf16.mxu0 0
        %5349 = vmatpush1.bf16.msra.mxu0 0
        %5350 = vmatprep.subr.bf16.mxu0 0
        %5351 = vmatpush1.bf16.msra.mxu0 0
        %5352 = vmatprep.subr.bf16.mxu0 0
        %5353 = vmatpush1.bf16.msra.mxu0 0
        %5354 = vmatprep.mubr.bf16.mxu0 0
        %5355 = vmatmul.mubr.bf16.gmra.mrb[0].mxu0 %v4201
        %v5356 = vpop.f32.mrb[0].mxu0
        %v5357 = vadd.f32 %v5275, %v5356
        %v5358 = vpop.f32.mrb[0].mxu0
        %v5359 = vadd.f32 %v5277, %v5358
        %v5360 = vpop.f32.mrb[0].mxu0
        %v5361 = vpop.f32.mrb[0].mxu0
        %5362 = vdwg.mxu0
        %v5363 = vrot.slane %v4177, 2
        %v5364 = vrot.slane %v4178, 1
        %v5365 = vsel %vm373, %v5364, %v5363
        %v5366 = vsel %vm376, %v4179, %v5365
        %v5367 = vrot.slane %v4180, 7
        %v5368 = vsel %vm379, %v5367, %v5366
        %v5369 = vrot.slane %v4181, 6
        %v5370 = vsel %vm382, %v5369, %v5368
        %v5371 = vrot.slane %v4182, 5
        %v5372 = vsel %vm385, %v5371, %v5370
        %v5373 = vrot.slane %v4183, 4
        %v5374 = vsel %vm388, %v5373, %v5372
        %v5375 = vrot.slane %v4184, 3
        %v5376 = vsel %vm391, %v5375, %v5374
        %v5377 = vpack.c.b16 %v5376, %v5376
        %v5379 = vsel %vm414, %v5377, 0
        %5381 = vmatprep.subr.bf16.mxu0 %v653
        %5382 = vmatpush1.bf16.msra.mxu0 %v652
        %5383 = vmatprep.subr.bf16.mxu0 0
        %5384 = vmatpush1.bf16.msra.mxu0 0
        %5385 = vmatprep.subr.bf16.mxu0 0
        %5386 = vmatpush1.bf16.msra.mxu0 0
        %5387 = vmatprep.subr.bf16.mxu0 0
        %5388 = vmatpush1.bf16.msra.mxu0 0
        %5389 = vmatprep.subr.bf16.mxu0 0
        %5390 = vmatpush1.bf16.msra.mxu0 0
        %5391 = vmatprep.subr.bf16.mxu0 0
        %5392 = vmatpush1.bf16.msra.mxu0 0
        %5393 = vmatprep.subr.bf16.mxu0 0
        %5394 = vmatpush1.bf16.msra.mxu0 0
        %5395 = vmatprep.subr.bf16.mxu0 0
        %5396 = vmatpush1.bf16.msra.mxu0 0
        %5397 = vmatprep.subr.bf16.mxu0 0
        %5398 = vmatpush1.bf16.msra.mxu0 0
        %5399 = vmatprep.subr.bf16.mxu0 0
        %5400 = vmatpush1.bf16.msra.mxu0 0
        %5401 = vmatprep.subr.bf16.mxu0 0
        %5402 = vmatpush1.bf16.msra.mxu0 0
        %5403 = vmatprep.subr.bf16.mxu0 0
        %5404 = vmatpush1.bf16.msra.mxu0 0
        %5405 = vmatprep.subr.bf16.mxu0 0
        %5406 = vmatpush1.bf16.msra.mxu0 0
        %5407 = vmatprep.subr.bf16.mxu0 0
        %5408 = vmatpush1.bf16.msra.mxu0 0
        %5409 = vmatprep.subr.bf16.mxu0 0
        %5410 = vmatpush1.bf16.msra.mxu0 0
        %5411 = vmatprep.subr.bf16.mxu0 0
        %5412 = vmatpush1.bf16.msra.mxu0 0
        %5413 = vmatprep.mubr.bf16.mxu0 0
        %5414 = vmatmul.mubr.bf16.gmra.mrb[0].mxu0 %v5379
        %v5415 = vpop.f32.mrb[0].mxu0
        %v5416 = vadd.f32 0.0, %v5415
        %v5417 = vpop.f32.mrb[0].mxu0
        %v5418 = vadd.f32 0.0, %v5417
        %v5419 = vpop.f32.mrb[0].mxu0
        %v5420 = vpop.f32.mrb[0].mxu0
        %5421 = vdwg.mxu0
        %5422 = vmatprep.subr.bf16.mxu0 %v655
        %5423 = vmatpush1.bf16.msra.mxu0 %v654
        %5424 = vmatprep.subr.bf16.mxu0 0
        %5425 = vmatpush1.bf16.msra.mxu0 0
        %5426 = vmatprep.subr.bf16.mxu0 0
        %5427 = vmatpush1.bf16.msra.mxu0 0
        %5428 = vmatprep.subr.bf16.mxu0 0
        %5429 = vmatpush1.bf16.msra.mxu0 0
        %5430 = vmatprep.subr.bf16.mxu0 0
        %5431 = vmatpush1.bf16.msra.mxu0 0
        %5432 = vmatprep.subr.bf16.mxu0 0
        %5433 = vmatpush1.bf16.msra.mxu0 0
        %5434 = vmatprep.subr.bf16.mxu0 0
        %5435 = vmatpush1.bf16.msra.mxu0 0
        %5436 = vmatprep.subr.bf16.mxu0 0
        %5437 = vmatpush1.bf16.msra.mxu0 0
        %5438 = vmatprep.subr.bf16.mxu0 0
        %5439 = vmatpush1.bf16.msra.mxu0 0
        %5440 = vmatprep.subr.bf16.mxu0 0
        %5441 = vmatpush1.bf16.msra.mxu0 0
        %5442 = vmatprep.subr.bf16.mxu0 0
        %5443 = vmatpush1.bf16.msra.mxu0 0
        %5444 = vmatprep.subr.bf16.mxu0 0
        %5445 = vmatpush1.bf16.msra.mxu0 0
        %5446 = vmatprep.subr.bf16.mxu0 0
        %5447 = vmatpush1.bf16.msra.mxu0 0
        %5448 = vmatprep.subr.bf16.mxu0 0
        %5449 = vmatpush1.bf16.msra.mxu0 0
        %5450 = vmatprep.subr.bf16.mxu0 0
        %5451 = vmatpush1.bf16.msra.mxu0 0
        %5452 = vmatprep.subr.bf16.mxu0 0
        %5453 = vmatpush1.bf16.msra.mxu0 0
        %5454 = vmatprep.mubr.bf16.mxu0 0
        %5455 = vmatmul.mubr.bf16.gmra.mrb[0].mxu0 %v5379
        %v5456 = vpop.f32.mrb[0].mxu0
        %v5457 = vadd.f32 0.0, %v5456
        %v5458 = vpop.f32.mrb[0].mxu0
        %v5459 = vadd.f32 0.0, %v5458
        %v5460 = vpop.f32.mrb[0].mxu0
        %v5461 = vpop.f32.mrb[0].mxu0
        %5462 = vdwg.mxu0
        %v5463 = vadd.f32 %v5316, %v5416
        %v5464 = vadd.f32 %v5318, %v5418
        %v5465 = vadd.f32 %v5357, %v5457
        %v5466 = vadd.f32 %v5359, %v5459
        %v5467 = vadd.f32 %v5463, %v329
        %v5468 = vadd.f32 %v5464, %v333
        %v5469 = vadd.f32 %v5465, %v337
        %v5470 = vadd.f32 %v5466, %v341
        %v5471 = vmax.f32 %v5467, 0.0
        %v5472 = vmax.f32 %v5468, 0.0
        %v5473 = vmax.f32 %v5469, 0.0
        %v5474 = vmax.f32 %v5470, 0.0
        %v5475 = vpack.c.bf16 %v5471, %v5471
        %v5476 = vpack.c.bf16 %v5472, %v5472
        %v5477 = vpack.c.bf16 %v5473, %v5473
        %v5478 = vpack.c.bf16 %v5474, %v5474
        %s5479 = scalar_lea.vmem [#allocation6], 1792
        %v5480 = vld [vmem:[%s5479] sm:$0xf]
        %v5481 = vld [vmem:[%s5479 + $0x4] sm:$0xf]
        %v5482 = vld [vmem:[%s5479 + $0x8] sm:$0xf]
        %v5483 = vld [vmem:[%s5479 + $0xc] sm:$0xf]
        %v5484 = vld [vmem:[%s5479 + $0x10] sm:$0xf]
        %v5485 = vld [vmem:[%s5479 + $0x14] sm:$0xf]
        %v5486 = vld [vmem:[%s5479 + $0x18] sm:$0xf]
        %v5487 = vld [vmem:[%s5479 + $0x1c] sm:$0xf]
        %v5488 = vld [vmem:[%s5479 + $0x20] sm:$0xf]
        %v5489 = vld [vmem:[%s5479 + $0x24] sm:$0xf]
        %v5490 = vld [vmem:[%s5479 + $0x28] sm:$0xf]
        %v5491 = vld [vmem:[%s5479 + $0x2c] sm:$0xf]
        %v5492 = vld [vmem:[%s5479 + $0x30] sm:$0xf]
        %v5493 = vld [vmem:[%s5479 + $0x34] sm:$0xf]
        %v5494 = vld [vmem:[%s5479 + $0x38] sm:$0xf]
        %v5495 = vld [vmem:[%s5479 + $0x3c] sm:$0xf]
        %v5496 = vld [vmem:[%s5479 + $0x40] sm:$0xf]
        %v5497 = vld [vmem:[%s5479 + $0x44] sm:$0xf]
        %v5498 = vld [vmem:[%s5479 + $0x48] sm:$0xf]
        %v5499 = vld [vmem:[%s5479 + $0x4c] sm:$0xf]
        %v5500 = vld [vmem:[%s5479 + $0x50] sm:$0xf]
        %v5501 = vld [vmem:[%s5479 + $0x54] sm:$0xf]
        %v5502 = vld [vmem:[%s5479 + $0x58] sm:$0xf]
        %v5503 = vld [vmem:[%s5479 + $0x5c] sm:$0xf]
        %v5504 = vld [vmem:[%s5479 + $0x60] sm:$0xf]
        %v5505 = vld [vmem:[%s5479 + $0x64] sm:$0xf]
        %v5506 = vld [vmem:[%s5479 + $0x68] sm:$0xf]
        %v5507 = vld [vmem:[%s5479 + $0x6c] sm:$0xf]
        %v5508 = vld [vmem:[%s5479 + $0x70] sm:$0xf]
        %v5509 = vld [vmem:[%s5479 + $0x74] sm:$0xf]
        %v5510 = vld [vmem:[%s5479 + $0x78] sm:$0xf]
        %v5511 = vld [vmem:[%s5479 + $0x7c] sm:$0xf]
        %v5512 = vld [vmem:[%s5479 + $0x80] sm:$0xf]
        %v5513 = vld [vmem:[%s5479 + $0x84] sm:$0xf]
        %v5514 = vld [vmem:[%s5479 + $0x88] sm:$0xf]
        %v5515 = vld [vmem:[%s5479 + $0x8c] sm:$0xf]
        %v5516 = vld [vmem:[%s5479 + $0x90] sm:$0xf]
        %v5517 = vld [vmem:[%s5479 + $0x94] sm:$0xf]
        %v5518 = vld [vmem:[%s5479 + $0x98] sm:$0xf]
        %v5519 = vld [vmem:[%s5479 + $0x9c] sm:$0xf]
        %v5520 = vld [vmem:[%s5479 + $0xa0] sm:$0xf]
        %v5521 = vld [vmem:[%s5479 + $0xa4] sm:$0xf]
        %v5522 = vld [vmem:[%s5479 + $0xa8] sm:$0xf]
        %v5523 = vld [vmem:[%s5479 + $0xac] sm:$0xf]
        %v5524 = vld [vmem:[%s5479 + $0xb0] sm:$0xf]
        %v5525 = vld [vmem:[%s5479 + $0xb4] sm:$0xf]
        %v5526 = vld [vmem:[%s5479 + $0xb8] sm:$0xf]
        %v5527 = vld [vmem:[%s5479 + $0xbc] sm:$0xf]
        %v5528 = vld [vmem:[%s5479 + $0xc0] sm:$0xf]
        %v5529 = vld [vmem:[%s5479 + $0xc4] sm:$0xf]
        %v5530 = vld [vmem:[%s5479 + $0xc8] sm:$0xf]
        %v5531 = vld [vmem:[%s5479 + $0xcc] sm:$0xf]
        %v5532 = vld [vmem:[%s5479 + $0xd0] sm:$0xf]
        %v5533 = vld [vmem:[%s5479 + $0xd4] sm:$0xf]
        %v5534 = vld [vmem:[%s5479 + $0xd8] sm:$0xf]
        %v5535 = vld [vmem:[%s5479 + $0xdc] sm:$0xf]
        %v5592 = vunpack.c.l.b16 %v5480
        %v5593 = vunpack.c.l.b16 %v5481
        %v5594 = vunpack.c.l.b16 %v5482
        %v5595 = vunpack.c.l.b16 %v5483
        %v5596 = vunpack.c.l.b16 %v5484
        %v5597 = vunpack.c.l.b16 %v5485
        %v5598 = vunpack.c.l.b16 %v5486
        %v5599 = vunpack.c.l.b16 %v5487
        %v5600 = vunpack.c.l.b16 %v5488
        %v5601 = vunpack.c.l.b16 %v5489
        %v5602 = vunpack.c.l.b16 %v5490
        %v5603 = vunpack.c.l.b16 %v5491
        %v5604 = vunpack.c.l.b16 %v5492
        %v5605 = vunpack.c.l.b16 %v5493
        %v5606 = vunpack.c.l.b16 %v5494
        %v5607 = vunpack.c.l.b16 %v5495
        %v5608 = vunpack.c.l.b16 %v5496
        %v5609 = vunpack.c.l.b16 %v5497
        %v5610 = vunpack.c.l.b16 %v5498
        %v5611 = vunpack.c.l.b16 %v5499
        %v5612 = vunpack.c.l.b16 %v5500
        %v5613 = vunpack.c.l.b16 %v5501
        %v5614 = vunpack.c.l.b16 %v5502
        %v5615 = vunpack.c.l.b16 %v5503
        %v5616 = vunpack.c.l.b16 %v5504
        %v5617 = vunpack.c.l.b16 %v5505
        %v5618 = vunpack.c.l.b16 %v5506
        %v5619 = vunpack.c.l.b16 %v5507
        %v5620 = vunpack.c.l.b16 %v5508
        %v5621 = vunpack.c.l.b16 %v5509
        %v5622 = vunpack.c.l.b16 %v5510
        %v5623 = vunpack.c.l.b16 %v5511
        %v5624 = vunpack.c.l.b16 %v5512
        %v5625 = vunpack.c.l.b16 %v5513
        %v5626 = vunpack.c.l.b16 %v5514
        %v5627 = vunpack.c.l.b16 %v5515
        %v5628 = vunpack.c.l.b16 %v5516
        %v5629 = vunpack.c.l.b16 %v5517
        %v5630 = vunpack.c.l.b16 %v5518
        %v5631 = vunpack.c.l.b16 %v5519
        %v5632 = vunpack.c.l.b16 %v5520
        %v5633 = vunpack.c.l.b16 %v5521
        %v5634 = vunpack.c.l.b16 %v5522
        %v5635 = vunpack.c.l.b16 %v5523
        %v5636 = vunpack.c.l.b16 %v5524
        %v5637 = vunpack.c.l.b16 %v5525
        %v5638 = vunpack.c.l.b16 %v5526
        %v5639 = vunpack.c.l.b16 %v5527
        %v5640 = vunpack.c.l.b16 %v5528
        %v5641 = vunpack.c.l.b16 %v5529
        %v5642 = vunpack.c.l.b16 %v5530
        %v5643 = vunpack.c.l.b16 %v5531
        %v5644 = vunpack.c.l.b16 %v5532
        %v5645 = vunpack.c.l.b16 %v5533
        %v5646 = vunpack.c.l.b16 %v5534
        %v5647 = vunpack.c.l.b16 %v5535
        %v5648 = vpack.c.b16 %v5593, %v5592
        %v5649 = vpack.c.b16 %v5595, %v5594
        %v5650 = vpack.c.b16 %v5597, %v5596
        %v5651 = vpack.c.b16 %v5599, %v5598
        %v5652 = vpack.c.b16 %v5601, %v5600
        %v5653 = vpack.c.b16 %v5603, %v5602
        %v5654 = vpack.c.b16 %v5605, %v5604
        %v5655 = vpack.c.b16 %v5607, %v5606
        %v5656 = vpack.c.b16 %v5609, %v5608
        %v5657 = vpack.c.b16 %v5611, %v5610
        %v5658 = vpack.c.b16 %v5613, %v5612
        %v5659 = vpack.c.b16 %v5615, %v5614
        %v5660 = vpack.c.b16 %v5617, %v5616
        %v5661 = vpack.c.b16 %v5619, %v5618
        %v5662 = vpack.c.b16 %v5621, %v5620
        %v5663 = vpack.c.b16 %v5623, %v5622
        %v5664 = vpack.c.b16 %v5625, %v5624
        %v5665 = vpack.c.b16 %v5627, %v5626
        %v5666 = vpack.c.b16 %v5629, %v5628
        %v5667 = vpack.c.b16 %v5631, %v5630
        %v5668 = vpack.c.b16 %v5633, %v5632
        %v5669 = vpack.c.b16 %v5635, %v5634
        %v5670 = vpack.c.b16 %v5637, %v5636
        %v5671 = vpack.c.b16 %v5639, %v5638
        %v5672 = vpack.c.b16 %v5641, %v5640
        %v5673 = vpack.c.b16 %v5643, %v5642
        %v5674 = vpack.c.b16 %v5645, %v5644
        %v5675 = vpack.c.b16 %v5647, %v5646
        %v5705 = vsel %vm1322, %v5478, 0
        %5707 = vmatprep.subr.bf16.mxu0 0
        %5708 = vmatpush1.bf16.msra.mxu0 %v5648
        %5709 = vmatprep.subr.bf16.mxu0 0
        %5710 = vmatpush1.bf16.msra.mxu0 %v5649
        %5711 = vmatprep.subr.bf16.mxu0 0
        %5712 = vmatpush1.bf16.msra.mxu0 %v5650
        %5713 = vmatprep.subr.bf16.mxu0 0
        %5714 = vmatpush1.bf16.msra.mxu0 %v5651
        %5715 = vmatprep.subr.bf16.mxu0 0
        %5716 = vmatpush1.bf16.msra.mxu0 %v5652
        %5717 = vmatprep.subr.bf16.mxu0 0
        %5718 = vmatpush1.bf16.msra.mxu0 %v5653
        %5719 = vmatprep.subr.bf16.mxu0 0
        %5720 = vmatpush1.bf16.msra.mxu0 %v5654
        %5721 = vmatprep.subr.bf16.mxu0 0
        %5722 = vmatpush1.bf16.msra.mxu0 %v5655
        %5723 = vmatprep.subr.bf16.mxu0 0
        %5724 = vmatpush1.bf16.msra.mxu0 %v5656
        %5725 = vmatprep.subr.bf16.mxu0 0
        %5726 = vmatpush1.bf16.msra.mxu0 %v5657
        %5727 = vmatprep.subr.bf16.mxu0 0
        %5728 = vmatpush1.bf16.msra.mxu0 %v5658
        %5729 = vmatprep.subr.bf16.mxu0 0
        %5730 = vmatpush1.bf16.msra.mxu0 %v5659
        %5731 = vmatprep.subr.bf16.mxu0 0
        %5732 = vmatpush1.bf16.msra.mxu0 %v5660
        %5733 = vmatprep.subr.bf16.mxu0 0
        %5734 = vmatpush1.bf16.msra.mxu0 %v5661
        %5735 = vmatprep.subr.bf16.mxu0 0
        %5736 = vmatpush1.bf16.msra.mxu0 %v5662
        %5737 = vmatprep.subr.bf16.mxu0 0
        %5738 = vmatpush1.bf16.msra.mxu0 %v5663
        %5739 = vmatprep.mubr.bf16.mxu0 %v5476
        %5740 = vmatmul.mubr.bf16.gmra.mrb[0].mxu0 %v5475
        %v5741 = vpop.f32.mrb[0].mxu0
        %v5742 = vadd.f32 0.0, %v5741
        %v5743 = vpop.f32.mrb[0].mxu0
        %v5744 = vpop.f32.mrb[0].mxu0
        %v5745 = vpop.f32.mrb[0].mxu0
        %5746 = vdwg.mxu0
        %5747 = vmatprep.subr.bf16.mxu0 0
        %5748 = vmatpush1.bf16.msra.mxu0 %v5664
        %5749 = vmatprep.subr.bf16.mxu0 0
        %5750 = vmatpush1.bf16.msra.mxu0 %v5665
        %5751 = vmatprep.subr.bf16.mxu0 0
        %5752 = vmatpush1.bf16.msra.mxu0 %v5666
        %5753 = vmatprep.subr.bf16.mxu0 0
        %5754 = vmatpush1.bf16.msra.mxu0 %v5667
        %5755 = vmatprep.subr.bf16.mxu0 0
        %5756 = vmatpush1.bf16.msra.mxu0 %v5668
        %5757 = vmatprep.subr.bf16.mxu0 0
        %5758 = vmatpush1.bf16.msra.mxu0 %v5669
        %5759 = vmatprep.subr.bf16.mxu0 0
        %5760 = vmatpush1.bf16.msra.mxu0 %v5670
        %5761 = vmatprep.subr.bf16.mxu0 0
        %5762 = vmatpush1.bf16.msra.mxu0 %v5671
        %5763 = vmatprep.subr.bf16.mxu0 0
        %5764 = vmatpush1.bf16.msra.mxu0 %v5672
        %5765 = vmatprep.subr.bf16.mxu0 0
        %5766 = vmatpush1.bf16.msra.mxu0 %v5673
        %5767 = vmatprep.subr.bf16.mxu0 0
        %5768 = vmatpush1.bf16.msra.mxu0 %v5674
        %5769 = vmatprep.subr.bf16.mxu0 0
        %5770 = vmatpush1.bf16.msra.mxu0 %v5675
        %5771 = vmatprep.subr.bf16.mxu0 0
        %5772 = vmatpush1.bf16.msra.mxu0 0
        %5773 = vmatprep.subr.bf16.mxu0 0
        %5774 = vmatpush1.bf16.msra.mxu0 0
        %5775 = vmatprep.subr.bf16.mxu0 0
        %5776 = vmatpush1.bf16.msra.mxu0 0
        %5777 = vmatprep.subr.bf16.mxu0 0
        %5778 = vmatpush1.bf16.msra.mxu0 0
        %5779 = vmatprep.mubr.bf16.mxu0 %v5705
        %5780 = vmatmul.mubr.bf16.gmra.mrb[0].mxu0 %v5477
        %v5781 = vpop.f32.mrb[0].mxu0
        %v5782 = vadd.f32 %v5742, %v5781
        %v5783 = vpop.f32.mrb[0].mxu0
        %v5784 = vpop.f32.mrb[0].mxu0
        %v5785 = vpop.f32.mrb[0].mxu0
        %5786 = vdwg.mxu0
        %v5787 = vadd.f32 %v5198, %v5782
        %5788 = vmatprep.subr.bf16.mxu0 %v407
        %5789 = vmatpush1.bf16.msra.mxu0 %v406
        %5790 = vmatprep.subr.bf16.mxu0 0
        %5791 = vmatpush1.bf16.msra.mxu0 0
        %5792 = vmatprep.subr.bf16.mxu0 0
        %5793 = vmatpush1.bf16.msra.mxu0 0
        %5794 = vmatprep.subr.bf16.mxu0 0
        %5795 = vmatpush1.bf16.msra.mxu0 0
        %5796 = vmatprep.subr.bf16.mxu0 0
        %5797 = vmatpush1.bf16.msra.mxu0 0
        %5798 = vmatprep.subr.bf16.mxu0 0
        %5799 = vmatpush1.bf16.msra.mxu0 0
        %5800 = vmatprep.subr.bf16.mxu0 0
        %5801 = vmatpush1.bf16.msra.mxu0 0
        %5802 = vmatprep.subr.bf16.mxu0 0
        %5803 = vmatpush1.bf16.msra.mxu0 0
        %5804 = vmatprep.subr.bf16.mxu0 0
        %5805 = vmatpush1.bf16.msra.mxu0 0
        %5806 = vmatprep.subr.bf16.mxu0 0
        %5807 = vmatpush1.bf16.msra.mxu0 0
        %5808 = vmatprep.subr.bf16.mxu0 0
        %5809 = vmatpush1.bf16.msra.mxu0 0
        %5810 = vmatprep.subr.bf16.mxu0 0
        %5811 = vmatpush1.bf16.msra.mxu0 0
        %5812 = vmatprep.subr.bf16.mxu0 0
        %5813 = vmatpush1.bf16.msra.mxu0 0
        %5814 = vmatprep.subr.bf16.mxu0 0
        %5815 = vmatpush1.bf16.msra.mxu0 0
        %5816 = vmatprep.subr.bf16.mxu0 0
        %5817 = vmatpush1.bf16.msra.mxu0 0
        %5818 = vmatprep.subr.bf16.mxu0 0
        %5819 = vmatpush1.bf16.msra.mxu0 0
        %5820 = vmatprep.mubr.bf16.mxu0 0
        %5821 = vmatmul.mubr.bf16.gmra.mrb[0].mxu0 %v5379
        %v5822 = vpop.f32.mrb[0].mxu0
        %v5823 = vadd.f32 0.0, %v5822
        %v5824 = vpop.f32.mrb[0].mxu0
        %v5825 = vadd.f32 0.0, %v5824
        %v5826 = vpop.f32.mrb[0].mxu0
        %v5827 = vpop.f32.mrb[0].mxu0
        %5828 = vdwg.mxu0
        %5829 = vmatprep.subr.bf16.mxu0 %v409
        %5830 = vmatpush1.bf16.msra.mxu0 %v408
        %5831 = vmatprep.subr.bf16.mxu0 0
        %5832 = vmatpush1.bf16.msra.mxu0 0
        %5833 = vmatprep.subr.bf16.mxu0 0
        %5834 = vmatpush1.bf16.msra.mxu0 0
        %5835 = vmatprep.subr.bf16.mxu0 0
        %5836 = vmatpush1.bf16.msra.mxu0 0
        %5837 = vmatprep.subr.bf16.mxu0 0
        %5838 = vmatpush1.bf16.msra.mxu0 0
        %5839 = vmatprep.subr.bf16.mxu0 0
        %5840 = vmatpush1.bf16.msra.mxu0 0
        %5841 = vmatprep.subr.bf16.mxu0 0
        %5842 = vmatpush1.bf16.msra.mxu0 0
        %5843 = vmatprep.subr.bf16.mxu0 0
        %5844 = vmatpush1.bf16.msra.mxu0 0
        %5845 = vmatprep.subr.bf16.mxu0 0
        %5846 = vmatpush1.bf16.msra.mxu0 0
        %5847 = vmatprep.subr.bf16.mxu0 0
        %5848 = vmatpush1.bf16.msra.mxu0 0
        %5849 = vmatprep.subr.bf16.mxu0 0
        %5850 = vmatpush1.bf16.msra.mxu0 0
        %5851 = vmatprep.subr.bf16.mxu0 0
        %5852 = vmatpush1.bf16.msra.mxu0 0
        %5853 = vmatprep.subr.bf16.mxu0 0
        %5854 = vmatpush1.bf16.msra.mxu0 0
        %5855 = vmatprep.subr.bf16.mxu0 0
        %5856 = vmatpush1.bf16.msra.mxu0 0
        %5857 = vmatprep.subr.bf16.mxu0 0
        %5858 = vmatpush1.bf16.msra.mxu0 0
        %5859 = vmatprep.subr.bf16.mxu0 0
        %5860 = vmatpush1.bf16.msra.mxu0 0
        %5861 = vmatprep.mubr.bf16.mxu0 0
        %5862 = vmatmul.mubr.bf16.gmra.mrb[0].mxu0 %v5379
        %v5863 = vpop.f32.mrb[0].mxu0
        %v5864 = vadd.f32 0.0, %v5863
        %v5865 = vpop.f32.mrb[0].mxu0
        %v5866 = vadd.f32 0.0, %v5865
        %v5867 = vpop.f32.mrb[0].mxu0
        %v5868 = vpop.f32.mrb[0].mxu0
        %5869 = vdwg.mxu0
        %5870 = vmatprep.subr.bf16.mxu0 %v528
        %5871 = vmatpush1.bf16.msra.mxu0 %v527
        %5872 = vmatprep.subr.bf16.mxu0 0
        %5873 = vmatpush1.bf16.msra.mxu0 0
        %5874 = vmatprep.subr.bf16.mxu0 0
        %5875 = vmatpush1.bf16.msra.mxu0 0
        %5876 = vmatprep.subr.bf16.mxu0 0
        %5877 = vmatpush1.bf16.msra.mxu0 0
        %5878 = vmatprep.subr.bf16.mxu0 0
        %5879 = vmatpush1.bf16.msra.mxu0 0
        %5880 = vmatprep.subr.bf16.mxu0 0
        %5881 = vmatpush1.bf16.msra.mxu0 0
        %5882 = vmatprep.subr.bf16.mxu0 0
        %5883 = vmatpush1.bf16.msra.mxu0 0
        %5884 = vmatprep.subr.bf16.mxu0 0
        %5885 = vmatpush1.bf16.msra.mxu0 0
        %5886 = vmatprep.subr.bf16.mxu0 0
        %5887 = vmatpush1.bf16.msra.mxu0 0
        %5888 = vmatprep.subr.bf16.mxu0 0
        %5889 = vmatpush1.bf16.msra.mxu0 0
        %5890 = vmatprep.subr.bf16.mxu0 0
        %5891 = vmatpush1.bf16.msra.mxu0 0
        %5892 = vmatprep.subr.bf16.mxu0 0
        %5893 = vmatpush1.bf16.msra.mxu0 0
        %5894 = vmatprep.subr.bf16.mxu0 0
        %5895 = vmatpush1.bf16.msra.mxu0 0
        %5896 = vmatprep.subr.bf16.mxu0 0
        %5897 = vmatpush1.bf16.msra.mxu0 0
        %5898 = vmatprep.subr.bf16.mxu0 0
        %5899 = vmatpush1.bf16.msra.mxu0 0
        %5900 = vmatprep.subr.bf16.mxu0 0
        %5901 = vmatpush1.bf16.msra.mxu0 0
        %5902 = vmatprep.mubr.bf16.mxu0 0
        %5903 = vmatmul.mubr.bf16.gmra.mrb[0].mxu0 %v4790
        %v5904 = vpop.f32.mrb[0].mxu0
        %v5905 = vadd.f32 %v5823, %v5904
        %v5906 = vpop.f32.mrb[0].mxu0
        %v5907 = vadd.f32 %v5825, %v5906
        %v5908 = vpop.f32.mrb[0].mxu0
        %v5909 = vpop.f32.mrb[0].mxu0
        %5910 = vdwg.mxu0
        %5911 = vmatprep.subr.bf16.mxu0 %v530
        %5912 = vmatpush1.bf16.msra.mxu0 %v529
        %5913 = vmatprep.subr.bf16.mxu0 0
        %5914 = vmatpush1.bf16.msra.mxu0 0
        %5915 = vmatprep.subr.bf16.mxu0 0
        %5916 = vmatpush1.bf16.msra.mxu0 0
        %5917 = vmatprep.subr.bf16.mxu0 0
        %5918 = vmatpush1.bf16.msra.mxu0 0
        %5919 = vmatprep.subr.bf16.mxu0 0
        %5920 = vmatpush1.bf16.msra.mxu0 0
        %5921 = vmatprep.subr.bf16.mxu0 0
        %5922 = vmatpush1.bf16.msra.mxu0 0
        %5923 = vmatprep.subr.bf16.mxu0 0
        %5924 = vmatpush1.bf16.msra.mxu0 0
        %5925 = vmatprep.subr.bf16.mxu0 0
        %5926 = vmatpush1.bf16.msra.mxu0 0
        %5927 = vmatprep.subr.bf16.mxu0 0
        %5928 = vmatpush1.bf16.msra.mxu0 0
        %5929 = vmatprep.subr.bf16.mxu0 0
        %5930 = vmatpush1.bf16.msra.mxu0 0
        %5931 = vmatprep.subr.bf16.mxu0 0
        %5932 = vmatpush1.bf16.msra.mxu0 0
        %5933 = vmatprep.subr.bf16.mxu0 0
        %5934 = vmatpush1.bf16.msra.mxu0 0
        %5935 = vmatprep.subr.bf16.mxu0 0
        %5936 = vmatpush1.bf16.msra.mxu0 0
        %5937 = vmatprep.subr.bf16.mxu0 0
        %5938 = vmatpush1.bf16.msra.mxu0 0
        %5939 = vmatprep.subr.bf16.mxu0 0
        %5940 = vmatpush1.bf16.msra.mxu0 0
        %5941 = vmatprep.subr.bf16.mxu0 0
        %5942 = vmatpush1.bf16.msra.mxu0 0
        %5943 = vmatprep.mubr.bf16.mxu0 0
        %5944 = vmatmul.mubr.bf16.gmra.mrb[0].mxu0 %v4790
        %v5945 = vpop.f32.mrb[0].mxu0
        %v5946 = vadd.f32 %v5864, %v5945
        %v5947 = vpop.f32.mrb[0].mxu0
        %v5948 = vadd.f32 %v5866, %v5947
        %v5949 = vpop.f32.mrb[0].mxu0
        %v5950 = vpop.f32.mrb[0].mxu0
        %5951 = vdwg.mxu0
        %v5952 = vrot.slane %v4177, 3
        %v5953 = vrot.slane %v4178, 2
        %v5954 = vsel %vm373, %v5953, %v5952
        %v5955 = vrot.slane %v4179, 1
        %v5956 = vsel %vm376, %v5955, %v5954
        %v5957 = vsel %vm379, %v4180, %v5956
        %v5958 = vrot.slane %v4181, 7
        %v5959 = vsel %vm382, %v5958, %v5957
        %v5960 = vrot.slane %v4182, 6
        %v5961 = vsel %vm385, %v5960, %v5959
        %v5962 = vrot.slane %v4183, 5
        %v5963 = vsel %vm388, %v5962, %v5961
        %v5964 = vrot.slane %v4184, 4
        %v5965 = vsel %vm391, %v5964, %v5963
        %v5966 = vpack.c.b16 %v5965, %v5965
        %v5968 = vsel %vm414, %v5966, 0
        %5970 = vmatprep.subr.bf16.mxu0 %v653
        %5971 = vmatpush1.bf16.msra.mxu0 %v652
        %5972 = vmatprep.subr.bf16.mxu0 0
        %5973 = vmatpush1.bf16.msra.mxu0 0
        %5974 = vmatprep.subr.bf16.mxu0 0
        %5975 = vmatpush1.bf16.msra.mxu0 0
        %5976 = vmatprep.subr.bf16.mxu0 0
        %5977 = vmatpush1.bf16.msra.mxu0 0
        %5978 = vmatprep.subr.bf16.mxu0 0
        %5979 = vmatpush1.bf16.msra.mxu0 0
        %5980 = vmatprep.subr.bf16.mxu0 0
        %5981 = vmatpush1.bf16.msra.mxu0 0
        %5982 = vmatprep.subr.bf16.mxu0 0
        %5983 = vmatpush1.bf16.msra.mxu0 0
        %5984 = vmatprep.subr.bf16.mxu0 0
        %5985 = vmatpush1.bf16.msra.mxu0 0
        %5986 = vmatprep.subr.bf16.mxu0 0
        %5987 = vmatpush1.bf16.msra.mxu0 0
        %5988 = vmatprep.subr.bf16.mxu0 0
        %5989 = vmatpush1.bf16.msra.mxu0 0
        %5990 = vmatprep.subr.bf16.mxu0 0
        %5991 = vmatpush1.bf16.msra.mxu0 0
        %5992 = vmatprep.subr.bf16.mxu0 0
        %5993 = vmatpush1.bf16.msra.mxu0 0
        %5994 = vmatprep.subr.bf16.mxu0 0
        %5995 = vmatpush1.bf16.msra.mxu0 0
        %5996 = vmatprep.subr.bf16.mxu0 0
        %5997 = vmatpush1.bf16.msra.mxu0 0
        %5998 = vmatprep.subr.bf16.mxu0 0
        %5999 = vmatpush1.bf16.msra.mxu0 0
        %6000 = vmatprep.subr.bf16.mxu0 0
        %6001 = vmatpush1.bf16.msra.mxu0 0
        %6002 = vmatprep.mubr.bf16.mxu0 0
        %6003 = vmatmul.mubr.bf16.gmra.mrb[0].mxu0 %v5968
        %v6004 = vpop.f32.mrb[0].mxu0
        %v6005 = vadd.f32 0.0, %v6004
        %v6006 = vpop.f32.mrb[0].mxu0
        %v6007 = vadd.f32 0.0, %v6006
        %v6008 = vpop.f32.mrb[0].mxu0
        %v6009 = vpop.f32.mrb[0].mxu0
        %6010 = vdwg.mxu0
        %6011 = vmatprep.subr.bf16.mxu0 %v655
        %6012 = vmatpush1.bf16.msra.mxu0 %v654
        %6013 = vmatprep.subr.bf16.mxu0 0
        %6014 = vmatpush1.bf16.msra.mxu0 0
        %6015 = vmatprep.subr.bf16.mxu0 0
        %6016 = vmatpush1.bf16.msra.mxu0 0
        %6017 = vmatprep.subr.bf16.mxu0 0
        %6018 = vmatpush1.bf16.msra.mxu0 0
        %6019 = vmatprep.subr.bf16.mxu0 0
        %6020 = vmatpush1.bf16.msra.mxu0 0
        %6021 = vmatprep.subr.bf16.mxu0 0
        %6022 = vmatpush1.bf16.msra.mxu0 0
        %6023 = vmatprep.subr.bf16.mxu0 0
        %6024 = vmatpush1.bf16.msra.mxu0 0
        %6025 = vmatprep.subr.bf16.mxu0 0
        %6026 = vmatpush1.bf16.msra.mxu0 0
        %6027 = vmatprep.subr.bf16.mxu0 0
        %6028 = vmatpush1.bf16.msra.mxu0 0
        %6029 = vmatprep.subr.bf16.mxu0 0
        %6030 = vmatpush1.bf16.msra.mxu0 0
        %6031 = vmatprep.subr.bf16.mxu0 0
        %6032 = vmatpush1.bf16.msra.mxu0 0
        %6033 = vmatprep.subr.bf16.mxu0 0
        %6034 = vmatpush1.bf16.msra.mxu0 0
        %6035 = vmatprep.subr.bf16.mxu0 0
        %6036 = vmatpush1.bf16.msra.mxu0 0
        %6037 = vmatprep.subr.bf16.mxu0 0
        %6038 = vmatpush1.bf16.msra.mxu0 0
        %6039 = vmatprep.subr.bf16.mxu0 0
        %6040 = vmatpush1.bf16.msra.mxu0 0
        %6041 = vmatprep.subr.bf16.mxu0 0
        %6042 = vmatpush1.bf16.msra.mxu0 0
        %6043 = vmatprep.mubr.bf16.mxu0 0
        %6044 = vmatmul.mubr.bf16.gmra.mrb[0].mxu0 %v5968
        %v6045 = vpop.f32.mrb[0].mxu0
        %v6046 = vadd.f32 0.0, %v6045
        %v6047 = vpop.f32.mrb[0].mxu0
        %v6048 = vadd.f32 0.0, %v6047
        %v6049 = vpop.f32.mrb[0].mxu0
        %v6050 = vpop.f32.mrb[0].mxu0
        %6051 = vdwg.mxu0
        %v6052 = vadd.f32 %v5905, %v6005
        %v6053 = vadd.f32 %v5907, %v6007
        %v6054 = vadd.f32 %v5946, %v6046
        %v6055 = vadd.f32 %v5948, %v6048
        %v6056 = vadd.f32 %v6052, %v329
        %v6057 = vadd.f32 %v6053, %v333
        %v6058 = vadd.f32 %v6054, %v337
        %v6059 = vadd.f32 %v6055, %v341
        %v6060 = vmax.f32 %v6056, 0.0
        %v6061 = vmax.f32 %v6057, 0.0
        %v6062 = vmax.f32 %v6058, 0.0
        %v6063 = vmax.f32 %v6059, 0.0
        %v6064 = vpack.c.bf16 %v6060, %v6060
        %v6065 = vpack.c.bf16 %v6061, %v6061
        %v6066 = vpack.c.bf16 %v6062, %v6062
        %v6067 = vpack.c.bf16 %v6063, %v6063
        %s6068 = scalar_lea.vmem [#allocation6], 2016
        %v6069 = vld [vmem:[%s6068] sm:$0xf]
        %v6070 = vld [vmem:[%s6068 + $0x4] sm:$0xf]
        %v6071 = vld [vmem:[%s6068 + $0x8] sm:$0xf]
        %v6072 = vld [vmem:[%s6068 + $0xc] sm:$0xf]
        %v6073 = vld [vmem:[%s6068 + $0x10] sm:$0xf]
        %v6074 = vld [vmem:[%s6068 + $0x14] sm:$0xf]
        %v6075 = vld [vmem:[%s6068 + $0x18] sm:$0xf]
        %v6076 = vld [vmem:[%s6068 + $0x1c] sm:$0xf]
        %v6077 = vld [vmem:[%s6068 + $0x20] sm:$0xf]
        %v6078 = vld [vmem:[%s6068 + $0x24] sm:$0xf]
        %v6079 = vld [vmem:[%s6068 + $0x28] sm:$0xf]
        %v6080 = vld [vmem:[%s6068 + $0x2c] sm:$0xf]
        %v6081 = vld [vmem:[%s6068 + $0x30] sm:$0xf]
        %v6082 = vld [vmem:[%s6068 + $0x34] sm:$0xf]
        %v6083 = vld [vmem:[%s6068 + $0x38] sm:$0xf]
        %v6084 = vld [vmem:[%s6068 + $0x3c] sm:$0xf]
        %v6085 = vld [vmem:[%s6068 + $0x40] sm:$0xf]
        %v6086 = vld [vmem:[%s6068 + $0x44] sm:$0xf]
        %v6087 = vld [vmem:[%s6068 + $0x48] sm:$0xf]
        %v6088 = vld [vmem:[%s6068 + $0x4c] sm:$0xf]
        %v6089 = vld [vmem:[%s6068 + $0x50] sm:$0xf]
        %v6090 = vld [vmem:[%s6068 + $0x54] sm:$0xf]
        %v6091 = vld [vmem:[%s6068 + $0x58] sm:$0xf]
        %v6092 = vld [vmem:[%s6068 + $0x5c] sm:$0xf]
        %v6093 = vld [vmem:[%s6068 + $0x60] sm:$0xf]
        %v6094 = vld [vmem:[%s6068 + $0x64] sm:$0xf]
        %v6095 = vld [vmem:[%s6068 + $0x68] sm:$0xf]
        %v6096 = vld [vmem:[%s6068 + $0x6c] sm:$0xf]
        %v6097 = vld [vmem:[%s6068 + $0x70] sm:$0xf]
        %v6098 = vld [vmem:[%s6068 + $0x74] sm:$0xf]
        %v6099 = vld [vmem:[%s6068 + $0x78] sm:$0xf]
        %v6100 = vld [vmem:[%s6068 + $0x7c] sm:$0xf]
        %v6101 = vld [vmem:[%s6068 + $0x80] sm:$0xf]
        %v6102 = vld [vmem:[%s6068 + $0x84] sm:$0xf]
        %v6103 = vld [vmem:[%s6068 + $0x88] sm:$0xf]
        %v6104 = vld [vmem:[%s6068 + $0x8c] sm:$0xf]
        %v6105 = vld [vmem:[%s6068 + $0x90] sm:$0xf]
        %v6106 = vld [vmem:[%s6068 + $0x94] sm:$0xf]
        %v6107 = vld [vmem:[%s6068 + $0x98] sm:$0xf]
        %v6108 = vld [vmem:[%s6068 + $0x9c] sm:$0xf]
        %v6109 = vld [vmem:[%s6068 + $0xa0] sm:$0xf]
        %v6110 = vld [vmem:[%s6068 + $0xa4] sm:$0xf]
        %v6111 = vld [vmem:[%s6068 + $0xa8] sm:$0xf]
        %v6112 = vld [vmem:[%s6068 + $0xac] sm:$0xf]
        %v6113 = vld [vmem:[%s6068 + $0xb0] sm:$0xf]
        %v6114 = vld [vmem:[%s6068 + $0xb4] sm:$0xf]
        %v6115 = vld [vmem:[%s6068 + $0xb8] sm:$0xf]
        %v6116 = vld [vmem:[%s6068 + $0xbc] sm:$0xf]
        %v6117 = vld [vmem:[%s6068 + $0xc0] sm:$0xf]
        %v6118 = vld [vmem:[%s6068 + $0xc4] sm:$0xf]
        %v6119 = vld [vmem:[%s6068 + $0xc8] sm:$0xf]
        %v6120 = vld [vmem:[%s6068 + $0xcc] sm:$0xf]
        %v6121 = vld [vmem:[%s6068 + $0xd0] sm:$0xf]
        %v6122 = vld [vmem:[%s6068 + $0xd4] sm:$0xf]
        %v6123 = vld [vmem:[%s6068 + $0xd8] sm:$0xf]
        %v6124 = vld [vmem:[%s6068 + $0xdc] sm:$0xf]
        %v6181 = vunpack.c.l.b16 %v6069
        %v6182 = vunpack.c.l.b16 %v6070
        %v6183 = vunpack.c.l.b16 %v6071
        %v6184 = vunpack.c.l.b16 %v6072
        %v6185 = vunpack.c.l.b16 %v6073
        %v6186 = vunpack.c.l.b16 %v6074
        %v6187 = vunpack.c.l.b16 %v6075
        %v6188 = vunpack.c.l.b16 %v6076
        %v6189 = vunpack.c.l.b16 %v6077
        %v6190 = vunpack.c.l.b16 %v6078
        %v6191 = vunpack.c.l.b16 %v6079
        %v6192 = vunpack.c.l.b16 %v6080
        %v6193 = vunpack.c.l.b16 %v6081
        %v6194 = vunpack.c.l.b16 %v6082
        %v6195 = vunpack.c.l.b16 %v6083
        %v6196 = vunpack.c.l.b16 %v6084
        %v6197 = vunpack.c.l.b16 %v6085
        %v6198 = vunpack.c.l.b16 %v6086
        %v6199 = vunpack.c.l.b16 %v6087
        %v6200 = vunpack.c.l.b16 %v6088
        %v6201 = vunpack.c.l.b16 %v6089
        %v6202 = vunpack.c.l.b16 %v6090
        %v6203 = vunpack.c.l.b16 %v6091
        %v6204 = vunpack.c.l.b16 %v6092
        %v6205 = vunpack.c.l.b16 %v6093
        %v6206 = vunpack.c.l.b16 %v6094
        %v6207 = vunpack.c.l.b16 %v6095
        %v6208 = vunpack.c.l.b16 %v6096
        %v6209 = vunpack.c.l.b16 %v6097
        %v6210 = vunpack.c.l.b16 %v6098
        %v6211 = vunpack.c.l.b16 %v6099
        %v6212 = vunpack.c.l.b16 %v6100
        %v6213 = vunpack.c.l.b16 %v6101
        %v6214 = vunpack.c.l.b16 %v6102
        %v6215 = vunpack.c.l.b16 %v6103
        %v6216 = vunpack.c.l.b16 %v6104
        %v6217 = vunpack.c.l.b16 %v6105
        %v6218 = vunpack.c.l.b16 %v6106
        %v6219 = vunpack.c.l.b16 %v6107
        %v6220 = vunpack.c.l.b16 %v6108
        %v6221 = vunpack.c.l.b16 %v6109
        %v6222 = vunpack.c.l.b16 %v6110
        %v6223 = vunpack.c.l.b16 %v6111
        %v6224 = vunpack.c.l.b16 %v6112
        %v6225 = vunpack.c.l.b16 %v6113
        %v6226 = vunpack.c.l.b16 %v6114
        %v6227 = vunpack.c.l.b16 %v6115
        %v6228 = vunpack.c.l.b16 %v6116
        %v6229 = vunpack.c.l.b16 %v6117
        %v6230 = vunpack.c.l.b16 %v6118
        %v6231 = vunpack.c.l.b16 %v6119
        %v6232 = vunpack.c.l.b16 %v6120
        %v6233 = vunpack.c.l.b16 %v6121
        %v6234 = vunpack.c.l.b16 %v6122
        %v6235 = vunpack.c.l.b16 %v6123
        %v6236 = vunpack.c.l.b16 %v6124
        %v6237 = vpack.c.b16 %v6182, %v6181
        %v6238 = vpack.c.b16 %v6184, %v6183
        %v6239 = vpack.c.b16 %v6186, %v6185
        %v6240 = vpack.c.b16 %v6188, %v6187
        %v6241 = vpack.c.b16 %v6190, %v6189
        %v6242 = vpack.c.b16 %v6192, %v6191
        %v6243 = vpack.c.b16 %v6194, %v6193
        %v6244 = vpack.c.b16 %v6196, %v6195
        %v6245 = vpack.c.b16 %v6198, %v6197
        %v6246 = vpack.c.b16 %v6200, %v6199
        %v6247 = vpack.c.b16 %v6202, %v6201
        %v6248 = vpack.c.b16 %v6204, %v6203
        %v6249 = vpack.c.b16 %v6206, %v6205
        %v6250 = vpack.c.b16 %v6208, %v6207
        %v6251 = vpack.c.b16 %v6210, %v6209
        %v6252 = vpack.c.b16 %v6212, %v6211
        %v6253 = vpack.c.b16 %v6214, %v6213
        %v6254 = vpack.c.b16 %v6216, %v6215
        %v6255 = vpack.c.b16 %v6218, %v6217
        %v6256 = vpack.c.b16 %v6220, %v6219
        %v6257 = vpack.c.b16 %v6222, %v6221
        %v6258 = vpack.c.b16 %v6224, %v6223
        %v6259 = vpack.c.b16 %v6226, %v6225
        %v6260 = vpack.c.b16 %v6228, %v6227
        %v6261 = vpack.c.b16 %v6230, %v6229
        %v6262 = vpack.c.b16 %v6232, %v6231
        %v6263 = vpack.c.b16 %v6234, %v6233
        %v6264 = vpack.c.b16 %v6236, %v6235
        %v6294 = vsel %vm1322, %v6067, 0
        %6296 = vmatprep.subr.bf16.mxu0 0
        %6297 = vmatpush1.bf16.msra.mxu0 %v6237
        %6298 = vmatprep.subr.bf16.mxu0 0
        %6299 = vmatpush1.bf16.msra.mxu0 %v6238
        %6300 = vmatprep.subr.bf16.mxu0 0
        %6301 = vmatpush1.bf16.msra.mxu0 %v6239
        %6302 = vmatprep.subr.bf16.mxu0 0
        %6303 = vmatpush1.bf16.msra.mxu0 %v6240
        %6304 = vmatprep.subr.bf16.mxu0 0
        %6305 = vmatpush1.bf16.msra.mxu0 %v6241
        %6306 = vmatprep.subr.bf16.mxu0 0
        %6307 = vmatpush1.bf16.msra.mxu0 %v6242
        %6308 = vmatprep.subr.bf16.mxu0 0
        %6309 = vmatpush1.bf16.msra.mxu0 %v6243
        %6310 = vmatprep.subr.bf16.mxu0 0
        %6311 = vmatpush1.bf16.msra.mxu0 %v6244
        %6312 = vmatprep.subr.bf16.mxu0 0
        %6313 = vmatpush1.bf16.msra.mxu0 %v6245
        %6314 = vmatprep.subr.bf16.mxu0 0
        %6315 = vmatpush1.bf16.msra.mxu0 %v6246
        %6316 = vmatprep.subr.bf16.mxu0 0
        %6317 = vmatpush1.bf16.msra.mxu0 %v6247
        %6318 = vmatprep.subr.bf16.mxu0 0
        %6319 = vmatpush1.bf16.msra.mxu0 %v6248
        %6320 = vmatprep.subr.bf16.mxu0 0
        %6321 = vmatpush1.bf16.msra.mxu0 %v6249
        %6322 = vmatprep.subr.bf16.mxu0 0
        %6323 = vmatpush1.bf16.msra.mxu0 %v6250
        %6324 = vmatprep.subr.bf16.mxu0 0
        %6325 = vmatpush1.bf16.msra.mxu0 %v6251
        %6326 = vmatprep.subr.bf16.mxu0 0
        %6327 = vmatpush1.bf16.msra.mxu0 %v6252
        %6328 = vmatprep.mubr.bf16.mxu0 %v6065
        %6329 = vmatmul.mubr.bf16.gmra.mrb[0].mxu0 %v6064
        %v6330 = vpop.f32.mrb[0].mxu0
        %v6331 = vadd.f32 0.0, %v6330
        %v6332 = vpop.f32.mrb[0].mxu0
        %v6333 = vpop.f32.mrb[0].mxu0
        %v6334 = vpop.f32.mrb[0].mxu0
        %6335 = vdwg.mxu0
        %6336 = vmatprep.subr.bf16.mxu0 0
        %6337 = vmatpush1.bf16.msra.mxu0 %v6253
        %6338 = vmatprep.subr.bf16.mxu0 0
        %6339 = vmatpush1.bf16.msra.mxu0 %v6254
        %6340 = vmatprep.subr.bf16.mxu0 0
        %6341 = vmatpush1.bf16.msra.mxu0 %v6255
        %6342 = vmatprep.subr.bf16.mxu0 0
        %6343 = vmatpush1.bf16.msra.mxu0 %v6256
        %6344 = vmatprep.subr.bf16.mxu0 0
        %6345 = vmatpush1.bf16.msra.mxu0 %v6257
        %6346 = vmatprep.subr.bf16.mxu0 0
        %6347 = vmatpush1.bf16.msra.mxu0 %v6258
        %6348 = vmatprep.subr.bf16.mxu0 0
        %6349 = vmatpush1.bf16.msra.mxu0 %v6259
        %6350 = vmatprep.subr.bf16.mxu0 0
        %6351 = vmatpush1.bf16.msra.mxu0 %v6260
        %6352 = vmatprep.subr.bf16.mxu0 0
        %6353 = vmatpush1.bf16.msra.mxu0 %v6261
        %6354 = vmatprep.subr.bf16.mxu0 0
        %6355 = vmatpush1.bf16.msra.mxu0 %v6262
        %6356 = vmatprep.subr.bf16.mxu0 0
        %6357 = vmatpush1.bf16.msra.mxu0 %v6263
        %6358 = vmatprep.subr.bf16.mxu0 0
        %6359 = vmatpush1.bf16.msra.mxu0 %v6264
        %6360 = vmatprep.subr.bf16.mxu0 0
        %6361 = vmatpush1.bf16.msra.mxu0 0
        %6362 = vmatprep.subr.bf16.mxu0 0
        %6363 = vmatpush1.bf16.msra.mxu0 0
        %6364 = vmatprep.subr.bf16.mxu0 0
        %6365 = vmatpush1.bf16.msra.mxu0 0
        %6366 = vmatprep.subr.bf16.mxu0 0
        %6367 = vmatpush1.bf16.msra.mxu0 0
        %6368 = vmatprep.mubr.bf16.mxu0 %v6294
        %6369 = vmatmul.mubr.bf16.gmra.mrb[0].mxu0 %v6066
        %v6370 = vpop.f32.mrb[0].mxu0
        %v6371 = vadd.f32 %v6331, %v6370
        %v6372 = vpop.f32.mrb[0].mxu0
        %v6373 = vpop.f32.mrb[0].mxu0
        %v6374 = vpop.f32.mrb[0].mxu0
        %6375 = vdwg.mxu0
        %v6376 = vadd.f32 %v5787, %v6371
        %6377 = vmatprep.subr.bf16.mxu0 %v407
        %6378 = vmatpush1.bf16.msra.mxu0 %v406
        %6379 = vmatprep.subr.bf16.mxu0 0
        %6380 = vmatpush1.bf16.msra.mxu0 0
        %6381 = vmatprep.subr.bf16.mxu0 0
        %6382 = vmatpush1.bf16.msra.mxu0 0
        %6383 = vmatprep.subr.bf16.mxu0 0
        %6384 = vmatpush1.bf16.msra.mxu0 0
        %6385 = vmatprep.subr.bf16.mxu0 0
        %6386 = vmatpush1.bf16.msra.mxu0 0
        %6387 = vmatprep.subr.bf16.mxu0 0
        %6388 = vmatpush1.bf16.msra.mxu0 0
        %6389 = vmatprep.subr.bf16.mxu0 0
        %6390 = vmatpush1.bf16.msra.mxu0 0
        %6391 = vmatprep.subr.bf16.mxu0 0
        %6392 = vmatpush1.bf16.msra.mxu0 0
        %6393 = vmatprep.subr.bf16.mxu0 0
        %6394 = vmatpush1.bf16.msra.mxu0 0
        %6395 = vmatprep.subr.bf16.mxu0 0
        %6396 = vmatpush1.bf16.msra.mxu0 0
        %6397 = vmatprep.subr.bf16.mxu0 0
        %6398 = vmatpush1.bf16.msra.mxu0 0
        %6399 = vmatprep.subr.bf16.mxu0 0
        %6400 = vmatpush1.bf16.msra.mxu0 0
        %6401 = vmatprep.subr.bf16.mxu0 0
        %6402 = vmatpush1.bf16.msra.mxu0 0
        %6403 = vmatprep.subr.bf16.mxu0 0
        %6404 = vmatpush1.bf16.msra.mxu0 0
        %6405 = vmatprep.subr.bf16.mxu0 0
        %6406 = vmatpush1.bf16.msra.mxu0 0
        %6407 = vmatprep.subr.bf16.mxu0 0
        %6408 = vmatpush1.bf16.msra.mxu0 0
        %6409 = vmatprep.mubr.bf16.mxu0 0
        %6410 = vmatmul.mubr.bf16.gmra.mrb[0].mxu0 %v5968
        %v6411 = vpop.f32.mrb[0].mxu0
        %v6412 = vadd.f32 0.0, %v6411
        %v6413 = vpop.f32.mrb[0].mxu0
        %v6414 = vadd.f32 0.0, %v6413
        %v6415 = vpop.f32.mrb[0].mxu0
        %v6416 = vpop.f32.mrb[0].mxu0
        %6417 = vdwg.mxu0
        %6418 = vmatprep.subr.bf16.mxu0 %v409
        %6419 = vmatpush1.bf16.msra.mxu0 %v408
        %6420 = vmatprep.subr.bf16.mxu0 0
        %6421 = vmatpush1.bf16.msra.mxu0 0
        %6422 = vmatprep.subr.bf16.mxu0 0
        %6423 = vmatpush1.bf16.msra.mxu0 0
        %6424 = vmatprep.subr.bf16.mxu0 0
        %6425 = vmatpush1.bf16.msra.mxu0 0
        %6426 = vmatprep.subr.bf16.mxu0 0
        %6427 = vmatpush1.bf16.msra.mxu0 0
        %6428 = vmatprep.subr.bf16.mxu0 0
        %6429 = vmatpush1.bf16.msra.mxu0 0
        %6430 = vmatprep.subr.bf16.mxu0 0
        %6431 = vmatpush1.bf16.msra.mxu0 0
        %6432 = vmatprep.subr.bf16.mxu0 0
        %6433 = vmatpush1.bf16.msra.mxu0 0
        %6434 = vmatprep.subr.bf16.mxu0 0
        %6435 = vmatpush1.bf16.msra.mxu0 0
        %6436 = vmatprep.subr.bf16.mxu0 0
        %6437 = vmatpush1.bf16.msra.mxu0 0
        %6438 = vmatprep.subr.bf16.mxu0 0
        %6439 = vmatpush1.bf16.msra.mxu0 0
        %6440 = vmatprep.subr.bf16.mxu0 0
        %6441 = vmatpush1.bf16.msra.mxu0 0
        %6442 = vmatprep.subr.bf16.mxu0 0
        %6443 = vmatpush1.bf16.msra.mxu0 0
        %6444 = vmatprep.subr.bf16.mxu0 0
        %6445 = vmatpush1.bf16.msra.mxu0 0
        %6446 = vmatprep.subr.bf16.mxu0 0
        %6447 = vmatpush1.bf16.msra.mxu0 0
        %6448 = vmatprep.subr.bf16.mxu0 0
        %6449 = vmatpush1.bf16.msra.mxu0 0
        %6450 = vmatprep.mubr.bf16.mxu0 0
        %6451 = vmatmul.mubr.bf16.gmra.mrb[0].mxu0 %v5968
        %v6452 = vpop.f32.mrb[0].mxu0
        %v6453 = vadd.f32 0.0, %v6452
        %v6454 = vpop.f32.mrb[0].mxu0
        %v6455 = vadd.f32 0.0, %v6454
        %v6456 = vpop.f32.mrb[0].mxu0
        %v6457 = vpop.f32.mrb[0].mxu0
        %6458 = vdwg.mxu0
        %6459 = vmatprep.subr.bf16.mxu0 %v528
        %6460 = vmatpush1.bf16.msra.mxu0 %v527
        %6461 = vmatprep.subr.bf16.mxu0 0
        %6462 = vmatpush1.bf16.msra.mxu0 0
        %6463 = vmatprep.subr.bf16.mxu0 0
        %6464 = vmatpush1.bf16.msra.mxu0 0
        %6465 = vmatprep.subr.bf16.mxu0 0
        %6466 = vmatpush1.bf16.msra.mxu0 0
        %6467 = vmatprep.subr.bf16.mxu0 0
        %6468 = vmatpush1.bf16.msra.mxu0 0
        %6469 = vmatprep.subr.bf16.mxu0 0
        %6470 = vmatpush1.bf16.msra.mxu0 0
        %6471 = vmatprep.subr.bf16.mxu0 0
        %6472 = vmatpush1.bf16.msra.mxu0 0
        %6473 = vmatprep.subr.bf16.mxu0 0
        %6474 = vmatpush1.bf16.msra.mxu0 0
        %6475 = vmatprep.subr.bf16.mxu0 0
        %6476 = vmatpush1.bf16.msra.mxu0 0
        %6477 = vmatprep.subr.bf16.mxu0 0
        %6478 = vmatpush1.bf16.msra.mxu0 0
        %6479 = vmatprep.subr.bf16.mxu0 0
        %6480 = vmatpush1.bf16.msra.mxu0 0
        %6481 = vmatprep.subr.bf16.mxu0 0
        %6482 = vmatpush1.bf16.msra.mxu0 0
        %6483 = vmatprep.subr.bf16.mxu0 0
        %6484 = vmatpush1.bf16.msra.mxu0 0
        %6485 = vmatprep.subr.bf16.mxu0 0
        %6486 = vmatpush1.bf16.msra.mxu0 0
        %6487 = vmatprep.subr.bf16.mxu0 0
        %6488 = vmatpush1.bf16.msra.mxu0 0
        %6489 = vmatprep.subr.bf16.mxu0 0
        %6490 = vmatpush1.bf16.msra.mxu0 0
        %6491 = vmatprep.mubr.bf16.mxu0 0
        %6492 = vmatmul.mubr.bf16.gmra.mrb[0].mxu0 %v5379
        %v6493 = vpop.f32.mrb[0].mxu0
        %v6494 = vadd.f32 %v6412, %v6493
        %v6495 = vpop.f32.mrb[0].mxu0
        %v6496 = vadd.f32 %v6414, %v6495
        %v6497 = vpop.f32.mrb[0].mxu0
        %v6498 = vpop.f32.mrb[0].mxu0
        %6499 = vdwg.mxu0
        %6500 = vmatprep.subr.bf16.mxu0 %v530
        %6501 = vmatpush1.bf16.msra.mxu0 %v529
        %6502 = vmatprep.subr.bf16.mxu0 0
        %6503 = vmatpush1.bf16.msra.mxu0 0
        %6504 = vmatprep.subr.bf16.mxu0 0
        %6505 = vmatpush1.bf16.msra.mxu0 0
        %6506 = vmatprep.subr.bf16.mxu0 0
        %6507 = vmatpush1.bf16.msra.mxu0 0
        %6508 = vmatprep.subr.bf16.mxu0 0
        %6509 = vmatpush1.bf16.msra.mxu0 0
        %6510 = vmatprep.subr.bf16.mxu0 0
        %6511 = vmatpush1.bf16.msra.mxu0 0
        %6512 = vmatprep.subr.bf16.mxu0 0
        %6513 = vmatpush1.bf16.msra.mxu0 0
        %6514 = vmatprep.subr.bf16.mxu0 0
        %6515 = vmatpush1.bf16.msra.mxu0 0
        %6516 = vmatprep.subr.bf16.mxu0 0
        %6517 = vmatpush1.bf16.msra.mxu0 0
        %6518 = vmatprep.subr.bf16.mxu0 0
        %6519 = vmatpush1.bf16.msra.mxu0 0
        %6520 = vmatprep.subr.bf16.mxu0 0
        %6521 = vmatpush1.bf16.msra.mxu0 0
        %6522 = vmatprep.subr.bf16.mxu0 0
        %6523 = vmatpush1.bf16.msra.mxu0 0
        %6524 = vmatprep.subr.bf16.mxu0 0
        %6525 = vmatpush1.bf16.msra.mxu0 0
        %6526 = vmatprep.subr.bf16.mxu0 0
        %6527 = vmatpush1.bf16.msra.mxu0 0
        %6528 = vmatprep.subr.bf16.mxu0 0
        %6529 = vmatpush1.bf16.msra.mxu0 0
        %6530 = vmatprep.subr.bf16.mxu0 0
        %6531 = vmatpush1.bf16.msra.mxu0 0
        %6532 = vmatprep.mubr.bf16.mxu0 0
        %6533 = vmatmul.mubr.bf16.gmra.mrb[0].mxu0 %v5379
        %v6534 = vpop.f32.mrb[0].mxu0
        %v6535 = vadd.f32 %v6453, %v6534
        %v6536 = vpop.f32.mrb[0].mxu0
        %v6537 = vadd.f32 %v6455, %v6536
        %v6538 = vpop.f32.mrb[0].mxu0
        %v6539 = vpop.f32.mrb[0].mxu0
        %6540 = vdwg.mxu0
        %v6541 = vrot.slane %v4177, 4
        %v6542 = vrot.slane %v4178, 3
        %v6543 = vsel %vm373, %v6542, %v6541
        %v6544 = vrot.slane %v4179, 2
        %v6545 = vsel %vm376, %v6544, %v6543
        %v6546 = vrot.slane %v4180, 1
        %v6547 = vsel %vm379, %v6546, %v6545
        %v6548 = vsel %vm382, %v4181, %v6547
        %v6549 = vrot.slane %v4182, 7
        %v6550 = vsel %vm385, %v6549, %v6548
        %v6551 = vrot.slane %v4183, 6
        %v6552 = vsel %vm388, %v6551, %v6550
        %v6553 = vrot.slane %v4184, 5
        %v6554 = vsel %vm391, %v6553, %v6552
        %v6555 = vpack.c.b16 %v6554, %v6554
        %v6557 = vsel %vm414, %v6555, 0
        %6559 = vmatprep.subr.bf16.mxu0 %v653
        %6560 = vmatpush1.bf16.msra.mxu0 %v652
        %6561 = vmatprep.subr.bf16.mxu0 0
        %6562 = vmatpush1.bf16.msra.mxu0 0
        %6563 = vmatprep.subr.bf16.mxu0 0
        %6564 = vmatpush1.bf16.msra.mxu0 0
        %6565 = vmatprep.subr.bf16.mxu0 0
        %6566 = vmatpush1.bf16.msra.mxu0 0
        %6567 = vmatprep.subr.bf16.mxu0 0
        %6568 = vmatpush1.bf16.msra.mxu0 0
        %6569 = vmatprep.subr.bf16.mxu0 0
        %6570 = vmatpush1.bf16.msra.mxu0 0
        %6571 = vmatprep.subr.bf16.mxu0 0
        %6572 = vmatpush1.bf16.msra.mxu0 0
        %6573 = vmatprep.subr.bf16.mxu0 0
        %6574 = vmatpush1.bf16.msra.mxu0 0
        %6575 = vmatprep.subr.bf16.mxu0 0
        %6576 = vmatpush1.bf16.msra.mxu0 0
        %6577 = vmatprep.subr.bf16.mxu0 0
        %6578 = vmatpush1.bf16.msra.mxu0 0
        %6579 = vmatprep.subr.bf16.mxu0 0
        %6580 = vmatpush1.bf16.msra.mxu0 0
        %6581 = vmatprep.subr.bf16.mxu0 0
        %6582 = vmatpush1.bf16.msra.mxu0 0
        %6583 = vmatprep.subr.bf16.mxu0 0
        %6584 = vmatpush1.bf16.msra.mxu0 0
        %6585 = vmatprep.subr.bf16.mxu0 0
        %6586 = vmatpush1.bf16.msra.mxu0 0
        %6587 = vmatprep.subr.bf16.mxu0 0
        %6588 = vmatpush1.bf16.msra.mxu0 0
        %6589 = vmatprep.subr.bf16.mxu0 0
        %6590 = vmatpush1.bf16.msra.mxu0 0
        %6591 = vmatprep.mubr.bf16.mxu0 0
        %6592 = vmatmul.mubr.bf16.gmra.mrb[0].mxu0 %v6557
        %v6593 = vpop.f32.mrb[0].mxu0
        %v6594 = vadd.f32 0.0, %v6593
        %v6595 = vpop.f32.mrb[0].mxu0
        %v6596 = vadd.f32 0.0, %v6595
        %v6597 = vpop.f32.mrb[0].mxu0
        %v6598 = vpop.f32.mrb[0].mxu0
        %6599 = vdwg.mxu0
        %6600 = vmatprep.subr.bf16.mxu0 %v655
        %6601 = vmatpush1.bf16.msra.mxu0 %v654
        %6602 = vmatprep.subr.bf16.mxu0 0
        %6603 = vmatpush1.bf16.msra.mxu0 0
        %6604 = vmatprep.subr.bf16.mxu0 0
        %6605 = vmatpush1.bf16.msra.mxu0 0
        %6606 = vmatprep.subr.bf16.mxu0 0
        %6607 = vmatpush1.bf16.msra.mxu0 0
        %6608 = vmatprep.subr.bf16.mxu0 0
        %6609 = vmatpush1.bf16.msra.mxu0 0
        %6610 = vmatprep.subr.bf16.mxu0 0
        %6611 = vmatpush1.bf16.msra.mxu0 0
        %6612 = vmatprep.subr.bf16.mxu0 0
        %6613 = vmatpush1.bf16.msra.mxu0 0
        %6614 = vmatprep.subr.bf16.mxu0 0
        %6615 = vmatpush1.bf16.msra.mxu0 0
        %6616 = vmatprep.subr.bf16.mxu0 0
        %6617 = vmatpush1.bf16.msra.mxu0 0
        %6618 = vmatprep.subr.bf16.mxu0 0
        %6619 = vmatpush1.bf16.msra.mxu0 0
        %6620 = vmatprep.subr.bf16.mxu0 0
        %6621 = vmatpush1.bf16.msra.mxu0 0
        %6622 = vmatprep.subr.bf16.mxu0 0
        %6623 = vmatpush1.bf16.msra.mxu0 0
        %6624 = vmatprep.subr.bf16.mxu0 0
        %6625 = vmatpush1.bf16.msra.mxu0 0
        %6626 = vmatprep.subr.bf16.mxu0 0
        %6627 = vmatpush1.bf16.msra.mxu0 0
        %6628 = vmatprep.subr.bf16.mxu0 0
        %6629 = vmatpush1.bf16.msra.mxu0 0
        %6630 = vmatprep.subr.bf16.mxu0 0
        %6631 = vmatpush1.bf16.msra.mxu0 0
        %6632 = vmatprep.mubr.bf16.mxu0 0
        %6633 = vmatmul.mubr.bf16.gmra.mrb[0].mxu0 %v6557
        %v6634 = vpop.f32.mrb[0].mxu0
        %v6635 = vadd.f32 0.0, %v6634
        %v6636 = vpop.f32.mrb[0].mxu0
        %v6637 = vadd.f32 0.0, %v6636
        %v6638 = vpop.f32.mrb[0].mxu0
        %v6639 = vpop.f32.mrb[0].mxu0
        %6640 = vdwg.mxu0
        %v6641 = vadd.f32 %v6494, %v6594
        %v6642 = vadd.f32 %v6496, %v6596
        %v6643 = vadd.f32 %v6535, %v6635
        %v6644 = vadd.f32 %v6537, %v6637
        %v6645 = vadd.f32 %v6641, %v329
        %v6646 = vadd.f32 %v6642, %v333
        %v6647 = vadd.f32 %v6643, %v337
        %v6648 = vadd.f32 %v6644, %v341
        %v6649 = vmax.f32 %v6645, 0.0
        %v6650 = vmax.f32 %v6646, 0.0
        %v6651 = vmax.f32 %v6647, 0.0
        %v6652 = vmax.f32 %v6648, 0.0
        %v6653 = vpack.c.bf16 %v6649, %v6649
        %v6654 = vpack.c.bf16 %v6650, %v6650
        %v6655 = vpack.c.bf16 %v6651, %v6651
        %v6656 = vpack.c.bf16 %v6652, %v6652
        %s6657 = scalar_lea.vmem [#allocation6], 2240
        %v6658 = vld [vmem:[%s6657] sm:$0xf]
        %v6659 = vld [vmem:[%s6657 + $0x4] sm:$0xf]
        %v6660 = vld [vmem:[%s6657 + $0x8] sm:$0xf]
        %v6661 = vld [vmem:[%s6657 + $0xc] sm:$0xf]
        %v6662 = vld [vmem:[%s6657 + $0x10] sm:$0xf]
        %v6663 = vld [vmem:[%s6657 + $0x14] sm:$0xf]
        %v6664 = vld [vmem:[%s6657 + $0x18] sm:$0xf]
        %v6665 = vld [vmem:[%s6657 + $0x1c] sm:$0xf]
        %v6666 = vld [vmem:[%s6657 + $0x20] sm:$0xf]
        %v6667 = vld [vmem:[%s6657 + $0x24] sm:$0xf]
        %v6668 = vld [vmem:[%s6657 + $0x28] sm:$0xf]
        %v6669 = vld [vmem:[%s6657 + $0x2c] sm:$0xf]
        %v6670 = vld [vmem:[%s6657 + $0x30] sm:$0xf]
        %v6671 = vld [vmem:[%s6657 + $0x34] sm:$0xf]
        %v6672 = vld [vmem:[%s6657 + $0x38] sm:$0xf]
        %v6673 = vld [vmem:[%s6657 + $0x3c] sm:$0xf]
        %v6674 = vld [vmem:[%s6657 + $0x40] sm:$0xf]
        %v6675 = vld [vmem:[%s6657 + $0x44] sm:$0xf]
        %v6676 = vld [vmem:[%s6657 + $0x48] sm:$0xf]
        %v6677 = vld [vmem:[%s6657 + $0x4c] sm:$0xf]
        %v6678 = vld [vmem:[%s6657 + $0x50] sm:$0xf]
        %v6679 = vld [vmem:[%s6657 + $0x54] sm:$0xf]
        %v6680 = vld [vmem:[%s6657 + $0x58] sm:$0xf]
        %v6681 = vld [vmem:[%s6657 + $0x5c] sm:$0xf]
        %v6682 = vld [vmem:[%s6657 + $0x60] sm:$0xf]
        %v6683 = vld [vmem:[%s6657 + $0x64] sm:$0xf]
        %v6684 = vld [vmem:[%s6657 + $0x68] sm:$0xf]
        %v6685 = vld [vmem:[%s6657 + $0x6c] sm:$0xf]
        %v6686 = vld [vmem:[%s6657 + $0x70] sm:$0xf]
        %v6687 = vld [vmem:[%s6657 + $0x74] sm:$0xf]
        %v6688 = vld [vmem:[%s6657 + $0x78] sm:$0xf]
        %v6689 = vld [vmem:[%s6657 + $0x7c] sm:$0xf]
        %v6690 = vld [vmem:[%s6657 + $0x80] sm:$0xf]
        %v6691 = vld [vmem:[%s6657 + $0x84] sm:$0xf]
        %v6692 = vld [vmem:[%s6657 + $0x88] sm:$0xf]
        %v6693 = vld [vmem:[%s6657 + $0x8c] sm:$0xf]
        %v6694 = vld [vmem:[%s6657 + $0x90] sm:$0xf]
        %v6695 = vld [vmem:[%s6657 + $0x94] sm:$0xf]
        %v6696 = vld [vmem:[%s6657 + $0x98] sm:$0xf]
        %v6697 = vld [vmem:[%s6657 + $0x9c] sm:$0xf]
        %v6698 = vld [vmem:[%s6657 + $0xa0] sm:$0xf]
        %v6699 = vld [vmem:[%s6657 + $0xa4] sm:$0xf]
        %v6700 = vld [vmem:[%s6657 + $0xa8] sm:$0xf]
        %v6701 = vld [vmem:[%s6657 + $0xac] sm:$0xf]
        %v6702 = vld [vmem:[%s6657 + $0xb0] sm:$0xf]
        %v6703 = vld [vmem:[%s6657 + $0xb4] sm:$0xf]
        %v6704 = vld [vmem:[%s6657 + $0xb8] sm:$0xf]
        %v6705 = vld [vmem:[%s6657 + $0xbc] sm:$0xf]
        %v6706 = vld [vmem:[%s6657 + $0xc0] sm:$0xf]
        %v6707 = vld [vmem:[%s6657 + $0xc4] sm:$0xf]
        %v6708 = vld [vmem:[%s6657 + $0xc8] sm:$0xf]
        %v6709 = vld [vmem:[%s6657 + $0xcc] sm:$0xf]
        %v6710 = vld [vmem:[%s6657 + $0xd0] sm:$0xf]
        %v6711 = vld [vmem:[%s6657 + $0xd4] sm:$0xf]
        %v6712 = vld [vmem:[%s6657 + $0xd8] sm:$0xf]
        %v6713 = vld [vmem:[%s6657 + $0xdc] sm:$0xf]
        %v6770 = vunpack.c.l.b16 %v6658
        %v6771 = vunpack.c.l.b16 %v6659
        %v6772 = vunpack.c.l.b16 %v6660
        %v6773 = vunpack.c.l.b16 %v6661
        %v6774 = vunpack.c.l.b16 %v6662
        %v6775 = vunpack.c.l.b16 %v6663
        %v6776 = vunpack.c.l.b16 %v6664
        %v6777 = vunpack.c.l.b16 %v6665
        %v6778 = vunpack.c.l.b16 %v6666
        %v6779 = vunpack.c.l.b16 %v6667
        %v6780 = vunpack.c.l.b16 %v6668
        %v6781 = vunpack.c.l.b16 %v6669
        %v6782 = vunpack.c.l.b16 %v6670
        %v6783 = vunpack.c.l.b16 %v6671
        %v6784 = vunpack.c.l.b16 %v6672
        %v6785 = vunpack.c.l.b16 %v6673
        %v6786 = vunpack.c.l.b16 %v6674
        %v6787 = vunpack.c.l.b16 %v6675
        %v6788 = vunpack.c.l.b16 %v6676
        %v6789 = vunpack.c.l.b16 %v6677
        %v6790 = vunpack.c.l.b16 %v6678
        %v6791 = vunpack.c.l.b16 %v6679
        %v6792 = vunpack.c.l.b16 %v6680
        %v6793 = vunpack.c.l.b16 %v6681
        %v6794 = vunpack.c.l.b16 %v6682
        %v6795 = vunpack.c.l.b16 %v6683
        %v6796 = vunpack.c.l.b16 %v6684
        %v6797 = vunpack.c.l.b16 %v6685
        %v6798 = vunpack.c.l.b16 %v6686
        %v6799 = vunpack.c.l.b16 %v6687
        %v6800 = vunpack.c.l.b16 %v6688
        %v6801 = vunpack.c.l.b16 %v6689
        %v6802 = vunpack.c.l.b16 %v6690
        %v6803 = vunpack.c.l.b16 %v6691
        %v6804 = vunpack.c.l.b16 %v6692
        %v6805 = vunpack.c.l.b16 %v6693
        %v6806 = vunpack.c.l.b16 %v6694
        %v6807 = vunpack.c.l.b16 %v6695
        %v6808 = vunpack.c.l.b16 %v6696
        %v6809 = vunpack.c.l.b16 %v6697
        %v6810 = vunpack.c.l.b16 %v6698
        %v6811 = vunpack.c.l.b16 %v6699
        %v6812 = vunpack.c.l.b16 %v6700
        %v6813 = vunpack.c.l.b16 %v6701
        %v6814 = vunpack.c.l.b16 %v6702
        %v6815 = vunpack.c.l.b16 %v6703
        %v6816 = vunpack.c.l.b16 %v6704
        %v6817 = vunpack.c.l.b16 %v6705
        %v6818 = vunpack.c.l.b16 %v6706
        %v6819 = vunpack.c.l.b16 %v6707
        %v6820 = vunpack.c.l.b16 %v6708
        %v6821 = vunpack.c.l.b16 %v6709
        %v6822 = vunpack.c.l.b16 %v6710
        %v6823 = vunpack.c.l.b16 %v6711
        %v6824 = vunpack.c.l.b16 %v6712
        %v6825 = vunpack.c.l.b16 %v6713
        %v6826 = vpack.c.b16 %v6771, %v6770
        %v6827 = vpack.c.b16 %v6773, %v6772
        %v6828 = vpack.c.b16 %v6775, %v6774
        %v6829 = vpack.c.b16 %v6777, %v6776
        %v6830 = vpack.c.b16 %v6779, %v6778
        %v6831 = vpack.c.b16 %v6781, %v6780
        %v6832 = vpack.c.b16 %v6783, %v6782
        %v6833 = vpack.c.b16 %v6785, %v6784
        %v6834 = vpack.c.b16 %v6787, %v6786
        %v6835 = vpack.c.b16 %v6789, %v6788
        %v6836 = vpack.c.b16 %v6791, %v6790
        %v6837 = vpack.c.b16 %v6793, %v6792
        %v6838 = vpack.c.b16 %v6795, %v6794
        %v6839 = vpack.c.b16 %v6797, %v6796
        %v6840 = vpack.c.b16 %v6799, %v6798
        %v6841 = vpack.c.b16 %v6801, %v6800
        %v6842 = vpack.c.b16 %v6803, %v6802
        %v6843 = vpack.c.b16 %v6805, %v6804
        %v6844 = vpack.c.b16 %v6807, %v6806
        %v6845 = vpack.c.b16 %v6809, %v6808
        %v6846 = vpack.c.b16 %v6811, %v6810
        %v6847 = vpack.c.b16 %v6813, %v6812
        %v6848 = vpack.c.b16 %v6815, %v6814
        %v6849 = vpack.c.b16 %v6817, %v6816
        %v6850 = vpack.c.b16 %v6819, %v6818
        %v6851 = vpack.c.b16 %v6821, %v6820
        %v6852 = vpack.c.b16 %v6823, %v6822
        %v6853 = vpack.c.b16 %v6825, %v6824
        %v6883 = vsel %vm1322, %v6656, 0
        %6885 = vmatprep.subr.bf16.mxu0 0
        %6886 = vmatpush1.bf16.msra.mxu0 %v6826
        %6887 = vmatprep.subr.bf16.mxu0 0
        %6888 = vmatpush1.bf16.msra.mxu0 %v6827
        %6889 = vmatprep.subr.bf16.mxu0 0
        %6890 = vmatpush1.bf16.msra.mxu0 %v6828
        %6891 = vmatprep.subr.bf16.mxu0 0
        %6892 = vmatpush1.bf16.msra.mxu0 %v6829
        %6893 = vmatprep.subr.bf16.mxu0 0
        %6894 = vmatpush1.bf16.msra.mxu0 %v6830
        %6895 = vmatprep.subr.bf16.mxu0 0
        %6896 = vmatpush1.bf16.msra.mxu0 %v6831
        %6897 = vmatprep.subr.bf16.mxu0 0
        %6898 = vmatpush1.bf16.msra.mxu0 %v6832
        %6899 = vmatprep.subr.bf16.mxu0 0
        %6900 = vmatpush1.bf16.msra.mxu0 %v6833
        %6901 = vmatprep.subr.bf16.mxu0 0
        %6902 = vmatpush1.bf16.msra.mxu0 %v6834
        %6903 = vmatprep.subr.bf16.mxu0 0
        %6904 = vmatpush1.bf16.msra.mxu0 %v6835
        %6905 = vmatprep.subr.bf16.mxu0 0
        %6906 = vmatpush1.bf16.msra.mxu0 %v6836
        %6907 = vmatprep.subr.bf16.mxu0 0
        %6908 = vmatpush1.bf16.msra.mxu0 %v6837
        %6909 = vmatprep.subr.bf16.mxu0 0
        %6910 = vmatpush1.bf16.msra.mxu0 %v6838
        %6911 = vmatprep.subr.bf16.mxu0 0
        %6912 = vmatpush1.bf16.msra.mxu0 %v6839
        %6913 = vmatprep.subr.bf16.mxu0 0
        %6914 = vmatpush1.bf16.msra.mxu0 %v6840
        %6915 = vmatprep.subr.bf16.mxu0 0
        %6916 = vmatpush1.bf16.msra.mxu0 %v6841
        %6917 = vmatprep.mubr.bf16.mxu0 %v6654
        %6918 = vmatmul.mubr.bf16.gmra.mrb[0].mxu0 %v6653
        %v6919 = vpop.f32.mrb[0].mxu0
        %v6920 = vadd.f32 0.0, %v6919
        %v6921 = vpop.f32.mrb[0].mxu0
        %v6922 = vpop.f32.mrb[0].mxu0
        %v6923 = vpop.f32.mrb[0].mxu0
        %6924 = vdwg.mxu0
        %6925 = vmatprep.subr.bf16.mxu0 0
        %6926 = vmatpush1.bf16.msra.mxu0 %v6842
        %6927 = vmatprep.subr.bf16.mxu0 0
        %6928 = vmatpush1.bf16.msra.mxu0 %v6843
        %6929 = vmatprep.subr.bf16.mxu0 0
        %6930 = vmatpush1.bf16.msra.mxu0 %v6844
        %6931 = vmatprep.subr.bf16.mxu0 0
        %6932 = vmatpush1.bf16.msra.mxu0 %v6845
        %6933 = vmatprep.subr.bf16.mxu0 0
        %6934 = vmatpush1.bf16.msra.mxu0 %v6846
        %6935 = vmatprep.subr.bf16.mxu0 0
        %6936 = vmatpush1.bf16.msra.mxu0 %v6847
        %6937 = vmatprep.subr.bf16.mxu0 0
        %6938 = vmatpush1.bf16.msra.mxu0 %v6848
        %6939 = vmatprep.subr.bf16.mxu0 0
        %6940 = vmatpush1.bf16.msra.mxu0 %v6849
        %6941 = vmatprep.subr.bf16.mxu0 0
        %6942 = vmatpush1.bf16.msra.mxu0 %v6850
        %6943 = vmatprep.subr.bf16.mxu0 0
        %6944 = vmatpush1.bf16.msra.mxu0 %v6851
        %6945 = vmatprep.subr.bf16.mxu0 0
        %6946 = vmatpush1.bf16.msra.mxu0 %v6852
        %6947 = vmatprep.subr.bf16.mxu0 0
        %6948 = vmatpush1.bf16.msra.mxu0 %v6853
        %6949 = vmatprep.subr.bf16.mxu0 0
        %6950 = vmatpush1.bf16.msra.mxu0 0
        %6951 = vmatprep.subr.bf16.mxu0 0
        %6952 = vmatpush1.bf16.msra.mxu0 0
        %6953 = vmatprep.subr.bf16.mxu0 0
        %6954 = vmatpush1.bf16.msra.mxu0 0
        %6955 = vmatprep.subr.bf16.mxu0 0
        %6956 = vmatpush1.bf16.msra.mxu0 0
        %6957 = vmatprep.mubr.bf16.mxu0 %v6883
        %6958 = vmatmul.mubr.bf16.gmra.mrb[0].mxu0 %v6655
        %v6959 = vpop.f32.mrb[0].mxu0
        %v6960 = vadd.f32 %v6920, %v6959
        %v6961 = vpop.f32.mrb[0].mxu0
        %v6962 = vpop.f32.mrb[0].mxu0
        %v6963 = vpop.f32.mrb[0].mxu0
        %6964 = vdwg.mxu0
        %v6965 = vadd.f32 %v6376, %v6960
        %6966 = vmatprep.subr.bf16.mxu0 %v407
        %6967 = vmatpush1.bf16.msra.mxu0 %v406
        %6968 = vmatprep.subr.bf16.mxu0 0
        %6969 = vmatpush1.bf16.msra.mxu0 0
        %6970 = vmatprep.subr.bf16.mxu0 0
        %6971 = vmatpush1.bf16.msra.mxu0 0
        %6972 = vmatprep.subr.bf16.mxu0 0
        %6973 = vmatpush1.bf16.msra.mxu0 0
        %6974 = vmatprep.subr.bf16.mxu0 0
        %6975 = vmatpush1.bf16.msra.mxu0 0
        %6976 = vmatprep.subr.bf16.mxu0 0
        %6977 = vmatpush1.bf16.msra.mxu0 0
        %6978 = vmatprep.subr.bf16.mxu0 0
        %6979 = vmatpush1.bf16.msra.mxu0 0
        %6980 = vmatprep.subr.bf16.mxu0 0
        %6981 = vmatpush1.bf16.msra.mxu0 0
        %6982 = vmatprep.subr.bf16.mxu0 0
        %6983 = vmatpush1.bf16.msra.mxu0 0
        %6984 = vmatprep.subr.bf16.mxu0 0
        %6985 = vmatpush1.bf16.msra.mxu0 0
        %6986 = vmatprep.subr.bf16.mxu0 0
        %6987 = vmatpush1.bf16.msra.mxu0 0
        %6988 = vmatprep.subr.bf16.mxu0 0
        %6989 = vmatpush1.bf16.msra.mxu0 0
        %6990 = vmatprep.subr.bf16.mxu0 0
        %6991 = vmatpush1.bf16.msra.mxu0 0
        %6992 = vmatprep.subr.bf16.mxu0 0
        %6993 = vmatpush1.bf16.msra.mxu0 0
        %6994 = vmatprep.subr.bf16.mxu0 0
        %6995 = vmatpush1.bf16.msra.mxu0 0
        %6996 = vmatprep.subr.bf16.mxu0 0
        %6997 = vmatpush1.bf16.msra.mxu0 0
        %6998 = vmatprep.mubr.bf16.mxu0 0
        %6999 = vmatmul.mubr.bf16.gmra.mrb[0].mxu0 %v6557
        %v7000 = vpop.f32.mrb[0].mxu0
        %v7001 = vadd.f32 0.0, %v7000
        %v7002 = vpop.f32.mrb[0].mxu0
        %v7003 = vadd.f32 0.0, %v7002
        %v7004 = vpop.f32.mrb[0].mxu0
        %v7005 = vpop.f32.mrb[0].mxu0
        %7006 = vdwg.mxu0
        %7007 = vmatprep.subr.bf16.mxu0 %v409
        %7008 = vmatpush1.bf16.msra.mxu0 %v408
        %7009 = vmatprep.subr.bf16.mxu0 0
        %7010 = vmatpush1.bf16.msra.mxu0 0
        %7011 = vmatprep.subr.bf16.mxu0 0
        %7012 = vmatpush1.bf16.msra.mxu0 0
        %7013 = vmatprep.subr.bf16.mxu0 0
        %7014 = vmatpush1.bf16.msra.mxu0 0
        %7015 = vmatprep.subr.bf16.mxu0 0
        %7016 = vmatpush1.bf16.msra.mxu0 0
        %7017 = vmatprep.subr.bf16.mxu0 0
        %7018 = vmatpush1.bf16.msra.mxu0 0
        %7019 = vmatprep.subr.bf16.mxu0 0
        %7020 = vmatpush1.bf16.msra.mxu0 0
        %7021 = vmatprep.subr.bf16.mxu0 0
        %7022 = vmatpush1.bf16.msra.mxu0 0
        %7023 = vmatprep.subr.bf16.mxu0 0
        %7024 = vmatpush1.bf16.msra.mxu0 0
        %7025 = vmatprep.subr.bf16.mxu0 0
        %7026 = vmatpush1.bf16.msra.mxu0 0
        %7027 = vmatprep.subr.bf16.mxu0 0
        %7028 = vmatpush1.bf16.msra.mxu0 0
        %7029 = vmatprep.subr.bf16.mxu0 0
        %7030 = vmatpush1.bf16.msra.mxu0 0
        %7031 = vmatprep.subr.bf16.mxu0 0
        %7032 = vmatpush1.bf16.msra.mxu0 0
        %7033 = vmatprep.subr.bf16.mxu0 0
        %7034 = vmatpush1.bf16.msra.mxu0 0
        %7035 = vmatprep.subr.bf16.mxu0 0
        %7036 = vmatpush1.bf16.msra.mxu0 0
        %7037 = vmatprep.subr.bf16.mxu0 0
        %7038 = vmatpush1.bf16.msra.mxu0 0
        %7039 = vmatprep.mubr.bf16.mxu0 0
        %7040 = vmatmul.mubr.bf16.gmra.mrb[0].mxu0 %v6557
        %v7041 = vpop.f32.mrb[0].mxu0
        %v7042 = vadd.f32 0.0, %v7041
        %v7043 = vpop.f32.mrb[0].mxu0
        %v7044 = vadd.f32 0.0, %v7043
        %v7045 = vpop.f32.mrb[0].mxu0
        %v7046 = vpop.f32.mrb[0].mxu0
        %7047 = vdwg.mxu0
        %7048 = vmatprep.subr.bf16.mxu0 %v528
        %7049 = vmatpush1.bf16.msra.mxu0 %v527
        %7050 = vmatprep.subr.bf16.mxu0 0
        %7051 = vmatpush1.bf16.msra.mxu0 0
        %7052 = vmatprep.subr.bf16.mxu0 0
        %7053 = vmatpush1.bf16.msra.mxu0 0
        %7054 = vmatprep.subr.bf16.mxu0 0
        %7055 = vmatpush1.bf16.msra.mxu0 0
        %7056 = vmatprep.subr.bf16.mxu0 0
        %7057 = vmatpush1.bf16.msra.mxu0 0
        %7058 = vmatprep.subr.bf16.mxu0 0
        %7059 = vmatpush1.bf16.msra.mxu0 0
        %7060 = vmatprep.subr.bf16.mxu0 0
        %7061 = vmatpush1.bf16.msra.mxu0 0
        %7062 = vmatprep.subr.bf16.mxu0 0
        %7063 = vmatpush1.bf16.msra.mxu0 0
        %7064 = vmatprep.subr.bf16.mxu0 0
        %7065 = vmatpush1.bf16.msra.mxu0 0
        %7066 = vmatprep.subr.bf16.mxu0 0
        %7067 = vmatpush1.bf16.msra.mxu0 0
        %7068 = vmatprep.subr.bf16.mxu0 0
        %7069 = vmatpush1.bf16.msra.mxu0 0
        %7070 = vmatprep.subr.bf16.mxu0 0
        %7071 = vmatpush1.bf16.msra.mxu0 0
        %7072 = vmatprep.subr.bf16.mxu0 0
        %7073 = vmatpush1.bf16.msra.mxu0 0
        %7074 = vmatprep.subr.bf16.mxu0 0
        %7075 = vmatpush1.bf16.msra.mxu0 0
        %7076 = vmatprep.subr.bf16.mxu0 0
        %7077 = vmatpush1.bf16.msra.mxu0 0
        %7078 = vmatprep.subr.bf16.mxu0 0
        %7079 = vmatpush1.bf16.msra.mxu0 0
        %7080 = vmatprep.mubr.bf16.mxu0 0
        %7081 = vmatmul.mubr.bf16.gmra.mrb[0].mxu0 %v5968
        %v7082 = vpop.f32.mrb[0].mxu0
        %v7083 = vadd.f32 %v7001, %v7082
        %v7084 = vpop.f32.mrb[0].mxu0
        %v7085 = vadd.f32 %v7003, %v7084
        %v7086 = vpop.f32.mrb[0].mxu0
        %v7087 = vpop.f32.mrb[0].mxu0
        %7088 = vdwg.mxu0
        %7089 = vmatprep.subr.bf16.mxu0 %v530
        %7090 = vmatpush1.bf16.msra.mxu0 %v529
        %7091 = vmatprep.subr.bf16.mxu0 0
        %7092 = vmatpush1.bf16.msra.mxu0 0
        %7093 = vmatprep.subr.bf16.mxu0 0
        %7094 = vmatpush1.bf16.msra.mxu0 0
        %7095 = vmatprep.subr.bf16.mxu0 0
        %7096 = vmatpush1.bf16.msra.mxu0 0
        %7097 = vmatprep.subr.bf16.mxu0 0
        %7098 = vmatpush1.bf16.msra.mxu0 0
        %7099 = vmatprep.subr.bf16.mxu0 0
        %7100 = vmatpush1.bf16.msra.mxu0 0
        %7101 = vmatprep.subr.bf16.mxu0 0
        %7102 = vmatpush1.bf16.msra.mxu0 0
        %7103 = vmatprep.subr.bf16.mxu0 0
        %7104 = vmatpush1.bf16.msra.mxu0 0
        %7105 = vmatprep.subr.bf16.mxu0 0
        %7106 = vmatpush1.bf16.msra.mxu0 0
        %7107 = vmatprep.subr.bf16.mxu0 0
        %7108 = vmatpush1.bf16.msra.mxu0 0
        %7109 = vmatprep.subr.bf16.mxu0 0
        %7110 = vmatpush1.bf16.msra.mxu0 0
        %7111 = vmatprep.subr.bf16.mxu0 0
        %7112 = vmatpush1.bf16.msra.mxu0 0
        %7113 = vmatprep.subr.bf16.mxu0 0
        %7114 = vmatpush1.bf16.msra.mxu0 0
        %7115 = vmatprep.subr.bf16.mxu0 0
        %7116 = vmatpush1.bf16.msra.mxu0 0
        %7117 = vmatprep.subr.bf16.mxu0 0
        %7118 = vmatpush1.bf16.msra.mxu0 0
        %7119 = vmatprep.subr.bf16.mxu0 0
        %7120 = vmatpush1.bf16.msra.mxu0 0
        %7121 = vmatprep.mubr.bf16.mxu0 0
        %7122 = vmatmul.mubr.bf16.gmra.mrb[0].mxu0 %v5968
        %v7123 = vpop.f32.mrb[0].mxu0
        %v7124 = vadd.f32 %v7042, %v7123
        %v7125 = vpop.f32.mrb[0].mxu0
        %v7126 = vadd.f32 %v7044, %v7125
        %v7127 = vpop.f32.mrb[0].mxu0
        %v7128 = vpop.f32.mrb[0].mxu0
        %7129 = vdwg.mxu0
        %v7130 = vrot.slane %v4177, 5
        %v7131 = vrot.slane %v4178, 4
        %v7132 = vsel %vm373, %v7131, %v7130
        %v7133 = vrot.slane %v4179, 3
        %v7134 = vsel %vm376, %v7133, %v7132
        %v7135 = vrot.slane %v4180, 2
        %v7136 = vsel %vm379, %v7135, %v7134
        %v7137 = vrot.slane %v4181, 1
        %v7138 = vsel %vm382, %v7137, %v7136
        %v7139 = vsel %vm385, %v4182, %v7138
        %v7140 = vrot.slane %v4183, 7
        %v7141 = vsel %vm388, %v7140, %v7139
        %v7142 = vrot.slane %v4184, 6
        %v7143 = vsel %vm391, %v7142, %v7141
        %v7144 = vpack.c.b16 %v7143, %v7143
        %v7146 = vsel %vm414, %v7144, 0
        %7148 = vmatprep.subr.bf16.mxu0 %v653
        %7149 = vmatpush1.bf16.msra.mxu0 %v652
        %7150 = vmatprep.subr.bf16.mxu0 0
        %7151 = vmatpush1.bf16.msra.mxu0 0
        %7152 = vmatprep.subr.bf16.mxu0 0
        %7153 = vmatpush1.bf16.msra.mxu0 0
        %7154 = vmatprep.subr.bf16.mxu0 0
        %7155 = vmatpush1.bf16.msra.mxu0 0
        %7156 = vmatprep.subr.bf16.mxu0 0
        %7157 = vmatpush1.bf16.msra.mxu0 0
        %7158 = vmatprep.subr.bf16.mxu0 0
        %7159 = vmatpush1.bf16.msra.mxu0 0
        %7160 = vmatprep.subr.bf16.mxu0 0
        %7161 = vmatpush1.bf16.msra.mxu0 0
        %7162 = vmatprep.subr.bf16.mxu0 0
        %7163 = vmatpush1.bf16.msra.mxu0 0
        %7164 = vmatprep.subr.bf16.mxu0 0
        %7165 = vmatpush1.bf16.msra.mxu0 0
        %7166 = vmatprep.subr.bf16.mxu0 0
        %7167 = vmatpush1.bf16.msra.mxu0 0
        %7168 = vmatprep.subr.bf16.mxu0 0
        %7169 = vmatpush1.bf16.msra.mxu0 0
        %7170 = vmatprep.subr.bf16.mxu0 0
        %7171 = vmatpush1.bf16.msra.mxu0 0
        %7172 = vmatprep.subr.bf16.mxu0 0
        %7173 = vmatpush1.bf16.msra.mxu0 0
        %7174 = vmatprep.subr.bf16.mxu0 0
        %7175 = vmatpush1.bf16.msra.mxu0 0
        %7176 = vmatprep.subr.bf16.mxu0 0
        %7177 = vmatpush1.bf16.msra.mxu0 0
        %7178 = vmatprep.subr.bf16.mxu0 0
        %7179 = vmatpush1.bf16.msra.mxu0 0
        %7180 = vmatprep.mubr.bf16.mxu0 0
        %7181 = vmatmul.mubr.bf16.gmra.mrb[0].mxu0 %v7146
        %v7182 = vpop.f32.mrb[0].mxu0
        %v7183 = vadd.f32 0.0, %v7182
        %v7184 = vpop.f32.mrb[0].mxu0
        %v7185 = vadd.f32 0.0, %v7184
        %v7186 = vpop.f32.mrb[0].mxu0
        %v7187 = vpop.f32.mrb[0].mxu0
        %7188 = vdwg.mxu0
        %7189 = vmatprep.subr.bf16.mxu0 %v655
        %7190 = vmatpush1.bf16.msra.mxu0 %v654
        %7191 = vmatprep.subr.bf16.mxu0 0
        %7192 = vmatpush1.bf16.msra.mxu0 0
        %7193 = vmatprep.subr.bf16.mxu0 0
        %7194 = vmatpush1.bf16.msra.mxu0 0
        %7195 = vmatprep.subr.bf16.mxu0 0
        %7196 = vmatpush1.bf16.msra.mxu0 0
        %7197 = vmatprep.subr.bf16.mxu0 0
        %7198 = vmatpush1.bf16.msra.mxu0 0
        %7199 = vmatprep.subr.bf16.mxu0 0
        %7200 = vmatpush1.bf16.msra.mxu0 0
        %7201 = vmatprep.subr.bf16.mxu0 0
        %7202 = vmatpush1.bf16.msra.mxu0 0
        %7203 = vmatprep.subr.bf16.mxu0 0
        %7204 = vmatpush1.bf16.msra.mxu0 0
        %7205 = vmatprep.subr.bf16.mxu0 0
        %7206 = vmatpush1.bf16.msra.mxu0 0
        %7207 = vmatprep.subr.bf16.mxu0 0
        %7208 = vmatpush1.bf16.msra.mxu0 0
        %7209 = vmatprep.subr.bf16.mxu0 0
        %7210 = vmatpush1.bf16.msra.mxu0 0
        %7211 = vmatprep.subr.bf16.mxu0 0
        %7212 = vmatpush1.bf16.msra.mxu0 0
        %7213 = vmatprep.subr.bf16.mxu0 0
        %7214 = vmatpush1.bf16.msra.mxu0 0
        %7215 = vmatprep.subr.bf16.mxu0 0
        %7216 = vmatpush1.bf16.msra.mxu0 0
        %7217 = vmatprep.subr.bf16.mxu0 0
        %7218 = vmatpush1.bf16.msra.mxu0 0
        %7219 = vmatprep.subr.bf16.mxu0 0
        %7220 = vmatpush1.bf16.msra.mxu0 0
        %7221 = vmatprep.mubr.bf16.mxu0 0
        %7222 = vmatmul.mubr.bf16.gmra.mrb[0].mxu0 %v7146
        %v7223 = vpop.f32.mrb[0].mxu0
        %v7224 = vadd.f32 0.0, %v7223
        %v7225 = vpop.f32.mrb[0].mxu0
        %v7226 = vadd.f32 0.0, %v7225
        %v7227 = vpop.f32.mrb[0].mxu0
        %v7228 = vpop.f32.mrb[0].mxu0
        %7229 = vdwg.mxu0
        %v7230 = vadd.f32 %v7083, %v7183
        %v7231 = vadd.f32 %v7085, %v7185
        %v7232 = vadd.f32 %v7124, %v7224
        %v7233 = vadd.f32 %v7126, %v7226
        %v7234 = vadd.f32 %v7230, %v329
        %v7235 = vadd.f32 %v7231, %v333
        %v7236 = vadd.f32 %v7232, %v337
        %v7237 = vadd.f32 %v7233, %v341
        %v7238 = vmax.f32 %v7234, 0.0
        %v7239 = vmax.f32 %v7235, 0.0
        %v7240 = vmax.f32 %v7236, 0.0
        %v7241 = vmax.f32 %v7237, 0.0
        %v7242 = vpack.c.bf16 %v7238, %v7238
        %v7243 = vpack.c.bf16 %v7239, %v7239
        %v7244 = vpack.c.bf16 %v7240, %v7240
        %v7245 = vpack.c.bf16 %v7241, %v7241
        %s7246 = scalar_lea.vmem [#allocation6], 2464
        %v7247 = vld [vmem:[%s7246] sm:$0xf]
        %v7248 = vld [vmem:[%s7246 + $0x4] sm:$0xf]
        %v7249 = vld [vmem:[%s7246 + $0x8] sm:$0xf]
        %v7250 = vld [vmem:[%s7246 + $0xc] sm:$0xf]
        %v7251 = vld [vmem:[%s7246 + $0x10] sm:$0xf]
        %v7252 = vld [vmem:[%s7246 + $0x14] sm:$0xf]
        %v7253 = vld [vmem:[%s7246 + $0x18] sm:$0xf]
        %v7254 = vld [vmem:[%s7246 + $0x1c] sm:$0xf]
        %v7255 = vld [vmem:[%s7246 + $0x20] sm:$0xf]
        %v7256 = vld [vmem:[%s7246 + $0x24] sm:$0xf]
        %v7257 = vld [vmem:[%s7246 + $0x28] sm:$0xf]
        %v7258 = vld [vmem:[%s7246 + $0x2c] sm:$0xf]
        %v7259 = vld [vmem:[%s7246 + $0x30] sm:$0xf]
        %v7260 = vld [vmem:[%s7246 + $0x34] sm:$0xf]
        %v7261 = vld [vmem:[%s7246 + $0x38] sm:$0xf]
        %v7262 = vld [vmem:[%s7246 + $0x3c] sm:$0xf]
        %v7263 = vld [vmem:[%s7246 + $0x40] sm:$0xf]
        %v7264 = vld [vmem:[%s7246 + $0x44] sm:$0xf]
        %v7265 = vld [vmem:[%s7246 + $0x48] sm:$0xf]
        %v7266 = vld [vmem:[%s7246 + $0x4c] sm:$0xf]
        %v7267 = vld [vmem:[%s7246 + $0x50] sm:$0xf]
        %v7268 = vld [vmem:[%s7246 + $0x54] sm:$0xf]
        %v7269 = vld [vmem:[%s7246 + $0x58] sm:$0xf]
        %v7270 = vld [vmem:[%s7246 + $0x5c] sm:$0xf]
        %v7271 = vld [vmem:[%s7246 + $0x60] sm:$0xf]
        %v7272 = vld [vmem:[%s7246 + $0x64] sm:$0xf]
        %v7273 = vld [vmem:[%s7246 + $0x68] sm:$0xf]
        %v7274 = vld [vmem:[%s7246 + $0x6c] sm:$0xf]
        %v7275 = vld [vmem:[%s7246 + $0x70] sm:$0xf]
        %v7276 = vld [vmem:[%s7246 + $0x74] sm:$0xf]
        %v7277 = vld [vmem:[%s7246 + $0x78] sm:$0xf]
        %v7278 = vld [vmem:[%s7246 + $0x7c] sm:$0xf]
        %v7279 = vld [vmem:[%s7246 + $0x80] sm:$0xf]
        %v7280 = vld [vmem:[%s7246 + $0x84] sm:$0xf]
        %v7281 = vld [vmem:[%s7246 + $0x88] sm:$0xf]
        %v7282 = vld [vmem:[%s7246 + $0x8c] sm:$0xf]
        %v7283 = vld [vmem:[%s7246 + $0x90] sm:$0xf]
        %v7284 = vld [vmem:[%s7246 + $0x94] sm:$0xf]
        %v7285 = vld [vmem:[%s7246 + $0x98] sm:$0xf]
        %v7286 = vld [vmem:[%s7246 + $0x9c] sm:$0xf]
        %v7287 = vld [vmem:[%s7246 + $0xa0] sm:$0xf]
        %v7288 = vld [vmem:[%s7246 + $0xa4] sm:$0xf]
        %v7289 = vld [vmem:[%s7246 + $0xa8] sm:$0xf]
        %v7290 = vld [vmem:[%s7246 + $0xac] sm:$0xf]
        %v7291 = vld [vmem:[%s7246 + $0xb0] sm:$0xf]
        %v7292 = vld [vmem:[%s7246 + $0xb4] sm:$0xf]
        %v7293 = vld [vmem:[%s7246 + $0xb8] sm:$0xf]
        %v7294 = vld [vmem:[%s7246 + $0xbc] sm:$0xf]
        %v7295 = vld [vmem:[%s7246 + $0xc0] sm:$0xf]
        %v7296 = vld [vmem:[%s7246 + $0xc4] sm:$0xf]
        %v7297 = vld [vmem:[%s7246 + $0xc8] sm:$0xf]
        %v7298 = vld [vmem:[%s7246 + $0xcc] sm:$0xf]
        %v7299 = vld [vmem:[%s7246 + $0xd0] sm:$0xf]
        %v7300 = vld [vmem:[%s7246 + $0xd4] sm:$0xf]
        %v7301 = vld [vmem:[%s7246 + $0xd8] sm:$0xf]
        %v7302 = vld [vmem:[%s7246 + $0xdc] sm:$0xf]
        %v7359 = vunpack.c.l.b16 %v7247
        %v7360 = vunpack.c.l.b16 %v7248
        %v7361 = vunpack.c.l.b16 %v7249
        %v7362 = vunpack.c.l.b16 %v7250
        %v7363 = vunpack.c.l.b16 %v7251
        %v7364 = vunpack.c.l.b16 %v7252
        %v7365 = vunpack.c.l.b16 %v7253
        %v7366 = vunpack.c.l.b16 %v7254
        %v7367 = vunpack.c.l.b16 %v7255
        %v7368 = vunpack.c.l.b16 %v7256
        %v7369 = vunpack.c.l.b16 %v7257
        %v7370 = vunpack.c.l.b16 %v7258
        %v7371 = vunpack.c.l.b16 %v7259
        %v7372 = vunpack.c.l.b16 %v7260
        %v7373 = vunpack.c.l.b16 %v7261
        %v7374 = vunpack.c.l.b16 %v7262
        %v7375 = vunpack.c.l.b16 %v7263
        %v7376 = vunpack.c.l.b16 %v7264
        %v7377 = vunpack.c.l.b16 %v7265
        %v7378 = vunpack.c.l.b16 %v7266
        %v7379 = vunpack.c.l.b16 %v7267
        %v7380 = vunpack.c.l.b16 %v7268
        %v7381 = vunpack.c.l.b16 %v7269
        %v7382 = vunpack.c.l.b16 %v7270
        %v7383 = vunpack.c.l.b16 %v7271
        %v7384 = vunpack.c.l.b16 %v7272
        %v7385 = vunpack.c.l.b16 %v7273
        %v7386 = vunpack.c.l.b16 %v7274
        %v7387 = vunpack.c.l.b16 %v7275
        %v7388 = vunpack.c.l.b16 %v7276
        %v7389 = vunpack.c.l.b16 %v7277
        %v7390 = vunpack.c.l.b16 %v7278
        %v7391 = vunpack.c.l.b16 %v7279
        %v7392 = vunpack.c.l.b16 %v7280
        %v7393 = vunpack.c.l.b16 %v7281
        %v7394 = vunpack.c.l.b16 %v7282
        %v7395 = vunpack.c.l.b16 %v7283
        %v7396 = vunpack.c.l.b16 %v7284
        %v7397 = vunpack.c.l.b16 %v7285
        %v7398 = vunpack.c.l.b16 %v7286
        %v7399 = vunpack.c.l.b16 %v7287
        %v7400 = vunpack.c.l.b16 %v7288
        %v7401 = vunpack.c.l.b16 %v7289
        %v7402 = vunpack.c.l.b16 %v7290
        %v7403 = vunpack.c.l.b16 %v7291
        %v7404 = vunpack.c.l.b16 %v7292
        %v7405 = vunpack.c.l.b16 %v7293
        %v7406 = vunpack.c.l.b16 %v7294
        %v7407 = vunpack.c.l.b16 %v7295
        %v7408 = vunpack.c.l.b16 %v7296
        %v7409 = vunpack.c.l.b16 %v7297
        %v7410 = vunpack.c.l.b16 %v7298
        %v7411 = vunpack.c.l.b16 %v7299
        %v7412 = vunpack.c.l.b16 %v7300
        %v7413 = vunpack.c.l.b16 %v7301
        %v7414 = vunpack.c.l.b16 %v7302
        %v7415 = vpack.c.b16 %v7360, %v7359
        %v7416 = vpack.c.b16 %v7362, %v7361
        %v7417 = vpack.c.b16 %v7364, %v7363
        %v7418 = vpack.c.b16 %v7366, %v7365
        %v7419 = vpack.c.b16 %v7368, %v7367
        %v7420 = vpack.c.b16 %v7370, %v7369
        %v7421 = vpack.c.b16 %v7372, %v7371
        %v7422 = vpack.c.b16 %v7374, %v7373
        %v7423 = vpack.c.b16 %v7376, %v7375
        %v7424 = vpack.c.b16 %v7378, %v7377
        %v7425 = vpack.c.b16 %v7380, %v7379
        %v7426 = vpack.c.b16 %v7382, %v7381
        %v7427 = vpack.c.b16 %v7384, %v7383
        %v7428 = vpack.c.b16 %v7386, %v7385
        %v7429 = vpack.c.b16 %v7388, %v7387
        %v7430 = vpack.c.b16 %v7390, %v7389
        %v7431 = vpack.c.b16 %v7392, %v7391
        %v7432 = vpack.c.b16 %v7394, %v7393
        %v7433 = vpack.c.b16 %v7396, %v7395
        %v7434 = vpack.c.b16 %v7398, %v7397
        %v7435 = vpack.c.b16 %v7400, %v7399
        %v7436 = vpack.c.b16 %v7402, %v7401
        %v7437 = vpack.c.b16 %v7404, %v7403
        %v7438 = vpack.c.b16 %v7406, %v7405
        %v7439 = vpack.c.b16 %v7408, %v7407
        %v7440 = vpack.c.b16 %v7410, %v7409
        %v7441 = vpack.c.b16 %v7412, %v7411
        %v7442 = vpack.c.b16 %v7414, %v7413
        %v7472 = vsel %vm1322, %v7245, 0
        %7474 = vmatprep.subr.bf16.mxu0 0
        %7475 = vmatpush1.bf16.msra.mxu0 %v7415
        %7476 = vmatprep.subr.bf16.mxu0 0
        %7477 = vmatpush1.bf16.msra.mxu0 %v7416
        %7478 = vmatprep.subr.bf16.mxu0 0
        %7479 = vmatpush1.bf16.msra.mxu0 %v7417
        %7480 = vmatprep.subr.bf16.mxu0 0
        %7481 = vmatpush1.bf16.msra.mxu0 %v7418
        %7482 = vmatprep.subr.bf16.mxu0 0
        %7483 = vmatpush1.bf16.msra.mxu0 %v7419
        %7484 = vmatprep.subr.bf16.mxu0 0
        %7485 = vmatpush1.bf16.msra.mxu0 %v7420
        %7486 = vmatprep.subr.bf16.mxu0 0
        %7487 = vmatpush1.bf16.msra.mxu0 %v7421
        %7488 = vmatprep.subr.bf16.mxu0 0
        %7489 = vmatpush1.bf16.msra.mxu0 %v7422
        %7490 = vmatprep.subr.bf16.mxu0 0
        %7491 = vmatpush1.bf16.msra.mxu0 %v7423
        %7492 = vmatprep.subr.bf16.mxu0 0
        %7493 = vmatpush1.bf16.msra.mxu0 %v7424
        %7494 = vmatprep.subr.bf16.mxu0 0
        %7495 = vmatpush1.bf16.msra.mxu0 %v7425
        %7496 = vmatprep.subr.bf16.mxu0 0
        %7497 = vmatpush1.bf16.msra.mxu0 %v7426
        %7498 = vmatprep.subr.bf16.mxu0 0
        %7499 = vmatpush1.bf16.msra.mxu0 %v7427
        %7500 = vmatprep.subr.bf16.mxu0 0
        %7501 = vmatpush1.bf16.msra.mxu0 %v7428
        %7502 = vmatprep.subr.bf16.mxu0 0
        %7503 = vmatpush1.bf16.msra.mxu0 %v7429
        %7504 = vmatprep.subr.bf16.mxu0 0
        %7505 = vmatpush1.bf16.msra.mxu0 %v7430
        %7506 = vmatprep.mubr.bf16.mxu0 %v7243
        %7507 = vmatmul.mubr.bf16.gmra.mrb[0].mxu0 %v7242
        %v7508 = vpop.f32.mrb[0].mxu0
        %v7509 = vadd.f32 0.0, %v7508
        %v7510 = vpop.f32.mrb[0].mxu0
        %v7511 = vpop.f32.mrb[0].mxu0
        %v7512 = vpop.f32.mrb[0].mxu0
        %7513 = vdwg.mxu0
        %7514 = vmatprep.subr.bf16.mxu0 0
        %7515 = vmatpush1.bf16.msra.mxu0 %v7431
        %7516 = vmatprep.subr.bf16.mxu0 0
        %7517 = vmatpush1.bf16.msra.mxu0 %v7432
        %7518 = vmatprep.subr.bf16.mxu0 0
        %7519 = vmatpush1.bf16.msra.mxu0 %v7433
        %7520 = vmatprep.subr.bf16.mxu0 0
        %7521 = vmatpush1.bf16.msra.mxu0 %v7434
        %7522 = vmatprep.subr.bf16.mxu0 0
        %7523 = vmatpush1.bf16.msra.mxu0 %v7435
        %7524 = vmatprep.subr.bf16.mxu0 0
        %7525 = vmatpush1.bf16.msra.mxu0 %v7436
        %7526 = vmatprep.subr.bf16.mxu0 0
        %7527 = vmatpush1.bf16.msra.mxu0 %v7437
        %7528 = vmatprep.subr.bf16.mxu0 0
        %7529 = vmatpush1.bf16.msra.mxu0 %v7438
        %7530 = vmatprep.subr.bf16.mxu0 0
        %7531 = vmatpush1.bf16.msra.mxu0 %v7439
        %7532 = vmatprep.subr.bf16.mxu0 0
        %7533 = vmatpush1.bf16.msra.mxu0 %v7440
        %7534 = vmatprep.subr.bf16.mxu0 0
        %7535 = vmatpush1.bf16.msra.mxu0 %v7441
        %7536 = vmatprep.subr.bf16.mxu0 0
        %7537 = vmatpush1.bf16.msra.mxu0 %v7442
        %7538 = vmatprep.subr.bf16.mxu0 0
        %7539 = vmatpush1.bf16.msra.mxu0 0
        %7540 = vmatprep.subr.bf16.mxu0 0
        %7541 = vmatpush1.bf16.msra.mxu0 0
        %7542 = vmatprep.subr.bf16.mxu0 0
        %7543 = vmatpush1.bf16.msra.mxu0 0
        %7544 = vmatprep.subr.bf16.mxu0 0
        %7545 = vmatpush1.bf16.msra.mxu0 0
        %7546 = vmatprep.mubr.bf16.mxu0 %v7472
        %7547 = vmatmul.mubr.bf16.gmra.mrb[0].mxu0 %v7244
        %v7548 = vpop.f32.mrb[0].mxu0
        %v7549 = vadd.f32 %v7509, %v7548
        %v7550 = vpop.f32.mrb[0].mxu0
        %v7551 = vpop.f32.mrb[0].mxu0
        %v7552 = vpop.f32.mrb[0].mxu0
        %7553 = vdwg.mxu0
        %v7554 = vadd.f32 %v6965, %v7549
        %7555 = vmatprep.subr.bf16.mxu0 %v407
        %7556 = vmatpush1.bf16.msra.mxu0 %v406
        %7557 = vmatprep.subr.bf16.mxu0 0
        %7558 = vmatpush1.bf16.msra.mxu0 0
        %7559 = vmatprep.subr.bf16.mxu0 0
        %7560 = vmatpush1.bf16.msra.mxu0 0
        %7561 = vmatprep.subr.bf16.mxu0 0
        %7562 = vmatpush1.bf16.msra.mxu0 0
        %7563 = vmatprep.subr.bf16.mxu0 0
        %7564 = vmatpush1.bf16.msra.mxu0 0
        %7565 = vmatprep.subr.bf16.mxu0 0
        %7566 = vmatpush1.bf16.msra.mxu0 0
        %7567 = vmatprep.subr.bf16.mxu0 0
        %7568 = vmatpush1.bf16.msra.mxu0 0
        %7569 = vmatprep.subr.bf16.mxu0 0
        %7570 = vmatpush1.bf16.msra.mxu0 0
        %7571 = vmatprep.subr.bf16.mxu0 0
        %7572 = vmatpush1.bf16.msra.mxu0 0
        %7573 = vmatprep.subr.bf16.mxu0 0
        %7574 = vmatpush1.bf16.msra.mxu0 0
        %7575 = vmatprep.subr.bf16.mxu0 0
        %7576 = vmatpush1.bf16.msra.mxu0 0
        %7577 = vmatprep.subr.bf16.mxu0 0
        %7578 = vmatpush1.bf16.msra.mxu0 0
        %7579 = vmatprep.subr.bf16.mxu0 0
        %7580 = vmatpush1.bf16.msra.mxu0 0
        %7581 = vmatprep.subr.bf16.mxu0 0
        %7582 = vmatpush1.bf16.msra.mxu0 0
        %7583 = vmatprep.subr.bf16.mxu0 0
        %7584 = vmatpush1.bf16.msra.mxu0 0
        %7585 = vmatprep.subr.bf16.mxu0 0
        %7586 = vmatpush1.bf16.msra.mxu0 0
        %7587 = vmatprep.mubr.bf16.mxu0 0
        %7588 = vmatmul.mubr.bf16.gmra.mrb[0].mxu0 %v7146
        %v7589 = vpop.f32.mrb[0].mxu0
        %v7590 = vadd.f32 0.0, %v7589
        %v7591 = vpop.f32.mrb[0].mxu0
        %v7592 = vadd.f32 0.0, %v7591
        %v7593 = vpop.f32.mrb[0].mxu0
        %v7594 = vpop.f32.mrb[0].mxu0
        %7595 = vdwg.mxu0
        %7596 = vmatprep.subr.bf16.mxu0 %v409
        %7597 = vmatpush1.bf16.msra.mxu0 %v408
        %7598 = vmatprep.subr.bf16.mxu0 0
        %7599 = vmatpush1.bf16.msra.mxu0 0
        %7600 = vmatprep.subr.bf16.mxu0 0
        %7601 = vmatpush1.bf16.msra.mxu0 0
        %7602 = vmatprep.subr.bf16.mxu0 0
        %7603 = vmatpush1.bf16.msra.mxu0 0
        %7604 = vmatprep.subr.bf16.mxu0 0
        %7605 = vmatpush1.bf16.msra.mxu0 0
        %7606 = vmatprep.subr.bf16.mxu0 0
        %7607 = vmatpush1.bf16.msra.mxu0 0
        %7608 = vmatprep.subr.bf16.mxu0 0
        %7609 = vmatpush1.bf16.msra.mxu0 0
        %7610 = vmatprep.subr.bf16.mxu0 0
        %7611 = vmatpush1.bf16.msra.mxu0 0
        %7612 = vmatprep.subr.bf16.mxu0 0
        %7613 = vmatpush1.bf16.msra.mxu0 0
        %7614 = vmatprep.subr.bf16.mxu0 0
        %7615 = vmatpush1.bf16.msra.mxu0 0
        %7616 = vmatprep.subr.bf16.mxu0 0
        %7617 = vmatpush1.bf16.msra.mxu0 0
        %7618 = vmatprep.subr.bf16.mxu0 0
        %7619 = vmatpush1.bf16.msra.mxu0 0
        %7620 = vmatprep.subr.bf16.mxu0 0
        %7621 = vmatpush1.bf16.msra.mxu0 0
        %7622 = vmatprep.subr.bf16.mxu0 0
        %7623 = vmatpush1.bf16.msra.mxu0 0
        %7624 = vmatprep.subr.bf16.mxu0 0
        %7625 = vmatpush1.bf16.msra.mxu0 0
        %7626 = vmatprep.subr.bf16.mxu0 0
        %7627 = vmatpush1.bf16.msra.mxu0 0
        %7628 = vmatprep.mubr.bf16.mxu0 0
        %7629 = vmatmul.mubr.bf16.gmra.mrb[0].mxu0 %v7146
        %v7630 = vpop.f32.mrb[0].mxu0
        %v7631 = vadd.f32 0.0, %v7630
        %v7632 = vpop.f32.mrb[0].mxu0
        %v7633 = vadd.f32 0.0, %v7632
        %v7634 = vpop.f32.mrb[0].mxu0
        %v7635 = vpop.f32.mrb[0].mxu0
        %7636 = vdwg.mxu0
        %7637 = vmatprep.subr.bf16.mxu0 %v528
        %7638 = vmatpush1.bf16.msra.mxu0 %v527
        %7639 = vmatprep.subr.bf16.mxu0 0
        %7640 = vmatpush1.bf16.msra.mxu0 0
        %7641 = vmatprep.subr.bf16.mxu0 0
        %7642 = vmatpush1.bf16.msra.mxu0 0
        %7643 = vmatprep.subr.bf16.mxu0 0
        %7644 = vmatpush1.bf16.msra.mxu0 0
        %7645 = vmatprep.subr.bf16.mxu0 0
        %7646 = vmatpush1.bf16.msra.mxu0 0
        %7647 = vmatprep.subr.bf16.mxu0 0
        %7648 = vmatpush1.bf16.msra.mxu0 0
        %7649 = vmatprep.subr.bf16.mxu0 0
        %7650 = vmatpush1.bf16.msra.mxu0 0
        %7651 = vmatprep.subr.bf16.mxu0 0
        %7652 = vmatpush1.bf16.msra.mxu0 0
        %7653 = vmatprep.subr.bf16.mxu0 0
        %7654 = vmatpush1.bf16.msra.mxu0 0
        %7655 = vmatprep.subr.bf16.mxu0 0
        %7656 = vmatpush1.bf16.msra.mxu0 0
        %7657 = vmatprep.subr.bf16.mxu0 0
        %7658 = vmatpush1.bf16.msra.mxu0 0
        %7659 = vmatprep.subr.bf16.mxu0 0
        %7660 = vmatpush1.bf16.msra.mxu0 0
        %7661 = vmatprep.subr.bf16.mxu0 0
        %7662 = vmatpush1.bf16.msra.mxu0 0
        %7663 = vmatprep.subr.bf16.mxu0 0
        %7664 = vmatpush1.bf16.msra.mxu0 0
        %7665 = vmatprep.subr.bf16.mxu0 0
        %7666 = vmatpush1.bf16.msra.mxu0 0
        %7667 = vmatprep.subr.bf16.mxu0 0
        %7668 = vmatpush1.bf16.msra.mxu0 0
        %7669 = vmatprep.mubr.bf16.mxu0 0
        %7670 = vmatmul.mubr.bf16.gmra.mrb[0].mxu0 %v6557
        %v7671 = vpop.f32.mrb[0].mxu0
        %v7672 = vadd.f32 %v7590, %v7671
        %v7673 = vpop.f32.mrb[0].mxu0
        %v7674 = vadd.f32 %v7592, %v7673
        %v7675 = vpop.f32.mrb[0].mxu0
        %v7676 = vpop.f32.mrb[0].mxu0
        %7677 = vdwg.mxu0
        %7678 = vmatprep.subr.bf16.mxu0 %v530
        %7679 = vmatpush1.bf16.msra.mxu0 %v529
        %7680 = vmatprep.subr.bf16.mxu0 0
        %7681 = vmatpush1.bf16.msra.mxu0 0
        %7682 = vmatprep.subr.bf16.mxu0 0
        %7683 = vmatpush1.bf16.msra.mxu0 0
        %7684 = vmatprep.subr.bf16.mxu0 0
        %7685 = vmatpush1.bf16.msra.mxu0 0
        %7686 = vmatprep.subr.bf16.mxu0 0
        %7687 = vmatpush1.bf16.msra.mxu0 0
        %7688 = vmatprep.subr.bf16.mxu0 0
        %7689 = vmatpush1.bf16.msra.mxu0 0
        %7690 = vmatprep.subr.bf16.mxu0 0
        %7691 = vmatpush1.bf16.msra.mxu0 0
        %7692 = vmatprep.subr.bf16.mxu0 0
        %7693 = vmatpush1.bf16.msra.mxu0 0
        %7694 = vmatprep.subr.bf16.mxu0 0
        %7695 = vmatpush1.bf16.msra.mxu0 0
        %7696 = vmatprep.subr.bf16.mxu0 0
        %7697 = vmatpush1.bf16.msra.mxu0 0
        %7698 = vmatprep.subr.bf16.mxu0 0
        %7699 = vmatpush1.bf16.msra.mxu0 0
        %7700 = vmatprep.subr.bf16.mxu0 0
        %7701 = vmatpush1.bf16.msra.mxu0 0
        %7702 = vmatprep.subr.bf16.mxu0 0
        %7703 = vmatpush1.bf16.msra.mxu0 0
        %7704 = vmatprep.subr.bf16.mxu0 0
        %7705 = vmatpush1.bf16.msra.mxu0 0
        %7706 = vmatprep.subr.bf16.mxu0 0
        %7707 = vmatpush1.bf16.msra.mxu0 0
        %7708 = vmatprep.subr.bf16.mxu0 0
        %7709 = vmatpush1.bf16.msra.mxu0 0
        %7710 = vmatprep.mubr.bf16.mxu0 0
        %7711 = vmatmul.mubr.bf16.gmra.mrb[0].mxu0 %v6557
        %v7712 = vpop.f32.mrb[0].mxu0
        %v7713 = vadd.f32 %v7631, %v7712
        %v7714 = vpop.f32.mrb[0].mxu0
        %v7715 = vadd.f32 %v7633, %v7714
        %v7716 = vpop.f32.mrb[0].mxu0
        %v7717 = vpop.f32.mrb[0].mxu0
        %7718 = vdwg.mxu0
        %v7719 = vrot.slane %v4177, 6
        %v7720 = vrot.slane %v4178, 5
        %v7721 = vsel %vm373, %v7720, %v7719
        %v7722 = vrot.slane %v4179, 4
        %v7723 = vsel %vm376, %v7722, %v7721
        %v7724 = vrot.slane %v4180, 3
        %v7725 = vsel %vm379, %v7724, %v7723
        %v7726 = vrot.slane %v4181, 2
        %v7727 = vsel %vm382, %v7726, %v7725
        %v7728 = vrot.slane %v4182, 1
        %v7729 = vsel %vm385, %v7728, %v7727
        %v7730 = vsel %vm388, %v4183, %v7729
        %v7731 = vrot.slane %v4184, 7
        %v7732 = vsel %vm391, %v7731, %v7730
        %v7733 = vpack.c.b16 %v7732, %v7732
        %v7735 = vsel %vm414, %v7733, 0
        %7737 = vmatprep.subr.bf16.mxu0 %v653
        %7738 = vmatpush1.bf16.msra.mxu0 %v652
        %7739 = vmatprep.subr.bf16.mxu0 0
        %7740 = vmatpush1.bf16.msra.mxu0 0
        %7741 = vmatprep.subr.bf16.mxu0 0
        %7742 = vmatpush1.bf16.msra.mxu0 0
        %7743 = vmatprep.subr.bf16.mxu0 0
        %7744 = vmatpush1.bf16.msra.mxu0 0
        %7745 = vmatprep.subr.bf16.mxu0 0
        %7746 = vmatpush1.bf16.msra.mxu0 0
        %7747 = vmatprep.subr.bf16.mxu0 0
        %7748 = vmatpush1.bf16.msra.mxu0 0
        %7749 = vmatprep.subr.bf16.mxu0 0
        %7750 = vmatpush1.bf16.msra.mxu0 0
        %7751 = vmatprep.subr.bf16.mxu0 0
        %7752 = vmatpush1.bf16.msra.mxu0 0
        %7753 = vmatprep.subr.bf16.mxu0 0
        %7754 = vmatpush1.bf16.msra.mxu0 0
        %7755 = vmatprep.subr.bf16.mxu0 0
        %7756 = vmatpush1.bf16.msra.mxu0 0
        %7757 = vmatprep.subr.bf16.mxu0 0
        %7758 = vmatpush1.bf16.msra.mxu0 0
        %7759 = vmatprep.subr.bf16.mxu0 0
        %7760 = vmatpush1.bf16.msra.mxu0 0
        %7761 = vmatprep.subr.bf16.mxu0 0
        %7762 = vmatpush1.bf16.msra.mxu0 0
        %7763 = vmatprep.subr.bf16.mxu0 0
        %7764 = vmatpush1.bf16.msra.mxu0 0
        %7765 = vmatprep.subr.bf16.mxu0 0
        %7766 = vmatpush1.bf16.msra.mxu0 0
        %7767 = vmatprep.subr.bf16.mxu0 0
        %7768 = vmatpush1.bf16.msra.mxu0 0
        %7769 = vmatprep.mubr.bf16.mxu0 0
        %7770 = vmatmul.mubr.bf16.gmra.mrb[0].mxu0 %v7735
        %v7771 = vpop.f32.mrb[0].mxu0
        %v7772 = vadd.f32 0.0, %v7771
        %v7773 = vpop.f32.mrb[0].mxu0
        %v7774 = vadd.f32 0.0, %v7773
        %v7775 = vpop.f32.mrb[0].mxu0
        %v7776 = vpop.f32.mrb[0].mxu0
        %7777 = vdwg.mxu0
        %7778 = vmatprep.subr.bf16.mxu0 %v655
        %7779 = vmatpush1.bf16.msra.mxu0 %v654
        %7780 = vmatprep.subr.bf16.mxu0 0
        %7781 = vmatpush1.bf16.msra.mxu0 0
        %7782 = vmatprep.subr.bf16.mxu0 0
        %7783 = vmatpush1.bf16.msra.mxu0 0
        %7784 = vmatprep.subr.bf16.mxu0 0
        %7785 = vmatpush1.bf16.msra.mxu0 0
        %7786 = vmatprep.subr.bf16.mxu0 0
        %7787 = vmatpush1.bf16.msra.mxu0 0
        %7788 = vmatprep.subr.bf16.mxu0 0
        %7789 = vmatpush1.bf16.msra.mxu0 0
        %7790 = vmatprep.subr.bf16.mxu0 0
        %7791 = vmatpush1.bf16.msra.mxu0 0
        %7792 = vmatprep.subr.bf16.mxu0 0
        %7793 = vmatpush1.bf16.msra.mxu0 0
        %7794 = vmatprep.subr.bf16.mxu0 0
        %7795 = vmatpush1.bf16.msra.mxu0 0
        %7796 = vmatprep.subr.bf16.mxu0 0
        %7797 = vmatpush1.bf16.msra.mxu0 0
        %7798 = vmatprep.subr.bf16.mxu0 0
        %7799 = vmatpush1.bf16.msra.mxu0 0
        %7800 = vmatprep.subr.bf16.mxu0 0
        %7801 = vmatpush1.bf16.msra.mxu0 0
        %7802 = vmatprep.subr.bf16.mxu0 0
        %7803 = vmatpush1.bf16.msra.mxu0 0
        %7804 = vmatprep.subr.bf16.mxu0 0
        %7805 = vmatpush1.bf16.msra.mxu0 0
        %7806 = vmatprep.subr.bf16.mxu0 0
        %7807 = vmatpush1.bf16.msra.mxu0 0
        %7808 = vmatprep.subr.bf16.mxu0 0
        %7809 = vmatpush1.bf16.msra.mxu0 0
        %7810 = vmatprep.mubr.bf16.mxu0 0
        %7811 = vmatmul.mubr.bf16.gmra.mrb[0].mxu0 %v7735
        %v7812 = vpop.f32.mrb[0].mxu0
        %v7813 = vadd.f32 0.0, %v7812
        %v7814 = vpop.f32.mrb[0].mxu0
        %v7815 = vadd.f32 0.0, %v7814
        %v7816 = vpop.f32.mrb[0].mxu0
        %v7817 = vpop.f32.mrb[0].mxu0
        %7818 = vdwg.mxu0
        %v7819 = vadd.f32 %v7672, %v7772
        %v7820 = vadd.f32 %v7674, %v7774
        %v7821 = vadd.f32 %v7713, %v7813
        %v7822 = vadd.f32 %v7715, %v7815
        %v7823 = vadd.f32 %v7819, %v329
        %v7824 = vadd.f32 %v7820, %v333
        %v7825 = vadd.f32 %v7821, %v337
        %v7826 = vadd.f32 %v7822, %v341
        %v7827 = vmax.f32 %v7823, 0.0
        %v7828 = vmax.f32 %v7824, 0.0
        %v7829 = vmax.f32 %v7825, 0.0
        %v7830 = vmax.f32 %v7826, 0.0
        %v7831 = vpack.c.bf16 %v7827, %v7827
        %v7832 = vpack.c.bf16 %v7828, %v7828
        %v7833 = vpack.c.bf16 %v7829, %v7829
        %v7834 = vpack.c.bf16 %v7830, %v7830
        %s7835 = scalar_lea.vmem [#allocation6], 2688
        %v7836 = vld [vmem:[%s7835] sm:$0xf]
        %v7837 = vld [vmem:[%s7835 + $0x4] sm:$0xf]
        %v7838 = vld [vmem:[%s7835 + $0x8] sm:$0xf]
        %v7839 = vld [vmem:[%s7835 + $0xc] sm:$0xf]
        %v7840 = vld [vmem:[%s7835 + $0x10] sm:$0xf]
        %v7841 = vld [vmem:[%s7835 + $0x14] sm:$0xf]
        %v7842 = vld [vmem:[%s7835 + $0x18] sm:$0xf]
        %v7843 = vld [vmem:[%s7835 + $0x1c] sm:$0xf]
        %v7844 = vld [vmem:[%s7835 + $0x20] sm:$0xf]
        %v7845 = vld [vmem:[%s7835 + $0x24] sm:$0xf]
        %v7846 = vld [vmem:[%s7835 + $0x28] sm:$0xf]
        %v7847 = vld [vmem:[%s7835 + $0x2c] sm:$0xf]
        %v7848 = vld [vmem:[%s7835 + $0x30] sm:$0xf]
        %v7849 = vld [vmem:[%s7835 + $0x34] sm:$0xf]
        %v7850 = vld [vmem:[%s7835 + $0x38] sm:$0xf]
        %v7851 = vld [vmem:[%s7835 + $0x3c] sm:$0xf]
        %v7852 = vld [vmem:[%s7835 + $0x40] sm:$0xf]
        %v7853 = vld [vmem:[%s7835 + $0x44] sm:$0xf]
        %v7854 = vld [vmem:[%s7835 + $0x48] sm:$0xf]
        %v7855 = vld [vmem:[%s7835 + $0x4c] sm:$0xf]
        %v7856 = vld [vmem:[%s7835 + $0x50] sm:$0xf]
        %v7857 = vld [vmem:[%s7835 + $0x54] sm:$0xf]
        %v7858 = vld [vmem:[%s7835 + $0x58] sm:$0xf]
        %v7859 = vld [vmem:[%s7835 + $0x5c] sm:$0xf]
        %v7860 = vld [vmem:[%s7835 + $0x60] sm:$0xf]
        %v7861 = vld [vmem:[%s7835 + $0x64] sm:$0xf]
        %v7862 = vld [vmem:[%s7835 + $0x68] sm:$0xf]
        %v7863 = vld [vmem:[%s7835 + $0x6c] sm:$0xf]
        %v7864 = vld [vmem:[%s7835 + $0x70] sm:$0xf]
        %v7865 = vld [vmem:[%s7835 + $0x74] sm:$0xf]
        %v7866 = vld [vmem:[%s7835 + $0x78] sm:$0xf]
        %v7867 = vld [vmem:[%s7835 + $0x7c] sm:$0xf]
        %v7868 = vld [vmem:[%s7835 + $0x80] sm:$0xf]
        %v7869 = vld [vmem:[%s7835 + $0x84] sm:$0xf]
        %v7870 = vld [vmem:[%s7835 + $0x88] sm:$0xf]
        %v7871 = vld [vmem:[%s7835 + $0x8c] sm:$0xf]
        %v7872 = vld [vmem:[%s7835 + $0x90] sm:$0xf]
        %v7873 = vld [vmem:[%s7835 + $0x94] sm:$0xf]
        %v7874 = vld [vmem:[%s7835 + $0x98] sm:$0xf]
        %v7875 = vld [vmem:[%s7835 + $0x9c] sm:$0xf]
        %v7876 = vld [vmem:[%s7835 + $0xa0] sm:$0xf]
        %v7877 = vld [vmem:[%s7835 + $0xa4] sm:$0xf]
        %v7878 = vld [vmem:[%s7835 + $0xa8] sm:$0xf]
        %v7879 = vld [vmem:[%s7835 + $0xac] sm:$0xf]
        %v7880 = vld [vmem:[%s7835 + $0xb0] sm:$0xf]
        %v7881 = vld [vmem:[%s7835 + $0xb4] sm:$0xf]
        %v7882 = vld [vmem:[%s7835 + $0xb8] sm:$0xf]
        %v7883 = vld [vmem:[%s7835 + $0xbc] sm:$0xf]
        %v7884 = vld [vmem:[%s7835 + $0xc0] sm:$0xf]
        %v7885 = vld [vmem:[%s7835 + $0xc4] sm:$0xf]
        %v7886 = vld [vmem:[%s7835 + $0xc8] sm:$0xf]
        %v7887 = vld [vmem:[%s7835 + $0xcc] sm:$0xf]
        %v7888 = vld [vmem:[%s7835 + $0xd0] sm:$0xf]
        %v7889 = vld [vmem:[%s7835 + $0xd4] sm:$0xf]
        %v7890 = vld [vmem:[%s7835 + $0xd8] sm:$0xf]
        %v7891 = vld [vmem:[%s7835 + $0xdc] sm:$0xf]
        %v7948 = vunpack.c.l.b16 %v7836
        %v7949 = vunpack.c.l.b16 %v7837
        %v7950 = vunpack.c.l.b16 %v7838
        %v7951 = vunpack.c.l.b16 %v7839
        %v7952 = vunpack.c.l.b16 %v7840
        %v7953 = vunpack.c.l.b16 %v7841
        %v7954 = vunpack.c.l.b16 %v7842
        %v7955 = vunpack.c.l.b16 %v7843
        %v7956 = vunpack.c.l.b16 %v7844
        %v7957 = vunpack.c.l.b16 %v7845
        %v7958 = vunpack.c.l.b16 %v7846
        %v7959 = vunpack.c.l.b16 %v7847
        %v7960 = vunpack.c.l.b16 %v7848
        %v7961 = vunpack.c.l.b16 %v7849
        %v7962 = vunpack.c.l.b16 %v7850
        %v7963 = vunpack.c.l.b16 %v7851
        %v7964 = vunpack.c.l.b16 %v7852
        %v7965 = vunpack.c.l.b16 %v7853
        %v7966 = vunpack.c.l.b16 %v7854
        %v7967 = vunpack.c.l.b16 %v7855
        %v7968 = vunpack.c.l.b16 %v7856
        %v7969 = vunpack.c.l.b16 %v7857
        %v7970 = vunpack.c.l.b16 %v7858
        %v7971 = vunpack.c.l.b16 %v7859
        %v7972 = vunpack.c.l.b16 %v7860
        %v7973 = vunpack.c.l.b16 %v7861
        %v7974 = vunpack.c.l.b16 %v7862
        %v7975 = vunpack.c.l.b16 %v7863
        %v7976 = vunpack.c.l.b16 %v7864
        %v7977 = vunpack.c.l.b16 %v7865
        %v7978 = vunpack.c.l.b16 %v7866
        %v7979 = vunpack.c.l.b16 %v7867
        %v7980 = vunpack.c.l.b16 %v7868
        %v7981 = vunpack.c.l.b16 %v7869
        %v7982 = vunpack.c.l.b16 %v7870
        %v7983 = vunpack.c.l.b16 %v7871
        %v7984 = vunpack.c.l.b16 %v7872
        %v7985 = vunpack.c.l.b16 %v7873
        %v7986 = vunpack.c.l.b16 %v7874
        %v7987 = vunpack.c.l.b16 %v7875
        %v7988 = vunpack.c.l.b16 %v7876
        %v7989 = vunpack.c.l.b16 %v7877
        %v7990 = vunpack.c.l.b16 %v7878
        %v7991 = vunpack.c.l.b16 %v7879
        %v7992 = vunpack.c.l.b16 %v7880
        %v7993 = vunpack.c.l.b16 %v7881
        %v7994 = vunpack.c.l.b16 %v7882
        %v7995 = vunpack.c.l.b16 %v7883
        %v7996 = vunpack.c.l.b16 %v7884
        %v7997 = vunpack.c.l.b16 %v7885
        %v7998 = vunpack.c.l.b16 %v7886
        %v7999 = vunpack.c.l.b16 %v7887
        %v8000 = vunpack.c.l.b16 %v7888
        %v8001 = vunpack.c.l.b16 %v7889
        %v8002 = vunpack.c.l.b16 %v7890
        %v8003 = vunpack.c.l.b16 %v7891
        %v8004 = vpack.c.b16 %v7949, %v7948
        %v8005 = vpack.c.b16 %v7951, %v7950
        %v8006 = vpack.c.b16 %v7953, %v7952
        %v8007 = vpack.c.b16 %v7955, %v7954
        %v8008 = vpack.c.b16 %v7957, %v7956
        %v8009 = vpack.c.b16 %v7959, %v7958
        %v8010 = vpack.c.b16 %v7961, %v7960
        %v8011 = vpack.c.b16 %v7963, %v7962
        %v8012 = vpack.c.b16 %v7965, %v7964
        %v8013 = vpack.c.b16 %v7967, %v7966
        %v8014 = vpack.c.b16 %v7969, %v7968
        %v8015 = vpack.c.b16 %v7971, %v7970
        %v8016 = vpack.c.b16 %v7973, %v7972
        %v8017 = vpack.c.b16 %v7975, %v7974
        %v8018 = vpack.c.b16 %v7977, %v7976
        %v8019 = vpack.c.b16 %v7979, %v7978
        %v8020 = vpack.c.b16 %v7981, %v7980
        %v8021 = vpack.c.b16 %v7983, %v7982
        %v8022 = vpack.c.b16 %v7985, %v7984
        %v8023 = vpack.c.b16 %v7987, %v7986
        %v8024 = vpack.c.b16 %v7989, %v7988
        %v8025 = vpack.c.b16 %v7991, %v7990
        %v8026 = vpack.c.b16 %v7993, %v7992
        %v8027 = vpack.c.b16 %v7995, %v7994
        %v8028 = vpack.c.b16 %v7997, %v7996
        %v8029 = vpack.c.b16 %v7999, %v7998
        %v8030 = vpack.c.b16 %v8001, %v8000
        %v8031 = vpack.c.b16 %v8003, %v8002
        %v8061 = vsel %vm1322, %v7834, 0
        %8063 = vmatprep.subr.bf16.mxu0 0
        %8064 = vmatpush1.bf16.msra.mxu0 %v8004
        %8065 = vmatprep.subr.bf16.mxu0 0
        %8066 = vmatpush1.bf16.msra.mxu0 %v8005
        %8067 = vmatprep.subr.bf16.mxu0 0
        %8068 = vmatpush1.bf16.msra.mxu0 %v8006
        %8069 = vmatprep.subr.bf16.mxu0 0
        %8070 = vmatpush1.bf16.msra.mxu0 %v8007
        %8071 = vmatprep.subr.bf16.mxu0 0
        %8072 = vmatpush1.bf16.msra.mxu0 %v8008
        %8073 = vmatprep.subr.bf16.mxu0 0
        %8074 = vmatpush1.bf16.msra.mxu0 %v8009
        %8075 = vmatprep.subr.bf16.mxu0 0
        %8076 = vmatpush1.bf16.msra.mxu0 %v8010
        %8077 = vmatprep.subr.bf16.mxu0 0
        %8078 = vmatpush1.bf16.msra.mxu0 %v8011
        %8079 = vmatprep.subr.bf16.mxu0 0
        %8080 = vmatpush1.bf16.msra.mxu0 %v8012
        %8081 = vmatprep.subr.bf16.mxu0 0
        %8082 = vmatpush1.bf16.msra.mxu0 %v8013
        %8083 = vmatprep.subr.bf16.mxu0 0
        %8084 = vmatpush1.bf16.msra.mxu0 %v8014
        %8085 = vmatprep.subr.bf16.mxu0 0
        %8086 = vmatpush1.bf16.msra.mxu0 %v8015
        %8087 = vmatprep.subr.bf16.mxu0 0
        %8088 = vmatpush1.bf16.msra.mxu0 %v8016
        %8089 = vmatprep.subr.bf16.mxu0 0
        %8090 = vmatpush1.bf16.msra.mxu0 %v8017
        %8091 = vmatprep.subr.bf16.mxu0 0
        %8092 = vmatpush1.bf16.msra.mxu0 %v8018
        %8093 = vmatprep.subr.bf16.mxu0 0
        %8094 = vmatpush1.bf16.msra.mxu0 %v8019
        %8095 = vmatprep.mubr.bf16.mxu0 %v7832
        %8096 = vmatmul.mubr.bf16.gmra.mrb[0].mxu0 %v7831
        %v8097 = vpop.f32.mrb[0].mxu0
        %v8098 = vadd.f32 0.0, %v8097
        %v8099 = vpop.f32.mrb[0].mxu0
        %v8100 = vpop.f32.mrb[0].mxu0
        %v8101 = vpop.f32.mrb[0].mxu0
        %8102 = vdwg.mxu0
        %8103 = vmatprep.subr.bf16.mxu0 0
        %8104 = vmatpush1.bf16.msra.mxu0 %v8020
        %8105 = vmatprep.subr.bf16.mxu0 0
        %8106 = vmatpush1.bf16.msra.mxu0 %v8021
        %8107 = vmatprep.subr.bf16.mxu0 0
        %8108 = vmatpush1.bf16.msra.mxu0 %v8022
        %8109 = vmatprep.subr.bf16.mxu0 0
        %8110 = vmatpush1.bf16.msra.mxu0 %v8023
        %8111 = vmatprep.subr.bf16.mxu0 0
        %8112 = vmatpush1.bf16.msra.mxu0 %v8024
        %8113 = vmatprep.subr.bf16.mxu0 0
        %8114 = vmatpush1.bf16.msra.mxu0 %v8025
        %8115 = vmatprep.subr.bf16.mxu0 0
        %8116 = vmatpush1.bf16.msra.mxu0 %v8026
        %8117 = vmatprep.subr.bf16.mxu0 0
        %8118 = vmatpush1.bf16.msra.mxu0 %v8027
        %8119 = vmatprep.subr.bf16.mxu0 0
        %8120 = vmatpush1.bf16.msra.mxu0 %v8028
        %8121 = vmatprep.subr.bf16.mxu0 0
        %8122 = vmatpush1.bf16.msra.mxu0 %v8029
        %8123 = vmatprep.subr.bf16.mxu0 0
        %8124 = vmatpush1.bf16.msra.mxu0 %v8030
        %8125 = vmatprep.subr.bf16.mxu0 0
        %8126 = vmatpush1.bf16.msra.mxu0 %v8031
        %8127 = vmatprep.subr.bf16.mxu0 0
        %8128 = vmatpush1.bf16.msra.mxu0 0
        %8129 = vmatprep.subr.bf16.mxu0 0
        %8130 = vmatpush1.bf16.msra.mxu0 0
        %8131 = vmatprep.subr.bf16.mxu0 0
        %8132 = vmatpush1.bf16.msra.mxu0 0
        %8133 = vmatprep.subr.bf16.mxu0 0
        %8134 = vmatpush1.bf16.msra.mxu0 0
        %8135 = vmatprep.mubr.bf16.mxu0 %v8061
        %8136 = vmatmul.mubr.bf16.gmra.mrb[0].mxu0 %v7833
        %v8137 = vpop.f32.mrb[0].mxu0
        %v8138 = vadd.f32 %v8098, %v8137
        %v8139 = vpop.f32.mrb[0].mxu0
        %v8140 = vpop.f32.mrb[0].mxu0
        %v8141 = vpop.f32.mrb[0].mxu0
        %8142 = vdwg.mxu0
        %v8143 = vadd.f32 %v7554, %v8138
        %8144 = vmatprep.subr.bf16.mxu0 %v407
        %8145 = vmatpush1.bf16.msra.mxu0 %v406
        %8146 = vmatprep.subr.bf16.mxu0 0
        %8147 = vmatpush1.bf16.msra.mxu0 0
        %8148 = vmatprep.subr.bf16.mxu0 0
        %8149 = vmatpush1.bf16.msra.mxu0 0
        %8150 = vmatprep.subr.bf16.mxu0 0
        %8151 = vmatpush1.bf16.msra.mxu0 0
        %8152 = vmatprep.subr.bf16.mxu0 0
        %8153 = vmatpush1.bf16.msra.mxu0 0
        %8154 = vmatprep.subr.bf16.mxu0 0
        %8155 = vmatpush1.bf16.msra.mxu0 0
        %8156 = vmatprep.subr.bf16.mxu0 0
        %8157 = vmatpush1.bf16.msra.mxu0 0
        %8158 = vmatprep.subr.bf16.mxu0 0
        %8159 = vmatpush1.bf16.msra.mxu0 0
        %8160 = vmatprep.subr.bf16.mxu0 0
        %8161 = vmatpush1.bf16.msra.mxu0 0
        %8162 = vmatprep.subr.bf16.mxu0 0
        %8163 = vmatpush1.bf16.msra.mxu0 0
        %8164 = vmatprep.subr.bf16.mxu0 0
        %8165 = vmatpush1.bf16.msra.mxu0 0
        %8166 = vmatprep.subr.bf16.mxu0 0
        %8167 = vmatpush1.bf16.msra.mxu0 0
        %8168 = vmatprep.subr.bf16.mxu0 0
        %8169 = vmatpush1.bf16.msra.mxu0 0
        %8170 = vmatprep.subr.bf16.mxu0 0
        %8171 = vmatpush1.bf16.msra.mxu0 0
        %8172 = vmatprep.subr.bf16.mxu0 0
        %8173 = vmatpush1.bf16.msra.mxu0 0
        %8174 = vmatprep.subr.bf16.mxu0 0
        %8175 = vmatpush1.bf16.msra.mxu0 0
        %8176 = vmatprep.mubr.bf16.mxu0 0
        %8177 = vmatmul.mubr.bf16.gmra.mrb[0].mxu0 %v7735
        %v8178 = vpop.f32.mrb[0].mxu0
        %v8179 = vadd.f32 0.0, %v8178
        %v8180 = vpop.f32.mrb[0].mxu0
        %v8181 = vadd.f32 0.0, %v8180
        %v8182 = vpop.f32.mrb[0].mxu0
        %v8183 = vpop.f32.mrb[0].mxu0
        %8184 = vdwg.mxu0
        %8185 = vmatprep.subr.bf16.mxu0 %v409
        %8186 = vmatpush1.bf16.msra.mxu0 %v408
        %8187 = vmatprep.subr.bf16.mxu0 0
        %8188 = vmatpush1.bf16.msra.mxu0 0
        %8189 = vmatprep.subr.bf16.mxu0 0
        %8190 = vmatpush1.bf16.msra.mxu0 0
        %8191 = vmatprep.subr.bf16.mxu0 0
        %8192 = vmatpush1.bf16.msra.mxu0 0
        %8193 = vmatprep.subr.bf16.mxu0 0
        %8194 = vmatpush1.bf16.msra.mxu0 0
        %8195 = vmatprep.subr.bf16.mxu0 0
        %8196 = vmatpush1.bf16.msra.mxu0 0
        %8197 = vmatprep.subr.bf16.mxu0 0
        %8198 = vmatpush1.bf16.msra.mxu0 0
        %8199 = vmatprep.subr.bf16.mxu0 0
        %8200 = vmatpush1.bf16.msra.mxu0 0
        %8201 = vmatprep.subr.bf16.mxu0 0
        %8202 = vmatpush1.bf16.msra.mxu0 0
        %8203 = vmatprep.subr.bf16.mxu0 0
        %8204 = vmatpush1.bf16.msra.mxu0 0
        %8205 = vmatprep.subr.bf16.mxu0 0
        %8206 = vmatpush1.bf16.msra.mxu0 0
        %8207 = vmatprep.subr.bf16.mxu0 0
        %8208 = vmatpush1.bf16.msra.mxu0 0
        %8209 = vmatprep.subr.bf16.mxu0 0
        %8210 = vmatpush1.bf16.msra.mxu0 0
        %8211 = vmatprep.subr.bf16.mxu0 0
        %8212 = vmatpush1.bf16.msra.mxu0 0
        %8213 = vmatprep.subr.bf16.mxu0 0
        %8214 = vmatpush1.bf16.msra.mxu0 0
        %8215 = vmatprep.subr.bf16.mxu0 0
        %8216 = vmatpush1.bf16.msra.mxu0 0
        %8217 = vmatprep.mubr.bf16.mxu0 0
        %8218 = vmatmul.mubr.bf16.gmra.mrb[0].mxu0 %v7735
        %v8219 = vpop.f32.mrb[0].mxu0
        %v8220 = vadd.f32 0.0, %v8219
        %v8221 = vpop.f32.mrb[0].mxu0
        %v8222 = vadd.f32 0.0, %v8221
        %v8223 = vpop.f32.mrb[0].mxu0
        %v8224 = vpop.f32.mrb[0].mxu0
        %8225 = vdwg.mxu0
        %8226 = vmatprep.subr.bf16.mxu0 %v528
        %8227 = vmatpush1.bf16.msra.mxu0 %v527
        %8228 = vmatprep.subr.bf16.mxu0 0
        %8229 = vmatpush1.bf16.msra.mxu0 0
        %8230 = vmatprep.subr.bf16.mxu0 0
        %8231 = vmatpush1.bf16.msra.mxu0 0
        %8232 = vmatprep.subr.bf16.mxu0 0
        %8233 = vmatpush1.bf16.msra.mxu0 0
        %8234 = vmatprep.subr.bf16.mxu0 0
        %8235 = vmatpush1.bf16.msra.mxu0 0
        %8236 = vmatprep.subr.bf16.mxu0 0
        %8237 = vmatpush1.bf16.msra.mxu0 0
        %8238 = vmatprep.subr.bf16.mxu0 0
        %8239 = vmatpush1.bf16.msra.mxu0 0
        %8240 = vmatprep.subr.bf16.mxu0 0
        %8241 = vmatpush1.bf16.msra.mxu0 0
        %8242 = vmatprep.subr.bf16.mxu0 0
        %8243 = vmatpush1.bf16.msra.mxu0 0
        %8244 = vmatprep.subr.bf16.mxu0 0
        %8245 = vmatpush1.bf16.msra.mxu0 0
        %8246 = vmatprep.subr.bf16.mxu0 0
        %8247 = vmatpush1.bf16.msra.mxu0 0
        %8248 = vmatprep.subr.bf16.mxu0 0
        %8249 = vmatpush1.bf16.msra.mxu0 0
        %8250 = vmatprep.subr.bf16.mxu0 0
        %8251 = vmatpush1.bf16.msra.mxu0 0
        %8252 = vmatprep.subr.bf16.mxu0 0
        %8253 = vmatpush1.bf16.msra.mxu0 0
        %8254 = vmatprep.subr.bf16.mxu0 0
        %8255 = vmatpush1.bf16.msra.mxu0 0
        %8256 = vmatprep.subr.bf16.mxu0 0
        %8257 = vmatpush1.bf16.msra.mxu0 0
        %8258 = vmatprep.mubr.bf16.mxu0 0
        %8259 = vmatmul.mubr.bf16.gmra.mrb[0].mxu0 %v7146
        %v8260 = vpop.f32.mrb[0].mxu0
        %v8261 = vadd.f32 %v8179, %v8260
        %v8262 = vpop.f32.mrb[0].mxu0
        %v8263 = vadd.f32 %v8181, %v8262
        %v8264 = vpop.f32.mrb[0].mxu0
        %v8265 = vpop.f32.mrb[0].mxu0
        %8266 = vdwg.mxu0
        %8267 = vmatprep.subr.bf16.mxu0 %v530
        %8268 = vmatpush1.bf16.msra.mxu0 %v529
        %8269 = vmatprep.subr.bf16.mxu0 0
        %8270 = vmatpush1.bf16.msra.mxu0 0
        %8271 = vmatprep.subr.bf16.mxu0 0
        %8272 = vmatpush1.bf16.msra.mxu0 0
        %8273 = vmatprep.subr.bf16.mxu0 0
        %8274 = vmatpush1.bf16.msra.mxu0 0
        %8275 = vmatprep.subr.bf16.mxu0 0
        %8276 = vmatpush1.bf16.msra.mxu0 0
        %8277 = vmatprep.subr.bf16.mxu0 0
        %8278 = vmatpush1.bf16.msra.mxu0 0
        %8279 = vmatprep.subr.bf16.mxu0 0
        %8280 = vmatpush1.bf16.msra.mxu0 0
        %8281 = vmatprep.subr.bf16.mxu0 0
        %8282 = vmatpush1.bf16.msra.mxu0 0
        %8283 = vmatprep.subr.bf16.mxu0 0
        %8284 = vmatpush1.bf16.msra.mxu0 0
        %8285 = vmatprep.subr.bf16.mxu0 0
        %8286 = vmatpush1.bf16.msra.mxu0 0
        %8287 = vmatprep.subr.bf16.mxu0 0
        %8288 = vmatpush1.bf16.msra.mxu0 0
        %8289 = vmatprep.subr.bf16.mxu0 0
        %8290 = vmatpush1.bf16.msra.mxu0 0
        %8291 = vmatprep.subr.bf16.mxu0 0
        %8292 = vmatpush1.bf16.msra.mxu0 0
        %8293 = vmatprep.subr.bf16.mxu0 0
        %8294 = vmatpush1.bf16.msra.mxu0 0
        %8295 = vmatprep.subr.bf16.mxu0 0
        %8296 = vmatpush1.bf16.msra.mxu0 0
        %8297 = vmatprep.subr.bf16.mxu0 0
        %8298 = vmatpush1.bf16.msra.mxu0 0
        %8299 = vmatprep.mubr.bf16.mxu0 0
        %8300 = vmatmul.mubr.bf16.gmra.mrb[0].mxu0 %v7146
        %v8301 = vpop.f32.mrb[0].mxu0
        %v8302 = vadd.f32 %v8220, %v8301
        %v8303 = vpop.f32.mrb[0].mxu0
        %v8304 = vadd.f32 %v8222, %v8303
        %v8305 = vpop.f32.mrb[0].mxu0
        %v8306 = vpop.f32.mrb[0].mxu0
        %8307 = vdwg.mxu0
        %v8308 = vrot.slane %v4177, 7
        %v8309 = vrot.slane %v4178, 6
        %v8310 = vsel %vm373, %v8309, %v8308
        %v8311 = vrot.slane %v4179, 5
        %v8312 = vsel %vm376, %v8311, %v8310
        %v8313 = vrot.slane %v4180, 4
        %v8314 = vsel %vm379, %v8313, %v8312
        %v8315 = vrot.slane %v4181, 3
        %v8316 = vsel %vm382, %v8315, %v8314
        %v8317 = vrot.slane %v4182, 2
        %v8318 = vsel %vm385, %v8317, %v8316
        %v8319 = vrot.slane %v4183, 1
        %v8320 = vsel %vm388, %v8319, %v8318
        %v8321 = vsel %vm391, %v4184, %v8320
        %v8322 = vpack.c.b16 %v8321, %v8321
        %v8324 = vsel %vm414, %v8322, 0
        %8326 = vmatprep.subr.bf16.mxu0 %v653
        %8327 = vmatpush1.bf16.msra.mxu0 %v652
        %8328 = vmatprep.subr.bf16.mxu0 0
        %8329 = vmatpush1.bf16.msra.mxu0 0
        %8330 = vmatprep.subr.bf16.mxu0 0
        %8331 = vmatpush1.bf16.msra.mxu0 0
        %8332 = vmatprep.subr.bf16.mxu0 0
        %8333 = vmatpush1.bf16.msra.mxu0 0
        %8334 = vmatprep.subr.bf16.mxu0 0
        %8335 = vmatpush1.bf16.msra.mxu0 0
        %8336 = vmatprep.subr.bf16.mxu0 0
        %8337 = vmatpush1.bf16.msra.mxu0 0
        %8338 = vmatprep.subr.bf16.mxu0 0
        %8339 = vmatpush1.bf16.msra.mxu0 0
        %8340 = vmatprep.subr.bf16.mxu0 0
        %8341 = vmatpush1.bf16.msra.mxu0 0
        %8342 = vmatprep.subr.bf16.mxu0 0
        %8343 = vmatpush1.bf16.msra.mxu0 0
        %8344 = vmatprep.subr.bf16.mxu0 0
        %8345 = vmatpush1.bf16.msra.mxu0 0
        %8346 = vmatprep.subr.bf16.mxu0 0
        %8347 = vmatpush1.bf16.msra.mxu0 0
        %8348 = vmatprep.subr.bf16.mxu0 0
        %8349 = vmatpush1.bf16.msra.mxu0 0
        %8350 = vmatprep.subr.bf16.mxu0 0
        %8351 = vmatpush1.bf16.msra.mxu0 0
        %8352 = vmatprep.subr.bf16.mxu0 0
        %8353 = vmatpush1.bf16.msra.mxu0 0
        %8354 = vmatprep.subr.bf16.mxu0 0
        %8355 = vmatpush1.bf16.msra.mxu0 0
        %8356 = vmatprep.subr.bf16.mxu0 0
        %8357 = vmatpush1.bf16.msra.mxu0 0
        %8358 = vmatprep.mubr.bf16.mxu0 0
        %8359 = vmatmul.mubr.bf16.gmra.mrb[0].mxu0 %v8324
        %v8360 = vpop.f32.mrb[0].mxu0
        %v8361 = vadd.f32 0.0, %v8360
        %v8362 = vpop.f32.mrb[0].mxu0
        %v8363 = vadd.f32 0.0, %v8362
        %v8364 = vpop.f32.mrb[0].mxu0
        %v8365 = vpop.f32.mrb[0].mxu0
        %8366 = vdwg.mxu0
        %8367 = vmatprep.subr.bf16.mxu0 %v655
        %8368 = vmatpush1.bf16.msra.mxu0 %v654
        %8369 = vmatprep.subr.bf16.mxu0 0
        %8370 = vmatpush1.bf16.msra.mxu0 0
        %8371 = vmatprep.subr.bf16.mxu0 0
        %8372 = vmatpush1.bf16.msra.mxu0 0
        %8373 = vmatprep.subr.bf16.mxu0 0
        %8374 = vmatpush1.bf16.msra.mxu0 0
        %8375 = vmatprep.subr.bf16.mxu0 0
        %8376 = vmatpush1.bf16.msra.mxu0 0
        %8377 = vmatprep.subr.bf16.mxu0 0
        %8378 = vmatpush1.bf16.msra.mxu0 0
        %8379 = vmatprep.subr.bf16.mxu0 0
        %8380 = vmatpush1.bf16.msra.mxu0 0
        %8381 = vmatprep.subr.bf16.mxu0 0
        %8382 = vmatpush1.bf16.msra.mxu0 0
        %8383 = vmatprep.subr.bf16.mxu0 0
        %8384 = vmatpush1.bf16.msra.mxu0 0
        %8385 = vmatprep.subr.bf16.mxu0 0
        %8386 = vmatpush1.bf16.msra.mxu0 0
        %8387 = vmatprep.subr.bf16.mxu0 0
        %8388 = vmatpush1.bf16.msra.mxu0 0
        %8389 = vmatprep.subr.bf16.mxu0 0
        %8390 = vmatpush1.bf16.msra.mxu0 0
        %8391 = vmatprep.subr.bf16.mxu0 0
        %8392 = vmatpush1.bf16.msra.mxu0 0
        %8393 = vmatprep.subr.bf16.mxu0 0
        %8394 = vmatpush1.bf16.msra.mxu0 0
        %8395 = vmatprep.subr.bf16.mxu0 0
        %8396 = vmatpush1.bf16.msra.mxu0 0
        %8397 = vmatprep.subr.bf16.mxu0 0
        %8398 = vmatpush1.bf16.msra.mxu0 0
        %8399 = vmatprep.mubr.bf16.mxu0 0
        %8400 = vmatmul.mubr.bf16.gmra.mrb[0].mxu0 %v8324
        %v8401 = vpop.f32.mrb[0].mxu0
        %v8402 = vadd.f32 0.0, %v8401
        %v8403 = vpop.f32.mrb[0].mxu0
        %v8404 = vadd.f32 0.0, %v8403
        %v8405 = vpop.f32.mrb[0].mxu0
        %v8406 = vpop.f32.mrb[0].mxu0
        %8407 = vdwg.mxu0
        %v8408 = vadd.f32 %v8261, %v8361
        %v8409 = vadd.f32 %v8263, %v8363
        %v8410 = vadd.f32 %v8302, %v8402
        %v8411 = vadd.f32 %v8304, %v8404
        %v8412 = vadd.f32 %v8408, %v329
        %v8413 = vadd.f32 %v8409, %v333
        %v8414 = vadd.f32 %v8410, %v337
        %v8415 = vadd.f32 %v8411, %v341
        %v8416 = vmax.f32 %v8412, 0.0
        %v8417 = vmax.f32 %v8413, 0.0
        %v8418 = vmax.f32 %v8414, 0.0
        %v8419 = vmax.f32 %v8415, 0.0
        %v8420 = vpack.c.bf16 %v8416, %v8416
        %v8421 = vpack.c.bf16 %v8417, %v8417
        %v8422 = vpack.c.bf16 %v8418, %v8418
        %v8423 = vpack.c.bf16 %v8419, %v8419
        %s8424 = scalar_lea.vmem [#allocation6], 2912
        %v8425 = vld [vmem:[%s8424] sm:$0xf]
        %v8426 = vld [vmem:[%s8424 + $0x4] sm:$0xf]
        %v8427 = vld [vmem:[%s8424 + $0x8] sm:$0xf]
        %v8428 = vld [vmem:[%s8424 + $0xc] sm:$0xf]
        %v8429 = vld [vmem:[%s8424 + $0x10] sm:$0xf]
        %v8430 = vld [vmem:[%s8424 + $0x14] sm:$0xf]
        %v8431 = vld [vmem:[%s8424 + $0x18] sm:$0xf]
        %v8432 = vld [vmem:[%s8424 + $0x1c] sm:$0xf]
        %v8433 = vld [vmem:[%s8424 + $0x20] sm:$0xf]
        %v8434 = vld [vmem:[%s8424 + $0x24] sm:$0xf]
        %v8435 = vld [vmem:[%s8424 + $0x28] sm:$0xf]
        %v8436 = vld [vmem:[%s8424 + $0x2c] sm:$0xf]
        %v8437 = vld [vmem:[%s8424 + $0x30] sm:$0xf]
        %v8438 = vld [vmem:[%s8424 + $0x34] sm:$0xf]
        %v8439 = vld [vmem:[%s8424 + $0x38] sm:$0xf]
        %v8440 = vld [vmem:[%s8424 + $0x3c] sm:$0xf]
        %v8441 = vld [vmem:[%s8424 + $0x40] sm:$0xf]
        %v8442 = vld [vmem:[%s8424 + $0x44] sm:$0xf]
        %v8443 = vld [vmem:[%s8424 + $0x48] sm:$0xf]
        %v8444 = vld [vmem:[%s8424 + $0x4c] sm:$0xf]
        %v8445 = vld [vmem:[%s8424 + $0x50] sm:$0xf]
        %v8446 = vld [vmem:[%s8424 + $0x54] sm:$0xf]
        %v8447 = vld [vmem:[%s8424 + $0x58] sm:$0xf]
        %v8448 = vld [vmem:[%s8424 + $0x5c] sm:$0xf]
        %v8449 = vld [vmem:[%s8424 + $0x60] sm:$0xf]
        %v8450 = vld [vmem:[%s8424 + $0x64] sm:$0xf]
        %v8451 = vld [vmem:[%s8424 + $0x68] sm:$0xf]
        %v8452 = vld [vmem:[%s8424 + $0x6c] sm:$0xf]
        %v8453 = vld [vmem:[%s8424 + $0x70] sm:$0xf]
        %v8454 = vld [vmem:[%s8424 + $0x74] sm:$0xf]
        %v8455 = vld [vmem:[%s8424 + $0x78] sm:$0xf]
        %v8456 = vld [vmem:[%s8424 + $0x7c] sm:$0xf]
        %v8457 = vld [vmem:[%s8424 + $0x80] sm:$0xf]
        %v8458 = vld [vmem:[%s8424 + $0x84] sm:$0xf]
        %v8459 = vld [vmem:[%s8424 + $0x88] sm:$0xf]
        %v8460 = vld [vmem:[%s8424 + $0x8c] sm:$0xf]
        %v8461 = vld [vmem:[%s8424 + $0x90] sm:$0xf]
        %v8462 = vld [vmem:[%s8424 + $0x94] sm:$0xf]
        %v8463 = vld [vmem:[%s8424 + $0x98] sm:$0xf]
        %v8464 = vld [vmem:[%s8424 + $0x9c] sm:$0xf]
        %v8465 = vld [vmem:[%s8424 + $0xa0] sm:$0xf]
        %v8466 = vld [vmem:[%s8424 + $0xa4] sm:$0xf]
        %v8467 = vld [vmem:[%s8424 + $0xa8] sm:$0xf]
        %v8468 = vld [vmem:[%s8424 + $0xac] sm:$0xf]
        %v8469 = vld [vmem:[%s8424 + $0xb0] sm:$0xf]
        %v8470 = vld [vmem:[%s8424 + $0xb4] sm:$0xf]
        %v8471 = vld [vmem:[%s8424 + $0xb8] sm:$0xf]
        %v8472 = vld [vmem:[%s8424 + $0xbc] sm:$0xf]
        %v8473 = vld [vmem:[%s8424 + $0xc0] sm:$0xf]
        %v8474 = vld [vmem:[%s8424 + $0xc4] sm:$0xf]
        %v8475 = vld [vmem:[%s8424 + $0xc8] sm:$0xf]
        %v8476 = vld [vmem:[%s8424 + $0xcc] sm:$0xf]
        %v8477 = vld [vmem:[%s8424 + $0xd0] sm:$0xf]
        %v8478 = vld [vmem:[%s8424 + $0xd4] sm:$0xf]
        %v8479 = vld [vmem:[%s8424 + $0xd8] sm:$0xf]
        %v8480 = vld [vmem:[%s8424 + $0xdc] sm:$0xf]
        %v8537 = vunpack.c.l.b16 %v8425
        %v8538 = vunpack.c.l.b16 %v8426
        %v8539 = vunpack.c.l.b16 %v8427
        %v8540 = vunpack.c.l.b16 %v8428
        %v8541 = vunpack.c.l.b16 %v8429
        %v8542 = vunpack.c.l.b16 %v8430
        %v8543 = vunpack.c.l.b16 %v8431
        %v8544 = vunpack.c.l.b16 %v8432
        %v8545 = vunpack.c.l.b16 %v8433
        %v8546 = vunpack.c.l.b16 %v8434
        %v8547 = vunpack.c.l.b16 %v8435
        %v8548 = vunpack.c.l.b16 %v8436
        %v8549 = vunpack.c.l.b16 %v8437
        %v8550 = vunpack.c.l.b16 %v8438
        %v8551 = vunpack.c.l.b16 %v8439
        %v8552 = vunpack.c.l.b16 %v8440
        %v8553 = vunpack.c.l.b16 %v8441
        %v8554 = vunpack.c.l.b16 %v8442
        %v8555 = vunpack.c.l.b16 %v8443
        %v8556 = vunpack.c.l.b16 %v8444
        %v8557 = vunpack.c.l.b16 %v8445
        %v8558 = vunpack.c.l.b16 %v8446
        %v8559 = vunpack.c.l.b16 %v8447
        %v8560 = vunpack.c.l.b16 %v8448
        %v8561 = vunpack.c.l.b16 %v8449
        %v8562 = vunpack.c.l.b16 %v8450
        %v8563 = vunpack.c.l.b16 %v8451
        %v8564 = vunpack.c.l.b16 %v8452
        %v8565 = vunpack.c.l.b16 %v8453
        %v8566 = vunpack.c.l.b16 %v8454
        %v8567 = vunpack.c.l.b16 %v8455
        %v8568 = vunpack.c.l.b16 %v8456
        %v8569 = vunpack.c.l.b16 %v8457
        %v8570 = vunpack.c.l.b16 %v8458
        %v8571 = vunpack.c.l.b16 %v8459
        %v8572 = vunpack.c.l.b16 %v8460
        %v8573 = vunpack.c.l.b16 %v8461
        %v8574 = vunpack.c.l.b16 %v8462
        %v8575 = vunpack.c.l.b16 %v8463
        %v8576 = vunpack.c.l.b16 %v8464
        %v8577 = vunpack.c.l.b16 %v8465
        %v8578 = vunpack.c.l.b16 %v8466
        %v8579 = vunpack.c.l.b16 %v8467
        %v8580 = vunpack.c.l.b16 %v8468
        %v8581 = vunpack.c.l.b16 %v8469
        %v8582 = vunpack.c.l.b16 %v8470
        %v8583 = vunpack.c.l.b16 %v8471
        %v8584 = vunpack.c.l.b16 %v8472
        %v8585 = vunpack.c.l.b16 %v8473
        %v8586 = vunpack.c.l.b16 %v8474
        %v8587 = vunpack.c.l.b16 %v8475
        %v8588 = vunpack.c.l.b16 %v8476
        %v8589 = vunpack.c.l.b16 %v8477
        %v8590 = vunpack.c.l.b16 %v8478
        %v8591 = vunpack.c.l.b16 %v8479
        %v8592 = vunpack.c.l.b16 %v8480
        %v8593 = vpack.c.b16 %v8538, %v8537
        %v8594 = vpack.c.b16 %v8540, %v8539
        %v8595 = vpack.c.b16 %v8542, %v8541
        %v8596 = vpack.c.b16 %v8544, %v8543
        %v8597 = vpack.c.b16 %v8546, %v8545
        %v8598 = vpack.c.b16 %v8548, %v8547
        %v8599 = vpack.c.b16 %v8550, %v8549
        %v8600 = vpack.c.b16 %v8552, %v8551
        %v8601 = vpack.c.b16 %v8554, %v8553
        %v8602 = vpack.c.b16 %v8556, %v8555
        %v8603 = vpack.c.b16 %v8558, %v8557
        %v8604 = vpack.c.b16 %v8560, %v8559
        %v8605 = vpack.c.b16 %v8562, %v8561
        %v8606 = vpack.c.b16 %v8564, %v8563
        %v8607 = vpack.c.b16 %v8566, %v8565
        %v8608 = vpack.c.b16 %v8568, %v8567
        %v8609 = vpack.c.b16 %v8570, %v8569
        %v8610 = vpack.c.b16 %v8572, %v8571
        %v8611 = vpack.c.b16 %v8574, %v8573
        %v8612 = vpack.c.b16 %v8576, %v8575
        %v8613 = vpack.c.b16 %v8578, %v8577
        %v8614 = vpack.c.b16 %v8580, %v8579
        %v8615 = vpack.c.b16 %v8582, %v8581
        %v8616 = vpack.c.b16 %v8584, %v8583
        %v8617 = vpack.c.b16 %v8586, %v8585
        %v8618 = vpack.c.b16 %v8588, %v8587
        %v8619 = vpack.c.b16 %v8590, %v8589
        %v8620 = vpack.c.b16 %v8592, %v8591
        %v8650 = vsel %vm1322, %v8423, 0
        %8652 = vmatprep.subr.bf16.mxu0 0
        %8653 = vmatpush1.bf16.msra.mxu0 %v8593
        %8654 = vmatprep.subr.bf16.mxu0 0
        %8655 = vmatpush1.bf16.msra.mxu0 %v8594
        %8656 = vmatprep.subr.bf16.mxu0 0
        %8657 = vmatpush1.bf16.msra.mxu0 %v8595
        %8658 = vmatprep.subr.bf16.mxu0 0
        %8659 = vmatpush1.bf16.msra.mxu0 %v8596
        %8660 = vmatprep.subr.bf16.mxu0 0
        %8661 = vmatpush1.bf16.msra.mxu0 %v8597
        %8662 = vmatprep.subr.bf16.mxu0 0
        %8663 = vmatpush1.bf16.msra.mxu0 %v8598
        %8664 = vmatprep.subr.bf16.mxu0 0
        %8665 = vmatpush1.bf16.msra.mxu0 %v8599
        %8666 = vmatprep.subr.bf16.mxu0 0
        %8667 = vmatpush1.bf16.msra.mxu0 %v8600
        %8668 = vmatprep.subr.bf16.mxu0 0
        %8669 = vmatpush1.bf16.msra.mxu0 %v8601
        %8670 = vmatprep.subr.bf16.mxu0 0
        %8671 = vmatpush1.bf16.msra.mxu0 %v8602
        %8672 = vmatprep.subr.bf16.mxu0 0
        %8673 = vmatpush1.bf16.msra.mxu0 %v8603
        %8674 = vmatprep.subr.bf16.mxu0 0
        %8675 = vmatpush1.bf16.msra.mxu0 %v8604
        %8676 = vmatprep.subr.bf16.mxu0 0
        %8677 = vmatpush1.bf16.msra.mxu0 %v8605
        %8678 = vmatprep.subr.bf16.mxu0 0
        %8679 = vmatpush1.bf16.msra.mxu0 %v8606
        %8680 = vmatprep.subr.bf16.mxu0 0
        %8681 = vmatpush1.bf16.msra.mxu0 %v8607
        %8682 = vmatprep.subr.bf16.mxu0 0
        %8683 = vmatpush1.bf16.msra.mxu0 %v8608
        %8684 = vmatprep.mubr.bf16.mxu0 %v8421
        %8685 = vmatmul.mubr.bf16.gmra.mrb[0].mxu0 %v8420
        %v8686 = vpop.f32.mrb[0].mxu0
        %v8687 = vadd.f32 0.0, %v8686
        %v8688 = vpop.f32.mrb[0].mxu0
        %v8689 = vpop.f32.mrb[0].mxu0
        %v8690 = vpop.f32.mrb[0].mxu0
        %8691 = vdwg.mxu0
        %8692 = vmatprep.subr.bf16.mxu0 0
        %8693 = vmatpush1.bf16.msra.mxu0 %v8609
        %8694 = vmatprep.subr.bf16.mxu0 0
        %8695 = vmatpush1.bf16.msra.mxu0 %v8610
        %8696 = vmatprep.subr.bf16.mxu0 0
        %8697 = vmatpush1.bf16.msra.mxu0 %v8611
        %8698 = vmatprep.subr.bf16.mxu0 0
        %8699 = vmatpush1.bf16.msra.mxu0 %v8612
        %8700 = vmatprep.subr.bf16.mxu0 0
        %8701 = vmatpush1.bf16.msra.mxu0 %v8613
        %8702 = vmatprep.subr.bf16.mxu0 0
        %8703 = vmatpush1.bf16.msra.mxu0 %v8614
        %8704 = vmatprep.subr.bf16.mxu0 0
        %8705 = vmatpush1.bf16.msra.mxu0 %v8615
        %8706 = vmatprep.subr.bf16.mxu0 0
        %8707 = vmatpush1.bf16.msra.mxu0 %v8616
        %8708 = vmatprep.subr.bf16.mxu0 0
        %8709 = vmatpush1.bf16.msra.mxu0 %v8617
        %8710 = vmatprep.subr.bf16.mxu0 0
        %8711 = vmatpush1.bf16.msra.mxu0 %v8618
        %8712 = vmatprep.subr.bf16.mxu0 0
        %8713 = vmatpush1.bf16.msra.mxu0 %v8619
        %8714 = vmatprep.subr.bf16.mxu0 0
        %8715 = vmatpush1.bf16.msra.mxu0 %v8620
        %8716 = vmatprep.subr.bf16.mxu0 0
        %8717 = vmatpush1.bf16.msra.mxu0 0
        %8718 = vmatprep.subr.bf16.mxu0 0
        %8719 = vmatpush1.bf16.msra.mxu0 0
        %8720 = vmatprep.subr.bf16.mxu0 0
        %8721 = vmatpush1.bf16.msra.mxu0 0
        %8722 = vmatprep.subr.bf16.mxu0 0
        %8723 = vmatpush1.bf16.msra.mxu0 0
        %8724 = vmatprep.mubr.bf16.mxu0 %v8650
        %8725 = vmatmul.mubr.bf16.gmra.mrb[0].mxu0 %v8422
        %v8726 = vpop.f32.mrb[0].mxu0
        %v8727 = vadd.f32 %v8687, %v8726
        %v8728 = vpop.f32.mrb[0].mxu0
        %v8729 = vpop.f32.mrb[0].mxu0
        %v8730 = vpop.f32.mrb[0].mxu0
        %8731 = vdwg.mxu0
        %v8732 = vadd.f32 %v8143, %v8727
        %v8734 = vlaneseq
        %v8735 = vshrl.u32 %v8734, 7
        %v8736 = vsub.s32 0, %v8735
        %v8737 = vrot.slane %v346, %v8736
        %v8739 = vadd.f32 %v8732, %v8737
        %8740 = vst [vmem:[%s298] sm:$0xff] %v8739
        %p8741 = scmp.lt.s32.totalorder %s21, 1
        %s8742 = scalar_select %p8741, %s21, 1
        %s8743 = smul.addr %s8742, 8
        %s8744 = scalar_lea.vmem %s5, %s8743
        // Predicated region
        $region61: #{cnn_lstm_forward.3} parent=39 // pred_check
          %p8745 = pneg %p149
        $region62: #{cnn_lstm_forward.3} parent=39 // pred_check_branch
          %8747 = sbr.rel (%p8745) target = $region64
        $region63: #{cnn_lstm_forward.3} parent=39 // pred_region
          _
        $region64: #{cnn_lstm_forward.3} parent=39 // pred_fallthru
          _
      $region40: #{cnn_lstm_forward.3} parent=5 // pred_fallthru
        _
      %p8748 = scmp.le.s32.totalorder 2, %s16
      // Predicated region
      $region65: #{cnn_lstm_forward.3} parent=5 // pred_check
        %p8749 = pneg %p8748
      $region66: #{cnn_lstm_forward.3} parent=5 // pred_check_branch
        %8751 = sbr.rel (%p8749) target = $region68
      $region67: #{cnn_lstm_forward.3} parent=5 // pred_region
        %s8752 = ssub.s32 %s16, 2
        // Predicated region
        $region69: #{cnn_lstm_forward.3} parent=67 // pred_check
          %p8753 = pneg %p155
        $region70: #{cnn_lstm_forward.3} parent=67 // pred_check_branch
          %8755 = sbr.rel (%p8753) target = $region72
        $region71: #{cnn_lstm_forward.3} parent=67 // pred_region
          %p8756 = scmp.lt.s32.totalorder %s22, 1
          %s8757 = scalar_select %p8756, %s22, 1
          %s8758 = smul.addr %s8757, 8
          %s8759 = scalar_lea.vmem %s5, %s8758
        $region72: #{cnn_lstm_forward.3} parent=67 // pred_fallthru
          _
      $region68: #{cnn_lstm_forward.3} parent=5 // pred_fallthru
        _
    $region6: #{cnn_lstm_forward.3} parent=1 // loop_footer
      %s20 = sadd.s32 1, %s16
    $region7: #{cnn_lstm_forward.3} parent=1 // loop_footer_branch
      %15 = sbr.rel target = $region3
    $region8: #{cnn_lstm_forward.3} parent=1 // loop_exit
      _
    %8760 = vsyncpa [#allocation3], 1
    %s8761 = scalar_lea.sflag [#allocation3], 1
    %8762 = vsyncpa %s8761, 1
    %8763 = vsyncpa [#allocation5], 1
    %8764 = vsyncpa [#allocation8], 1

</llo_original>
